<compile_context>
chip_gen: v6e
topology: v6e:2x2x1
jax: 0.10.0
libtpu: 0.0.40
codegen_flags: <defaults>
</compile_context>

<pallas_src>
import functools

import jax
import jax.numpy as jnp
from jax.experimental import pallas as pl
from jax.experimental.pallas import tpu as pltpu

NUM_CLASSES = 10
LAYER_PLANES = (16, 32, 64)
LAYER_STRIDES = (1, 2, 2)
FC_PAD = 128                       # lane-dense logits, sliced to NUM_CLASSES outside
VMEM_LIMIT = 8 * 1024 * 1024       # actual need < 1 MiB; keep well under v7x's 64 MiB


def _round_up(x, m):
    return (x + m - 1) // m * m


# ----------------------------- Pallas kernels -----------------------------

def _conv_matmul_kernel(p_ref, w_ref, shift_ref, o_ref):
    # out = relu(patches @ W_bnfolded + shift); single K block (no reduction grid axis).
    y = jnp.dot(p_ref[...], w_ref[...], preferred_element_type=jnp.float32)
    o_ref[...] = jnp.maximum(y + shift_ref[...], 0.0).astype(o_ref.dtype)


def _conv3x3_same(out1_f32, w2_ref, buf_ref, ho, wo, c1, pad_top):
    """3x3 / stride-1 / pad-1 conv of the VMEM-resident activation of ONE image.

    out1_f32: [ho*wo, c1] f32 (flattened rows).  In-kernel im2col: stage out1 into a
    zero-margined f32 VMEM buffer so every tap is a plain row-slice read; only the
    left/right column wrap needs a mask (the vertical margins are zero).
    """
    m1 = ho * wo
    c2 = w2_ref.shape[1]
    buf_ref[...] = jnp.zeros_like(buf_ref)                 # zero margins (and interior)
    buf_ref[pad_top:pad_top + m1, :] = out1_f32            # aligned interior store

    col = jax.lax.broadcasted_iota(jnp.int32, (m1, 1), 0) % wo
    not_left = col >= 1            # tap dx-1 == -1 is invalid at w == 0
    not_right = col < wo - 1       # tap dx-1 == +1 is invalid at w == wo-1

    acc = jnp.zeros((m1, c2), jnp.float32)
    for t in range(9):
        dy, dx = t // 3, t % 3
        off = pad_top + (dy - 1) * wo + (dx - 1)
        win = buf_ref[off:off + m1, :]                     # [m1, c1] f32 (shifted rows)
        if dx == 0:
            win = jnp.where(not_left, win, 0.0)
        elif dx == 2:
            win = jnp.where(not_right, win, 0.0)
        acc = acc + jnp.dot(win.astype(jnp.bfloat16),
                            w2_ref[t * c1:(t + 1) * c1, :],
                            preferred_element_type=jnp.float32)
    return acc


def _block_identity_kernel(p1_ref, w1_ref, s1_ref, w2_ref, s2_ref, res_ref,
                           o_ref, buf_ref, *, ho, wo, c1, pad_top):
    # One BasicBlock (stride 1, identity shortcut); one image per grid step.
    out1 = jnp.dot(p1_ref[0], w1_ref[...], preferred_element_type=jnp.float32)
    out1 = jnp.maximum(out1 + s1_ref[...], 0.0)            # relu(bn1(conv1))  [m1, c1]
    y = _conv3x3_same(out1, w2_ref, buf_ref, ho, wo, c1, pad_top) + s2_ref[...]
    y = y + res_ref[0].astype(jnp.float32)                 # identity shortcut
    o_ref[0] = jnp.maximum(y, 0.0).astype(o_ref.dtype)


def _block_downsample_kernel(p1_ref, w1_ref, s1_ref, w2_ref, s2_ref,
                             xs_ref, wd_ref, sd_ref, o_ref, buf_ref,
                             *, ho, wo, c1, pad_top):
    # One BasicBlock (strided) with the 1x1 downsample conv + BN fused in the epilogue.
    out1 = jnp.dot(p1_ref[0], w1_ref[...], preferred_element_type=jnp.float32)
    out1 = jnp.maximum(out1 + s1_ref[...], 0.0)
    y = _conv3x3_same(out1, w2_ref, buf_ref, ho, wo, c1, pad_top) + s2_ref[...]
    ident = jnp.dot(xs_ref[0], wd_ref[...], preferred_element_type=jnp.float32)
    y = y + ident + sd_ref[...]
    o_ref[0] = jnp.maximum(y, 0.0).astype(o_ref.dtype)


def _avgpool_fc_kernel(x_ref, w_ref, b_ref, o_ref):
    # x: [N, H*W, C] -> global average pool -> [N, C] -> FC (lane-padded to 128 cols).
    pooled = jnp.mean(x_ref[...].astype(jnp.float32), axis=1)
    o_ref[...] = jnp.dot(pooled.astype(jnp.bfloat16), w_ref[...],
                         preferred_element_type=jnp.float32) + b_ref[...]


# ----------------------------- im2col glue (plain JAX, compact channels) ---------------

def im2col(x_nhwc, k, stride, padding, k_pad):
    """im2col with compact channels; K padded once to `k_pad` via an extra zero slab."""
    N, H, W, C = x_nhwc.shape
    xp = jnp.pad(x_nhwc, ((0, 0), (padding, padding), (padding, padding), (0, 0)))
    Ho = (H + 2 * padding - k) // stride + 1
    Wo = (W + 2 * padding - k) // stride + 1
    cols = []
    for i in range(k):
        for j in range(k):
            cols.append(xp[:, i:i + Ho * stride:stride, j:j + Wo * stride:stride, :])
    if k_pad > k * k * C:
        cols.append(jnp.zeros((N, Ho, Wo, k_pad - k * k * C), x_nhwc.dtype))
    patches = jnp.concatenate(cols, axis=-1)               # [N, Ho, Wo, k_pad]
    return patches.reshape(N, Ho * Wo, k_pad), (N, Ho, Wo)


# ----------------------------- Pallas wrappers -----------------------------

def stem_conv(x_nhwc, p):
    # relu(bn1(conv1(x))): XLA im2col (K padded 27->128) + one fused matmul kernel.
    Kp, C = p["w"].shape
    patches, (N, Ho, Wo) = im2col(x_nhwc, 3, 1, 1, Kp)
    M = N * Ho * Wo
    patches = patches.reshape(M, Kp)
    tm = 256 if M % 256 == 0 else (128 if M % 128 == 0 else M)   # >=2 parallel blocks
    out = pl.pallas_call(
        _conv_matmul_kernel,
        out_shape=jax.ShapeDtypeStruct((M, C), jnp.bfloat16),
        grid_spec=pltpu.PrefetchScalarGridSpec(
            num_scalar_prefetch=0,
            grid=(M // tm,),
            in_specs=[pl.BlockSpec((tm, Kp), lambda i: (i, 0)),
                      pl.BlockSpec((Kp, C), lambda i: (0, 0)),
                      pl.BlockSpec((1, C), lambda i: (0, 0))],
            out_specs=pl.BlockSpec((tm, C), lambda i: (i, 0)),
        ),
        compiler_params=pltpu.CompilerParams(
            dimension_semantics=("parallel",), vmem_limit_bytes=VMEM_LIMIT),
    )(patches, p["w"], p["shift"])
    return out.reshape(N, Ho, Wo, C)


def basic_block(x_nhwc, blk, stride):
    """Whole BasicBlock in one pallas_call, gridded over the batch (parallel axis)."""
    N, H, W, Cin = x_nhwc.shape
    p1, p2 = blk["conv1"], blk["conv2"]
    K1p = p1["w"].shape[0]
    C = p2["w"].shape[1]                                    # planes (= conv1/conv2 out)
    patches1, (_, Ho, Wo) = im2col(x_nhwc, 3, stride, 1, K1p)
    M1 = Ho * Wo
    pad_top = _round_up(Wo + 1, 8)
    buf_rows = _round_up(pad_top + M1 + Wo + 1, 8)

    in_arrays = [patches1, p1["w"], p1["shift"], p2["w"], p2["shift"]]
    in_specs = [
        pl.BlockSpec((1, M1, K1p), lambda n: (n, 0, 0)),
        pl.BlockSpec(p1["w"].shape, lambda n: (0, 0)),
        pl.BlockSpec((1, C), lambda n: (0, 0)),
        pl.BlockSpec(p2["w"].shape, lambda n: (0, 0)),
        pl.BlockSpec((1, C), lambda n: (0, 0)),
    ]

    if blk["downsample"] is not None:
        pd = blk["downsample"]
        xs = x_nhwc[:, ::stride, ::stride, :].reshape(N, M1, Cin)
        kernel = functools.partial(_block_downsample_kernel,
                                   ho=Ho, wo=Wo, c1=C, pad_top=pad_top)
        in_arrays += [xs, pd["w"], pd["shift"]]
        in_specs += [pl.BlockSpec((1, M1, Cin), lambda n: (n, 0, 0)),
                     pl.BlockSpec(pd["w"].shape, lambda n: (0, 0)),
                     pl.BlockSpec((1, C), lambda n: (0, 0))]
    else:
        res = x_nhwc.reshape(N, M1, Cin)                    # Cin == C here
        kernel = functools.partial(_block_identity_kernel,
                                   ho=Ho, wo=Wo, c1=C, pad_top=pad_top)
        in_arrays += [res]
        in_specs += [pl.BlockSpec((1, M1, C), lambda n: (n, 0, 0))]

    out = pl.pallas_call(
        kernel,
        out_shape=jax.ShapeDtypeStruct((N, M1, C), jnp.bfloat16),
        grid_spec=pltpu.PrefetchScalarGridSpec(
            num_scalar_prefetch=0,
            grid=(N,),
            in_specs=in_specs,
            out_specs=pl.BlockSpec((1, M1, C), lambda n: (n, 0, 0)),
            scratch_shapes=[pltpu.VMEM((buf_rows, C), jnp.float32)],
        ),
        compiler_params=pltpu.CompilerParams(
            dimension_semantics=("parallel",), vmem_limit_bytes=VMEM_LIMIT),
    )(*in_arrays)
    return out.reshape(N, Ho, Wo, C)


def avgpool_fc(x_nhwc, fc_w, fc_b):
    N, H, W, C = x_nhwc.shape
    x = x_nhwc.reshape(N, H * W, C)
    return pl.pallas_call(
        _avgpool_fc_kernel,
        out_shape=jax.ShapeDtypeStruct((N, FC_PAD), jnp.float32),
        grid_spec=pltpu.PrefetchScalarGridSpec(
            num_scalar_prefetch=0,
            grid=(1,),
            in_specs=[pl.BlockSpec((N, H * W, C), lambda i: (0, 0, 0)),
                      pl.BlockSpec((C, FC_PAD), lambda i: (0, 0)),
                      pl.BlockSpec((1, FC_PAD), lambda i: (0, 0))],
            out_specs=pl.BlockSpec((N, FC_PAD), lambda i: (0, 0)),
        ),
        compiler_params=pltpu.CompilerParams(
            dimension_semantics=("arbitrary",), vmem_limit_bytes=VMEM_LIMIT),
    )(x, fc_w, fc_b)


# ----------------------------- parameter construction -----------------------------

def _conv_bn_params(key, cin, cout, k, conv_bias=False, k_pad=None, eps=1e-5):
    kw_, kb_ = jax.random.split(key)
    w = jax.random.normal(kw_, (cout, cin, k, k), jnp.float32) * 0.1
    b = jax.random.normal(kb_, (cout,), jnp.float32) * 0.1 if conv_bias else None
    # eval-mode BN with default (PyTorch-init) running stats, folded into the weights
    gamma = jnp.ones((cout,), jnp.float32)
    beta = jnp.zeros((cout,), jnp.float32)
    mean = jnp.zeros((cout,), jnp.float32)
    var = jnp.ones((cout,), jnp.float32)
    scale = gamma / jnp.sqrt(var + eps)
    shift = beta - scale * mean
    if b is not None:
        shift = shift + scale * b
    wt = jnp.transpose(w, (2, 3, 1, 0)) * scale[None, None, None, :]   # [k,k,cin,cout]
    w_mat = wt.reshape(k * k * cin, cout)
    if k_pad is not None and k_pad > w_mat.shape[0]:
        w_mat = jnp.pad(w_mat, ((0, k_pad - w_mat.shape[0]), (0, 0)))
    return {"w": w_mat.astype(jnp.bfloat16), "shift": shift.reshape(1, cout)}


def build_params(key, layers=(1, 1, 1), num_classes=10):
    params = {}
    keys = jax.random.split(key, 32)
    ki = iter(keys)

    # stem: Conv2d(3,16,3,s=1,p=1,bias=True) + BN(16); K: 27 -> 128
    params["stem"] = _conv_bn_params(next(ki), 3, 16, 3, conv_bias=True,
                                     k_pad=_round_up(9 * 3, 128))

    inplanes = 16
    for li, (planes, nblocks, stride0) in enumerate(
            zip(LAYER_PLANES, layers, LAYER_STRIDES), start=1):
        blocks = []
        for b in range(nblocks):
            stride = stride0 if b == 0 else 1
            blk = {
                # conv1 consumes XLA im2col patches -> K padded to a multiple of 128
                "conv1": _conv_bn_params(next(ki), inplanes, planes, 3,
                                         k_pad=_round_up(9 * inplanes, 128)),
                # conv2's im2col runs in-kernel -> compact [9*planes, planes]
                "conv2": _conv_bn_params(next(ki), planes, planes, 3),
                "downsample": (_conv_bn_params(next(ki), inplanes, planes, 1)
                               if (stride != 1 or inplanes != planes) else None),
            }
            blocks.append(blk)
            inplanes = planes
        params[f"layer{li}"] = blocks

    kfw, kfb = jax.random.split(next(ki))
    fc_w = jax.random.normal(kfw, (64, num_classes), jnp.float32) * 0.1
    fc_b = jax.random.normal(kfb, (num_classes,), jnp.float32) * 0.1
    params["fc_w"] = (jnp.zeros((64, FC_PAD), jnp.float32)
                      .at[:, :num_classes].set(fc_w).astype(jnp.bfloat16))
    params["fc_b"] = jnp.zeros((1, FC_PAD), jnp.float32).at[0, :num_classes].set(fc_b)
    return params


# ----------------------------- forward pass -----------------------------

@jax.jit
def resnet_forward(x_nchw, params):
    # NCHW -> NHWC, bf16 activations at their TRUE channel count (f32 accumulate in-kernel)
    x = jnp.transpose(x_nchw, (0, 2, 3, 1)).astype(jnp.bfloat16)

    x = stem_conv(x, params["stem"])                        # relu(bn1(conv1(x)))
    for li, name in enumerate(("layer1", "layer2", "layer3")):
        for bi, blk in enumerate(params[name]):
            stride = LAYER_STRIDES[li] if bi == 0 else 1    # static per trace
            x = basic_block(x, blk, stride)

    logits = avgpool_fc(x, params["fc_w"], params["fc_b"])  # [N, 128] lane-padded
    return logits[:, :NUM_CLASSES]


# ----------------------------- main -----------------------------

if __name__ == "__main__":
    key = jax.random.PRNGKey(0)
    k_in, k_par = jax.random.split(key)

    # CIFAR-like input: batch=2, channels=3, spatial=16x16 (NCHW, PyTorch convention)
    x = jax.random.normal(k_in, (2, 3, 16, 16), jnp.float32)
    params = build_params(k_par, layers=(1, 1, 1), num_classes=NUM_CLASSES)

    out = resnet_forward(x, params)
    out = jax.block_until_ready(out)
    assert out.shape == (2, NUM_CLASSES), out.shape
    assert bool(jnp.all(jnp.isfinite(out)))
    print("KERNEL_OK")
</pallas_src>

<mosaic_0001>
module attributes {stable_mosaic.version = 11 : i64} {
  func.func @_conv_matmul_kernel(%arg0: i32, %arg1: memref<256x128xbf16, #tpu.memory_space<vmem>>, %arg2: memref<128x16xbf16, #tpu.memory_space<vmem>>, %arg3: memref<1x16xf32, #tpu.memory_space<vmem>>, %arg4: memref<256x16xbf16, #tpu.memory_space<vmem>>) attributes {dimension_semantics = [#tpu.dimension_semantics<parallel>], iteration_bounds = array<i64: 2>, scalar_prefetch = 0 : i64, scratch_operands = 0 : i64, tpu.core_type = #tpu.core_type<tc>, window_params = [{transform_indices = @transform_0, window_bounds = array<i64: 256, 128>}, {pipeline_mode = #tpu.pipeline_mode<synchronous>, transform_indices = @transform_1, window_bounds = array<i64: 128, 16>}, {pipeline_mode = #tpu.pipeline_mode<synchronous>, transform_indices = @transform_2, window_bounds = array<i64: 1, 16>}, {transform_indices = @transform_3, window_bounds = array<i64: 256, 16>}]} {
    %c0 = arith.constant 0 : index
    %c0_0 = arith.constant 0 : index
    %0 = vector.load %arg1[%c0, %c0_0] : memref<256x128xbf16, #tpu.memory_space<vmem>>, vector<256x128xbf16>
    %c0_1 = arith.constant 0 : index
    %c0_2 = arith.constant 0 : index
    %1 = vector.load %arg2[%c0_1, %c0_2] : memref<128x16xbf16, #tpu.memory_space<vmem>>, vector<128x16xbf16>
    %cst = arith.constant dense<0.000000e+00> : vector<256x16xf32>
    %2 = tpu.matmul %0, %1, %cst {dimension_numbers = #tpu.dot_dimension_numbers<[1], [0], [0], [1], [0, 0, 1, 1], [], []>} : vector<256x128xbf16>, vector<128x16xbf16>, vector<256x16xf32> -> vector<256x16xf32>
    %c0_3 = arith.constant 0 : index
    %c0_4 = arith.constant 0 : index
    %3 = vector.load %arg3[%c0_3, %c0_4] : memref<1x16xf32, #tpu.memory_space<vmem>>, vector<1x16xf32>
    %4 = vector.broadcast %3 : vector<1x16xf32> to vector<256x16xf32>
    %5 = arith.addf %2, %4 : vector<256x16xf32>
    %cst_5 = arith.constant 0.000000e+00 : f32
    %6 = vector.broadcast %cst_5 : f32 to vector<256x16xf32>
    %7 = arith.maximumf %5, %6 : vector<256x16xf32>
    %8 = arith.truncf %7 : vector<256x16xf32> to vector<256x16xbf16>
    %c0_6 = arith.constant 0 : index
    %c0_7 = arith.constant 0 : index
    %9 = vector.load %arg4[%c0_6, %c0_7] : memref<256x16xbf16, #tpu.memory_space<vmem>>, vector<256x16xbf16>
    tpu.vector_store %arg4[%c0_6, %c0_7], %8 {strides = array<i32>} : memref<256x16xbf16, #tpu.memory_space<vmem>>, vector<256x16xbf16>,
    return
  }
  func.func @transform_0(%arg0: i32) -> (i32, i32) {
    %c0_i32 = arith.constant 0 : i32
    %c0_i32_0 = arith.constant 0 : i32
    return %arg0, %c0_i32 : i32, i32
  }
  func.func @transform_1(%arg0: i32) -> (i32, i32) {
    %c0_i32 = arith.constant 0 : i32
    %c0_i32_0 = arith.constant 0 : i32
    %c0_i32_1 = arith.constant 0 : i32
    return %c0_i32, %c0_i32_0 : i32, i32
  }
  func.func @transform_2(%arg0: i32) -> (i32, i32) {
    %c0_i32 = arith.constant 0 : i32
    %c0_i32_0 = arith.constant 0 : i32
    %c0_i32_1 = arith.constant 0 : i32
    return %c0_i32, %c0_i32_0 : i32, i32
  }
  func.func @transform_3(%arg0: i32) -> (i32, i32) {
    %c0_i32 = arith.constant 0 : i32
    %c0_i32_0 = arith.constant 0 : i32
    return %arg0, %c0_i32 : i32, i32
  }
}

module attributes {stable_mosaic.version = 11 : i64} {
  func.func @_block_identity_kernel(%arg0: i32, %arg1: memref<1x256x256xbf16, #tpu.memory_space<vmem>>, %arg2: memref<256x16xbf16, #tpu.memory_space<vmem>>, %arg3: memref<1x16xf32, #tpu.memory_space<vmem>>, %arg4: memref<144x16xbf16, #tpu.memory_space<vmem>>, %arg5: memref<1x16xf32, #tpu.memory_space<vmem>>, %arg6: memref<1x256x16xbf16, #tpu.memory_space<vmem>>, %arg7: memref<1x256x16xbf16, #tpu.memory_space<vmem>>, %arg8: memref<304x16xf32, #tpu.memory_space<vmem>>) attributes {dimension_semantics = [#tpu.dimension_semantics<parallel>], iteration_bounds = array<i64: 2>, scalar_prefetch = 0 : i64, scratch_operands = 1 : i64, tpu.core_type = #tpu.core_type<tc>, window_params = [{transform_indices = @transform_0, window_bounds = array<i64: 1, 256, 256>}, {pipeline_mode = #tpu.pipeline_mode<synchronous>, transform_indices = @transform_1, window_bounds = array<i64: 256, 16>}, {pipeline_mode = #tpu.pipeline_mode<synchronous>, transform_indices = @transform_2, window_bounds = array<i64: 1, 16>}, {pipeline_mode = #tpu.pipeline_mode<synchronous>, transform_indices = @transform_3, window_bounds = array<i64: 144, 16>}, {pipeline_mode = #tpu.pipeline_mode<synchronous>, transform_indices = @transform_4, window_bounds = array<i64: 1, 16>}, {transform_indices = @transform_5, window_bounds = array<i64: 1, 256, 16>}, {transform_indices = @transform_6, window_bounds = array<i64: 1, 256, 16>}]} {
    %c0 = arith.constant 0 : index
    %c0_0 = arith.constant 0 : index
    %c0_1 = arith.constant 0 : index
    %0 = vector.load %arg1[%c0, %c0_0, %c0_1] : memref<1x256x256xbf16, #tpu.memory_space<vmem>>, vector<1x256x256xbf16>
    %1 = vector.shape_cast %0 : vector<1x256x256xbf16> to vector<256x256xbf16>
    %c0_2 = arith.constant 0 : index
    %c0_3 = arith.constant 0 : index
    %2 = vector.load %arg2[%c0_2, %c0_3] : memref<256x16xbf16, #tpu.memory_space<vmem>>, vector<256x16xbf16>
    %cst = arith.constant dense<0.000000e+00> : vector<256x16xf32>
    %3 = tpu.matmul %1, %2, %cst {dimension_numbers = #tpu.dot_dimension_numbers<[1], [0], [0], [1], [0, 0, 1, 1], [], []>} : vector<256x256xbf16>, vector<256x16xbf16>, vector<256x16xf32> -> vector<256x16xf32>
    %c0_4 = arith.constant 0 : index
    %c0_5 = arith.constant 0 : index
    %4 = vector.load %arg3[%c0_4, %c0_5] : memref<1x16xf32, #tpu.memory_space<vmem>>, vector<1x16xf32>
    %5 = vector.broadcast %4 : vector<1x16xf32> to vector<256x16xf32>
    %6 = arith.addf %3, %5 : vector<256x16xf32>
    %cst_6 = arith.constant 0.000000e+00 : f32
    %7 = vector.broadcast %cst_6 : f32 to vector<256x16xf32>
    %8 = arith.maximumf %6, %7 : vector<256x16xf32>
    %cst_7 = arith.constant 0.000000e+00 : f32
    %9 = vector.broadcast %cst_7 : f32 to vector<304x16xf32>
    %c0_8 = arith.constant 0 : index
    %c0_9 = arith.constant 0 : index
    %10 = vector.load %arg8[%c0_8, %c0_9] : memref<304x16xf32, #tpu.memory_space<vmem>>, vector<304x16xf32>
    tpu.vector_store %arg8[%c0_8, %c0_9], %9 {strides = array<i32>} : memref<304x16xf32, #tpu.memory_space<vmem>>, vector<304x16xf32>,
    %c24 = arith.constant 24 : index
    %c0_10 = arith.constant 0 : index
    %11 = vector.load %arg8[%c24, %c0_10] : memref<304x16xf32, #tpu.memory_space<vmem>>, vector<256x16xf32>
    tpu.vector_store %arg8[%c24, %c0_10], %8 {strides = array<i32>} : memref<304x16xf32, #tpu.memory_space<vmem>>, vector<256x16xf32>,
    %12 = tpu.iota {dimensions = array<i32: 0>} : vector<256x1xi32>
    %c16_i32 = arith.constant 16 : i32
    %c0_i32 = arith.constant 0 : i32
    %13 = arith.cmpi eq, %c16_i32, %c0_i32 : i32
    %c1_i32 = arith.constant 1 : i32
    %14 = arith.select %13, %c1_i32, %c16_i32 : i32
    %15 = vector.broadcast %14 : i32 to vector<256x1xi32>
    %16 = arith.remsi %12, %15 : vector<256x1xi32>
    %c0_i32_11 = arith.constant 0 : i32
    %17 = vector.broadcast %c0_i32_11 : i32 to vector<256x1xi32>
    %18 = arith.cmpi ne, %16, %17 : vector<256x1xi32>
    %c0_i32_12 = arith.constant 0 : i32
    %19 = vector.broadcast %c0_i32_12 : i32 to vector<256x1xi32>
    %20 = arith.cmpi slt, %16, %19 : vector<256x1xi32>
    %c0_i32_13 = arith.constant 0 : i32
    %21 = arith.cmpi slt, %14, %c0_i32_13 : i32
    %22 = vector.broadcast %21 : i1 to vector<256x1xi1>
    %23 = vector.broadcast %22 : vector<256x1xi1> to vector<256x1xi1>
    %24 = arith.xori %20, %23 : vector<256x1xi1>
    %25 = arith.andi %24, %18 : vector<256x1xi1>
    %26 = vector.broadcast %14 : i32 to vector<256x1xi32>
    %27 = arith.addi %16, %26 : vector<256x1xi32>
    %28 = arith.select %25, %27, %16 : vector<256x1xi1>, vector<256x1xi32>
    %c1_i32_14 = arith.constant 1 : i32
    %29 = vector.broadcast %c1_i32_14 : i32 to vector<256x1xi32>
    %30 = arith.cmpi sge, %28, %29 : vector<256x1xi32>
    %c15_i32 = arith.constant 15 : i32
    %31 = vector.broadcast %c15_i32 : i32 to vector<256x1xi32>
    %32 = arith.cmpi slt, %28, %31 : vector<256x1xi32>
    %cst_15 = arith.constant 0.000000e+00 : f32
    %33 = vector.broadcast %cst_15 : f32 to vector<256x16xf32>
    %c7 = arith.constant 7 : index
    %c0_16 = arith.constant 0 : index
    %34 = vector.load %arg8[%c7, %c0_16] : memref<304x16xf32, #tpu.memory_space<vmem>>, vector<256x16xf32>
    %cst_17 = arith.constant 0.000000e+00 : f32
    %35 = vector.shape_cast %30 : vector<256x1xi1> to vector<256x1xi1>
    %36 = vector.broadcast %35 : vector<256x1xi1> to vector<256x16xi1>
    %37 = vector.broadcast %cst_17 : f32 to vector<256x16xf32>
    %38 = arith.select %36, %34, %37 : vector<256x16xi1>, vector<256x16xf32>
    %39 = arith.truncf %38 : vector<256x16xf32> to vector<256x16xbf16>
    %c0_18 = arith.constant 0 : index
    %c0_19 = arith.constant 0 : index
    %40 = vector.load %arg4[%c0_18, %c0_19] : memref<144x16xbf16, #tpu.memory_space<vmem>>, vector<16x16xbf16>
    %cst_20 = arith.constant dense<0.000000e+00> : vector<256x16xf32>
    %41 = tpu.matmul %39, %40, %cst_20 {dimension_numbers = #tpu.dot_dimension_numbers<[1], [0], [0], [1], [0, 0, 1, 1], [], []>} : vector<256x16xbf16>, vector<16x16xbf16>, vector<256x16xf32> -> vector<256x16xf32>
    %42 = arith.addf %33, %41 : vector<256x16xf32>
    %c8 = arith.constant 8 : index
    %c0_21 = arith.constant 0 : index
    %43 = vector.load %arg8[%c8, %c0_21] : memref<304x16xf32, #tpu.memory_space<vmem>>, vector<256x16xf32>
    %44 = arith.truncf %43 : vector<256x16xf32> to vector<256x16xbf16>
    %c16 = arith.constant 16 : index
    %c0_22 = arith.constant 0 : index
    %45 = vector.load %arg4[%c16, %c0_22] : memref<144x16xbf16, #tpu.memory_space<vmem>>, vector<16x16xbf16>
    %cst_23 = arith.constant dense<0.000000e+00> : vector<256x16xf32>
    %46 = tpu.matmul %44, %45, %cst_23 {dimension_numbers = #tpu.dot_dimension_numbers<[1], [0], [0], [1], [0, 0, 1, 1], [], []>} : vector<256x16xbf16>, vector<16x16xbf16>, vector<256x16xf32> -> vector<256x16xf32>
    %47 = arith.addf %42, %46 : vector<256x16xf32>
    %c9 = arith.constant 9 : index
    %c0_24 = arith.constant 0 : index
    %48 = vector.load %arg8[%c9, %c0_24] : memref<304x16xf32, #tpu.memory_space<vmem>>, vector<256x16xf32>
    %cst_25 = arith.constant 0.000000e+00 : f32
    %49 = vector.shape_cast %32 : vector<256x1xi1> to vector<256x1xi1>
    %50 = vector.broadcast %49 : vector<256x1xi1> to vector<256x16xi1>
    %51 = vector.broadcast %cst_25 : f32 to vector<256x16xf32>
    %52 = arith.select %50, %48, %51 : vector<256x16xi1>, vector<256x16xf32>
    %53 = arith.truncf %52 : vector<256x16xf32> to vector<256x16xbf16>
    %c32 = arith.constant 32 : index
    %c0_26 = arith.constant 0 : index
    %54 = vector.load %arg4[%c32, %c0_26] : memref<144x16xbf16, #tpu.memory_space<vmem>>, vector<16x16xbf16>
    %cst_27 = arith.constant dense<0.000000e+00> : vector<256x16xf32>
    %55 = tpu.matmul %53, %54, %cst_27 {dimension_numbers = #tpu.dot_dimension_numbers<[1], [0], [0], [1], [0, 0, 1, 1], [], []>} : vector<256x16xbf16>, vector<16x16xbf16>, vector<256x16xf32> -> vector<256x16xf32>
    %56 = arith.addf %47, %55 : vector<256x16xf32>
    %c23 = arith.constant 23 : index
    %c0_28 = arith.constant 0 : index
    %57 = vector.load %arg8[%c23, %c0_28] : memref<304x16xf32, #tpu.memory_space<vmem>>, vector<256x16xf32>
    %cst_29 = arith.constant 0.000000e+00 : f32
    %58 = vector.shape_cast %30 : vector<256x1xi1> to vector<256x1xi1>
    %59 = vector.broadcast %58 : vector<256x1xi1> to vector<256x16xi1>
    %60 = vector.broadcast %cst_29 : f32 to vector<256x16xf32>
    %61 = arith.select %59, %57, %60 : vector<256x16xi1>, vector<256x16xf32>
    %62 = arith.truncf %61 : vector<256x16xf32> to vector<256x16xbf16>
    %c48 = arith.constant 48 : index
    %c0_30 = arith.constant 0 : index
    %63 = vector.load %arg4[%c48, %c0_30] : memref<144x16xbf16, #tpu.memory_space<vmem>>, vector<16x16xbf16>
    %cst_31 = arith.constant dense<0.000000e+00> : vector<256x16xf32>
    %64 = tpu.matmul %62, %63, %cst_31 {dimension_numbers = #tpu.dot_dimension_numbers<[1], [0], [0], [1], [0, 0, 1, 1], [], []>} : vector<256x16xbf16>, vector<16x16xbf16>, vector<256x16xf32> -> vector<256x16xf32>
    %65 = arith.addf %56, %64 : vector<256x16xf32>
    %c24_32 = arith.constant 24 : index
    %c0_33 = arith.constant 0 : index
    %66 = vector.load %arg8[%c24_32, %c0_33] : memref<304x16xf32, #tpu.memory_space<vmem>>, vector<256x16xf32>
    %67 = arith.truncf %66 : vector<256x16xf32> to vector<256x16xbf16>
    %c64 = arith.constant 64 : index
    %c0_34 = arith.constant 0 : index
    %68 = vector.load %arg4[%c64, %c0_34] : memref<144x16xbf16, #tpu.memory_space<vmem>>, vector<16x16xbf16>
    %cst_35 = arith.constant dense<0.000000e+00> : vector<256x16xf32>
    %69 = tpu.matmul %67, %68, %cst_35 {dimension_numbers = #tpu.dot_dimension_numbers<[1], [0], [0], [1], [0, 0, 1, 1], [], []>} : vector<256x16xbf16>, vector<16x16xbf16>, vector<256x16xf32> -> vector<256x16xf32>
    %70 = arith.addf %65, %69 : vector<256x16xf32>
    %c25 = arith.constant 25 : index
    %c0_36 = arith.constant 0 : index
    %71 = vector.load %arg8[%c25, %c0_36] : memref<304x16xf32, #tpu.memory_space<vmem>>, vector<256x16xf32>
    %cst_37 = arith.constant 0.000000e+00 : f32
    %72 = vector.shape_cast %32 : vector<256x1xi1> to vector<256x1xi1>
    %73 = vector.broadcast %72 : vector<256x1xi1> to vector<256x16xi1>
    %74 = vector.broadcast %cst_37 : f32 to vector<256x16xf32>
    %75 = arith.select %73, %71, %74 : vector<256x16xi1>, vector<256x16xf32>
    %76 = arith.truncf %75 : vector<256x16xf32> to vector<256x16xbf16>
    %c80 = arith.constant 80 : index
    %c0_38 = arith.constant 0 : index
    %77 = vector.load %arg4[%c80, %c0_38] : memref<144x16xbf16, #tpu.memory_space<vmem>>, vector<16x16xbf16>
    %cst_39 = arith.constant dense<0.000000e+00> : vector<256x16xf32>
    %78 = tpu.matmul %76, %77, %cst_39 {dimension_numbers = #tpu.dot_dimension_numbers<[1], [0], [0], [1], [0, 0, 1, 1], [], []>} : vector<256x16xbf16>, vector<16x16xbf16>, vector<256x16xf32> -> vector<256x16xf32>
    %79 = arith.addf %70, %78 : vector<256x16xf32>
    %c39 = arith.constant 39 : index
    %c0_40 = arith.constant 0 : index
    %80 = vector.load %arg8[%c39, %c0_40] : memref<304x16xf32, #tpu.memory_space<vmem>>, vector<256x16xf32>
    %cst_41 = arith.constant 0.000000e+00 : f32
    %81 = vector.shape_cast %30 : vector<256x1xi1> to vector<256x1xi1>
    %82 = vector.broadcast %81 : vector<256x1xi1> to vector<256x16xi1>
    %83 = vector.broadcast %cst_41 : f32 to vector<256x16xf32>
    %84 = arith.select %82, %80, %83 : vector<256x16xi1>, vector<256x16xf32>
    %85 = arith.truncf %84 : vector<256x16xf32> to vector<256x16xbf16>
    %c96 = arith.constant 96 : index
    %c0_42 = arith.constant 0 : index
    %86 = vector.load %arg4[%c96, %c0_42] : memref<144x16xbf16, #tpu.memory_space<vmem>>, vector<16x16xbf16>
    %cst_43 = arith.constant dense<0.000000e+00> : vector<256x16xf32>
    %87 = tpu.matmul %85, %86, %cst_43 {dimension_numbers = #tpu.dot_dimension_numbers<[1], [0], [0], [1], [0, 0, 1, 1], [], []>} : vector<256x16xbf16>, vector<16x16xbf16>, vector<256x16xf32> -> vector<256x16xf32>
    %88 = arith.addf %79, %87 : vector<256x16xf32>
    %c40 = arith.constant 40 : index
    %c0_44 = arith.constant 0 : index
    %89 = vector.load %arg8[%c40, %c0_44] : memref<304x16xf32, #tpu.memory_space<vmem>>, vector<256x16xf32>
    %90 = arith.truncf %89 : vector<256x16xf32> to vector<256x16xbf16>
    %c112 = arith.constant 112 : index
    %c0_45 = arith.constant 0 : index
    %91 = vector.load %arg4[%c112, %c0_45] : memref<144x16xbf16, #tpu.memory_space<vmem>>, vector<16x16xbf16>
    %cst_46 = arith.constant dense<0.000000e+00> : vector<256x16xf32>
    %92 = tpu.matmul %90, %91, %cst_46 {dimension_numbers = #tpu.dot_dimension_numbers<[1], [0], [0], [1], [0, 0, 1, 1], [], []>} : vector<256x16xbf16>, vector<16x16xbf16>, vector<256x16xf32> -> vector<256x16xf32>
    %93 = arith.addf %88, %92 : vector<256x16xf32>
    %c41 = arith.constant 41 : index
    %c0_47 = arith.constant 0 : index
    %94 = vector.load %arg8[%c41, %c0_47] : memref<304x16xf32, #tpu.memory_space<vmem>>, vector<256x16xf32>
    %cst_48 = arith.constant 0.000000e+00 : f32
    %95 = vector.shape_cast %32 : vector<256x1xi1> to vector<256x1xi1>
    %96 = vector.broadcast %95 : vector<256x1xi1> to vector<256x16xi1>
    %97 = vector.broadcast %cst_48 : f32 to vector<256x16xf32>
    %98 = arith.select %96, %94, %97 : vector<256x16xi1>, vector<256x16xf32>
    %99 = arith.truncf %98 : vector<256x16xf32> to vector<256x16xbf16>
    %c128 = arith.constant 128 : index
    %c0_49 = arith.constant 0 : index
    %100 = vector.load %arg4[%c128, %c0_49] : memref<144x16xbf16, #tpu.memory_space<vmem>>, vector<16x16xbf16>
    %cst_50 = arith.constant dense<0.000000e+00> : vector<256x16xf32>
    %101 = tpu.matmul %99, %100, %cst_50 {dimension_numbers = #tpu.dot_dimension_numbers<[1], [0], [0], [1], [0, 0, 1, 1], [], []>} : vector<256x16xbf16>, vector<16x16xbf16>, vector<256x16xf32> -> vector<256x16xf32>
    %102 = arith.addf %93, %101 : vector<256x16xf32>
    %c0_51 = arith.constant 0 : index
    %c0_52 = arith.constant 0 : index
    %103 = vector.load %arg5[%c0_51, %c0_52] : memref<1x16xf32, #tpu.memory_space<vmem>>, vector<1x16xf32>
    %104 = vector.broadcast %103 : vector<1x16xf32> to vector<256x16xf32>
    %105 = arith.addf %102, %104 : vector<256x16xf32>
    %c0_53 = arith.constant 0 : index
    %c0_54 = arith.constant 0 : index
    %c0_55 = arith.constant 0 : index
    %106 = vector.load %arg6[%c0_53, %c0_54, %c0_55] : memref<1x256x16xbf16, #tpu.memory_space<vmem>>, vector<1x256x16xbf16>
    %107 = vector.shape_cast %106 : vector<1x256x16xbf16> to vector<256x16xbf16>
    %108 = arith.extf %107 : vector<256x16xbf16> to vector<256x16xf32>
    %109 = arith.addf %105, %108 : vector<256x16xf32>
    %cst_56 = arith.constant 0.000000e+00 : f32
    %110 = vector.broadcast %cst_56 : f32 to vector<256x16xf32>
    %111 = arith.maximumf %109, %110 : vector<256x16xf32>
    %112 = arith.truncf %111 : vector<256x16xf32> to vector<256x16xbf16>
    %c0_57 = arith.constant 0 : index
    %c0_58 = arith.constant 0 : index
    %c0_59 = arith.constant 0 : index
    %113 = vector.load %arg7[%c0_57, %c0_58, %c0_59] : memref<1x256x16xbf16, #tpu.memory_space<vmem>>, vector<1x256x16xbf16>
    %114 = vector.shape_cast %113 : vector<1x256x16xbf16> to vector<256x16xbf16>
    %115 = vector.shape_cast %112 : vector<256x16xbf16> to vector<1x256x16xbf16>
    tpu.vector_store %arg7[%c0_57, %c0_58, %c0_59], %115 {strides = array<i32>} : memref<1x256x16xbf16, #tpu.memory_space<vmem>>, vector<1x256x16xbf16>,
    return
  }
  func.func @transform_0(%arg0: i32) -> (i32, i32, i32) {
    %c0_i32 = arith.constant 0 : i32
    %c0_i32_0 = arith.constant 0 : i32
    %c0_i32_1 = arith.constant 0 : i32
    return %arg0, %c0_i32, %c0_i32_0 : i32, i32, i32
  }
  func.func @transform_1(%arg0: i32) -> (i32, i32) {
    %c0_i32 = arith.constant 0 : i32
    %c0_i32_0 = arith.constant 0 : i32
    %c0_i32_1 = arith.constant 0 : i32
    return %c0_i32, %c0_i32_0 : i32, i32
  }
  func.func @transform_2(%arg0: i32) -> (i32, i32) {
    %c0_i32 = arith.constant 0 : i32
    %c0_i32_0 = arith.constant 0 : i32
    %c0_i32_1 = arith.constant 0 : i32
    return %c0_i32, %c0_i32_0 : i32, i32
  }
  func.func @transform_3(%arg0: i32) -> (i32, i32) {
    %c0_i32 = arith.constant 0 : i32
    %c0_i32_0 = arith.constant 0 : i32
    %c0_i32_1 = arith.constant 0 : i32
    return %c0_i32, %c0_i32_0 : i32, i32
  }
  func.func @transform_4(%arg0: i32) -> (i32, i32) {
    %c0_i32 = arith.constant 0 : i32
    %c0_i32_0 = arith.constant 0 : i32
    %c0_i32_1 = arith.constant 0 : i32
    return %c0_i32, %c0_i32_0 : i32, i32
  }
  func.func @transform_5(%arg0: i32) -> (i32, i32, i32) {
    %c0_i32 = arith.constant 0 : i32
    %c0_i32_0 = arith.constant 0 : i32
    %c0_i32_1 = arith.constant 0 : i32
    return %arg0, %c0_i32, %c0_i32_0 : i32, i32, i32
  }
  func.func @transform_6(%arg0: i32) -> (i32, i32, i32) {
    %c0_i32 = arith.constant 0 : i32
    %c0_i32_0 = arith.constant 0 : i32
    %c0_i32_1 = arith.constant 0 : i32
    return %arg0, %c0_i32, %c0_i32_0 : i32, i32, i32
  }
}

module attributes {stable_mosaic.version = 11 : i64} {
  func.func @_block_downsample_kernel(%arg0: i32, %arg1: memref<1x64x256xbf16, #tpu.memory_space<vmem>>, %arg2: memref<256x32xbf16, #tpu.memory_space<vmem>>, %arg3: memref<1x32xf32, #tpu.memory_space<vmem>>, %arg4: memref<288x32xbf16, #tpu.memory_space<vmem>>, %arg5: memref<1x32xf32, #tpu.memory_space<vmem>>, %arg6: memref<1x64x16xbf16, #tpu.memory_space<vmem>>, %arg7: memref<16x32xbf16, #tpu.memory_space<vmem>>, %arg8: memref<1x32xf32, #tpu.memory_space<vmem>>, %arg9: memref<1x64x32xbf16, #tpu.memory_space<vmem>>, %arg10: memref<96x32xf32, #tpu.memory_space<vmem>>) attributes {dimension_semantics = [#tpu.dimension_semantics<parallel>], iteration_bounds = array<i64: 2>, scalar_prefetch = 0 : i64, scratch_operands = 1 : i64, tpu.core_type = #tpu.core_type<tc>, window_params = [{transform_indices = @transform_0, window_bounds = array<i64: 1, 64, 256>}, {pipeline_mode = #tpu.pipeline_mode<synchronous>, transform_indices = @transform_1, window_bounds = array<i64: 256, 32>}, {pipeline_mode = #tpu.pipeline_mode<synchronous>, transform_indices = @transform_2, window_bounds = array<i64: 1, 32>}, {pipeline_mode = #tpu.pipeline_mode<synchronous>, transform_indices = @transform_3, window_bounds = array<i64: 288, 32>}, {pipeline_mode = #tpu.pipeline_mode<synchronous>, transform_indices = @transform_4, window_bounds = array<i64: 1, 32>}, {transform_indices = @transform_5, window_bounds = array<i64: 1, 64, 16>}, {pipeline_mode = #tpu.pipeline_mode<synchronous>, transform_indices = @transform_6, window_bounds = array<i64: 16, 32>}, {pipeline_mode = #tpu.pipeline_mode<synchronous>, transform_indices = @transform_7, window_bounds = array<i64: 1, 32>}, {transform_indices = @transform_8, window_bounds = array<i64: 1, 64, 32>}]} {
    %c0 = arith.constant 0 : index
    %c0_0 = arith.constant 0 : index
    %c0_1 = arith.constant 0 : index
    %0 = vector.load %arg1[%c0, %c0_0, %c0_1] : memref<1x64x256xbf16, #tpu.memory_space<vmem>>, vector<1x64x256xbf16>
    %1 = vector.shape_cast %0 : vector<1x64x256xbf16> to vector<64x256xbf16>
    %c0_2 = arith.constant 0 : index
    %c0_3 = arith.constant 0 : index
    %2 = vector.load %arg2[%c0_2, %c0_3] : memref<256x32xbf16, #tpu.memory_space<vmem>>, vector<256x32xbf16>
    %cst = arith.constant dense<0.000000e+00> : vector<64x32xf32>
    %3 = tpu.matmul %1, %2, %cst {dimension_numbers = #tpu.dot_dimension_numbers<[1], [0], [0], [1], [0, 0, 1, 1], [], []>} : vector<64x256xbf16>, vector<256x32xbf16>, vector<64x32xf32> -> vector<64x32xf32>
    %c0_4 = arith.constant 0 : index
    %c0_5 = arith.constant 0 : index
    %4 = vector.load %arg3[%c0_4, %c0_5] : memref<1x32xf32, #tpu.memory_space<vmem>>, vector<1x32xf32>
    %5 = vector.broadcast %4 : vector<1x32xf32> to vector<64x32xf32>
    %6 = arith.addf %3, %5 : vector<64x32xf32>
    %cst_6 = arith.constant 0.000000e+00 : f32
    %7 = vector.broadcast %cst_6 : f32 to vector<64x32xf32>
    %8 = arith.maximumf %6, %7 : vector<64x32xf32>
    %cst_7 = arith.constant 0.000000e+00 : f32
    %9 = vector.broadcast %cst_7 : f32 to vector<96x32xf32>
    %c0_8 = arith.constant 0 : index
    %c0_9 = arith.constant 0 : index
    %10 = vector.load %arg10[%c0_8, %c0_9] : memref<96x32xf32, #tpu.memory_space<vmem>>, vector<96x32xf32>
    tpu.vector_store %arg10[%c0_8, %c0_9], %9 {strides = array<i32>} : memref<96x32xf32, #tpu.memory_space<vmem>>, vector<96x32xf32>,
    %c16 = arith.constant 16 : index
    %c0_10 = arith.constant 0 : index
    %11 = vector.load %arg10[%c16, %c0_10] : memref<96x32xf32, #tpu.memory_space<vmem>>, vector<64x32xf32>
    tpu.vector_store %arg10[%c16, %c0_10], %8 {strides = array<i32>} : memref<96x32xf32, #tpu.memory_space<vmem>>, vector<64x32xf32>,
    %12 = tpu.iota {dimensions = array<i32: 0>} : vector<64x1xi32>
    %c8_i32 = arith.constant 8 : i32
    %c0_i32 = arith.constant 0 : i32
    %13 = arith.cmpi eq, %c8_i32, %c0_i32 : i32
    %c1_i32 = arith.constant 1 : i32
    %14 = arith.select %13, %c1_i32, %c8_i32 : i32
    %15 = vector.broadcast %14 : i32 to vector<64x1xi32>
    %16 = arith.remsi %12, %15 : vector<64x1xi32>
    %c0_i32_11 = arith.constant 0 : i32
    %17 = vector.broadcast %c0_i32_11 : i32 to vector<64x1xi32>
    %18 = arith.cmpi ne, %16, %17 : vector<64x1xi32>
    %c0_i32_12 = arith.constant 0 : i32
    %19 = vector.broadcast %c0_i32_12 : i32 to vector<64x1xi32>
    %20 = arith.cmpi slt, %16, %19 : vector<64x1xi32>
    %c0_i32_13 = arith.constant 0 : i32
    %21 = arith.cmpi slt, %14, %c0_i32_13 : i32
    %22 = vector.broadcast %21 : i1 to vector<64x1xi1>
    %23 = vector.broadcast %22 : vector<64x1xi1> to vector<64x1xi1>
    %24 = arith.xori %20, %23 : vector<64x1xi1>
    %25 = arith.andi %24, %18 : vector<64x1xi1>
    %26 = vector.broadcast %14 : i32 to vector<64x1xi32>
    %27 = arith.addi %16, %26 : vector<64x1xi32>
    %28 = arith.select %25, %27, %16 : vector<64x1xi1>, vector<64x1xi32>
    %c1_i32_14 = arith.constant 1 : i32
    %29 = vector.broadcast %c1_i32_14 : i32 to vector<64x1xi32>
    %30 = arith.cmpi sge, %28, %29 : vector<64x1xi32>
    %c7_i32 = arith.constant 7 : i32
    %31 = vector.broadcast %c7_i32 : i32 to vector<64x1xi32>
    %32 = arith.cmpi slt, %28, %31 : vector<64x1xi32>
    %cst_15 = arith.constant 0.000000e+00 : f32
    %33 = vector.broadcast %cst_15 : f32 to vector<64x32xf32>
    %c7 = arith.constant 7 : index
    %c0_16 = arith.constant 0 : index
    %34 = vector.load %arg10[%c7, %c0_16] : memref<96x32xf32, #tpu.memory_space<vmem>>, vector<64x32xf32>
    %cst_17 = arith.constant 0.000000e+00 : f32
    %35 = vector.shape_cast %30 : vector<64x1xi1> to vector<64x1xi1>
    %36 = vector.broadcast %35 : vector<64x1xi1> to vector<64x32xi1>
    %37 = vector.broadcast %cst_17 : f32 to vector<64x32xf32>
    %38 = arith.select %36, %34, %37 : vector<64x32xi1>, vector<64x32xf32>
    %39 = arith.truncf %38 : vector<64x32xf32> to vector<64x32xbf16>
    %c0_18 = arith.constant 0 : index
    %c0_19 = arith.constant 0 : index
    %40 = vector.load %arg4[%c0_18, %c0_19] : memref<288x32xbf16, #tpu.memory_space<vmem>>, vector<32x32xbf16>
    %cst_20 = arith.constant dense<0.000000e+00> : vector<64x32xf32>
    %41 = tpu.matmul %39, %40, %cst_20 {dimension_numbers = #tpu.dot_dimension_numbers<[1], [0], [0], [1], [0, 0, 1, 1], [], []>} : vector<64x32xbf16>, vector<32x32xbf16>, vector<64x32xf32> -> vector<64x32xf32>
    %42 = arith.addf %33, %41 : vector<64x32xf32>
    %c8 = arith.constant 8 : index
    %c0_21 = arith.constant 0 : index
    %43 = vector.load %arg10[%c8, %c0_21] : memref<96x32xf32, #tpu.memory_space<vmem>>, vector<64x32xf32>
    %44 = arith.truncf %43 : vector<64x32xf32> to vector<64x32xbf16>
    %c32 = arith.constant 32 : index
    %c0_22 = arith.constant 0 : index
    %45 = vector.load %arg4[%c32, %c0_22] : memref<288x32xbf16, #tpu.memory_space<vmem>>, vector<32x32xbf16>
    %cst_23 = arith.constant dense<0.000000e+00> : vector<64x32xf32>
    %46 = tpu.matmul %44, %45, %cst_23 {dimension_numbers = #tpu.dot_dimension_numbers<[1], [0], [0], [1], [0, 0, 1, 1], [], []>} : vector<64x32xbf16>, vector<32x32xbf16>, vector<64x32xf32> -> vector<64x32xf32>
    %47 = arith.addf %42, %46 : vector<64x32xf32>
    %c9 = arith.constant 9 : index
    %c0_24 = arith.constant 0 : index
    %48 = vector.load %arg10[%c9, %c0_24] : memref<96x32xf32, #tpu.memory_space<vmem>>, vector<64x32xf32>
    %cst_25 = arith.constant 0.000000e+00 : f32
    %49 = vector.shape_cast %32 : vector<64x1xi1> to vector<64x1xi1>
    %50 = vector.broadcast %49 : vector<64x1xi1> to vector<64x32xi1>
    %51 = vector.broadcast %cst_25 : f32 to vector<64x32xf32>
    %52 = arith.select %50, %48, %51 : vector<64x32xi1>, vector<64x32xf32>
    %53 = arith.truncf %52 : vector<64x32xf32> to vector<64x32xbf16>
    %c64 = arith.constant 64 : index
    %c0_26 = arith.constant 0 : index
    %54 = vector.load %arg4[%c64, %c0_26] : memref<288x32xbf16, #tpu.memory_space<vmem>>, vector<32x32xbf16>
    %cst_27 = arith.constant dense<0.000000e+00> : vector<64x32xf32>
    %55 = tpu.matmul %53, %54, %cst_27 {dimension_numbers = #tpu.dot_dimension_numbers<[1], [0], [0], [1], [0, 0, 1, 1], [], []>} : vector<64x32xbf16>, vector<32x32xbf16>, vector<64x32xf32> -> vector<64x32xf32>
    %56 = arith.addf %47, %55 : vector<64x32xf32>
    %c15 = arith.constant 15 : index
    %c0_28 = arith.constant 0 : index
    %57 = vector.load %arg10[%c15, %c0_28] : memref<96x32xf32, #tpu.memory_space<vmem>>, vector<64x32xf32>
    %cst_29 = arith.constant 0.000000e+00 : f32
    %58 = vector.shape_cast %30 : vector<64x1xi1> to vector<64x1xi1>
    %59 = vector.broadcast %58 : vector<64x1xi1> to vector<64x32xi1>
    %60 = vector.broadcast %cst_29 : f32 to vector<64x32xf32>
    %61 = arith.select %59, %57, %60 : vector<64x32xi1>, vector<64x32xf32>
    %62 = arith.truncf %61 : vector<64x32xf32> to vector<64x32xbf16>
    %c96 = arith.constant 96 : index
    %c0_30 = arith.constant 0 : index
    %63 = vector.load %arg4[%c96, %c0_30] : memref<288x32xbf16, #tpu.memory_space<vmem>>, vector<32x32xbf16>
    %cst_31 = arith.constant dense<0.000000e+00> : vector<64x32xf32>
    %64 = tpu.matmul %62, %63, %cst_31 {dimension_numbers = #tpu.dot_dimension_numbers<[1], [0], [0], [1], [0, 0, 1, 1], [], []>} : vector<64x32xbf16>, vector<32x32xbf16>, vector<64x32xf32> -> vector<64x32xf32>
    %65 = arith.addf %56, %64 : vector<64x32xf32>
    %c16_32 = arith.constant 16 : index
    %c0_33 = arith.constant 0 : index
    %66 = vector.load %arg10[%c16_32, %c0_33] : memref<96x32xf32, #tpu.memory_space<vmem>>, vector<64x32xf32>
    %67 = arith.truncf %66 : vector<64x32xf32> to vector<64x32xbf16>
    %c128 = arith.constant 128 : index
    %c0_34 = arith.constant 0 : index
    %68 = vector.load %arg4[%c128, %c0_34] : memref<288x32xbf16, #tpu.memory_space<vmem>>, vector<32x32xbf16>
    %cst_35 = arith.constant dense<0.000000e+00> : vector<64x32xf32>
    %69 = tpu.matmul %67, %68, %cst_35 {dimension_numbers = #tpu.dot_dimension_numbers<[1], [0], [0], [1], [0, 0, 1, 1], [], []>} : vector<64x32xbf16>, vector<32x32xbf16>, vector<64x32xf32> -> vector<64x32xf32>
    %70 = arith.addf %65, %69 : vector<64x32xf32>
    %c17 = arith.constant 17 : index
    %c0_36 = arith.constant 0 : index
    %71 = vector.load %arg10[%c17, %c0_36] : memref<96x32xf32, #tpu.memory_space<vmem>>, vector<64x32xf32>
    %cst_37 = arith.constant 0.000000e+00 : f32
    %72 = vector.shape_cast %32 : vector<64x1xi1> to vector<64x1xi1>
    %73 = vector.broadcast %72 : vector<64x1xi1> to vector<64x32xi1>
    %74 = vector.broadcast %cst_37 : f32 to vector<64x32xf32>
    %75 = arith.select %73, %71, %74 : vector<64x32xi1>, vector<64x32xf32>
    %76 = arith.truncf %75 : vector<64x32xf32> to vector<64x32xbf16>
    %c160 = arith.constant 160 : index
    %c0_38 = arith.constant 0 : index
    %77 = vector.load %arg4[%c160, %c0_38] : memref<288x32xbf16, #tpu.memory_space<vmem>>, vector<32x32xbf16>
    %cst_39 = arith.constant dense<0.000000e+00> : vector<64x32xf32>
    %78 = tpu.matmul %76, %77, %cst_39 {dimension_numbers = #tpu.dot_dimension_numbers<[1], [0], [0], [1], [0, 0, 1, 1], [], []>} : vector<64x32xbf16>, vector<32x32xbf16>, vector<64x32xf32> -> vector<64x32xf32>
    %79 = arith.addf %70, %78 : vector<64x32xf32>
    %c23 = arith.constant 23 : index
    %c0_40 = arith.constant 0 : index
    %80 = vector.load %arg10[%c23, %c0_40] : memref<96x32xf32, #tpu.memory_space<vmem>>, vector<64x32xf32>
    %cst_41 = arith.constant 0.000000e+00 : f32
    %81 = vector.shape_cast %30 : vector<64x1xi1> to vector<64x1xi1>
    %82 = vector.broadcast %81 : vector<64x1xi1> to vector<64x32xi1>
    %83 = vector.broadcast %cst_41 : f32 to vector<64x32xf32>
    %84 = arith.select %82, %80, %83 : vector<64x32xi1>, vector<64x32xf32>
    %85 = arith.truncf %84 : vector<64x32xf32> to vector<64x32xbf16>
    %c192 = arith.constant 192 : index
    %c0_42 = arith.constant 0 : index
    %86 = vector.load %arg4[%c192, %c0_42] : memref<288x32xbf16, #tpu.memory_space<vmem>>, vector<32x32xbf16>
    %cst_43 = arith.constant dense<0.000000e+00> : vector<64x32xf32>
    %87 = tpu.matmul %85, %86, %cst_43 {dimension_numbers = #tpu.dot_dimension_numbers<[1], [0], [0], [1], [0, 0, 1, 1], [], []>} : vector<64x32xbf16>, vector<32x32xbf16>, vector<64x32xf32> -> vector<64x32xf32>
    %88 = arith.addf %79, %87 : vector<64x32xf32>
    %c24 = arith.constant 24 : index
    %c0_44 = arith.constant 0 : index
    %89 = vector.load %arg10[%c24, %c0_44] : memref<96x32xf32, #tpu.memory_space<vmem>>, vector<64x32xf32>
    %90 = arith.truncf %89 : vector<64x32xf32> to vector<64x32xbf16>
    %c224 = arith.constant 224 : index
    %c0_45 = arith.constant 0 : index
    %91 = vector.load %arg4[%c224, %c0_45] : memref<288x32xbf16, #tpu.memory_space<vmem>>, vector<32x32xbf16>
    %cst_46 = arith.constant dense<0.000000e+00> : vector<64x32xf32>
    %92 = tpu.matmul %90, %91, %cst_46 {dimension_numbers = #tpu.dot_dimension_numbers<[1], [0], [0], [1], [0, 0, 1, 1], [], []>} : vector<64x32xbf16>, vector<32x32xbf16>, vector<64x32xf32> -> vector<64x32xf32>
    %93 = arith.addf %88, %92 : vector<64x32xf32>
    %c25 = arith.constant 25 : index
    %c0_47 = arith.constant 0 : index
    %94 = vector.load %arg10[%c25, %c0_47] : memref<96x32xf32, #tpu.memory_space<vmem>>, vector<64x32xf32>
    %cst_48 = arith.constant 0.000000e+00 : f32
    %95 = vector.shape_cast %32 : vector<64x1xi1> to vector<64x1xi1>
    %96 = vector.broadcast %95 : vector<64x1xi1> to vector<64x32xi1>
    %97 = vector.broadcast %cst_48 : f32 to vector<64x32xf32>
    %98 = arith.select %96, %94, %97 : vector<64x32xi1>, vector<64x32xf32>
    %99 = arith.truncf %98 : vector<64x32xf32> to vector<64x32xbf16>
    %c256 = arith.constant 256 : index
    %c0_49 = arith.constant 0 : index
    %100 = vector.load %arg4[%c256, %c0_49] : memref<288x32xbf16, #tpu.memory_space<vmem>>, vector<32x32xbf16>
    %cst_50 = arith.constant dense<0.000000e+00> : vector<64x32xf32>
    %101 = tpu.matmul %99, %100, %cst_50 {dimension_numbers = #tpu.dot_dimension_numbers<[1], [0], [0], [1], [0, 0, 1, 1], [], []>} : vector<64x32xbf16>, vector<32x32xbf16>, vector<64x32xf32> -> vector<64x32xf32>
    %102 = arith.addf %93, %101 : vector<64x32xf32>
    %c0_51 = arith.constant 0 : index
    %c0_52 = arith.constant 0 : index
    %103 = vector.load %arg5[%c0_51, %c0_52] : memref<1x32xf32, #tpu.memory_space<vmem>>, vector<1x32xf32>
    %104 = vector.broadcast %103 : vector<1x32xf32> to vector<64x32xf32>
    %105 = arith.addf %102, %104 : vector<64x32xf32>
    %c0_53 = arith.constant 0 : index
    %c0_54 = arith.constant 0 : index
    %c0_55 = arith.constant 0 : index
    %106 = vector.load %arg6[%c0_53, %c0_54, %c0_55] : memref<1x64x16xbf16, #tpu.memory_space<vmem>>, vector<1x64x16xbf16>
    %107 = vector.shape_cast %106 : vector<1x64x16xbf16> to vector<64x16xbf16>
    %c0_56 = arith.constant 0 : index
    %c0_57 = arith.constant 0 : index
    %108 = vector.load %arg7[%c0_56, %c0_57] : memref<16x32xbf16, #tpu.memory_space<vmem>>, vector<16x32xbf16>
    %cst_58 = arith.constant dense<0.000000e+00> : vector<64x32xf32>
    %109 = tpu.matmul %107, %108, %cst_58 {dimension_numbers = #tpu.dot_dimension_numbers<[1], [0], [0], [1], [0, 0, 1, 1], [], []>} : vector<64x16xbf16>, vector<16x32xbf16>, vector<64x32xf32> -> vector<64x32xf32>
    %110 = arith.addf %105, %109 : vector<64x32xf32>
    %c0_59 = arith.constant 0 : index
    %c0_60 = arith.constant 0 : index
    %111 = vector.load %arg8[%c0_59, %c0_60] : memref<1x32xf32, #tpu.memory_space<vmem>>, vector<1x32xf32>
    %112 = vector.broadcast %111 : vector<1x32xf32> to vector<64x32xf32>
    %113 = arith.addf %110, %112 : vector<64x32xf32>
    %cst_61 = arith.constant 0.000000e+00 : f32
    %114 = vector.broadcast %cst_61 : f32 to vector<64x32xf32>
    %115 = arith.maximumf %113, %114 : vector<64x32xf32>
    %116 = arith.truncf %115 : vector<64x32xf32> to vector<64x32xbf16>
    %c0_62 = arith.constant 0 : index
    %c0_63 = arith.constant 0 : index
    %c0_64 = arith.constant 0 : index
    %117 = vector.load %arg9[%c0_62, %c0_63, %c0_64] : memref<1x64x32xbf16, #tpu.memory_space<vmem>>, vector<1x64x32xbf16>
    %118 = vector.shape_cast %117 : vector<1x64x32xbf16> to vector<64x32xbf16>
    %119 = vector.shape_cast %116 : vector<64x32xbf16> to vector<1x64x32xbf16>
    tpu.vector_store %arg9[%c0_62, %c0_63, %c0_64], %119 {strides = array<i32>} : memref<1x64x32xbf16, #tpu.memory_space<vmem>>, vector<1x64x32xbf16>,
    return
  }
  func.func @transform_0(%arg0: i32) -> (i32, i32, i32) {
    %c0_i32 = arith.constant 0 : i32
    %c0_i32_0 = arith.constant 0 : i32
    %c0_i32_1 = arith.constant 0 : i32
    return %arg0, %c0_i32, %c0_i32_0 : i32, i32, i32
  }
  func.func @transform_1(%arg0: i32) -> (i32, i32) {
    %c0_i32 = arith.constant 0 : i32
    %c0_i32_0 = arith.constant 0 : i32
    %c0_i32_1 = arith.constant 0 : i32
    return %c0_i32, %c0_i32_0 : i32, i32
  }
  func.func @transform_2(%arg0: i32) -> (i32, i32) {
    %c0_i32 = arith.constant 0 : i32
    %c0_i32_0 = arith.constant 0 : i32
    %c0_i32_1 = arith.constant 0 : i32
    return %c0_i32, %c0_i32_0 : i32, i32
  }
  func.func @transform_3(%arg0: i32) -> (i32, i32) {
    %c0_i32 = arith.constant 0 : i32
    %c0_i32_0 = arith.constant 0 : i32
    %c0_i32_1 = arith.constant 0 : i32
    return %c0_i32, %c0_i32_0 : i32, i32
  }
  func.func @transform_4(%arg0: i32) -> (i32, i32) {
    %c0_i32 = arith.constant 0 : i32
    %c0_i32_0 = arith.constant 0 : i32
    %c0_i32_1 = arith.constant 0 : i32
    return %c0_i32, %c0_i32_0 : i32, i32
  }
  func.func @transform_5(%arg0: i32) -> (i32, i32, i32) {
    %c0_i32 = arith.constant 0 : i32
    %c0_i32_0 = arith.constant 0 : i32
    %c0_i32_1 = arith.constant 0 : i32
    return %arg0, %c0_i32, %c0_i32_0 : i32, i32, i32
  }
  func.func @transform_6(%arg0: i32) -> (i32, i32) {
    %c0_i32 = arith.constant 0 : i32
    %c0_i32_0 = arith.constant 0 : i32
    %c0_i32_1 = arith.constant 0 : i32
    return %c0_i32, %c0_i32_0 : i32, i32
  }
  func.func @transform_7(%arg0: i32) -> (i32, i32) {
    %c0_i32 = arith.constant 0 : i32
    %c0_i32_0 = arith.constant 0 : i32
    %c0_i32_1 = arith.constant 0 : i32
    return %c0_i32, %c0_i32_0 : i32, i32
  }
  func.func @transform_8(%arg0: i32) -> (i32, i32, i32) {
    %c0_i32 = arith.constant 0 : i32
    %c0_i32_0 = arith.constant 0 : i32
    %c0_i32_1 = arith.constant 0 : i32
    return %arg0, %c0_i32, %c0_i32_0 : i32, i32, i32
  }
}

module attributes {stable_mosaic.version = 11 : i64} {
  func.func @_avgpool_fc_kernel(%arg0: i32, %arg1: memref<2x16x64xbf16, #tpu.memory_space<vmem>>, %arg2: memref<64x128xbf16, #tpu.memory_space<vmem>>, %arg3: memref<1x128xf32, #tpu.memory_space<vmem>>, %arg4: memref<2x128xf32, #tpu.memory_space<vmem>>) attributes {dimension_semantics = [#tpu.dimension_semantics<arbitrary>], iteration_bounds = array<i64: 1>, scalar_prefetch = 0 : i64, scratch_operands = 0 : i64, tpu.core_type = #tpu.core_type<tc>, window_params = [{pipeline_mode = #tpu.pipeline_mode<synchronous>, transform_indices = @transform_0, window_bounds = array<i64: 2, 16, 64>}, {pipeline_mode = #tpu.pipeline_mode<synchronous>, transform_indices = @transform_1, window_bounds = array<i64: 64, 128>}, {pipeline_mode = #tpu.pipeline_mode<synchronous>, transform_indices = @transform_2, window_bounds = array<i64: 1, 128>}, {pipeline_mode = #tpu.pipeline_mode<synchronous>, transform_indices = @transform_3, window_bounds = array<i64: 2, 128>}]} {
    %c0 = arith.constant 0 : index
    %c0_0 = arith.constant 0 : index
    %c0_1 = arith.constant 0 : index
    %0 = vector.load %arg1[%c0, %c0_0, %c0_1] : memref<2x16x64xbf16, #tpu.memory_space<vmem>>, vector<2x16x64xbf16>
    %1 = arith.extf %0 : vector<2x16x64xbf16> to vector<2x16x64xf32>
    %cst = arith.constant dense<0.000000e+00> : vector<2x64xf32>
    %2 = vector.multi_reduction <add>, %1, %cst [1] : vector<2x16x64xf32> to vector<2x64xf32>
    %cst_2 = arith.constant 1.600000e+01 : f32
    %3 = vector.broadcast %cst_2 : f32 to vector<2x64xf32>
    %4 = arith.divf %2, %3 : vector<2x64xf32>
    %5 = arith.truncf %4 : vector<2x64xf32> to vector<2x64xbf16>
    %c0_3 = arith.constant 0 : index
    %c0_4 = arith.constant 0 : index
    %6 = vector.load %arg2[%c0_3, %c0_4] : memref<64x128xbf16, #tpu.memory_space<vmem>>, vector<64x128xbf16>
    %cst_5 = arith.constant dense<0.000000e+00> : vector<2x128xf32>
    %7 = tpu.matmul %5, %6, %cst_5 {dimension_numbers = #tpu.dot_dimension_numbers<[1], [0], [0], [1], [0, 0, 1, 1], [], []>} : vector<2x64xbf16>, vector<64x128xbf16>, vector<2x128xf32> -> vector<2x128xf32>
    %c0_6 = arith.constant 0 : index
    %c0_7 = arith.constant 0 : index
    %8 = vector.load %arg3[%c0_6, %c0_7] : memref<1x128xf32, #tpu.memory_space<vmem>>, vector<1x128xf32>
    %9 = vector.broadcast %8 : vector<1x128xf32> to vector<2x128xf32>
    %10 = arith.addf %7, %9 : vector<2x128xf32>
    %c0_8 = arith.constant 0 : index
    %c0_9 = arith.constant 0 : index
    %11 = vector.load %arg4[%c0_8, %c0_9] : memref<2x128xf32, #tpu.memory_space<vmem>>, vector<2x128xf32>
    tpu.vector_store %arg4[%c0_8, %c0_9], %10 {strides = array<i32>} : memref<2x128xf32, #tpu.memory_space<vmem>>, vector<2x128xf32>,
    return
  }
  func.func @transform_0(%arg0: i32) -> (i32, i32, i32) {
    %c0_i32 = arith.constant 0 : i32
    %c0_i32_0 = arith.constant 0 : i32
    %c0_i32_1 = arith.constant 0 : i32
    %c0_i32_2 = arith.constant 0 : i32
    return %c0_i32, %c0_i32_0, %c0_i32_1 : i32, i32, i32
  }
  func.func @transform_1(%arg0: i32) -> (i32, i32) {
    %c0_i32 = arith.constant 0 : i32
    %c0_i32_0 = arith.constant 0 : i32
    %c0_i32_1 = arith.constant 0 : i32
    return %c0_i32, %c0_i32_0 : i32, i32
  }
  func.func @transform_2(%arg0: i32) -> (i32, i32) {
    %c0_i32 = arith.constant 0 : i32
    %c0_i32_0 = arith.constant 0 : i32
    %c0_i32_1 = arith.constant 0 : i32
    return %c0_i32, %c0_i32_0 : i32, i32
  }
  func.func @transform_3(%arg0: i32) -> (i32, i32) {
    %c0_i32 = arith.constant 0 : i32
    %c0_i32_0 = arith.constant 0 : i32
    %c0_i32_1 = arith.constant 0 : i32
    return %c0_i32, %c0_i32_0 : i32, i32
  }
}

module attributes {stable_mosaic.version = 11 : i64} {
  func.func @_block_downsample_kernel(%arg0: i32, %arg1: memref<1x16x384xbf16, #tpu.memory_space<vmem>>, %arg2: memref<384x64xbf16, #tpu.memory_space<vmem>>, %arg3: memref<1x64xf32, #tpu.memory_space<vmem>>, %arg4: memref<576x64xbf16, #tpu.memory_space<vmem>>, %arg5: memref<1x64xf32, #tpu.memory_space<vmem>>, %arg6: memref<1x16x32xbf16, #tpu.memory_space<vmem>>, %arg7: memref<32x64xbf16, #tpu.memory_space<vmem>>, %arg8: memref<1x64xf32, #tpu.memory_space<vmem>>, %arg9: memref<1x16x64xbf16, #tpu.memory_space<vmem>>, %arg10: memref<32x64xf32, #tpu.memory_space<vmem>>) attributes {dimension_semantics = [#tpu.dimension_semantics<parallel>], iteration_bounds = array<i64: 2>, scalar_prefetch = 0 : i64, scratch_operands = 1 : i64, tpu.core_type = #tpu.core_type<tc>, window_params = [{transform_indices = @transform_0, window_bounds = array<i64: 1, 16, 384>}, {pipeline_mode = #tpu.pipeline_mode<synchronous>, transform_indices = @transform_1, window_bounds = array<i64: 384, 64>}, {pipeline_mode = #tpu.pipeline_mode<synchronous>, transform_indices = @transform_2, window_bounds = array<i64: 1, 64>}, {pipeline_mode = #tpu.pipeline_mode<synchronous>, transform_indices = @transform_3, window_bounds = array<i64: 576, 64>}, {pipeline_mode = #tpu.pipeline_mode<synchronous>, transform_indices = @transform_4, window_bounds = array<i64: 1, 64>}, {transform_indices = @transform_5, window_bounds = array<i64: 1, 16, 32>}, {pipeline_mode = #tpu.pipeline_mode<synchronous>, transform_indices = @transform_6, window_bounds = array<i64: 32, 64>}, {pipeline_mode = #tpu.pipeline_mode<synchronous>, transform_indices = @transform_7, window_bounds = array<i64: 1, 64>}, {transform_indices = @transform_8, window_bounds = array<i64: 1, 16, 64>}]} {
    %c0 = arith.constant 0 : index
    %c0_0 = arith.constant 0 : index
    %c0_1 = arith.constant 0 : index
    %0 = vector.load %arg1[%c0, %c0_0, %c0_1] : memref<1x16x384xbf16, #tpu.memory_space<vmem>>, vector<1x16x384xbf16>
    %1 = vector.shape_cast %0 : vector<1x16x384xbf16> to vector<16x384xbf16>
    %c0_2 = arith.constant 0 : index
    %c0_3 = arith.constant 0 : index
    %2 = vector.load %arg2[%c0_2, %c0_3] : memref<384x64xbf16, #tpu.memory_space<vmem>>, vector<384x64xbf16>
    %cst = arith.constant dense<0.000000e+00> : vector<16x64xf32>
    %3 = tpu.matmul %1, %2, %cst {dimension_numbers = #tpu.dot_dimension_numbers<[1], [0], [0], [1], [0, 0, 1, 1], [], []>} : vector<16x384xbf16>, vector<384x64xbf16>, vector<16x64xf32> -> vector<16x64xf32>
    %c0_4 = arith.constant 0 : index
    %c0_5 = arith.constant 0 : index
    %4 = vector.load %arg3[%c0_4, %c0_5] : memref<1x64xf32, #tpu.memory_space<vmem>>, vector<1x64xf32>
    %5 = vector.broadcast %4 : vector<1x64xf32> to vector<16x64xf32>
    %6 = arith.addf %3, %5 : vector<16x64xf32>
    %cst_6 = arith.constant 0.000000e+00 : f32
    %7 = vector.broadcast %cst_6 : f32 to vector<16x64xf32>
    %8 = arith.maximumf %6, %7 : vector<16x64xf32>
    %cst_7 = arith.constant 0.000000e+00 : f32
    %9 = vector.broadcast %cst_7 : f32 to vector<32x64xf32>
    %c0_8 = arith.constant 0 : index
    %c0_9 = arith.constant 0 : index
    %10 = vector.load %arg10[%c0_8, %c0_9] : memref<32x64xf32, #tpu.memory_space<vmem>>, vector<32x64xf32>
    tpu.vector_store %arg10[%c0_8, %c0_9], %9 {strides = array<i32>} : memref<32x64xf32, #tpu.memory_space<vmem>>, vector<32x64xf32>,
    %c8 = arith.constant 8 : index
    %c0_10 = arith.constant 0 : index
    %11 = vector.load %arg10[%c8, %c0_10] : memref<32x64xf32, #tpu.memory_space<vmem>>, vector<16x64xf32>
    tpu.vector_store %arg10[%c8, %c0_10], %8 {strides = array<i32>} : memref<32x64xf32, #tpu.memory_space<vmem>>, vector<16x64xf32>,
    %12 = tpu.iota {dimensions = array<i32: 0>} : vector<16x1xi32>
    %c4_i32 = arith.constant 4 : i32
    %c0_i32 = arith.constant 0 : i32
    %13 = arith.cmpi eq, %c4_i32, %c0_i32 : i32
    %c1_i32 = arith.constant 1 : i32
    %14 = arith.select %13, %c1_i32, %c4_i32 : i32
    %15 = vector.broadcast %14 : i32 to vector<16x1xi32>
    %16 = arith.remsi %12, %15 : vector<16x1xi32>
    %c0_i32_11 = arith.constant 0 : i32
    %17 = vector.broadcast %c0_i32_11 : i32 to vector<16x1xi32>
    %18 = arith.cmpi ne, %16, %17 : vector<16x1xi32>
    %c0_i32_12 = arith.constant 0 : i32
    %19 = vector.broadcast %c0_i32_12 : i32 to vector<16x1xi32>
    %20 = arith.cmpi slt, %16, %19 : vector<16x1xi32>
    %c0_i32_13 = arith.constant 0 : i32
    %21 = arith.cmpi slt, %14, %c0_i32_13 : i32
    %22 = vector.broadcast %21 : i1 to vector<16x1xi1>
    %23 = vector.broadcast %22 : vector<16x1xi1> to vector<16x1xi1>
    %24 = arith.xori %20, %23 : vector<16x1xi1>
    %25 = arith.andi %24, %18 : vector<16x1xi1>
    %26 = vector.broadcast %14 : i32 to vector<16x1xi32>
    %27 = arith.addi %16, %26 : vector<16x1xi32>
    %28 = arith.select %25, %27, %16 : vector<16x1xi1>, vector<16x1xi32>
    %c1_i32_14 = arith.constant 1 : i32
    %29 = vector.broadcast %c1_i32_14 : i32 to vector<16x1xi32>
    %30 = arith.cmpi sge, %28, %29 : vector<16x1xi32>
    %c3_i32 = arith.constant 3 : i32
    %31 = vector.broadcast %c3_i32 : i32 to vector<16x1xi32>
    %32 = arith.cmpi slt, %28, %31 : vector<16x1xi32>
    %cst_15 = arith.constant 0.000000e+00 : f32
    %33 = vector.broadcast %cst_15 : f32 to vector<16x64xf32>
    %c3 = arith.constant 3 : index
    %c0_16 = arith.constant 0 : index
    %34 = vector.load %arg10[%c3, %c0_16] : memref<32x64xf32, #tpu.memory_space<vmem>>, vector<16x64xf32>
    %cst_17 = arith.constant 0.000000e+00 : f32
    %35 = vector.shape_cast %30 : vector<16x1xi1> to vector<16x1xi1>
    %36 = vector.broadcast %35 : vector<16x1xi1> to vector<16x64xi1>
    %37 = vector.broadcast %cst_17 : f32 to vector<16x64xf32>
    %38 = arith.select %36, %34, %37 : vector<16x64xi1>, vector<16x64xf32>
    %39 = arith.truncf %38 : vector<16x64xf32> to vector<16x64xbf16>
    %c0_18 = arith.constant 0 : index
    %c0_19 = arith.constant 0 : index
    %40 = vector.load %arg4[%c0_18, %c0_19] : memref<576x64xbf16, #tpu.memory_space<vmem>>, vector<64x64xbf16>
    %cst_20 = arith.constant dense<0.000000e+00> : vector<16x64xf32>
    %41 = tpu.matmul %39, %40, %cst_20 {dimension_numbers = #tpu.dot_dimension_numbers<[1], [0], [0], [1], [0, 0, 1, 1], [], []>} : vector<16x64xbf16>, vector<64x64xbf16>, vector<16x64xf32> -> vector<16x64xf32>
    %42 = arith.addf %33, %41 : vector<16x64xf32>
    %c4 = arith.constant 4 : index
    %c0_21 = arith.constant 0 : index
    %43 = vector.load %arg10[%c4, %c0_21] : memref<32x64xf32, #tpu.memory_space<vmem>>, vector<16x64xf32>
    %44 = arith.truncf %43 : vector<16x64xf32> to vector<16x64xbf16>
    %c64 = arith.constant 64 : index
    %c0_22 = arith.constant 0 : index
    %45 = vector.load %arg4[%c64, %c0_22] : memref<576x64xbf16, #tpu.memory_space<vmem>>, vector<64x64xbf16>
    %cst_23 = arith.constant dense<0.000000e+00> : vector<16x64xf32>
    %46 = tpu.matmul %44, %45, %cst_23 {dimension_numbers = #tpu.dot_dimension_numbers<[1], [0], [0], [1], [0, 0, 1, 1], [], []>} : vector<16x64xbf16>, vector<64x64xbf16>, vector<16x64xf32> -> vector<16x64xf32>
    %47 = arith.addf %42, %46 : vector<16x64xf32>
    %c5 = arith.constant 5 : index
    %c0_24 = arith.constant 0 : index
    %48 = vector.load %arg10[%c5, %c0_24] : memref<32x64xf32, #tpu.memory_space<vmem>>, vector<16x64xf32>
    %cst_25 = arith.constant 0.000000e+00 : f32
    %49 = vector.shape_cast %32 : vector<16x1xi1> to vector<16x1xi1>
    %50 = vector.broadcast %49 : vector<16x1xi1> to vector<16x64xi1>
    %51 = vector.broadcast %cst_25 : f32 to vector<16x64xf32>
    %52 = arith.select %50, %48, %51 : vector<16x64xi1>, vector<16x64xf32>
    %53 = arith.truncf %52 : vector<16x64xf32> to vector<16x64xbf16>
    %c128 = arith.constant 128 : index
    %c0_26 = arith.constant 0 : index
    %54 = vector.load %arg4[%c128, %c0_26] : memref<576x64xbf16, #tpu.memory_space<vmem>>, vector<64x64xbf16>
    %cst_27 = arith.constant dense<0.000000e+00> : vector<16x64xf32>
    %55 = tpu.matmul %53, %54, %cst_27 {dimension_numbers = #tpu.dot_dimension_numbers<[1], [0], [0], [1], [0, 0, 1, 1], [], []>} : vector<16x64xbf16>, vector<64x64xbf16>, vector<16x64xf32> -> vector<16x64xf32>
    %56 = arith.addf %47, %55 : vector<16x64xf32>
    %c7 = arith.constant 7 : index
    %c0_28 = arith.constant 0 : index
    %57 = vector.load %arg10[%c7, %c0_28] : memref<32x64xf32, #tpu.memory_space<vmem>>, vector<16x64xf32>
    %cst_29 = arith.constant 0.000000e+00 : f32
    %58 = vector.shape_cast %30 : vector<16x1xi1> to vector<16x1xi1>
    %59 = vector.broadcast %58 : vector<16x1xi1> to vector<16x64xi1>
    %60 = vector.broadcast %cst_29 : f32 to vector<16x64xf32>
    %61 = arith.select %59, %57, %60 : vector<16x64xi1>, vector<16x64xf32>
    %62 = arith.truncf %61 : vector<16x64xf32> to vector<16x64xbf16>
    %c192 = arith.constant 192 : index
    %c0_30 = arith.constant 0 : index
    %63 = vector.load %arg4[%c192, %c0_30] : memref<576x64xbf16, #tpu.memory_space<vmem>>, vector<64x64xbf16>
    %cst_31 = arith.constant dense<0.000000e+00> : vector<16x64xf32>
    %64 = tpu.matmul %62, %63, %cst_31 {dimension_numbers = #tpu.dot_dimension_numbers<[1], [0], [0], [1], [0, 0, 1, 1], [], []>} : vector<16x64xbf16>, vector<64x64xbf16>, vector<16x64xf32> -> vector<16x64xf32>
    %65 = arith.addf %56, %64 : vector<16x64xf32>
    %c8_32 = arith.constant 8 : index
    %c0_33 = arith.constant 0 : index
    %66 = vector.load %arg10[%c8_32, %c0_33] : memref<32x64xf32, #tpu.memory_space<vmem>>, vector<16x64xf32>
    %67 = arith.truncf %66 : vector<16x64xf32> to vector<16x64xbf16>
    %c256 = arith.constant 256 : index
    %c0_34 = arith.constant 0 : index
    %68 = vector.load %arg4[%c256, %c0_34] : memref<576x64xbf16, #tpu.memory_space<vmem>>, vector<64x64xbf16>
    %cst_35 = arith.constant dense<0.000000e+00> : vector<16x64xf32>
    %69 = tpu.matmul %67, %68, %cst_35 {dimension_numbers = #tpu.dot_dimension_numbers<[1], [0], [0], [1], [0, 0, 1, 1], [], []>} : vector<16x64xbf16>, vector<64x64xbf16>, vector<16x64xf32> -> vector<16x64xf32>
    %70 = arith.addf %65, %69 : vector<16x64xf32>
    %c9 = arith.constant 9 : index
    %c0_36 = arith.constant 0 : index
    %71 = vector.load %arg10[%c9, %c0_36] : memref<32x64xf32, #tpu.memory_space<vmem>>, vector<16x64xf32>
    %cst_37 = arith.constant 0.000000e+00 : f32
    %72 = vector.shape_cast %32 : vector<16x1xi1> to vector<16x1xi1>
    %73 = vector.broadcast %72 : vector<16x1xi1> to vector<16x64xi1>
    %74 = vector.broadcast %cst_37 : f32 to vector<16x64xf32>
    %75 = arith.select %73, %71, %74 : vector<16x64xi1>, vector<16x64xf32>
    %76 = arith.truncf %75 : vector<16x64xf32> to vector<16x64xbf16>
    %c320 = arith.constant 320 : index
    %c0_38 = arith.constant 0 : index
    %77 = vector.load %arg4[%c320, %c0_38] : memref<576x64xbf16, #tpu.memory_space<vmem>>, vector<64x64xbf16>
    %cst_39 = arith.constant dense<0.000000e+00> : vector<16x64xf32>
    %78 = tpu.matmul %76, %77, %cst_39 {dimension_numbers = #tpu.dot_dimension_numbers<[1], [0], [0], [1], [0, 0, 1, 1], [], []>} : vector<16x64xbf16>, vector<64x64xbf16>, vector<16x64xf32> -> vector<16x64xf32>
    %79 = arith.addf %70, %78 : vector<16x64xf32>
    %c11 = arith.constant 11 : index
    %c0_40 = arith.constant 0 : index
    %80 = vector.load %arg10[%c11, %c0_40] : memref<32x64xf32, #tpu.memory_space<vmem>>, vector<16x64xf32>
    %cst_41 = arith.constant 0.000000e+00 : f32
    %81 = vector.shape_cast %30 : vector<16x1xi1> to vector<16x1xi1>
    %82 = vector.broadcast %81 : vector<16x1xi1> to vector<16x64xi1>
    %83 = vector.broadcast %cst_41 : f32 to vector<16x64xf32>
    %84 = arith.select %82, %80, %83 : vector<16x64xi1>, vector<16x64xf32>
    %85 = arith.truncf %84 : vector<16x64xf32> to vector<16x64xbf16>
    %c384 = arith.constant 384 : index
    %c0_42 = arith.constant 0 : index
    %86 = vector.load %arg4[%c384, %c0_42] : memref<576x64xbf16, #tpu.memory_space<vmem>>, vector<64x64xbf16>
    %cst_43 = arith.constant dense<0.000000e+00> : vector<16x64xf32>
    %87 = tpu.matmul %85, %86, %cst_43 {dimension_numbers = #tpu.dot_dimension_numbers<[1], [0], [0], [1], [0, 0, 1, 1], [], []>} : vector<16x64xbf16>, vector<64x64xbf16>, vector<16x64xf32> -> vector<16x64xf32>
    %88 = arith.addf %79, %87 : vector<16x64xf32>
    %c12 = arith.constant 12 : index
    %c0_44 = arith.constant 0 : index
    %89 = vector.load %arg10[%c12, %c0_44] : memref<32x64xf32, #tpu.memory_space<vmem>>, vector<16x64xf32>
    %90 = arith.truncf %89 : vector<16x64xf32> to vector<16x64xbf16>
    %c448 = arith.constant 448 : index
    %c0_45 = arith.constant 0 : index
    %91 = vector.load %arg4[%c448, %c0_45] : memref<576x64xbf16, #tpu.memory_space<vmem>>, vector<64x64xbf16>
    %cst_46 = arith.constant dense<0.000000e+00> : vector<16x64xf32>
    %92 = tpu.matmul %90, %91, %cst_46 {dimension_numbers = #tpu.dot_dimension_numbers<[1], [0], [0], [1], [0, 0, 1, 1], [], []>} : vector<16x64xbf16>, vector<64x64xbf16>, vector<16x64xf32> -> vector<16x64xf32>
    %93 = arith.addf %88, %92 : vector<16x64xf32>
    %c13 = arith.constant 13 : index
    %c0_47 = arith.constant 0 : index
    %94 = vector.load %arg10[%c13, %c0_47] : memref<32x64xf32, #tpu.memory_space<vmem>>, vector<16x64xf32>
    %cst_48 = arith.constant 0.000000e+00 : f32
    %95 = vector.shape_cast %32 : vector<16x1xi1> to vector<16x1xi1>
    %96 = vector.broadcast %95 : vector<16x1xi1> to vector<16x64xi1>
    %97 = vector.broadcast %cst_48 : f32 to vector<16x64xf32>
    %98 = arith.select %96, %94, %97 : vector<16x64xi1>, vector<16x64xf32>
    %99 = arith.truncf %98 : vector<16x64xf32> to vector<16x64xbf16>
    %c512 = arith.constant 512 : index
    %c0_49 = arith.constant 0 : index
    %100 = vector.load %arg4[%c512, %c0_49] : memref<576x64xbf16, #tpu.memory_space<vmem>>, vector<64x64xbf16>
    %cst_50 = arith.constant dense<0.000000e+00> : vector<16x64xf32>
    %101 = tpu.matmul %99, %100, %cst_50 {dimension_numbers = #tpu.dot_dimension_numbers<[1], [0], [0], [1], [0, 0, 1, 1], [], []>} : vector<16x64xbf16>, vector<64x64xbf16>, vector<16x64xf32> -> vector<16x64xf32>
    %102 = arith.addf %93, %101 : vector<16x64xf32>
    %c0_51 = arith.constant 0 : index
    %c0_52 = arith.constant 0 : index
    %103 = vector.load %arg5[%c0_51, %c0_52] : memref<1x64xf32, #tpu.memory_space<vmem>>, vector<1x64xf32>
    %104 = vector.broadcast %103 : vector<1x64xf32> to vector<16x64xf32>
    %105 = arith.addf %102, %104 : vector<16x64xf32>
    %c0_53 = arith.constant 0 : index
    %c0_54 = arith.constant 0 : index
    %c0_55 = arith.constant 0 : index
    %106 = vector.load %arg6[%c0_53, %c0_54, %c0_55] : memref<1x16x32xbf16, #tpu.memory_space<vmem>>, vector<1x16x32xbf16>
    %107 = vector.shape_cast %106 : vector<1x16x32xbf16> to vector<16x32xbf16>
    %c0_56 = arith.constant 0 : index
    %c0_57 = arith.constant 0 : index
    %108 = vector.load %arg7[%c0_56, %c0_57] : memref<32x64xbf16, #tpu.memory_space<vmem>>, vector<32x64xbf16>
    %cst_58 = arith.constant dense<0.000000e+00> : vector<16x64xf32>
    %109 = tpu.matmul %107, %108, %cst_58 {dimension_numbers = #tpu.dot_dimension_numbers<[1], [0], [0], [1], [0, 0, 1, 1], [], []>} : vector<16x32xbf16>, vector<32x64xbf16>, vector<16x64xf32> -> vector<16x64xf32>
    %110 = arith.addf %105, %109 : vector<16x64xf32>
    %c0_59 = arith.constant 0 : index
    %c0_60 = arith.constant 0 : index
    %111 = vector.load %arg8[%c0_59, %c0_60] : memref<1x64xf32, #tpu.memory_space<vmem>>, vector<1x64xf32>
    %112 = vector.broadcast %111 : vector<1x64xf32> to vector<16x64xf32>
    %113 = arith.addf %110, %112 : vector<16x64xf32>
    %cst_61 = arith.constant 0.000000e+00 : f32
    %114 = vector.broadcast %cst_61 : f32 to vector<16x64xf32>
    %115 = arith.maximumf %113, %114 : vector<16x64xf32>
    %116 = arith.truncf %115 : vector<16x64xf32> to vector<16x64xbf16>
    %c0_62 = arith.constant 0 : index
    %c0_63 = arith.constant 0 : index
    %c0_64 = arith.constant 0 : index
    %117 = vector.load %arg9[%c0_62, %c0_63, %c0_64] : memref<1x16x64xbf16, #tpu.memory_space<vmem>>, vector<1x16x64xbf16>
    %118 = vector.shape_cast %117 : vector<1x16x64xbf16> to vector<16x64xbf16>
    %119 = vector.shape_cast %116 : vector<16x64xbf16> to vector<1x16x64xbf16>
    tpu.vector_store %arg9[%c0_62, %c0_63, %c0_64], %119 {strides = array<i32>} : memref<1x16x64xbf16, #tpu.memory_space<vmem>>, vector<1x16x64xbf16>,
    return
  }
  func.func @transform_0(%arg0: i32) -> (i32, i32, i32) {
    %c0_i32 = arith.constant 0 : i32
    %c0_i32_0 = arith.constant 0 : i32
    %c0_i32_1 = arith.constant 0 : i32
    return %arg0, %c0_i32, %c0_i32_0 : i32, i32, i32
  }
  func.func @transform_1(%arg0: i32) -> (i32, i32) {
    %c0_i32 = arith.constant 0 : i32
    %c0_i32_0 = arith.constant 0 : i32
    %c0_i32_1 = arith.constant 0 : i32
    return %c0_i32, %c0_i32_0 : i32, i32
  }
  func.func @transform_2(%arg0: i32) -> (i32, i32) {
    %c0_i32 = arith.constant 0 : i32
    %c0_i32_0 = arith.constant 0 : i32
    %c0_i32_1 = arith.constant 0 : i32
    return %c0_i32, %c0_i32_0 : i32, i32
  }
  func.func @transform_3(%arg0: i32) -> (i32, i32) {
    %c0_i32 = arith.constant 0 : i32
    %c0_i32_0 = arith.constant 0 : i32
    %c0_i32_1 = arith.constant 0 : i32
    return %c0_i32, %c0_i32_0 : i32, i32
  }
  func.func @transform_4(%arg0: i32) -> (i32, i32) {
    %c0_i32 = arith.constant 0 : i32
    %c0_i32_0 = arith.constant 0 : i32
    %c0_i32_1 = arith.constant 0 : i32
    return %c0_i32, %c0_i32_0 : i32, i32
  }
  func.func @transform_5(%arg0: i32) -> (i32, i32, i32) {
    %c0_i32 = arith.constant 0 : i32
    %c0_i32_0 = arith.constant 0 : i32
    %c0_i32_1 = arith.constant 0 : i32
    return %arg0, %c0_i32, %c0_i32_0 : i32, i32, i32
  }
  func.func @transform_6(%arg0: i32) -> (i32, i32) {
    %c0_i32 = arith.constant 0 : i32
    %c0_i32_0 = arith.constant 0 : i32
    %c0_i32_1 = arith.constant 0 : i32
    return %c0_i32, %c0_i32_0 : i32, i32
  }
  func.func @transform_7(%arg0: i32) -> (i32, i32) {
    %c0_i32 = arith.constant 0 : i32
    %c0_i32_0 = arith.constant 0 : i32
    %c0_i32_1 = arith.constant 0 : i32
    return %c0_i32, %c0_i32_0 : i32, i32
  }
  func.func @transform_8(%arg0: i32) -> (i32, i32, i32) {
    %c0_i32 = arith.constant 0 : i32
    %c0_i32_0 = arith.constant 0 : i32
    %c0_i32_1 = arith.constant 0 : i32
    return %arg0, %c0_i32, %c0_i32_0 : i32, i32, i32
  }
}

</mosaic_0001>

<llo_original>
// kernel: resnet_forward.5
$region0: #{resnet_forward.5}
  #allocation0 [shape = 'u32[]', space=smem, size = 0x4, offset = 0x4, fixed_abs, tag = 'smem constant byte address 0x4 - core index']
  #allocation1 [shape = 'u32[144,128]{1,0:T(1,128)}', space=vmem, size = 0x12000, scoped, tag = 'internal scratch']
  %s0 = inlined_call_operand.vmem [shape: bf16[512,128], index: 0, kind: input, shape index: {}]
  %s1 = inlined_call_operand.vmem [shape: bf16[128,16], index: 1, kind: input, shape index: {}]
  %s2 = inlined_call_operand.vmem [shape: f32[1,16], index: 2, kind: input, shape index: {}]
  %s3 = inlined_call_operand.vmem [shape: bf16[512,16], index: 3, kind: output, shape index: {}]
  %s4 = sld [smem:[#allocation0]]
  $region45: #{resnet_forward.5} parent=0
    _
  %s6 = ssub.s32 1, %s4
  %s7 = scalar_select 0, %s6, %s4
  loop: start=0, step=1, limit=4
  $region2: #{resnet_forward.5} parent=0 // loop_pre_header
    _
  $region3: #{resnet_forward.5} parent=0 // loop_header
    %s9 = sphi 0, %s13
    %p10 = scmp.ge.s32.totalorder %s9, 4
    %s19 = sphi 0, %s21
    %s22 = sphi 0, %s19
    %s23 = sphi 0, %s22
    %s39 = sphi 0, %s23
    %s43 = sphi 0, %s43
    %s45 = sphi 0, %s43
    %s46 = sphi 0, %s45
    %s60 = sphi 0, %s46
    %s64 = sphi 0, %s64
    %s66 = sphi 0, %s64
    %s67 = sphi 0, %s66
    %s81 = sphi 0, %s67
    %s87 = sphi 0, %s89
    %s90 = sphi 0, %s87
    %s91 = sphi 0, %s90
    %s107 = sphi 0, %s91
  $region4: #{resnet_forward.5} parent=0 // loop_header_branch
    %12 = sbr.rel (%p10) target = $region8
  $region5: #{resnet_forward.5} parent=0 // loop_body
    %s14 = ssub.s32 %s9, 1
    %s15 = ssub.s32 %s9, 2
    %s16 = sadd.s32 %s9, 1
    %s17 = ssub.s32 %s9, %s16
    %p18 = scmp.eq.s32.totalorder %s17, 0
    %s20 = sadd.s32 %s19, 1
    %s21 = scalar_select %p18, %s19, %s20
    %p24 = pneg %p18
    %p25 = scmp.eq.s32.totalorder %s9, 1
    %p26 = por %p24, %p25
    %p27 = scmp.ne.s32.totalorder %s19, %s22
    %p28 = scmp.eq.s32.totalorder %s9, 0
    %p29 = por %p27, %p28
    %p30 = scmp.ne.s32.totalorder %s19, %s22
    %p31 = scmp.eq.s32.totalorder %s14, 1
    %p32 = por %p30, %p31
    %p33 = scmp.ne.s32.totalorder %s22, %s23
    %p34 = scmp.eq.s32.totalorder %s14, 0
    %p35 = por %p33, %p34
    %p36 = scmp.ne.s32.totalorder %s22, %s23
    %p37 = scmp.eq.s32.totalorder %s15, 1
    %p38 = por %p36, %p37
    %p40 = scmp.ne.s32.totalorder %s23, %s39
    %p41 = scmp.eq.s32.totalorder %s15, 0
    %p42 = por %p40, %p41
    %s44 = sadd.s32 %s43, 1
    %p47 = scmp.eq.s32.totalorder %s9, 1
    %p48 = scmp.ne.s32.totalorder %s43, %s45
    %p49 = scmp.eq.s32.totalorder %s9, 0
    %p50 = por %p48, %p49
    %p51 = scmp.ne.s32.totalorder %s43, %s45
    %p52 = scmp.eq.s32.totalorder %s14, 1
    %p53 = por %p51, %p52
    %p54 = scmp.ne.s32.totalorder %s45, %s46
    %p55 = scmp.eq.s32.totalorder %s14, 0
    %p56 = por %p54, %p55
    %p57 = scmp.ne.s32.totalorder %s45, %s46
    %p58 = scmp.eq.s32.totalorder %s15, 1
    %p59 = por %p57, %p58
    %p61 = scmp.ne.s32.totalorder %s46, %s60
    %p62 = scmp.eq.s32.totalorder %s15, 0
    %p63 = por %p61, %p62
    %s65 = sadd.s32 %s64, 1
    %p68 = scmp.eq.s32.totalorder %s9, 1
    %p69 = scmp.ne.s32.totalorder %s64, %s66
    %p70 = scmp.eq.s32.totalorder %s9, 0
    %p71 = por %p69, %p70
    %p72 = scmp.ne.s32.totalorder %s64, %s66
    %p73 = scmp.eq.s32.totalorder %s14, 1
    %p74 = por %p72, %p73
    %p75 = scmp.ne.s32.totalorder %s66, %s67
    %p76 = scmp.eq.s32.totalorder %s14, 0
    %p77 = por %p75, %p76
    %p78 = scmp.ne.s32.totalorder %s66, %s67
    %p79 = scmp.eq.s32.totalorder %s15, 1
    %p80 = por %p78, %p79
    %p82 = scmp.ne.s32.totalorder %s67, %s81
    %p83 = scmp.eq.s32.totalorder %s15, 0
    %p84 = por %p82, %p83
    %s85 = ssub.s32 %s9, %s16
    %p86 = scmp.eq.s32.totalorder %s85, 0
    %s88 = sadd.s32 %s87, 1
    %s89 = scalar_select %p86, %s87, %s88
    %p92 = pneg %p86
    %p93 = scmp.eq.s32.totalorder %s9, 1
    %p94 = por %p92, %p93
    %p95 = scmp.ne.s32.totalorder %s87, %s90
    %p96 = scmp.eq.s32.totalorder %s9, 0
    %p97 = por %p95, %p96
    %p98 = scmp.ne.s32.totalorder %s87, %s90
    %p99 = scmp.eq.s32.totalorder %s14, 1
    %p100 = por %p98, %p99
    %p101 = scmp.ne.s32.totalorder %s90, %s91
    %p102 = scmp.eq.s32.totalorder %s14, 0
    %p103 = por %p101, %p102
    %p104 = scmp.ne.s32.totalorder %s90, %s91
    %p105 = scmp.eq.s32.totalorder %s15, 1
    %p106 = por %p104, %p105
    %p108 = scmp.ne.s32.totalorder %s91, %s107
    %p109 = scmp.eq.s32.totalorder %s15, 0
    %p110 = por %p108, %p109
    %p111 = scmp.le.s32.totalorder 1, %s9
    %p112 = scmp.lt.s32.totalorder %s9, 3
    %p113 = pnand %p111, %p112
    %p114 = pneg %p113
    // Predicated region
    $region9: #{resnet_forward.5} parent=5 // pred_check
      _
    $region10: #{resnet_forward.5} parent=5 // pred_check_branch
      %116 = sbr.rel (%p113) target = $region12
    $region11: #{resnet_forward.5} parent=5 // pred_region
      %s117 = ssub.s32 %s9, 1
      // Predicated region
      $region13: #{resnet_forward.5} parent=11 // pred_check
        %p118 = pneg %p56
      $region14: #{resnet_forward.5} parent=11 // pred_check_branch
        %120 = sbr.rel (%p118) target = $region16
      $region15: #{resnet_forward.5} parent=11 // pred_region
        _
      $region16: #{resnet_forward.5} parent=11 // pred_fallthru
        _
      // Predicated region
      $region17: #{resnet_forward.5} parent=11 // pred_check
        %p121 = pneg %p77
      $region18: #{resnet_forward.5} parent=11 // pred_check_branch
        %123 = sbr.rel (%p121) target = $region20
      $region19: #{resnet_forward.5} parent=11 // pred_region
        _
      $region20: #{resnet_forward.5} parent=11 // pred_fallthru
        _
    $region12: #{resnet_forward.5} parent=5 // pred_fallthru
      _
    %p124 = scmp.lt.s32.totalorder %s9, 2
    // Predicated region
    $region21: #{resnet_forward.5} parent=5 // pred_check
      %p125 = pneg %p124
    $region22: #{resnet_forward.5} parent=5 // pred_check_branch
      %127 = sbr.rel (%p125) target = $region24
    $region23: #{resnet_forward.5} parent=5 // pred_region
      // Predicated region
      $region25: #{resnet_forward.5} parent=23 // pred_check
        %p128 = pneg %p29
      $region26: #{resnet_forward.5} parent=23 // pred_check_branch
        %130 = sbr.rel (%p128) target = $region28
      $region27: #{resnet_forward.5} parent=23 // pred_region
        %s131 = smul.u32 32, %s9
        %p132 = scmp.lt.s32.totalorder %s131, 63
        %s133 = scalar_select %p132, %s131, 63
        %s134 = smul.addr %s133, 4
        %s135 = scalar_lea.vmem %s0, %s134
        %s136 = smul.u32 32, %s9
      $region28: #{resnet_forward.5} parent=23 // pred_fallthru
        _
    $region24: #{resnet_forward.5} parent=5 // pred_fallthru
      _
    %p137 = scmp.le.s32.totalorder 1, %s9
    %p138 = scmp.lt.s32.totalorder %s9, 3
    %p139 = pnand %p137, %p138
    %p140 = pneg %p139
    // Predicated region
    $region29: #{resnet_forward.5} parent=5 // pred_check
      _
    $region30: #{resnet_forward.5} parent=5 // pred_check_branch
      %142 = sbr.rel (%p139) target = $region32
    $region31: #{resnet_forward.5} parent=5 // pred_region
      %s143 = ssub.s32 %s9, 1
      %s144 = smul.u32 32, %s14
      %p145 = scmp.lt.s32.totalorder %s144, 63
      %s146 = scalar_select %p145, %s144, 63
      %s147 = smul.addr %s146, 4
      %s148 = scalar_lea.vmem %s0, %s147
      %p149 = pneg %p35
      %p150 = pneg %p32
      %p151 = pneg %p56
      %p152 = pneg %p53
      %p153 = pneg %p77
      %p154 = pneg %p74
      %p155 = pneg %p103
      %p156 = pneg %p100
      %s157 = smul.u32 32, %s14
      %p158 = scmp.lt.s32.totalorder %s157, 63
      %s159 = scalar_select %p158, %s157, 63
      %s160 = smul.addr %s159, 4
      %s161 = scalar_lea.vmem %s3, %s160
      %s162 = smul.u32 32, %s14
      %p163 = scmp.lt.s32.totalorder %s162, 63
      %s164 = scalar_select %p163, %s162, 63
      %s165 = smul.addr %s164, 4
      %s166 = scalar_lea.vmem %s0, %s165
      %s167 = smul.u32 32, %s14
      %s168 = smul.u32 32, %s14
      %p169 = scmp.lt.s32.totalorder %s168, 63
      %s170 = scalar_select %p169, %s168, 63
      %s171 = smul.addr %s170, 4
      %s172 = scalar_lea.vmem %s3, %s171
      %s173 = smul.u32 32, %s14
      %v175 = vld [vmem:[%s166] sm:$0xf]
      %v176 = vld [vmem:[%s166 + $0x4] sm:$0xf]
      %v177 = vld [vmem:[%s166 + $0x8] sm:$0xf]
      %v178 = vld [vmem:[%s166 + $0xc] sm:$0xf]
      %v179 = vld [vmem:[%s166 + $0x10] sm:$0xf]
      %v180 = vld [vmem:[%s166 + $0x14] sm:$0xf]
      %v181 = vld [vmem:[%s166 + $0x18] sm:$0xf]
      %v182 = vld [vmem:[%s166 + $0x1c] sm:$0xf]
      %v183 = vld [vmem:[%s166 + $0x20] sm:$0xf]
      %v184 = vld [vmem:[%s166 + $0x24] sm:$0xf]
      %v185 = vld [vmem:[%s166 + $0x28] sm:$0xf]
      %v186 = vld [vmem:[%s166 + $0x2c] sm:$0xf]
      %v187 = vld [vmem:[%s166 + $0x30] sm:$0xf]
      %v188 = vld [vmem:[%s166 + $0x34] sm:$0xf]
      %v189 = vld [vmem:[%s166 + $0x38] sm:$0xf]
      %v190 = vld [vmem:[%s166 + $0x3c] sm:$0xf]
      %v191 = vld [vmem:[%s166 + $0x40] sm:$0xf]
      %v192 = vld [vmem:[%s166 + $0x44] sm:$0xf]
      %v193 = vld [vmem:[%s166 + $0x48] sm:$0xf]
      %v194 = vld [vmem:[%s166 + $0x4c] sm:$0xf]
      %v195 = vld [vmem:[%s166 + $0x50] sm:$0xf]
      %v196 = vld [vmem:[%s166 + $0x54] sm:$0xf]
      %v197 = vld [vmem:[%s166 + $0x58] sm:$0xf]
      %v198 = vld [vmem:[%s166 + $0x5c] sm:$0xf]
      %v199 = vld [vmem:[%s166 + $0x60] sm:$0xf]
      %v200 = vld [vmem:[%s166 + $0x64] sm:$0xf]
      %v201 = vld [vmem:[%s166 + $0x68] sm:$0xf]
      %v202 = vld [vmem:[%s166 + $0x6c] sm:$0xf]
      %v203 = vld [vmem:[%s166 + $0x70] sm:$0xf]
      %v204 = vld [vmem:[%s166 + $0x74] sm:$0xf]
      %v205 = vld [vmem:[%s166 + $0x78] sm:$0xf]
      %v206 = vld [vmem:[%s166 + $0x7c] sm:$0xf]
      %v207 = vld [vmem:[%s1] sm:$0xf]
      %v208 = vld [vmem:[%s1 + $0x4] sm:$0xf]
      %v209 = vld [vmem:[%s1 + $0x8] sm:$0xf]
      %v210 = vld [vmem:[%s1 + $0xc] sm:$0xf]
      %v211 = vld [vmem:[%s1 + $0x10] sm:$0xf]
      %v212 = vld [vmem:[%s1 + $0x14] sm:$0xf]
      %v213 = vld [vmem:[%s1 + $0x18] sm:$0xf]
      %v214 = vld [vmem:[%s1 + $0x1c] sm:$0xf]
      %v215 = vld [vmem:[%s1 + $0x20] sm:$0xf]
      %v216 = vld [vmem:[%s1 + $0x24] sm:$0xf]
      %v217 = vld [vmem:[%s1 + $0x28] sm:$0xf]
      %v218 = vld [vmem:[%s1 + $0x2c] sm:$0xf]
      %v219 = vld [vmem:[%s1 + $0x30] sm:$0xf]
      %v220 = vld [vmem:[%s1 + $0x34] sm:$0xf]
      %v221 = vld [vmem:[%s1 + $0x38] sm:$0xf]
      %v222 = vld [vmem:[%s1 + $0x3c] sm:$0xf]
      %v223 = vld [vmem:[%s2] sm:$0x1]
      %v225 = vlaneseq
      %v226 = vshrl.u32 %v225, 7
      %v227 = vsub.s32 0, %v226
      %v228 = vrot.slane %v223, %v227
      %v262 = vunpack.c.l.b16 %v175
      %v263 = vunpack.c.l.b16 %v176
      %v264 = vunpack.c.l.b16 %v177
      %v265 = vunpack.c.l.b16 %v178
      %v266 = vunpack.c.l.b16 %v179
      %v267 = vunpack.c.l.b16 %v180
      %v268 = vunpack.c.l.b16 %v181
      %v269 = vunpack.c.l.b16 %v182
      %v270 = vunpack.c.l.b16 %v183
      %v271 = vunpack.c.l.b16 %v184
      %v272 = vunpack.c.l.b16 %v185
      %v273 = vunpack.c.l.b16 %v186
      %v274 = vunpack.c.l.b16 %v187
      %v275 = vunpack.c.l.b16 %v188
      %v276 = vunpack.c.l.b16 %v189
      %v277 = vunpack.c.l.b16 %v190
      %v278 = vunpack.c.l.b16 %v191
      %v279 = vunpack.c.l.b16 %v192
      %v280 = vunpack.c.l.b16 %v193
      %v281 = vunpack.c.l.b16 %v194
      %v282 = vunpack.c.l.b16 %v195
      %v283 = vunpack.c.l.b16 %v196
      %v284 = vunpack.c.l.b16 %v197
      %v285 = vunpack.c.l.b16 %v198
      %v286 = vunpack.c.l.b16 %v199
      %v287 = vunpack.c.l.b16 %v200
      %v288 = vunpack.c.l.b16 %v201
      %v289 = vunpack.c.l.b16 %v202
      %v290 = vunpack.c.l.b16 %v203
      %v291 = vunpack.c.l.b16 %v204
      %v292 = vunpack.c.l.b16 %v205
      %v293 = vunpack.c.l.b16 %v206
      %v294 = vpack.c.b16 %v263, %v262
      %v295 = vpack.c.b16 %v265, %v264
      %v296 = vpack.c.b16 %v267, %v266
      %v297 = vpack.c.b16 %v269, %v268
      %v298 = vpack.c.b16 %v271, %v270
      %v299 = vpack.c.b16 %v273, %v272
      %v300 = vpack.c.b16 %v275, %v274
      %v301 = vpack.c.b16 %v277, %v276
      %v302 = vpack.c.b16 %v279, %v278
      %v303 = vpack.c.b16 %v281, %v280
      %v304 = vpack.c.b16 %v283, %v282
      %v305 = vpack.c.b16 %v285, %v284
      %v306 = vpack.c.b16 %v287, %v286
      %v307 = vpack.c.b16 %v289, %v288
      %v308 = vpack.c.b16 %v291, %v290
      %v309 = vpack.c.b16 %v293, %v292
      %v342 = vunpack.c.l.b16 %v207
      %v343 = vunpack.c.l.b16 %v208
      %v344 = vunpack.c.l.b16 %v209
      %v345 = vunpack.c.l.b16 %v210
      %v346 = vunpack.c.l.b16 %v211
      %v347 = vunpack.c.l.b16 %v212
      %v348 = vunpack.c.l.b16 %v213
      %v349 = vunpack.c.l.b16 %v214
      %v350 = vunpack.c.l.b16 %v215
      %v351 = vunpack.c.l.b16 %v216
      %v352 = vunpack.c.l.b16 %v217
      %v353 = vunpack.c.l.b16 %v218
      %v354 = vunpack.c.l.b16 %v219
      %v355 = vunpack.c.l.b16 %v220
      %v356 = vunpack.c.l.b16 %v221
      %v357 = vunpack.c.l.b16 %v222
      %v358 = vpack.c.b16 %v343, %v342
      %v359 = vpack.c.b16 %v345, %v344
      %v360 = vpack.c.b16 %v347, %v346
      %v361 = vpack.c.b16 %v349, %v348
      %v362 = vpack.c.b16 %v351, %v350
      %v363 = vpack.c.b16 %v353, %v352
      %v364 = vpack.c.b16 %v355, %v354
      %v365 = vpack.c.b16 %v357, %v356
      %374 = vmatprep.subr.bf16.mxu0 0
      %375 = vmatpush1.bf16.msra.mxu0 %v365
      %376 = vmatprep.subr.bf16.mxu0 0
      %377 = vmatpush1.bf16.msra.mxu0 %v364
      %378 = vmatprep.subr.bf16.mxu0 0
      %379 = vmatpush1.bf16.msra.mxu0 %v363
      %380 = vmatprep.subr.bf16.mxu0 0
      %381 = vmatpush1.bf16.msra.mxu0 %v362
      %382 = vmatprep.subr.bf16.mxu0 0
      %383 = vmatpush1.bf16.msra.mxu0 %v361
      %384 = vmatprep.subr.bf16.mxu0 0
      %385 = vmatpush1.bf16.msra.mxu0 %v360
      %386 = vmatprep.subr.bf16.mxu0 0
      %387 = vmatpush1.bf16.msra.mxu0 %v359
      %388 = vmatprep.subr.bf16.mxu0 0
      %389 = vmatpush1.bf16.msra.mxu0 %v358
      %390 = vmatprep.subr.bf16.mxu0 0
      %391 = vmatpush2.bf16.msra.mxu0 0
      %392 = vmatprep.subr.bf16.mxu0 0
      %393 = vmatpush2.bf16.msra.mxu0 0
      %394 = vmatprep.subr.bf16.mxu0 0
      %395 = vmatpush2.bf16.msra.mxu0 0
      %396 = vmatprep.subr.bf16.mxu0 0
      %397 = vmatpush2.bf16.msra.mxu0 0
      %398 = vmatprep.subr.bf16.mxu0 0
      %399 = vmatpush2.bf16.msra.mxu0 0
      %400 = vmatprep.subr.bf16.mxu0 0
      %401 = vmatpush2.bf16.msra.mxu0 0
      %402 = vmatprep.subr.bf16.mxu0 0
      %403 = vmatpush2.bf16.msra.mxu0 0
      %404 = vmatprep.subr.bf16.mxu0 0
      %405 = vmatpush2.bf16.msra.mxu0 0
      %406 = vmatprep.mubr.bf16.mxu0 0
      %407 = vmatmul.mubr.bf16.gmra.mxu0 %v294
      %v408 = vpop.f32.mrf.mxu0
      %v409 = vadd.f32 %v228, %v408
      %v410 = vpop.f32.mrf.mxu0
      %v411 = vpop.f32.mrf.mxu0
      %v412 = vadd.f32 %v228, %v411
      %v413 = vpop.f32.mrf.mxu0
      %414 = vmatprep.mubr.bf16.mxu0 0
      %415 = vmatmul.mubr.bf16.gmra.mxu0 %v295
      %v416 = vpop.f32.mrf.mxu0
      %v417 = vadd.f32 %v228, %v416
      %v418 = vpop.f32.mrf.mxu0
      %v419 = vpop.f32.mrf.mxu0
      %v420 = vadd.f32 %v228, %v419
      %v421 = vpop.f32.mrf.mxu0
      %422 = vmatprep.mubr.bf16.mxu0 0
      %423 = vmatmul.mubr.bf16.gmra.mxu0 %v296
      %v424 = vpop.f32.mrf.mxu0
      %v425 = vadd.f32 %v228, %v424
      %v426 = vpop.f32.mrf.mxu0
      %v427 = vpop.f32.mrf.mxu0
      %v428 = vadd.f32 %v228, %v427
      %v429 = vpop.f32.mrf.mxu0
      %430 = vmatprep.mubr.bf16.mxu0 0
      %431 = vmatmul.mubr.bf16.gmra.mxu0 %v297
      %v432 = vpop.f32.mrf.mxu0
      %v433 = vadd.f32 %v228, %v432
      %v434 = vpop.f32.mrf.mxu0
      %v435 = vpop.f32.mrf.mxu0
      %v436 = vadd.f32 %v228, %v435
      %v437 = vpop.f32.mrf.mxu0
      %438 = vmatprep.mubr.bf16.mxu0 0
      %439 = vmatmul.mubr.bf16.gmra.mxu0 %v298
      %v440 = vpop.f32.mrf.mxu0
      %v441 = vadd.f32 %v228, %v440
      %v442 = vpop.f32.mrf.mxu0
      %v443 = vpop.f32.mrf.mxu0
      %v444 = vadd.f32 %v228, %v443
      %v445 = vpop.f32.mrf.mxu0
      %446 = vmatprep.mubr.bf16.mxu0 0
      %447 = vmatmul.mubr.bf16.gmra.mxu0 %v299
      %v448 = vpop.f32.mrf.mxu0
      %v449 = vadd.f32 %v228, %v448
      %v450 = vpop.f32.mrf.mxu0
      %v451 = vpop.f32.mrf.mxu0
      %v452 = vadd.f32 %v228, %v451
      %v453 = vpop.f32.mrf.mxu0
      %454 = vmatprep.mubr.bf16.mxu0 0
      %455 = vmatmul.mubr.bf16.gmra.mxu0 %v300
      %v456 = vpop.f32.mrf.mxu0
      %v457 = vadd.f32 %v228, %v456
      %v458 = vpop.f32.mrf.mxu0
      %v459 = vpop.f32.mrf.mxu0
      %v460 = vadd.f32 %v228, %v459
      %v461 = vpop.f32.mrf.mxu0
      %462 = vmatprep.mubr.bf16.mxu0 0
      %463 = vmatmul.mubr.bf16.gmra.mxu0 %v301
      %v464 = vpop.f32.mrf.mxu0
      %v465 = vadd.f32 %v228, %v464
      %v466 = vpop.f32.mrf.mxu0
      %v467 = vpop.f32.mrf.mxu0
      %v468 = vadd.f32 %v228, %v467
      %v469 = vpop.f32.mrf.mxu0
      %470 = vmatprep.mubr.bf16.mxu0 0
      %471 = vmatmul.mubr.bf16.gmra.mxu0 %v302
      %v472 = vpop.f32.mrf.mxu0
      %v473 = vadd.f32 %v228, %v472
      %v474 = vpop.f32.mrf.mxu0
      %v475 = vpop.f32.mrf.mxu0
      %v476 = vadd.f32 %v228, %v475
      %v477 = vpop.f32.mrf.mxu0
      %478 = vmatprep.mubr.bf16.mxu0 0
      %479 = vmatmul.mubr.bf16.gmra.mxu0 %v303
      %v480 = vpop.f32.mrf.mxu0
      %v481 = vadd.f32 %v228, %v480
      %v482 = vpop.f32.mrf.mxu0
      %v483 = vpop.f32.mrf.mxu0
      %v484 = vadd.f32 %v228, %v483
      %v485 = vpop.f32.mrf.mxu0
      %486 = vmatprep.mubr.bf16.mxu0 0
      %487 = vmatmul.mubr.bf16.gmra.mxu0 %v304
      %v488 = vpop.f32.mrf.mxu0
      %v489 = vadd.f32 %v228, %v488
      %v490 = vpop.f32.mrf.mxu0
      %v491 = vpop.f32.mrf.mxu0
      %v492 = vadd.f32 %v228, %v491
      %v493 = vpop.f32.mrf.mxu0
      %494 = vmatprep.mubr.bf16.mxu0 0
      %495 = vmatmul.mubr.bf16.gmra.mxu0 %v305
      %v496 = vpop.f32.mrf.mxu0
      %v497 = vadd.f32 %v228, %v496
      %v498 = vpop.f32.mrf.mxu0
      %v499 = vpop.f32.mrf.mxu0
      %v500 = vadd.f32 %v228, %v499
      %v501 = vpop.f32.mrf.mxu0
      %502 = vmatprep.mubr.bf16.mxu0 0
      %503 = vmatmul.mubr.bf16.gmra.mxu0 %v306
      %v504 = vpop.f32.mrf.mxu0
      %v505 = vadd.f32 %v228, %v504
      %v506 = vpop.f32.mrf.mxu0
      %v507 = vpop.f32.mrf.mxu0
      %v508 = vadd.f32 %v228, %v507
      %v509 = vpop.f32.mrf.mxu0
      %510 = vmatprep.mubr.bf16.mxu0 0
      %511 = vmatmul.mubr.bf16.gmra.mxu0 %v307
      %v512 = vpop.f32.mrf.mxu0
      %v513 = vadd.f32 %v228, %v512
      %v514 = vpop.f32.mrf.mxu0
      %v515 = vpop.f32.mrf.mxu0
      %v516 = vadd.f32 %v228, %v515
      %v517 = vpop.f32.mrf.mxu0
      %518 = vmatprep.mubr.bf16.mxu0 0
      %519 = vmatmul.mubr.bf16.gmra.mxu0 %v308
      %v520 = vpop.f32.mrf.mxu0
      %v521 = vadd.f32 %v228, %v520
      %v522 = vpop.f32.mrf.mxu0
      %v523 = vpop.f32.mrf.mxu0
      %v524 = vadd.f32 %v228, %v523
      %v525 = vpop.f32.mrf.mxu0
      %526 = vmatprep.mubr.bf16.mxu0 0
      %527 = vmatmul.mubr.bf16.gmra.mxu0 %v309
      %v528 = vpop.f32.mrf.mxu0
      %v529 = vadd.f32 %v228, %v528
      %v530 = vpop.f32.mrf.mxu0
      %v531 = vpop.f32.mrf.mxu0
      %v532 = vadd.f32 %v228, %v531
      %v533 = vpop.f32.mrf.mxu0
      %534 = vdwg.mxu0
      %v535 = vmax.f32 %v409, 0.0
      %v536 = vmax.f32 %v412, 0.0
      %v537 = vmax.f32 %v417, 0.0
      %v538 = vmax.f32 %v420, 0.0
      %v539 = vmax.f32 %v425, 0.0
      %v540 = vmax.f32 %v428, 0.0
      %v541 = vmax.f32 %v433, 0.0
      %v542 = vmax.f32 %v436, 0.0
      %v543 = vmax.f32 %v441, 0.0
      %v544 = vmax.f32 %v444, 0.0
      %v545 = vmax.f32 %v449, 0.0
      %v546 = vmax.f32 %v452, 0.0
      %v547 = vmax.f32 %v457, 0.0
      %v548 = vmax.f32 %v460, 0.0
      %v549 = vmax.f32 %v465, 0.0
      %v550 = vmax.f32 %v468, 0.0
      %v551 = vmax.f32 %v473, 0.0
      %v552 = vmax.f32 %v476, 0.0
      %v553 = vmax.f32 %v481, 0.0
      %v554 = vmax.f32 %v484, 0.0
      %v555 = vmax.f32 %v489, 0.0
      %v556 = vmax.f32 %v492, 0.0
      %v557 = vmax.f32 %v497, 0.0
      %v558 = vmax.f32 %v500, 0.0
      %v559 = vmax.f32 %v505, 0.0
      %v560 = vmax.f32 %v508, 0.0
      %v561 = vmax.f32 %v513, 0.0
      %v562 = vmax.f32 %v516, 0.0
      %v563 = vmax.f32 %v521, 0.0
      %v564 = vmax.f32 %v524, 0.0
      %v565 = vmax.f32 %v529, 0.0
      %v566 = vmax.f32 %v532, 0.0
      %v567 = vpack.c.bf16 %v536, %v535
      %v568 = vpack.c.bf16 %v538, %v537
      %v569 = vpack.c.bf16 %v540, %v539
      %v570 = vpack.c.bf16 %v542, %v541
      %v571 = vpack.c.bf16 %v544, %v543
      %v572 = vpack.c.bf16 %v546, %v545
      %v573 = vpack.c.bf16 %v548, %v547
      %v574 = vpack.c.bf16 %v550, %v549
      %v575 = vpack.c.bf16 %v552, %v551
      %v576 = vpack.c.bf16 %v554, %v553
      %v577 = vpack.c.bf16 %v556, %v555
      %v578 = vpack.c.bf16 %v558, %v557
      %v579 = vpack.c.bf16 %v560, %v559
      %v580 = vpack.c.bf16 %v562, %v561
      %v581 = vpack.c.bf16 %v564, %v563
      %v582 = vpack.c.bf16 %v566, %v565
      %v599 = vunpack.c.l.b16 %v567
      %v600 = vunpack.c.h.b16 %v567
      %v601 = vunpack.c.l.b16 %v568
      %v602 = vunpack.c.h.b16 %v568
      %v603 = vunpack.c.l.b16 %v569
      %v604 = vunpack.c.h.b16 %v569
      %v605 = vunpack.c.l.b16 %v570
      %v606 = vunpack.c.h.b16 %v570
      %v607 = vunpack.c.l.b16 %v571
      %v608 = vunpack.c.h.b16 %v571
      %v609 = vunpack.c.l.b16 %v572
      %v610 = vunpack.c.h.b16 %v572
      %v611 = vunpack.c.l.b16 %v573
      %v612 = vunpack.c.h.b16 %v573
      %v613 = vunpack.c.l.b16 %v574
      %v614 = vunpack.c.h.b16 %v574
      %v615 = vunpack.c.l.b16 %v575
      %v616 = vunpack.c.h.b16 %v575
      %v617 = vunpack.c.l.b16 %v576
      %v618 = vunpack.c.h.b16 %v576
      %v619 = vunpack.c.l.b16 %v577
      %v620 = vunpack.c.h.b16 %v577
      %v621 = vunpack.c.l.b16 %v578
      %v622 = vunpack.c.h.b16 %v578
      %v623 = vunpack.c.l.b16 %v579
      %v624 = vunpack.c.h.b16 %v579
      %v625 = vunpack.c.l.b16 %v580
      %v626 = vunpack.c.h.b16 %v580
      %v627 = vunpack.c.l.b16 %v581
      %v628 = vunpack.c.h.b16 %v581
      %v629 = vunpack.c.l.b16 %v582
      %v630 = vunpack.c.h.b16 %v582
      %v631 = vpack.c.b16 %v599, %v599
      %v632 = vpack.c.b16 %v600, %v600
      %v633 = vpack.c.b16 %v601, %v601
      %v634 = vpack.c.b16 %v602, %v602
      %v635 = vpack.c.b16 %v603, %v603
      %v636 = vpack.c.b16 %v604, %v604
      %v637 = vpack.c.b16 %v605, %v605
      %v638 = vpack.c.b16 %v606, %v606
      %v639 = vpack.c.b16 %v607, %v607
      %v640 = vpack.c.b16 %v608, %v608
      %v641 = vpack.c.b16 %v609, %v609
      %v642 = vpack.c.b16 %v610, %v610
      %v643 = vpack.c.b16 %v611, %v611
      %v644 = vpack.c.b16 %v612, %v612
      %v645 = vpack.c.b16 %v613, %v613
      %v646 = vpack.c.b16 %v614, %v614
      %v647 = vpack.c.b16 %v615, %v615
      %v648 = vpack.c.b16 %v616, %v616
      %v649 = vpack.c.b16 %v617, %v617
      %v650 = vpack.c.b16 %v618, %v618
      %v651 = vpack.c.b16 %v619, %v619
      %v652 = vpack.c.b16 %v620, %v620
      %v653 = vpack.c.b16 %v621, %v621
      %v654 = vpack.c.b16 %v622, %v622
      %v655 = vpack.c.b16 %v623, %v623
      %v656 = vpack.c.b16 %v624, %v624
      %v657 = vpack.c.b16 %v625, %v625
      %v658 = vpack.c.b16 %v626, %v626
      %v659 = vpack.c.b16 %v627, %v627
      %v660 = vpack.c.b16 %v628, %v628
      %v661 = vpack.c.b16 %v629, %v629
      %v662 = vpack.c.b16 %v630, %v630
      %vm695 = vcmask 125952
      %696 = vst.msk [vmem:[%s172] sm:$0xf] %vm695, %v631
      %697 = vst.msk [vmem:[%s172 + $0x4] sm:$0xf] %vm695, %v632
      %698 = vst.msk [vmem:[%s172 + $0x8] sm:$0xf] %vm695, %v633
      %699 = vst.msk [vmem:[%s172 + $0xc] sm:$0xf] %vm695, %v634
      %700 = vst.msk [vmem:[%s172 + $0x10] sm:$0xf] %vm695, %v635
      %701 = vst.msk [vmem:[%s172 + $0x14] sm:$0xf] %vm695, %v636
      %702 = vst.msk [vmem:[%s172 + $0x18] sm:$0xf] %vm695, %v637
      %703 = vst.msk [vmem:[%s172 + $0x1c] sm:$0xf] %vm695, %v638
      %704 = vst.msk [vmem:[%s172 + $0x20] sm:$0xf] %vm695, %v639
      %705 = vst.msk [vmem:[%s172 + $0x24] sm:$0xf] %vm695, %v640
      %706 = vst.msk [vmem:[%s172 + $0x28] sm:$0xf] %vm695, %v641
      %707 = vst.msk [vmem:[%s172 + $0x2c] sm:$0xf] %vm695, %v642
      %708 = vst.msk [vmem:[%s172 + $0x30] sm:$0xf] %vm695, %v643
      %709 = vst.msk [vmem:[%s172 + $0x34] sm:$0xf] %vm695, %v644
      %710 = vst.msk [vmem:[%s172 + $0x38] sm:$0xf] %vm695, %v645
      %711 = vst.msk [vmem:[%s172 + $0x3c] sm:$0xf] %vm695, %v646
      %712 = vst.msk [vmem:[%s172 + $0x40] sm:$0xf] %vm695, %v647
      %713 = vst.msk [vmem:[%s172 + $0x44] sm:$0xf] %vm695, %v648
      %714 = vst.msk [vmem:[%s172 + $0x48] sm:$0xf] %vm695, %v649
      %715 = vst.msk [vmem:[%s172 + $0x4c] sm:$0xf] %vm695, %v650
      %716 = vst.msk [vmem:[%s172 + $0x50] sm:$0xf] %vm695, %v651
      %717 = vst.msk [vmem:[%s172 + $0x54] sm:$0xf] %vm695, %v652
      %718 = vst.msk [vmem:[%s172 + $0x58] sm:$0xf] %vm695, %v653
      %719 = vst.msk [vmem:[%s172 + $0x5c] sm:$0xf] %vm695, %v654
      %720 = vst.msk [vmem:[%s172 + $0x60] sm:$0xf] %vm695, %v655
      %721 = vst.msk [vmem:[%s172 + $0x64] sm:$0xf] %vm695, %v656
      %722 = vst.msk [vmem:[%s172 + $0x68] sm:$0xf] %vm695, %v657
      %723 = vst.msk [vmem:[%s172 + $0x6c] sm:$0xf] %vm695, %v658
      %724 = vst.msk [vmem:[%s172 + $0x70] sm:$0xf] %vm695, %v659
      %725 = vst.msk [vmem:[%s172 + $0x74] sm:$0xf] %vm695, %v660
      %726 = vst.msk [vmem:[%s172 + $0x78] sm:$0xf] %vm695, %v661
      %727 = vst.msk [vmem:[%s172 + $0x7c] sm:$0xf] %vm695, %v662
      %s728 = smul.u32 32, %s14
      %p729 = scmp.lt.s32.totalorder %s728, 63
      %s730 = scalar_select %p729, %s728, 63
      %s731 = smul.addr %s730, 4
      %s732 = scalar_lea.vmem %s3, %s731
      // Predicated region
      $region33: #{resnet_forward.5} parent=31 // pred_check
        %p733 = pneg %p100
      $region34: #{resnet_forward.5} parent=31 // pred_check_branch
        %735 = sbr.rel (%p733) target = $region36
      $region35: #{resnet_forward.5} parent=31 // pred_region
        %s736 = smul.u32 32, %s14
      $region36: #{resnet_forward.5} parent=31 // pred_fallthru
        _
    $region32: #{resnet_forward.5} parent=5 // pred_fallthru
      _
    %p737 = scmp.le.s32.totalorder 2, %s9
    // Predicated region
    $region37: #{resnet_forward.5} parent=5 // pred_check
      %p738 = pneg %p737
    $region38: #{resnet_forward.5} parent=5 // pred_check_branch
      %740 = sbr.rel (%p738) target = $region40
    $region39: #{resnet_forward.5} parent=5 // pred_region
      %s741 = ssub.s32 %s9, 2
      // Predicated region
      $region41: #{resnet_forward.5} parent=39 // pred_check
        %p742 = pneg %p106
      $region42: #{resnet_forward.5} parent=39 // pred_check_branch
        %744 = sbr.rel (%p742) target = $region44
      $region43: #{resnet_forward.5} parent=39 // pred_region
        %s745 = smul.u32 32, %s15
        %p746 = scmp.lt.s32.totalorder %s745, 63
        %s747 = scalar_select %p746, %s745, 63
        %s748 = smul.addr %s747, 4
        %s749 = scalar_lea.vmem %s3, %s748
      $region44: #{resnet_forward.5} parent=39 // pred_fallthru
        _
    $region40: #{resnet_forward.5} parent=5 // pred_fallthru
      _
  $region6: #{resnet_forward.5} parent=0 // loop_footer
    %s13 = sadd.s32 1, %s9
  $region7: #{resnet_forward.5} parent=0 // loop_footer_branch
    %8 = sbr.rel target = $region3
  $region8: #{resnet_forward.5} parent=0 // loop_exit
    _

// kernel: resnet_forward.7
$region0: #{resnet_forward.7}
  #allocation0 [shape = 'u32[]', space=smem, size = 0x4, offset = 0x4, fixed_abs, tag = 'smem constant byte address 0x4 - core index']
  #allocation1 [shape = 'u32[144,128]{1,0:T(1,128)}', space=vmem, size = 0x12000, scoped, tag = 'internal scratch']
  #allocation2 [shape = 'f32[96,32]{1,0:T(8,128)}', space=vmem, size = 0xc000, scoped, tag = 'scratch operand']
  %s0 = inlined_call_operand.vmem [shape: bf16[2,64,256], index: 0, kind: input, shape index: {}]
  %s1 = inlined_call_operand.vmem [shape: bf16[256,32], index: 1, kind: input, shape index: {}]
  %s2 = inlined_call_operand.vmem [shape: f32[1,32], index: 2, kind: input, shape index: {}]
  %s3 = inlined_call_operand.vmem [shape: bf16[288,32], index: 3, kind: input, shape index: {}]
  %s4 = inlined_call_operand.vmem [shape: f32[1,32], index: 4, kind: input, shape index: {}]
  %s5 = inlined_call_operand.vmem [shape: bf16[2,64,16], index: 5, kind: input, shape index: {}]
  %s6 = inlined_call_operand.vmem [shape: bf16[16,32], index: 6, kind: input, shape index: {}]
  %s7 = inlined_call_operand.vmem [shape: f32[1,32], index: 7, kind: input, shape index: {}]
  %s8 = inlined_call_operand.vmem [shape: bf16[2,64,32], index: 8, kind: output, shape index: {}]
  %s9 = sld [smem:[#allocation0]]
  $region65: #{resnet_forward.7} parent=0
    _
  %s11 = ssub.s32 1, %s9
  %s12 = scalar_select 0, %s11, %s9
  loop: start=0, step=1, limit=4
  $region2: #{resnet_forward.7} parent=0 // loop_pre_header
    _
  $region3: #{resnet_forward.7} parent=0 // loop_header
    %s14 = sphi 0, %s18
    %p15 = scmp.ge.s32.totalorder %s14, 4
    %s24 = sphi 0, %s26
    %s27 = sphi 0, %s24
    %s28 = sphi 0, %s27
    %s44 = sphi 0, %s28
    %s48 = sphi 0, %s48
    %s50 = sphi 0, %s48
    %s51 = sphi 0, %s50
    %s65 = sphi 0, %s51
    %s69 = sphi 0, %s69
    %s71 = sphi 0, %s69
    %s72 = sphi 0, %s71
    %s86 = sphi 0, %s72
    %s90 = sphi 0, %s90
    %s92 = sphi 0, %s90
    %s93 = sphi 0, %s92
    %s107 = sphi 0, %s93
    %s111 = sphi 0, %s111
    %s113 = sphi 0, %s111
    %s114 = sphi 0, %s113
    %s128 = sphi 0, %s114
    %s134 = sphi 0, %s136
    %s137 = sphi 0, %s134
    %s138 = sphi 0, %s137
    %s154 = sphi 0, %s138
    %s158 = sphi 0, %s158
    %s160 = sphi 0, %s158
    %s161 = sphi 0, %s160
    %s175 = sphi 0, %s161
    %s179 = sphi 0, %s179
    %s181 = sphi 0, %s179
    %s182 = sphi 0, %s181
    %s196 = sphi 0, %s182
    %s202 = sphi 0, %s204
    %s205 = sphi 0, %s202
    %s206 = sphi 0, %s205
    %s222 = sphi 0, %s206
  $region4: #{resnet_forward.7} parent=0 // loop_header_branch
    %17 = sbr.rel (%p15) target = $region8
  $region5: #{resnet_forward.7} parent=0 // loop_body
    %s19 = ssub.s32 %s14, 1
    %s20 = ssub.s32 %s14, 2
    %s21 = sadd.s32 %s14, 1
    %s22 = ssub.s32 %s14, %s21
    %p23 = scmp.eq.s32.totalorder %s22, 0
    %s25 = sadd.s32 %s24, 1
    %s26 = scalar_select %p23, %s24, %s25
    %p29 = pneg %p23
    %p30 = scmp.eq.s32.totalorder %s14, 1
    %p31 = por %p29, %p30
    %p32 = scmp.ne.s32.totalorder %s24, %s27
    %p33 = scmp.eq.s32.totalorder %s14, 0
    %p34 = por %p32, %p33
    %p35 = scmp.ne.s32.totalorder %s24, %s27
    %p36 = scmp.eq.s32.totalorder %s19, 1
    %p37 = por %p35, %p36
    %p38 = scmp.ne.s32.totalorder %s27, %s28
    %p39 = scmp.eq.s32.totalorder %s19, 0
    %p40 = por %p38, %p39
    %p41 = scmp.ne.s32.totalorder %s27, %s28
    %p42 = scmp.eq.s32.totalorder %s20, 1
    %p43 = por %p41, %p42
    %p45 = scmp.ne.s32.totalorder %s28, %s44
    %p46 = scmp.eq.s32.totalorder %s20, 0
    %p47 = por %p45, %p46
    %s49 = sadd.s32 %s48, 1
    %p52 = scmp.eq.s32.totalorder %s14, 1
    %p53 = scmp.ne.s32.totalorder %s48, %s50
    %p54 = scmp.eq.s32.totalorder %s14, 0
    %p55 = por %p53, %p54
    %p56 = scmp.ne.s32.totalorder %s48, %s50
    %p57 = scmp.eq.s32.totalorder %s19, 1
    %p58 = por %p56, %p57
    %p59 = scmp.ne.s32.totalorder %s50, %s51
    %p60 = scmp.eq.s32.totalorder %s19, 0
    %p61 = por %p59, %p60
    %p62 = scmp.ne.s32.totalorder %s50, %s51
    %p63 = scmp.eq.s32.totalorder %s20, 1
    %p64 = por %p62, %p63
    %p66 = scmp.ne.s32.totalorder %s51, %s65
    %p67 = scmp.eq.s32.totalorder %s20, 0
    %p68 = por %p66, %p67
    %s70 = sadd.s32 %s69, 1
    %p73 = scmp.eq.s32.totalorder %s14, 1
    %p74 = scmp.ne.s32.totalorder %s69, %s71
    %p75 = scmp.eq.s32.totalorder %s14, 0
    %p76 = por %p74, %p75
    %p77 = scmp.ne.s32.totalorder %s69, %s71
    %p78 = scmp.eq.s32.totalorder %s19, 1
    %p79 = por %p77, %p78
    %p80 = scmp.ne.s32.totalorder %s71, %s72
    %p81 = scmp.eq.s32.totalorder %s19, 0
    %p82 = por %p80, %p81
    %p83 = scmp.ne.s32.totalorder %s71, %s72
    %p84 = scmp.eq.s32.totalorder %s20, 1
    %p85 = por %p83, %p84
    %p87 = scmp.ne.s32.totalorder %s72, %s86
    %p88 = scmp.eq.s32.totalorder %s20, 0
    %p89 = por %p87, %p88
    %s91 = sadd.s32 %s90, 1
    %p94 = scmp.eq.s32.totalorder %s14, 1
    %p95 = scmp.ne.s32.totalorder %s90, %s92
    %p96 = scmp.eq.s32.totalorder %s14, 0
    %p97 = por %p95, %p96
    %p98 = scmp.ne.s32.totalorder %s90, %s92
    %p99 = scmp.eq.s32.totalorder %s19, 1
    %p100 = por %p98, %p99
    %p101 = scmp.ne.s32.totalorder %s92, %s93
    %p102 = scmp.eq.s32.totalorder %s19, 0
    %p103 = por %p101, %p102
    %p104 = scmp.ne.s32.totalorder %s92, %s93
    %p105 = scmp.eq.s32.totalorder %s20, 1
    %p106 = por %p104, %p105
    %p108 = scmp.ne.s32.totalorder %s93, %s107
    %p109 = scmp.eq.s32.totalorder %s20, 0
    %p110 = por %p108, %p109
    %s112 = sadd.s32 %s111, 1
    %p115 = scmp.eq.s32.totalorder %s14, 1
    %p116 = scmp.ne.s32.totalorder %s111, %s113
    %p117 = scmp.eq.s32.totalorder %s14, 0
    %p118 = por %p116, %p117
    %p119 = scmp.ne.s32.totalorder %s111, %s113
    %p120 = scmp.eq.s32.totalorder %s19, 1
    %p121 = por %p119, %p120
    %p122 = scmp.ne.s32.totalorder %s113, %s114
    %p123 = scmp.eq.s32.totalorder %s19, 0
    %p124 = por %p122, %p123
    %p125 = scmp.ne.s32.totalorder %s113, %s114
    %p126 = scmp.eq.s32.totalorder %s20, 1
    %p127 = por %p125, %p126
    %p129 = scmp.ne.s32.totalorder %s114, %s128
    %p130 = scmp.eq.s32.totalorder %s20, 0
    %p131 = por %p129, %p130
    %s132 = ssub.s32 %s14, %s21
    %p133 = scmp.eq.s32.totalorder %s132, 0
    %s135 = sadd.s32 %s134, 1
    %s136 = scalar_select %p133, %s134, %s135
    %p139 = pneg %p133
    %p140 = scmp.eq.s32.totalorder %s14, 1
    %p141 = por %p139, %p140
    %p142 = scmp.ne.s32.totalorder %s134, %s137
    %p143 = scmp.eq.s32.totalorder %s14, 0
    %p144 = por %p142, %p143
    %p145 = scmp.ne.s32.totalorder %s134, %s137
    %p146 = scmp.eq.s32.totalorder %s19, 1
    %p147 = por %p145, %p146
    %p148 = scmp.ne.s32.totalorder %s137, %s138
    %p149 = scmp.eq.s32.totalorder %s19, 0
    %p150 = por %p148, %p149
    %p151 = scmp.ne.s32.totalorder %s137, %s138
    %p152 = scmp.eq.s32.totalorder %s20, 1
    %p153 = por %p151, %p152
    %p155 = scmp.ne.s32.totalorder %s138, %s154
    %p156 = scmp.eq.s32.totalorder %s20, 0
    %p157 = por %p155, %p156
    %s159 = sadd.s32 %s158, 1
    %p162 = scmp.eq.s32.totalorder %s14, 1
    %p163 = scmp.ne.s32.totalorder %s158, %s160
    %p164 = scmp.eq.s32.totalorder %s14, 0
    %p165 = por %p163, %p164
    %p166 = scmp.ne.s32.totalorder %s158, %s160
    %p167 = scmp.eq.s32.totalorder %s19, 1
    %p168 = por %p166, %p167
    %p169 = scmp.ne.s32.totalorder %s160, %s161
    %p170 = scmp.eq.s32.totalorder %s19, 0
    %p171 = por %p169, %p170
    %p172 = scmp.ne.s32.totalorder %s160, %s161
    %p173 = scmp.eq.s32.totalorder %s20, 1
    %p174 = por %p172, %p173
    %p176 = scmp.ne.s32.totalorder %s161, %s175
    %p177 = scmp.eq.s32.totalorder %s20, 0
    %p178 = por %p176, %p177
    %s180 = sadd.s32 %s179, 1
    %p183 = scmp.eq.s32.totalorder %s14, 1
    %p184 = scmp.ne.s32.totalorder %s179, %s181
    %p185 = scmp.eq.s32.totalorder %s14, 0
    %p186 = por %p184, %p185
    %p187 = scmp.ne.s32.totalorder %s179, %s181
    %p188 = scmp.eq.s32.totalorder %s19, 1
    %p189 = por %p187, %p188
    %p190 = scmp.ne.s32.totalorder %s181, %s182
    %p191 = scmp.eq.s32.totalorder %s19, 0
    %p192 = por %p190, %p191
    %p193 = scmp.ne.s32.totalorder %s181, %s182
    %p194 = scmp.eq.s32.totalorder %s20, 1
    %p195 = por %p193, %p194
    %p197 = scmp.ne.s32.totalorder %s182, %s196
    %p198 = scmp.eq.s32.totalorder %s20, 0
    %p199 = por %p197, %p198
    %s200 = ssub.s32 %s14, %s21
    %p201 = scmp.eq.s32.totalorder %s200, 0
    %s203 = sadd.s32 %s202, 1
    %s204 = scalar_select %p201, %s202, %s203
    %p207 = pneg %p201
    %p208 = scmp.eq.s32.totalorder %s14, 1
    %p209 = por %p207, %p208
    %p210 = scmp.ne.s32.totalorder %s202, %s205
    %p211 = scmp.eq.s32.totalorder %s14, 0
    %p212 = por %p210, %p211
    %p213 = scmp.ne.s32.totalorder %s202, %s205
    %p214 = scmp.eq.s32.totalorder %s19, 1
    %p215 = por %p213, %p214
    %p216 = scmp.ne.s32.totalorder %s205, %s206
    %p217 = scmp.eq.s32.totalorder %s19, 0
    %p218 = por %p216, %p217
    %p219 = scmp.ne.s32.totalorder %s205, %s206
    %p220 = scmp.eq.s32.totalorder %s20, 1
    %p221 = por %p219, %p220
    %p223 = scmp.ne.s32.totalorder %s206, %s222
    %p224 = scmp.eq.s32.totalorder %s20, 0
    %p225 = por %p223, %p224
    %p226 = scmp.le.s32.totalorder 1, %s14
    %p227 = scmp.lt.s32.totalorder %s14, 3
    %p228 = pnand %p226, %p227
    %p229 = pneg %p228
    // Predicated region
    $region9: #{resnet_forward.7} parent=5 // pred_check
      _
    $region10: #{resnet_forward.7} parent=5 // pred_check_branch
      %231 = sbr.rel (%p228) target = $region12
    $region11: #{resnet_forward.7} parent=5 // pred_region
      %s232 = ssub.s32 %s14, 1
      // Predicated region
      $region13: #{resnet_forward.7} parent=11 // pred_check
        %p233 = pneg %p61
      $region14: #{resnet_forward.7} parent=11 // pred_check_branch
        %235 = sbr.rel (%p233) target = $region16
      $region15: #{resnet_forward.7} parent=11 // pred_region
        _
      $region16: #{resnet_forward.7} parent=11 // pred_fallthru
        _
      // Predicated region
      $region17: #{resnet_forward.7} parent=11 // pred_check
        %p236 = pneg %p82
      $region18: #{resnet_forward.7} parent=11 // pred_check_branch
        %238 = sbr.rel (%p236) target = $region20
      $region19: #{resnet_forward.7} parent=11 // pred_region
        _
      $region20: #{resnet_forward.7} parent=11 // pred_fallthru
        _
      // Predicated region
      $region21: #{resnet_forward.7} parent=11 // pred_check
        %p239 = pneg %p103
      $region22: #{resnet_forward.7} parent=11 // pred_check_branch
        %241 = sbr.rel (%p239) target = $region24
      $region23: #{resnet_forward.7} parent=11 // pred_region
        _
      $region24: #{resnet_forward.7} parent=11 // pred_fallthru
        _
      // Predicated region
      $region25: #{resnet_forward.7} parent=11 // pred_check
        %p242 = pneg %p124
      $region26: #{resnet_forward.7} parent=11 // pred_check_branch
        %244 = sbr.rel (%p242) target = $region28
      $region27: #{resnet_forward.7} parent=11 // pred_region
        _
      $region28: #{resnet_forward.7} parent=11 // pred_fallthru
        _
      // Predicated region
      $region29: #{resnet_forward.7} parent=11 // pred_check
        %p245 = pneg %p171
      $region30: #{resnet_forward.7} parent=11 // pred_check_branch
        %247 = sbr.rel (%p245) target = $region32
      $region31: #{resnet_forward.7} parent=11 // pred_region
        _
      $region32: #{resnet_forward.7} parent=11 // pred_fallthru
        _
      // Predicated region
      $region33: #{resnet_forward.7} parent=11 // pred_check
        %p248 = pneg %p192
      $region34: #{resnet_forward.7} parent=11 // pred_check_branch
        %250 = sbr.rel (%p248) target = $region36
      $region35: #{resnet_forward.7} parent=11 // pred_region
        _
      $region36: #{resnet_forward.7} parent=11 // pred_fallthru
        _
    $region12: #{resnet_forward.7} parent=5 // pred_fallthru
      _
    %p251 = scmp.lt.s32.totalorder %s14, 2
    // Predicated region
    $region37: #{resnet_forward.7} parent=5 // pred_check
      %p252 = pneg %p251
    $region38: #{resnet_forward.7} parent=5 // pred_check_branch
      %254 = sbr.rel (%p252) target = $region40
    $region39: #{resnet_forward.7} parent=5 // pred_region
      // Predicated region
      $region41: #{resnet_forward.7} parent=39 // pred_check
        %p255 = pneg %p34
      $region42: #{resnet_forward.7} parent=39 // pred_check_branch
        %257 = sbr.rel (%p255) target = $region44
      $region43: #{resnet_forward.7} parent=39 // pred_region
        %p258 = scmp.lt.s32.totalorder %s14, 1
        %s259 = scalar_select %p258, %s14, 1
        %s260 = smul.addr %s259, 16
        %s261 = smul.addr %s260, 4
        %s262 = scalar_lea.vmem %s0, %s261
      $region44: #{resnet_forward.7} parent=39 // pred_fallthru
        _
      // Predicated region
      $region45: #{resnet_forward.7} parent=39 // pred_check
        %p263 = pneg %p144
      $region46: #{resnet_forward.7} parent=39 // pred_check_branch
        %265 = sbr.rel (%p263) target = $region48
      $region47: #{resnet_forward.7} parent=39 // pred_region
        %p266 = scmp.lt.s32.totalorder %s14, 1
        %s267 = scalar_select %p266, %s14, 1
        %s268 = smul.addr %s267, 8
        %s269 = smul.addr %s268, 4
        %s270 = scalar_lea.vmem %s5, %s269
      $region48: #{resnet_forward.7} parent=39 // pred_fallthru
        _
    $region40: #{resnet_forward.7} parent=5 // pred_fallthru
      _
    %p271 = scmp.le.s32.totalorder 1, %s14
    %p272 = scmp.lt.s32.totalorder %s14, 3
    %p273 = pnand %p271, %p272
    %p274 = pneg %p273
    // Predicated region
    $region49: #{resnet_forward.7} parent=5 // pred_check
      _
    $region50: #{resnet_forward.7} parent=5 // pred_check_branch
      %276 = sbr.rel (%p273) target = $region52
    $region51: #{resnet_forward.7} parent=5 // pred_region
      %s277 = ssub.s32 %s14, 1
      %p278 = scmp.lt.s32.totalorder %s19, 1
      %s279 = scalar_select %p278, %s19, 1
      %s280 = smul.addr %s279, 16
      %s281 = smul.addr %s280, 4
      %s282 = scalar_lea.vmem %s0, %s281
      %p283 = pneg %p40
      %p284 = pneg %p37
      %p285 = pneg %p61
      %p286 = pneg %p58
      %p287 = pneg %p82
      %p288 = pneg %p79
      %p289 = pneg %p103
      %p290 = pneg %p100
      %p291 = pneg %p124
      %p292 = pneg %p121
      %p293 = scmp.lt.s32.totalorder %s19, 1
      %s294 = scalar_select %p293, %s19, 1
      %s295 = smul.addr %s294, 8
      %s296 = smul.addr %s295, 4
      %s297 = scalar_lea.vmem %s5, %s296
      %p298 = pneg %p150
      %p299 = pneg %p147
      %p300 = pneg %p171
      %p301 = pneg %p168
      %p302 = pneg %p192
      %p303 = pneg %p189
      %p304 = pneg %p218
      %p305 = pneg %p215
      %p306 = scmp.lt.s32.totalorder %s19, 1
      %s307 = scalar_select %p306, %s19, 1
      %s308 = smul.addr %s307, 8
      %s309 = smul.addr %s308, 4
      %s310 = scalar_lea.vmem %s8, %s309
      %p311 = scmp.lt.s32.totalorder %s19, 1
      %s312 = scalar_select %p311, %s19, 1
      %s313 = smul.addr %s312, 16
      %s314 = smul.addr %s313, 4
      %s315 = scalar_lea.vmem %s0, %s314
      %p316 = scmp.lt.s32.totalorder %s19, 1
      %s317 = scalar_select %p316, %s19, 1
      %s318 = smul.addr %s317, 8
      %s319 = smul.addr %s318, 4
      %s320 = scalar_lea.vmem %s5, %s319
      %p321 = scmp.lt.s32.totalorder %s19, 1
      %s322 = scalar_select %p321, %s19, 1
      %s323 = smul.addr %s322, 8
      %s324 = smul.addr %s323, 4
      %s325 = scalar_lea.vmem %s8, %s324
      %v327 = vld [vmem:[%s315] sm:$0xff]
      %v328 = vld [vmem:[%s315 + $0x8] sm:$0xff]
      %v329 = vld [vmem:[%s315 + $0x10] sm:$0xff]
      %v330 = vld [vmem:[%s315 + $0x18] sm:$0xff]
      %v331 = vld [vmem:[%s315 + $0x20] sm:$0xff]
      %v332 = vld [vmem:[%s315 + $0x28] sm:$0xff]
      %v333 = vld [vmem:[%s315 + $0x30] sm:$0xff]
      %v334 = vld [vmem:[%s315 + $0x38] sm:$0xff]
      %v335 = vld [vmem:[%s1] sm:$0xf]
      %v336 = vld [vmem:[%s1 + $0x4] sm:$0xf]
      %v337 = vld [vmem:[%s1 + $0x8] sm:$0xf]
      %v338 = vld [vmem:[%s1 + $0xc] sm:$0xf]
      %v339 = vld [vmem:[%s1 + $0x10] sm:$0xf]
      %v340 = vld [vmem:[%s1 + $0x14] sm:$0xf]
      %v341 = vld [vmem:[%s1 + $0x18] sm:$0xf]
      %v342 = vld [vmem:[%s1 + $0x1c] sm:$0xf]
      %v343 = vld [vmem:[%s1 + $0x20] sm:$0xf]
      %v344 = vld [vmem:[%s1 + $0x24] sm:$0xf]
      %v345 = vld [vmem:[%s1 + $0x28] sm:$0xf]
      %v346 = vld [vmem:[%s1 + $0x2c] sm:$0xf]
      %v347 = vld [vmem:[%s1 + $0x30] sm:$0xf]
      %v348 = vld [vmem:[%s1 + $0x34] sm:$0xf]
      %v349 = vld [vmem:[%s1 + $0x38] sm:$0xf]
      %v350 = vld [vmem:[%s1 + $0x3c] sm:$0xf]
      %v351 = vld [vmem:[%s1 + $0x40] sm:$0xf]
      %v352 = vld [vmem:[%s1 + $0x44] sm:$0xf]
      %v353 = vld [vmem:[%s1 + $0x48] sm:$0xf]
      %v354 = vld [vmem:[%s1 + $0x4c] sm:$0xf]
      %v355 = vld [vmem:[%s1 + $0x50] sm:$0xf]
      %v356 = vld [vmem:[%s1 + $0x54] sm:$0xf]
      %v357 = vld [vmem:[%s1 + $0x58] sm:$0xf]
      %v358 = vld [vmem:[%s1 + $0x5c] sm:$0xf]
      %v359 = vld [vmem:[%s1 + $0x60] sm:$0xf]
      %v360 = vld [vmem:[%s1 + $0x64] sm:$0xf]
      %v361 = vld [vmem:[%s1 + $0x68] sm:$0xf]
      %v362 = vld [vmem:[%s1 + $0x6c] sm:$0xf]
      %v363 = vld [vmem:[%s1 + $0x70] sm:$0xf]
      %v364 = vld [vmem:[%s1 + $0x74] sm:$0xf]
      %v365 = vld [vmem:[%s1 + $0x78] sm:$0xf]
      %v366 = vld [vmem:[%s1 + $0x7c] sm:$0xf]
      %v367 = vld [vmem:[%s2] sm:$0x1]
      %v369 = vlaneseq
      %v370 = vshrl.u32 %v369, 7
      %v371 = vsub.s32 0, %v370
      %v372 = vrot.slane %v367, %v371
      %v382 = vunpack.c.l.b16 %v327
      %v383 = vunpack.c.h.b16 %v327
      %v384 = vunpack.c.l.b16 %v328
      %v385 = vunpack.c.h.b16 %v328
      %v386 = vunpack.c.l.b16 %v329
      %v387 = vunpack.c.h.b16 %v329
      %v388 = vunpack.c.l.b16 %v330
      %v389 = vunpack.c.h.b16 %v330
      %v390 = vunpack.c.l.b16 %v331
      %v391 = vunpack.c.h.b16 %v331
      %v392 = vunpack.c.l.b16 %v332
      %v393 = vunpack.c.h.b16 %v332
      %v394 = vunpack.c.l.b16 %v333
      %v395 = vunpack.c.h.b16 %v333
      %v396 = vunpack.c.l.b16 %v334
      %v397 = vunpack.c.h.b16 %v334
      %v398 = vpack.c.b16 %v384, %v382
      %v399 = vpack.c.b16 %v385, %v383
      %v400 = vpack.c.b16 %v388, %v386
      %v401 = vpack.c.b16 %v389, %v387
      %v402 = vpack.c.b16 %v392, %v390
      %v403 = vpack.c.b16 %v393, %v391
      %v404 = vpack.c.b16 %v396, %v394
      %v405 = vpack.c.b16 %v397, %v395
      %v446 = vunpack.c.l.b16 %v335
      %v447 = vunpack.c.l.b16 %v336
      %v448 = vunpack.c.l.b16 %v337
      %v449 = vunpack.c.l.b16 %v338
      %v450 = vunpack.c.l.b16 %v339
      %v451 = vunpack.c.l.b16 %v340
      %v452 = vunpack.c.l.b16 %v341
      %v453 = vunpack.c.l.b16 %v342
      %v454 = vunpack.c.l.b16 %v343
      %v455 = vunpack.c.l.b16 %v344
      %v456 = vunpack.c.l.b16 %v345
      %v457 = vunpack.c.l.b16 %v346
      %v458 = vunpack.c.l.b16 %v347
      %v459 = vunpack.c.l.b16 %v348
      %v460 = vunpack.c.l.b16 %v349
      %v461 = vunpack.c.l.b16 %v350
      %v462 = vunpack.c.l.b16 %v351
      %v463 = vunpack.c.l.b16 %v352
      %v464 = vunpack.c.l.b16 %v353
      %v465 = vunpack.c.l.b16 %v354
      %v466 = vunpack.c.l.b16 %v355
      %v467 = vunpack.c.l.b16 %v356
      %v468 = vunpack.c.l.b16 %v357
      %v469 = vunpack.c.l.b16 %v358
      %v470 = vunpack.c.l.b16 %v359
      %v471 = vunpack.c.l.b16 %v360
      %v472 = vunpack.c.l.b16 %v361
      %v473 = vunpack.c.l.b16 %v362
      %v474 = vunpack.c.l.b16 %v363
      %v475 = vunpack.c.l.b16 %v364
      %v476 = vunpack.c.l.b16 %v365
      %v477 = vunpack.c.l.b16 %v366
      %v478 = vpack.c.b16 %v447, %v446
      %v479 = vpack.c.b16 %v449, %v448
      %v480 = vpack.c.b16 %v451, %v450
      %v481 = vpack.c.b16 %v453, %v452
      %v482 = vpack.c.b16 %v455, %v454
      %v483 = vpack.c.b16 %v457, %v456
      %v484 = vpack.c.b16 %v459, %v458
      %v485 = vpack.c.b16 %v461, %v460
      %v486 = vpack.c.b16 %v463, %v462
      %v487 = vpack.c.b16 %v465, %v464
      %v488 = vpack.c.b16 %v467, %v466
      %v489 = vpack.c.b16 %v469, %v468
      %v490 = vpack.c.b16 %v471, %v470
      %v491 = vpack.c.b16 %v473, %v472
      %v492 = vpack.c.b16 %v475, %v474
      %v493 = vpack.c.b16 %v477, %v476
      %510 = vmatprep.subr.bf16.mxu0 0
      %511 = vmatpush1.bf16.msra.mxu0 %v485
      %512 = vmatprep.subr.bf16.mxu0 0
      %513 = vmatpush1.bf16.msra.mxu0 %v484
      %514 = vmatprep.subr.bf16.mxu0 0
      %515 = vmatpush1.bf16.msra.mxu0 %v483
      %516 = vmatprep.subr.bf16.mxu0 0
      %517 = vmatpush1.bf16.msra.mxu0 %v482
      %518 = vmatprep.subr.bf16.mxu0 0
      %519 = vmatpush1.bf16.msra.mxu0 %v481
      %520 = vmatprep.subr.bf16.mxu0 0
      %521 = vmatpush1.bf16.msra.mxu0 %v480
      %522 = vmatprep.subr.bf16.mxu0 0
      %523 = vmatpush1.bf16.msra.mxu0 %v479
      %524 = vmatprep.subr.bf16.mxu0 0
      %525 = vmatpush1.bf16.msra.mxu0 %v478
      %526 = vmatprep.subr.bf16.mxu0 0
      %527 = vmatpush2.bf16.msra.mxu0 %v493
      %528 = vmatprep.subr.bf16.mxu0 0
      %529 = vmatpush2.bf16.msra.mxu0 %v492
      %530 = vmatprep.subr.bf16.mxu0 0
      %531 = vmatpush2.bf16.msra.mxu0 %v491
      %532 = vmatprep.subr.bf16.mxu0 0
      %533 = vmatpush2.bf16.msra.mxu0 %v490
      %534 = vmatprep.subr.bf16.mxu0 0
      %535 = vmatpush2.bf16.msra.mxu0 %v489
      %536 = vmatprep.subr.bf16.mxu0 0
      %537 = vmatpush2.bf16.msra.mxu0 %v488
      %538 = vmatprep.subr.bf16.mxu0 0
      %539 = vmatpush2.bf16.msra.mxu0 %v487
      %540 = vmatprep.subr.bf16.mxu0 0
      %541 = vmatpush2.bf16.msra.mxu0 %v486
      %542 = vmatprep.mubr.bf16.mxu0 %v399
      %543 = vmatmul.mubr.bf16.gmra.mxu0 %v398
      %v544 = vpop.f32.mrf.mxu0
      %v545 = vadd.f32 %v372, %v544
      %v546 = vpop.f32.mrf.mxu0
      %v547 = vpop.f32.mrf.mxu0
      %v548 = vadd.f32 %v372, %v547
      %v549 = vpop.f32.mrf.mxu0
      %550 = vmatprep.mubr.bf16.mxu0 %v401
      %551 = vmatmul.mubr.bf16.gmra.mxu0 %v400
      %v552 = vpop.f32.mrf.mxu0
      %v553 = vadd.f32 %v372, %v552
      %v554 = vpop.f32.mrf.mxu0
      %v555 = vpop.f32.mrf.mxu0
      %v556 = vadd.f32 %v372, %v555
      %v557 = vpop.f32.mrf.mxu0
      %558 = vmatprep.mubr.bf16.mxu0 %v403
      %559 = vmatmul.mubr.bf16.gmra.mxu0 %v402
      %v560 = vpop.f32.mrf.mxu0
      %v561 = vadd.f32 %v372, %v560
      %v562 = vpop.f32.mrf.mxu0
      %v563 = vpop.f32.mrf.mxu0
      %v564 = vadd.f32 %v372, %v563
      %v565 = vpop.f32.mrf.mxu0
      %566 = vmatprep.mubr.bf16.mxu0 %v405
      %567 = vmatmul.mubr.bf16.gmra.mxu0 %v404
      %v568 = vpop.f32.mrf.mxu0
      %v569 = vadd.f32 %v372, %v568
      %v570 = vpop.f32.mrf.mxu0
      %v571 = vpop.f32.mrf.mxu0
      %v572 = vadd.f32 %v372, %v571
      %v573 = vpop.f32.mrf.mxu0
      %574 = vdwg.mxu0
      %v575 = vmax.f32 %v545, 0.0
      %v576 = vmax.f32 %v548, 0.0
      %v577 = vmax.f32 %v553, 0.0
      %v578 = vmax.f32 %v556, 0.0
      %v579 = vmax.f32 %v561, 0.0
      %v580 = vmax.f32 %v564, 0.0
      %v581 = vmax.f32 %v569, 0.0
      %v582 = vmax.f32 %v572, 0.0
      %vm583 = vcmask 261120
      %584 = vst.msk [vmem:[#allocation2] sm:$0xff] %vm583, 0.0
      %585 = vst.msk [vmem:[#allocation2 + $0x8] sm:$0xff] %vm583, 0.0
      %586 = vst.msk [vmem:[#allocation2 + $0x10] sm:$0xff] %vm583, 0.0
      %587 = vst.msk [vmem:[#allocation2 + $0x18] sm:$0xff] %vm583, 0.0
      %588 = vst.msk [vmem:[#allocation2 + $0x20] sm:$0xff] %vm583, 0.0
      %589 = vst.msk [vmem:[#allocation2 + $0x28] sm:$0xff] %vm583, 0.0
      %590 = vst.msk [vmem:[#allocation2 + $0x30] sm:$0xff] %vm583, 0.0
      %591 = vst.msk [vmem:[#allocation2 + $0x38] sm:$0xff] %vm583, 0.0
      %592 = vst.msk [vmem:[#allocation2 + $0x40] sm:$0xff] %vm583, 0.0
      %593 = vst.msk [vmem:[#allocation2 + $0x48] sm:$0xff] %vm583, 0.0
      %594 = vst.msk [vmem:[#allocation2 + $0x50] sm:$0xff] %vm583, 0.0
      %595 = vst.msk [vmem:[#allocation2 + $0x58] sm:$0xff] %vm583, 0.0
      %596 = vst.msk [vmem:[#allocation2 + $0x10] sm:$0xff] %vm583, %v575
      %597 = vst.msk [vmem:[#allocation2 + $0x18] sm:$0xff] %vm583, %v576
      %598 = vst.msk [vmem:[#allocation2 + $0x20] sm:$0xff] %vm583, %v577
      %599 = vst.msk [vmem:[#allocation2 + $0x28] sm:$0xff] %vm583, %v578
      %600 = vst.msk [vmem:[#allocation2 + $0x30] sm:$0xff] %vm583, %v579
      %601 = vst.msk [vmem:[#allocation2 + $0x38] sm:$0xff] %vm583, %v580
      %602 = vst.msk [vmem:[#allocation2 + $0x40] sm:$0xff] %vm583, %v581
      %603 = vst.msk [vmem:[#allocation2 + $0x48] sm:$0xff] %vm583, %v582
      %v604 = vlaneseq
      %v605 = vshrl.u32 %v604, 7
      %v606 = vadd.s32 %v605, 8
      %v607 = vadd.s32 %v605, 16
      %v608 = vadd.s32 %v605, 24
      %v609 = vadd.s32 %v605, 32
      %v610 = vadd.s32 %v605, 40
      %v611 = vadd.s32 %v605, 48
      %v612 = vadd.s32 %v605, 56
      %vm613 = vcmp.lt.s32.totalorder %v605, 0
      %v614 = vsub.s32 0, %v605
      %v615 = vsel %vm613, %v614, %v605
      %v616 = vshrl.u32 %v615, 3
      %v617 = vand.u32 %v615, 7
      %v618 = vsub.s32 0, %v617
      %v619 = vsel %vm613, %v618, %v617
      %vm620 = vcmp.lt.s32.totalorder %v606, 0
      %v621 = vsub.s32 0, %v606
      %v622 = vsel %vm620, %v621, %v606
      %v623 = vshrl.u32 %v622, 3
      %v624 = vand.u32 %v622, 7
      %v625 = vsub.s32 0, %v624
      %v626 = vsel %vm620, %v625, %v624
      %vm627 = vcmp.lt.s32.totalorder %v607, 0
      %v628 = vsub.s32 0, %v607
      %v629 = vsel %vm627, %v628, %v607
      %v630 = vshrl.u32 %v629, 3
      %v631 = vand.u32 %v629, 7
      %v632 = vsub.s32 0, %v631
      %v633 = vsel %vm627, %v632, %v631
      %vm634 = vcmp.lt.s32.totalorder %v608, 0
      %v635 = vsub.s32 0, %v608
      %v636 = vsel %vm634, %v635, %v608
      %v637 = vshrl.u32 %v636, 3
      %v638 = vand.u32 %v636, 7
      %v639 = vsub.s32 0, %v638
      %v640 = vsel %vm634, %v639, %v638
      %vm641 = vcmp.lt.s32.totalorder %v609, 0
      %v642 = vsub.s32 0, %v609
      %v643 = vsel %vm641, %v642, %v609
      %v644 = vshrl.u32 %v643, 3
      %v645 = vand.u32 %v643, 7
      %v646 = vsub.s32 0, %v645
      %v647 = vsel %vm641, %v646, %v645
      %vm648 = vcmp.lt.s32.totalorder %v610, 0
      %v649 = vsub.s32 0, %v610
      %v650 = vsel %vm648, %v649, %v610
      %v651 = vshrl.u32 %v650, 3
      %v652 = vand.u32 %v650, 7
      %v653 = vsub.s32 0, %v652
      %v654 = vsel %vm648, %v653, %v652
      %vm655 = vcmp.lt.s32.totalorder %v611, 0
      %v656 = vsub.s32 0, %v611
      %v657 = vsel %vm655, %v656, %v611
      %v658 = vshrl.u32 %v657, 3
      %v659 = vand.u32 %v657, 7
      %v660 = vsub.s32 0, %v659
      %v661 = vsel %vm655, %v660, %v659
      %vm662 = vcmp.lt.s32.totalorder %v612, 0
      %v663 = vsub.s32 0, %v612
      %v664 = vsel %vm662, %v663, %v612
      %v665 = vshrl.u32 %v664, 3
      %v666 = vand.u32 %v664, 7
      %v667 = vsub.s32 0, %v666
      %v668 = vsel %vm662, %v667, %v666
      %vm669 = vcmp.ne.s32.totalorder %v619, 0
      %vm670 = vcmp.ne.s32.totalorder %v626, 0
      %vm671 = vcmp.ne.s32.totalorder %v633, 0
      %vm672 = vcmp.ne.s32.totalorder %v640, 0
      %vm673 = vcmp.ne.s32.totalorder %v647, 0
      %vm674 = vcmp.ne.s32.totalorder %v654, 0
      %vm675 = vcmp.ne.s32.totalorder %v661, 0
      %vm676 = vcmp.ne.s32.totalorder %v668, 0
      %vm677 = vcmp.lt.s32.totalorder %v619, 0
      %vm678 = vcmp.lt.s32.totalorder %v626, 0
      %vm679 = vcmp.lt.s32.totalorder %v633, 0
      %vm680 = vcmp.lt.s32.totalorder %v640, 0
      %vm681 = vcmp.lt.s32.totalorder %v647, 0
      %vm682 = vcmp.lt.s32.totalorder %v654, 0
      %vm683 = vcmp.lt.s32.totalorder %v661, 0
      %vm684 = vcmp.lt.s32.totalorder %v668, 0
      %vm685 = vmand %vm677, %vm669
      %vm686 = vmand %vm678, %vm670
      %vm687 = vmand %vm679, %vm671
      %vm688 = vmand %vm680, %vm672
      %vm689 = vmand %vm681, %vm673
      %vm690 = vmand %vm682, %vm674
      %vm691 = vmand %vm683, %vm675
      %vm692 = vmand %vm684, %vm676
      %v693 = vadd.s32 %v619, 8
      %v694 = vadd.s32 %v626, 8
      %v695 = vadd.s32 %v633, 8
      %v696 = vadd.s32 %v640, 8
      %v697 = vadd.s32 %v647, 8
      %v698 = vadd.s32 %v654, 8
      %v699 = vadd.s32 %v661, 8
      %v700 = vadd.s32 %v668, 8
      %v701 = vsel %vm685, %v693, %v619
      %v702 = vsel %vm686, %v694, %v626
      %v703 = vsel %vm687, %v695, %v633
      %v704 = vsel %vm688, %v696, %v640
      %v705 = vsel %vm689, %v697, %v647
      %v706 = vsel %vm690, %v698, %v654
      %v707 = vsel %vm691, %v699, %v661
      %v708 = vsel %vm692, %v700, %v668
      %vm709 = vcmp.ge.s32.totalorder %v701, 1
      %vm710 = vcmp.ge.s32.totalorder %v702, 1
      %vm711 = vcmp.ge.s32.totalorder %v703, 1
      %vm712 = vcmp.ge.s32.totalorder %v704, 1
      %vm713 = vcmp.ge.s32.totalorder %v705, 1
      %vm714 = vcmp.ge.s32.totalorder %v706, 1
      %vm715 = vcmp.ge.s32.totalorder %v707, 1
      %vm716 = vcmp.ge.s32.totalorder %v708, 1
      %vm717 = vcmp.lt.s32.totalorder %v701, 7
      %vm718 = vcmp.lt.s32.totalorder %v702, 7
      %vm719 = vcmp.lt.s32.totalorder %v703, 7
      %vm720 = vcmp.lt.s32.totalorder %v704, 7
      %vm721 = vcmp.lt.s32.totalorder %v705, 7
      %vm722 = vcmp.lt.s32.totalorder %v706, 7
      %vm723 = vcmp.lt.s32.totalorder %v707, 7
      %vm724 = vcmp.lt.s32.totalorder %v708, 7
      %v725 = vld [vmem:[#allocation2 + $0x7] sm:$0xff]
      %v726 = vld [vmem:[#allocation2 + $0xf] sm:$0xff]
      %v727 = vld [vmem:[#allocation2 + $0x17] sm:$0xff]
      %v728 = vld [vmem:[#allocation2 + $0x1f] sm:$0xff]
      %v729 = vld [vmem:[#allocation2 + $0x27] sm:$0xff]
      %v730 = vld [vmem:[#allocation2 + $0x2f] sm:$0xff]
      %v731 = vld [vmem:[#allocation2 + $0x37] sm:$0xff]
      %v732 = vld [vmem:[#allocation2 + $0x3f] sm:$0xff]
      %v733 = vsel %vm709, 1, 0
      %v734 = vsel %vm710, 1, 0
      %v735 = vsel %vm711, 1, 0
      %v736 = vsel %vm712, 1, 0
      %v737 = vsel %vm713, 1, 0
      %v738 = vsel %vm714, 1, 0
      %v739 = vsel %vm715, 1, 0
      %v740 = vsel %vm716, 1, 0
      %vm741 = vcmp.eq.s32.totalorder %v733, 1
      %vm742 = vcmp.eq.s32.totalorder %v734, 1
      %vm743 = vcmp.eq.s32.totalorder %v735, 1
      %vm744 = vcmp.eq.s32.totalorder %v736, 1
      %vm745 = vcmp.eq.s32.totalorder %v737, 1
      %vm746 = vcmp.eq.s32.totalorder %v738, 1
      %vm747 = vcmp.eq.s32.totalorder %v739, 1
      %vm748 = vcmp.eq.s32.totalorder %v740, 1
      %v749 = vsel %vm741, %v725, 0.0
      %v750 = vsel %vm742, %v726, 0.0
      %v751 = vsel %vm743, %v727, 0.0
      %v752 = vsel %vm744, %v728, 0.0
      %v753 = vsel %vm745, %v729, 0.0
      %v754 = vsel %vm746, %v730, 0.0
      %v755 = vsel %vm747, %v731, 0.0
      %v756 = vsel %vm748, %v732, 0.0
      %v757 = vpack.c.bf16 %v750, %v749
      %v758 = vpack.c.bf16 %v752, %v751
      %v759 = vpack.c.bf16 %v754, %v753
      %v760 = vpack.c.bf16 %v756, %v755
      %v761 = vld [vmem:[%s3] sm:$0xf]
      %v762 = vld [vmem:[%s3 + $0x4] sm:$0xf]
      %v763 = vld [vmem:[%s3 + $0x8] sm:$0xf]
      %v764 = vld [vmem:[%s3 + $0xc] sm:$0xf]
      %v765 = vld [vmem:[#allocation2 + $0x8] sm:$0xff]
      %v766 = vld [vmem:[#allocation2 + $0x10] sm:$0xff]
      %v767 = vld [vmem:[#allocation2 + $0x18] sm:$0xff]
      %v768 = vld [vmem:[#allocation2 + $0x20] sm:$0xff]
      %v769 = vld [vmem:[#allocation2 + $0x28] sm:$0xff]
      %v770 = vld [vmem:[#allocation2 + $0x30] sm:$0xff]
      %v771 = vld [vmem:[#allocation2 + $0x38] sm:$0xff]
      %v772 = vld [vmem:[#allocation2 + $0x40] sm:$0xff]
      %v773 = vpack.c.bf16 %v766, %v765
      %v774 = vpack.c.bf16 %v768, %v767
      %v775 = vpack.c.bf16 %v770, %v769
      %v776 = vpack.c.bf16 %v772, %v771
      %v777 = vld [vmem:[%s3 + $0x10] sm:$0xf]
      %v778 = vld [vmem:[%s3 + $0x14] sm:$0xf]
      %v779 = vld [vmem:[%s3 + $0x18] sm:$0xf]
      %v780 = vld [vmem:[%s3 + $0x1c] sm:$0xf]
      %v785 = vunpack.c.l.b16 %v777
      %v786 = vunpack.c.l.b16 %v778
      %v787 = vunpack.c.l.b16 %v779
      %v788 = vunpack.c.l.b16 %v780
      %v789 = vpack.c.b16 %v786, %v785
      %v790 = vpack.c.b16 %v788, %v787
      %v794 = vsel %vm583, %v773, 0
      %v797 = vsel %vm583, %v774, 0
      %v800 = vsel %vm583, %v775, 0
      %v803 = vsel %vm583, %v776, 0
      %805 = vmatprep.subr.bf16.mxu0 0
      %806 = vmatpush1.bf16.msra.mxu0 0
      %807 = vmatprep.subr.bf16.mxu0 0
      %808 = vmatpush1.bf16.msra.mxu0 0
      %809 = vmatprep.subr.bf16.mxu0 0
      %810 = vmatpush1.bf16.msra.mxu0 0
      %811 = vmatprep.subr.bf16.mxu0 0
      %812 = vmatpush1.bf16.msra.mxu0 0
      %813 = vmatprep.subr.bf16.mxu0 0
      %814 = vmatpush1.bf16.msra.mxu0 0
      %815 = vmatprep.subr.bf16.mxu0 0
      %816 = vmatpush1.bf16.msra.mxu0 0
      %817 = vmatprep.subr.bf16.mxu0 0
      %818 = vmatpush1.bf16.msra.mxu0 %v790
      %819 = vmatprep.subr.bf16.mxu0 0
      %820 = vmatpush1.bf16.msra.mxu0 %v789
      %821 = vmatprep.subr.bf16.mxu0 0
      %822 = vmatpush2.bf16.msra.mxu0 0
      %823 = vmatprep.subr.bf16.mxu0 0
      %824 = vmatpush2.bf16.msra.mxu0 0
      %825 = vmatprep.subr.bf16.mxu0 0
      %826 = vmatpush2.bf16.msra.mxu0 0
      %827 = vmatprep.subr.bf16.mxu0 0
      %828 = vmatpush2.bf16.msra.mxu0 0
      %829 = vmatprep.subr.bf16.mxu0 0
      %830 = vmatpush2.bf16.msra.mxu0 0
      %831 = vmatprep.subr.bf16.mxu0 0
      %832 = vmatpush2.bf16.msra.mxu0 0
      %833 = vmatprep.subr.bf16.mxu0 0
      %834 = vmatpush2.bf16.msra.mxu0 0
      %835 = vmatprep.subr.bf16.mxu0 0
      %836 = vmatpush2.bf16.msra.mxu0 0
      %837 = vmatprep.mubr.bf16.mxu0 0
      %838 = vmatmul.mubr.bf16.gmra.mxu0 %v794
      %v839 = vpop.f32.mrf.mxu0
      %v840 = vadd.f32 0.0, %v839
      %v841 = vpop.f32.mrf.mxu0
      %v842 = vpop.f32.mrf.mxu0
      %v843 = vadd.f32 0.0, %v842
      %v844 = vpop.f32.mrf.mxu0
      %845 = vmatprep.mubr.bf16.mxu0 0
      %846 = vmatmul.mubr.bf16.gmra.mxu0 %v797
      %v847 = vpop.f32.mrf.mxu0
      %v848 = vadd.f32 0.0, %v847
      %v849 = vpop.f32.mrf.mxu0
      %v850 = vpop.f32.mrf.mxu0
      %v851 = vadd.f32 0.0, %v850
      %v852 = vpop.f32.mrf.mxu0
      %853 = vmatprep.mubr.bf16.mxu0 0
      %854 = vmatmul.mubr.bf16.gmra.mxu0 %v800
      %v855 = vpop.f32.mrf.mxu0
      %v856 = vadd.f32 0.0, %v855
      %v857 = vpop.f32.mrf.mxu0
      %v858 = vpop.f32.mrf.mxu0
      %v859 = vadd.f32 0.0, %v858
      %v860 = vpop.f32.mrf.mxu0
      %861 = vmatprep.mubr.bf16.mxu0 0
      %862 = vmatmul.mubr.bf16.gmra.mxu0 %v803
      %v863 = vpop.f32.mrf.mxu0
      %v864 = vadd.f32 0.0, %v863
      %v865 = vpop.f32.mrf.mxu0
      %v866 = vpop.f32.mrf.mxu0
      %v867 = vadd.f32 0.0, %v866
      %v868 = vpop.f32.mrf.mxu0
      %869 = vdwg.mxu0
      %v874 = vunpack.c.l.b16 %v761
      %v875 = vunpack.c.l.b16 %v762
      %v876 = vunpack.c.l.b16 %v763
      %v877 = vunpack.c.l.b16 %v764
      %v878 = vpack.c.b16 %v875, %v874
      %v879 = vpack.c.b16 %v877, %v876
      %v883 = vsel %vm583, %v757, 0
      %v886 = vsel %vm583, %v758, 0
      %v889 = vsel %vm583, %v759, 0
      %v892 = vsel %vm583, %v760, 0
      %894 = vmatprep.subr.bf16.mxu0 0
      %895 = vmatpush1.bf16.msra.mxu0 0
      %896 = vmatprep.subr.bf16.mxu0 0
      %897 = vmatpush1.bf16.msra.mxu0 0
      %898 = vmatprep.subr.bf16.mxu0 0
      %899 = vmatpush1.bf16.msra.mxu0 0
      %900 = vmatprep.subr.bf16.mxu0 0
      %901 = vmatpush1.bf16.msra.mxu0 0
      %902 = vmatprep.subr.bf16.mxu0 0
      %903 = vmatpush1.bf16.msra.mxu0 0
      %904 = vmatprep.subr.bf16.mxu0 0
      %905 = vmatpush1.bf16.msra.mxu0 0
      %906 = vmatprep.subr.bf16.mxu0 0
      %907 = vmatpush1.bf16.msra.mxu0 %v879
      %908 = vmatprep.subr.bf16.mxu0 0
      %909 = vmatpush1.bf16.msra.mxu0 %v878
      %910 = vmatprep.subr.bf16.mxu0 0
      %911 = vmatpush2.bf16.msra.mxu0 0
      %912 = vmatprep.subr.bf16.mxu0 0
      %913 = vmatpush2.bf16.msra.mxu0 0
      %914 = vmatprep.subr.bf16.mxu0 0
      %915 = vmatpush2.bf16.msra.mxu0 0
      %916 = vmatprep.subr.bf16.mxu0 0
      %917 = vmatpush2.bf16.msra.mxu0 0
      %918 = vmatprep.subr.bf16.mxu0 0
      %919 = vmatpush2.bf16.msra.mxu0 0
      %920 = vmatprep.subr.bf16.mxu0 0
      %921 = vmatpush2.bf16.msra.mxu0 0
      %922 = vmatprep.subr.bf16.mxu0 0
      %923 = vmatpush2.bf16.msra.mxu0 0
      %924 = vmatprep.subr.bf16.mxu0 0
      %925 = vmatpush2.bf16.msra.mxu0 0
      %926 = vmatprep.mubr.bf16.mxu0 0
      %927 = vmatmul.mubr.bf16.gmra.mxu0 %v883
      %v928 = vpop.f32.mrf.mxu0
      %v929 = vadd.f32 %v840, %v928
      %v930 = vpop.f32.mrf.mxu0
      %v931 = vpop.f32.mrf.mxu0
      %v932 = vadd.f32 %v843, %v931
      %v933 = vpop.f32.mrf.mxu0
      %934 = vmatprep.mubr.bf16.mxu0 0
      %935 = vmatmul.mubr.bf16.gmra.mxu0 %v886
      %v936 = vpop.f32.mrf.mxu0
      %v937 = vadd.f32 %v848, %v936
      %v938 = vpop.f32.mrf.mxu0
      %v939 = vpop.f32.mrf.mxu0
      %v940 = vadd.f32 %v851, %v939
      %v941 = vpop.f32.mrf.mxu0
      %942 = vmatprep.mubr.bf16.mxu0 0
      %943 = vmatmul.mubr.bf16.gmra.mxu0 %v889
      %v944 = vpop.f32.mrf.mxu0
      %v945 = vadd.f32 %v856, %v944
      %v946 = vpop.f32.mrf.mxu0
      %v947 = vpop.f32.mrf.mxu0
      %v948 = vadd.f32 %v859, %v947
      %v949 = vpop.f32.mrf.mxu0
      %950 = vmatprep.mubr.bf16.mxu0 0
      %951 = vmatmul.mubr.bf16.gmra.mxu0 %v892
      %v952 = vpop.f32.mrf.mxu0
      %v953 = vadd.f32 %v864, %v952
      %v954 = vpop.f32.mrf.mxu0
      %v955 = vpop.f32.mrf.mxu0
      %v956 = vadd.f32 %v867, %v955
      %v957 = vpop.f32.mrf.mxu0
      %958 = vdwg.mxu0
      %v959 = vld [vmem:[#allocation2 + $0x9] sm:$0xff]
      %v960 = vld [vmem:[#allocation2 + $0x11] sm:$0xff]
      %v961 = vld [vmem:[#allocation2 + $0x19] sm:$0xff]
      %v962 = vld [vmem:[#allocation2 + $0x21] sm:$0xff]
      %v963 = vld [vmem:[#allocation2 + $0x29] sm:$0xff]
      %v964 = vld [vmem:[#allocation2 + $0x31] sm:$0xff]
      %v965 = vld [vmem:[#allocation2 + $0x39] sm:$0xff]
      %v966 = vld [vmem:[#allocation2 + $0x41] sm:$0xff]
      %v967 = vsel %vm717, 1, 0
      %v968 = vsel %vm718, 1, 0
      %v969 = vsel %vm719, 1, 0
      %v970 = vsel %vm720, 1, 0
      %v971 = vsel %vm721, 1, 0
      %v972 = vsel %vm722, 1, 0
      %v973 = vsel %vm723, 1, 0
      %v974 = vsel %vm724, 1, 0
      %vm975 = vcmp.eq.s32.totalorder %v967, 1
      %vm976 = vcmp.eq.s32.totalorder %v968, 1
      %vm977 = vcmp.eq.s32.totalorder %v969, 1
      %vm978 = vcmp.eq.s32.totalorder %v970, 1
      %vm979 = vcmp.eq.s32.totalorder %v971, 1
      %vm980 = vcmp.eq.s32.totalorder %v972, 1
      %vm981 = vcmp.eq.s32.totalorder %v973, 1
      %vm982 = vcmp.eq.s32.totalorder %v974, 1
      %v983 = vsel %vm975, %v959, 0.0
      %v984 = vsel %vm976, %v960, 0.0
      %v985 = vsel %vm977, %v961, 0.0
      %v986 = vsel %vm978, %v962, 0.0
      %v987 = vsel %vm979, %v963, 0.0
      %v988 = vsel %vm980, %v964, 0.0
      %v989 = vsel %vm981, %v965, 0.0
      %v990 = vsel %vm982, %v966, 0.0
      %v991 = vpack.c.bf16 %v984, %v983
      %v992 = vpack.c.bf16 %v986, %v985
      %v993 = vpack.c.bf16 %v988, %v987
      %v994 = vpack.c.bf16 %v990, %v989
      %v995 = vld [vmem:[%s3 + $0x20] sm:$0xf]
      %v996 = vld [vmem:[%s3 + $0x24] sm:$0xf]
      %v997 = vld [vmem:[%s3 + $0x28] sm:$0xf]
      %v998 = vld [vmem:[%s3 + $0x2c] sm:$0xf]
      %v1003 = vunpack.c.l.b16 %v995
      %v1004 = vunpack.c.l.b16 %v996
      %v1005 = vunpack.c.l.b16 %v997
      %v1006 = vunpack.c.l.b16 %v998
      %v1007 = vpack.c.b16 %v1004, %v1003
      %v1008 = vpack.c.b16 %v1006, %v1005
      %v1012 = vsel %vm583, %v991, 0
      %v1015 = vsel %vm583, %v992, 0
      %v1018 = vsel %vm583, %v993, 0
      %v1021 = vsel %vm583, %v994, 0
      %1023 = vmatprep.subr.bf16.mxu0 0
      %1024 = vmatpush1.bf16.msra.mxu0 0
      %1025 = vmatprep.subr.bf16.mxu0 0
      %1026 = vmatpush1.bf16.msra.mxu0 0
      %1027 = vmatprep.subr.bf16.mxu0 0
      %1028 = vmatpush1.bf16.msra.mxu0 0
      %1029 = vmatprep.subr.bf16.mxu0 0
      %1030 = vmatpush1.bf16.msra.mxu0 0
      %1031 = vmatprep.subr.bf16.mxu0 0
      %1032 = vmatpush1.bf16.msra.mxu0 0
      %1033 = vmatprep.subr.bf16.mxu0 0
      %1034 = vmatpush1.bf16.msra.mxu0 0
      %1035 = vmatprep.subr.bf16.mxu0 0
      %1036 = vmatpush1.bf16.msra.mxu0 %v1008
      %1037 = vmatprep.subr.bf16.mxu0 0
      %1038 = vmatpush1.bf16.msra.mxu0 %v1007
      %1039 = vmatprep.subr.bf16.mxu0 0
      %1040 = vmatpush2.bf16.msra.mxu0 0
      %1041 = vmatprep.subr.bf16.mxu0 0
      %1042 = vmatpush2.bf16.msra.mxu0 0
      %1043 = vmatprep.subr.bf16.mxu0 0
      %1044 = vmatpush2.bf16.msra.mxu0 0
      %1045 = vmatprep.subr.bf16.mxu0 0
      %1046 = vmatpush2.bf16.msra.mxu0 0
      %1047 = vmatprep.subr.bf16.mxu0 0
      %1048 = vmatpush2.bf16.msra.mxu0 0
      %1049 = vmatprep.subr.bf16.mxu0 0
      %1050 = vmatpush2.bf16.msra.mxu0 0
      %1051 = vmatprep.subr.bf16.mxu0 0
      %1052 = vmatpush2.bf16.msra.mxu0 0
      %1053 = vmatprep.subr.bf16.mxu0 0
      %1054 = vmatpush2.bf16.msra.mxu0 0
      %1055 = vmatprep.mubr.bf16.mxu0 0
      %1056 = vmatmul.mubr.bf16.gmra.mxu0 %v1012
      %v1057 = vpop.f32.mrf.mxu0
      %v1058 = vadd.f32 0.0, %v1057
      %v1059 = vpop.f32.mrf.mxu0
      %v1060 = vpop.f32.mrf.mxu0
      %v1061 = vadd.f32 0.0, %v1060
      %v1062 = vpop.f32.mrf.mxu0
      %1063 = vmatprep.mubr.bf16.mxu0 0
      %1064 = vmatmul.mubr.bf16.gmra.mxu0 %v1015
      %v1065 = vpop.f32.mrf.mxu0
      %v1066 = vadd.f32 0.0, %v1065
      %v1067 = vpop.f32.mrf.mxu0
      %v1068 = vpop.f32.mrf.mxu0
      %v1069 = vadd.f32 0.0, %v1068
      %v1070 = vpop.f32.mrf.mxu0
      %1071 = vmatprep.mubr.bf16.mxu0 0
      %1072 = vmatmul.mubr.bf16.gmra.mxu0 %v1018
      %v1073 = vpop.f32.mrf.mxu0
      %v1074 = vadd.f32 0.0, %v1073
      %v1075 = vpop.f32.mrf.mxu0
      %v1076 = vpop.f32.mrf.mxu0
      %v1077 = vadd.f32 0.0, %v1076
      %v1078 = vpop.f32.mrf.mxu0
      %1079 = vmatprep.mubr.bf16.mxu0 0
      %1080 = vmatmul.mubr.bf16.gmra.mxu0 %v1021
      %v1081 = vpop.f32.mrf.mxu0
      %v1082 = vadd.f32 0.0, %v1081
      %v1083 = vpop.f32.mrf.mxu0
      %v1084 = vpop.f32.mrf.mxu0
      %v1085 = vadd.f32 0.0, %v1084
      %v1086 = vpop.f32.mrf.mxu0
      %1087 = vdwg.mxu0
      %v1088 = vadd.f32 %v929, %v1058
      %v1089 = vadd.f32 %v932, %v1061
      %v1090 = vadd.f32 %v937, %v1066
      %v1091 = vadd.f32 %v940, %v1069
      %v1092 = vadd.f32 %v945, %v1074
      %v1093 = vadd.f32 %v948, %v1077
      %v1094 = vadd.f32 %v953, %v1082
      %v1095 = vadd.f32 %v956, %v1085
      %v1096 = vld [vmem:[#allocation2 + $0xf] sm:$0xff]
      %v1097 = vld [vmem:[#allocation2 + $0x17] sm:$0xff]
      %v1098 = vld [vmem:[#allocation2 + $0x1f] sm:$0xff]
      %v1099 = vld [vmem:[#allocation2 + $0x27] sm:$0xff]
      %v1100 = vld [vmem:[#allocation2 + $0x2f] sm:$0xff]
      %v1101 = vld [vmem:[#allocation2 + $0x37] sm:$0xff]
      %v1102 = vld [vmem:[#allocation2 + $0x3f] sm:$0xff]
      %v1103 = vld [vmem:[#allocation2 + $0x47] sm:$0xff]
      %v1104 = vsel %vm741, %v1096, 0.0
      %v1105 = vsel %vm742, %v1097, 0.0
      %v1106 = vsel %vm743, %v1098, 0.0
      %v1107 = vsel %vm744, %v1099, 0.0
      %v1108 = vsel %vm745, %v1100, 0.0
      %v1109 = vsel %vm746, %v1101, 0.0
      %v1110 = vsel %vm747, %v1102, 0.0
      %v1111 = vsel %vm748, %v1103, 0.0
      %v1112 = vpack.c.bf16 %v1105, %v1104
      %v1113 = vpack.c.bf16 %v1107, %v1106
      %v1114 = vpack.c.bf16 %v1109, %v1108
      %v1115 = vpack.c.bf16 %v1111, %v1110
      %v1116 = vld [vmem:[%s3 + $0x30] sm:$0xf]
      %v1117 = vld [vmem:[%s3 + $0x34] sm:$0xf]
      %v1118 = vld [vmem:[%s3 + $0x38] sm:$0xf]
      %v1119 = vld [vmem:[%s3 + $0x3c] sm:$0xf]
      %v1124 = vunpack.c.l.b16 %v1116
      %v1125 = vunpack.c.l.b16 %v1117
      %v1126 = vunpack.c.l.b16 %v1118
      %v1127 = vunpack.c.l.b16 %v1119
      %v1128 = vpack.c.b16 %v1125, %v1124
      %v1129 = vpack.c.b16 %v1127, %v1126
      %v1133 = vsel %vm583, %v1112, 0
      %v1136 = vsel %vm583, %v1113, 0
      %v1139 = vsel %vm583, %v1114, 0
      %v1142 = vsel %vm583, %v1115, 0
      %1144 = vmatprep.subr.bf16.mxu0 0
      %1145 = vmatpush1.bf16.msra.mxu0 0
      %1146 = vmatprep.subr.bf16.mxu0 0
      %1147 = vmatpush1.bf16.msra.mxu0 0
      %1148 = vmatprep.subr.bf16.mxu0 0
      %1149 = vmatpush1.bf16.msra.mxu0 0
      %1150 = vmatprep.subr.bf16.mxu0 0
      %1151 = vmatpush1.bf16.msra.mxu0 0
      %1152 = vmatprep.subr.bf16.mxu0 0
      %1153 = vmatpush1.bf16.msra.mxu0 0
      %1154 = vmatprep.subr.bf16.mxu0 0
      %1155 = vmatpush1.bf16.msra.mxu0 0
      %1156 = vmatprep.subr.bf16.mxu0 0
      %1157 = vmatpush1.bf16.msra.mxu0 %v1129
      %1158 = vmatprep.subr.bf16.mxu0 0
      %1159 = vmatpush1.bf16.msra.mxu0 %v1128
      %1160 = vmatprep.subr.bf16.mxu0 0
      %1161 = vmatpush2.bf16.msra.mxu0 0
      %1162 = vmatprep.subr.bf16.mxu0 0
      %1163 = vmatpush2.bf16.msra.mxu0 0
      %1164 = vmatprep.subr.bf16.mxu0 0
      %1165 = vmatpush2.bf16.msra.mxu0 0
      %1166 = vmatprep.subr.bf16.mxu0 0
      %1167 = vmatpush2.bf16.msra.mxu0 0
      %1168 = vmatprep.subr.bf16.mxu0 0
      %1169 = vmatpush2.bf16.msra.mxu0 0
      %1170 = vmatprep.subr.bf16.mxu0 0
      %1171 = vmatpush2.bf16.msra.mxu0 0
      %1172 = vmatprep.subr.bf16.mxu0 0
      %1173 = vmatpush2.bf16.msra.mxu0 0
      %1174 = vmatprep.subr.bf16.mxu0 0
      %1175 = vmatpush2.bf16.msra.mxu0 0
      %1176 = vmatprep.mubr.bf16.mxu0 0
      %1177 = vmatmul.mubr.bf16.gmra.mxu0 %v1133
      %v1178 = vpop.f32.mrf.mxu0
      %v1179 = vadd.f32 0.0, %v1178
      %v1180 = vpop.f32.mrf.mxu0
      %v1181 = vpop.f32.mrf.mxu0
      %v1182 = vadd.f32 0.0, %v1181
      %v1183 = vpop.f32.mrf.mxu0
      %1184 = vmatprep.mubr.bf16.mxu0 0
      %1185 = vmatmul.mubr.bf16.gmra.mxu0 %v1136
      %v1186 = vpop.f32.mrf.mxu0
      %v1187 = vadd.f32 0.0, %v1186
      %v1188 = vpop.f32.mrf.mxu0
      %v1189 = vpop.f32.mrf.mxu0
      %v1190 = vadd.f32 0.0, %v1189
      %v1191 = vpop.f32.mrf.mxu0
      %1192 = vmatprep.mubr.bf16.mxu0 0
      %1193 = vmatmul.mubr.bf16.gmra.mxu0 %v1139
      %v1194 = vpop.f32.mrf.mxu0
      %v1195 = vadd.f32 0.0, %v1194
      %v1196 = vpop.f32.mrf.mxu0
      %v1197 = vpop.f32.mrf.mxu0
      %v1198 = vadd.f32 0.0, %v1197
      %v1199 = vpop.f32.mrf.mxu0
      %1200 = vmatprep.mubr.bf16.mxu0 0
      %1201 = vmatmul.mubr.bf16.gmra.mxu0 %v1142
      %v1202 = vpop.f32.mrf.mxu0
      %v1203 = vadd.f32 0.0, %v1202
      %v1204 = vpop.f32.mrf.mxu0
      %v1205 = vpop.f32.mrf.mxu0
      %v1206 = vadd.f32 0.0, %v1205
      %v1207 = vpop.f32.mrf.mxu0
      %1208 = vdwg.mxu0
      %v1209 = vadd.f32 %v1088, %v1179
      %v1210 = vadd.f32 %v1089, %v1182
      %v1211 = vadd.f32 %v1090, %v1187
      %v1212 = vadd.f32 %v1091, %v1190
      %v1213 = vadd.f32 %v1092, %v1195
      %v1214 = vadd.f32 %v1093, %v1198
      %v1215 = vadd.f32 %v1094, %v1203
      %v1216 = vadd.f32 %v1095, %v1206
      %v1217 = vld [vmem:[#allocation2 + $0x10] sm:$0xff]
      %v1218 = vld [vmem:[#allocation2 + $0x18] sm:$0xff]
      %v1219 = vld [vmem:[#allocation2 + $0x20] sm:$0xff]
      %v1220 = vld [vmem:[#allocation2 + $0x28] sm:$0xff]
      %v1221 = vld [vmem:[#allocation2 + $0x30] sm:$0xff]
      %v1222 = vld [vmem:[#allocation2 + $0x38] sm:$0xff]
      %v1223 = vld [vmem:[#allocation2 + $0x40] sm:$0xff]
      %v1224 = vld [vmem:[#allocation2 + $0x48] sm:$0xff]
      %v1225 = vpack.c.bf16 %v1218, %v1217
      %v1226 = vpack.c.bf16 %v1220, %v1219
      %v1227 = vpack.c.bf16 %v1222, %v1221
      %v1228 = vpack.c.bf16 %v1224, %v1223
      %v1229 = vld [vmem:[%s3 + $0x40] sm:$0xf]
      %v1230 = vld [vmem:[%s3 + $0x44] sm:$0xf]
      %v1231 = vld [vmem:[%s3 + $0x48] sm:$0xf]
      %v1232 = vld [vmem:[%s3 + $0x4c] sm:$0xf]
      %v1237 = vunpack.c.l.b16 %v1229
      %v1238 = vunpack.c.l.b16 %v1230
      %v1239 = vunpack.c.l.b16 %v1231
      %v1240 = vunpack.c.l.b16 %v1232
      %v1241 = vpack.c.b16 %v1238, %v1237
      %v1242 = vpack.c.b16 %v1240, %v1239
      %v1246 = vsel %vm583, %v1225, 0
      %v1249 = vsel %vm583, %v1226, 0
      %v1252 = vsel %vm583, %v1227, 0
      %v1255 = vsel %vm583, %v1228, 0
      %1257 = vmatprep.subr.bf16.mxu0 0
      %1258 = vmatpush1.bf16.msra.mxu0 0
      %1259 = vmatprep.subr.bf16.mxu0 0
      %1260 = vmatpush1.bf16.msra.mxu0 0
      %1261 = vmatprep.subr.bf16.mxu0 0
      %1262 = vmatpush1.bf16.msra.mxu0 0
      %1263 = vmatprep.subr.bf16.mxu0 0
      %1264 = vmatpush1.bf16.msra.mxu0 0
      %1265 = vmatprep.subr.bf16.mxu0 0
      %1266 = vmatpush1.bf16.msra.mxu0 0
      %1267 = vmatprep.subr.bf16.mxu0 0
      %1268 = vmatpush1.bf16.msra.mxu0 0
      %1269 = vmatprep.subr.bf16.mxu0 0
      %1270 = vmatpush1.bf16.msra.mxu0 %v1242
      %1271 = vmatprep.subr.bf16.mxu0 0
      %1272 = vmatpush1.bf16.msra.mxu0 %v1241
      %1273 = vmatprep.subr.bf16.mxu0 0
      %1274 = vmatpush2.bf16.msra.mxu0 0
      %1275 = vmatprep.subr.bf16.mxu0 0
      %1276 = vmatpush2.bf16.msra.mxu0 0
      %1277 = vmatprep.subr.bf16.mxu0 0
      %1278 = vmatpush2.bf16.msra.mxu0 0
      %1279 = vmatprep.subr.bf16.mxu0 0
      %1280 = vmatpush2.bf16.msra.mxu0 0
      %1281 = vmatprep.subr.bf16.mxu0 0
      %1282 = vmatpush2.bf16.msra.mxu0 0
      %1283 = vmatprep.subr.bf16.mxu0 0
      %1284 = vmatpush2.bf16.msra.mxu0 0
      %1285 = vmatprep.subr.bf16.mxu0 0
      %1286 = vmatpush2.bf16.msra.mxu0 0
      %1287 = vmatprep.subr.bf16.mxu0 0
      %1288 = vmatpush2.bf16.msra.mxu0 0
      %1289 = vmatprep.mubr.bf16.mxu0 0
      %1290 = vmatmul.mubr.bf16.gmra.mxu0 %v1246
      %v1291 = vpop.f32.mrf.mxu0
      %v1292 = vadd.f32 0.0, %v1291
      %v1293 = vpop.f32.mrf.mxu0
      %v1294 = vpop.f32.mrf.mxu0
      %v1295 = vadd.f32 0.0, %v1294
      %v1296 = vpop.f32.mrf.mxu0
      %1297 = vmatprep.mubr.bf16.mxu0 0
      %1298 = vmatmul.mubr.bf16.gmra.mxu0 %v1249
      %v1299 = vpop.f32.mrf.mxu0
      %v1300 = vadd.f32 0.0, %v1299
      %v1301 = vpop.f32.mrf.mxu0
      %v1302 = vpop.f32.mrf.mxu0
      %v1303 = vadd.f32 0.0, %v1302
      %v1304 = vpop.f32.mrf.mxu0
      %1305 = vmatprep.mubr.bf16.mxu0 0
      %1306 = vmatmul.mubr.bf16.gmra.mxu0 %v1252
      %v1307 = vpop.f32.mrf.mxu0
      %v1308 = vadd.f32 0.0, %v1307
      %v1309 = vpop.f32.mrf.mxu0
      %v1310 = vpop.f32.mrf.mxu0
      %v1311 = vadd.f32 0.0, %v1310
      %v1312 = vpop.f32.mrf.mxu0
      %1313 = vmatprep.mubr.bf16.mxu0 0
      %1314 = vmatmul.mubr.bf16.gmra.mxu0 %v1255
      %v1315 = vpop.f32.mrf.mxu0
      %v1316 = vadd.f32 0.0, %v1315
      %v1317 = vpop.f32.mrf.mxu0
      %v1318 = vpop.f32.mrf.mxu0
      %v1319 = vadd.f32 0.0, %v1318
      %v1320 = vpop.f32.mrf.mxu0
      %1321 = vdwg.mxu0
      %v1322 = vadd.f32 %v1209, %v1292
      %v1323 = vadd.f32 %v1210, %v1295
      %v1324 = vadd.f32 %v1211, %v1300
      %v1325 = vadd.f32 %v1212, %v1303
      %v1326 = vadd.f32 %v1213, %v1308
      %v1327 = vadd.f32 %v1214, %v1311
      %v1328 = vadd.f32 %v1215, %v1316
      %v1329 = vadd.f32 %v1216, %v1319
      %v1330 = vld [vmem:[#allocation2 + $0x11] sm:$0xff]
      %v1331 = vld [vmem:[#allocation2 + $0x19] sm:$0xff]
      %v1332 = vld [vmem:[#allocation2 + $0x21] sm:$0xff]
      %v1333 = vld [vmem:[#allocation2 + $0x29] sm:$0xff]
      %v1334 = vld [vmem:[#allocation2 + $0x31] sm:$0xff]
      %v1335 = vld [vmem:[#allocation2 + $0x39] sm:$0xff]
      %v1336 = vld [vmem:[#allocation2 + $0x41] sm:$0xff]
      %v1337 = vld [vmem:[#allocation2 + $0x49] sm:$0xff]
      %v1338 = vsel %vm975, %v1330, 0.0
      %v1339 = vsel %vm976, %v1331, 0.0
      %v1340 = vsel %vm977, %v1332, 0.0
      %v1341 = vsel %vm978, %v1333, 0.0
      %v1342 = vsel %vm979, %v1334, 0.0
      %v1343 = vsel %vm980, %v1335, 0.0
      %v1344 = vsel %vm981, %v1336, 0.0
      %v1345 = vsel %vm982, %v1337, 0.0
      %v1346 = vpack.c.bf16 %v1339, %v1338
      %v1347 = vpack.c.bf16 %v1341, %v1340
      %v1348 = vpack.c.bf16 %v1343, %v1342
      %v1349 = vpack.c.bf16 %v1345, %v1344
      %v1350 = vld [vmem:[%s3 + $0x50] sm:$0xf]
      %v1351 = vld [vmem:[%s3 + $0x54] sm:$0xf]
      %v1352 = vld [vmem:[%s3 + $0x58] sm:$0xf]
      %v1353 = vld [vmem:[%s3 + $0x5c] sm:$0xf]
      %v1358 = vunpack.c.l.b16 %v1350
      %v1359 = vunpack.c.l.b16 %v1351
      %v1360 = vunpack.c.l.b16 %v1352
      %v1361 = vunpack.c.l.b16 %v1353
      %v1362 = vpack.c.b16 %v1359, %v1358
      %v1363 = vpack.c.b16 %v1361, %v1360
      %v1367 = vsel %vm583, %v1346, 0
      %v1370 = vsel %vm583, %v1347, 0
      %v1373 = vsel %vm583, %v1348, 0
      %v1376 = vsel %vm583, %v1349, 0
      %1378 = vmatprep.subr.bf16.mxu0 0
      %1379 = vmatpush1.bf16.msra.mxu0 0
      %1380 = vmatprep.subr.bf16.mxu0 0
      %1381 = vmatpush1.bf16.msra.mxu0 0
      %1382 = vmatprep.subr.bf16.mxu0 0
      %1383 = vmatpush1.bf16.msra.mxu0 0
      %1384 = vmatprep.subr.bf16.mxu0 0
      %1385 = vmatpush1.bf16.msra.mxu0 0
      %1386 = vmatprep.subr.bf16.mxu0 0
      %1387 = vmatpush1.bf16.msra.mxu0 0
      %1388 = vmatprep.subr.bf16.mxu0 0
      %1389 = vmatpush1.bf16.msra.mxu0 0
      %1390 = vmatprep.subr.bf16.mxu0 0
      %1391 = vmatpush1.bf16.msra.mxu0 %v1363
      %1392 = vmatprep.subr.bf16.mxu0 0
      %1393 = vmatpush1.bf16.msra.mxu0 %v1362
      %1394 = vmatprep.subr.bf16.mxu0 0
      %1395 = vmatpush2.bf16.msra.mxu0 0
      %1396 = vmatprep.subr.bf16.mxu0 0
      %1397 = vmatpush2.bf16.msra.mxu0 0
      %1398 = vmatprep.subr.bf16.mxu0 0
      %1399 = vmatpush2.bf16.msra.mxu0 0
      %1400 = vmatprep.subr.bf16.mxu0 0
      %1401 = vmatpush2.bf16.msra.mxu0 0
      %1402 = vmatprep.subr.bf16.mxu0 0
      %1403 = vmatpush2.bf16.msra.mxu0 0
      %1404 = vmatprep.subr.bf16.mxu0 0
      %1405 = vmatpush2.bf16.msra.mxu0 0
      %1406 = vmatprep.subr.bf16.mxu0 0
      %1407 = vmatpush2.bf16.msra.mxu0 0
      %1408 = vmatprep.subr.bf16.mxu0 0
      %1409 = vmatpush2.bf16.msra.mxu0 0
      %1410 = vmatprep.mubr.bf16.mxu0 0
      %1411 = vmatmul.mubr.bf16.gmra.mxu0 %v1367
      %v1412 = vpop.f32.mrf.mxu0
      %v1413 = vadd.f32 0.0, %v1412
      %v1414 = vpop.f32.mrf.mxu0
      %v1415 = vpop.f32.mrf.mxu0
      %v1416 = vadd.f32 0.0, %v1415
      %v1417 = vpop.f32.mrf.mxu0
      %1418 = vmatprep.mubr.bf16.mxu0 0
      %1419 = vmatmul.mubr.bf16.gmra.mxu0 %v1370
      %v1420 = vpop.f32.mrf.mxu0
      %v1421 = vadd.f32 0.0, %v1420
      %v1422 = vpop.f32.mrf.mxu0
      %v1423 = vpop.f32.mrf.mxu0
      %v1424 = vadd.f32 0.0, %v1423
      %v1425 = vpop.f32.mrf.mxu0
      %1426 = vmatprep.mubr.bf16.mxu0 0
      %1427 = vmatmul.mubr.bf16.gmra.mxu0 %v1373
      %v1428 = vpop.f32.mrf.mxu0
      %v1429 = vadd.f32 0.0, %v1428
      %v1430 = vpop.f32.mrf.mxu0
      %v1431 = vpop.f32.mrf.mxu0
      %v1432 = vadd.f32 0.0, %v1431
      %v1433 = vpop.f32.mrf.mxu0
      %1434 = vmatprep.mubr.bf16.mxu0 0
      %1435 = vmatmul.mubr.bf16.gmra.mxu0 %v1376
      %v1436 = vpop.f32.mrf.mxu0
      %v1437 = vadd.f32 0.0, %v1436
      %v1438 = vpop.f32.mrf.mxu0
      %v1439 = vpop.f32.mrf.mxu0
      %v1440 = vadd.f32 0.0, %v1439
      %v1441 = vpop.f32.mrf.mxu0
      %1442 = vdwg.mxu0
      %v1443 = vadd.f32 %v1322, %v1413
      %v1444 = vadd.f32 %v1323, %v1416
      %v1445 = vadd.f32 %v1324, %v1421
      %v1446 = vadd.f32 %v1325, %v1424
      %v1447 = vadd.f32 %v1326, %v1429
      %v1448 = vadd.f32 %v1327, %v1432
      %v1449 = vadd.f32 %v1328, %v1437
      %v1450 = vadd.f32 %v1329, %v1440
      %v1451 = vld [vmem:[#allocation2 + $0x17] sm:$0xff]
      %v1452 = vld [vmem:[#allocation2 + $0x1f] sm:$0xff]
      %v1453 = vld [vmem:[#allocation2 + $0x27] sm:$0xff]
      %v1454 = vld [vmem:[#allocation2 + $0x2f] sm:$0xff]
      %v1455 = vld [vmem:[#allocation2 + $0x37] sm:$0xff]
      %v1456 = vld [vmem:[#allocation2 + $0x3f] sm:$0xff]
      %v1457 = vld [vmem:[#allocation2 + $0x47] sm:$0xff]
      %v1458 = vld [vmem:[#allocation2 + $0x4f] sm:$0xff]
      %v1459 = vsel %vm741, %v1451, 0.0
      %v1460 = vsel %vm742, %v1452, 0.0
      %v1461 = vsel %vm743, %v1453, 0.0
      %v1462 = vsel %vm744, %v1454, 0.0
      %v1463 = vsel %vm745, %v1455, 0.0
      %v1464 = vsel %vm746, %v1456, 0.0
      %v1465 = vsel %vm747, %v1457, 0.0
      %v1466 = vsel %vm748, %v1458, 0.0
      %v1467 = vpack.c.bf16 %v1460, %v1459
      %v1468 = vpack.c.bf16 %v1462, %v1461
      %v1469 = vpack.c.bf16 %v1464, %v1463
      %v1470 = vpack.c.bf16 %v1466, %v1465
      %v1471 = vld [vmem:[%s3 + $0x60] sm:$0xf]
      %v1472 = vld [vmem:[%s3 + $0x64] sm:$0xf]
      %v1473 = vld [vmem:[%s3 + $0x68] sm:$0xf]
      %v1474 = vld [vmem:[%s3 + $0x6c] sm:$0xf]
      %v1479 = vunpack.c.l.b16 %v1471
      %v1480 = vunpack.c.l.b16 %v1472
      %v1481 = vunpack.c.l.b16 %v1473
      %v1482 = vunpack.c.l.b16 %v1474
      %v1483 = vpack.c.b16 %v1480, %v1479
      %v1484 = vpack.c.b16 %v1482, %v1481
      %v1488 = vsel %vm583, %v1467, 0
      %v1491 = vsel %vm583, %v1468, 0
      %v1494 = vsel %vm583, %v1469, 0
      %v1497 = vsel %vm583, %v1470, 0
      %1499 = vmatprep.subr.bf16.mxu0 0
      %1500 = vmatpush1.bf16.msra.mxu0 0
      %1501 = vmatprep.subr.bf16.mxu0 0
      %1502 = vmatpush1.bf16.msra.mxu0 0
      %1503 = vmatprep.subr.bf16.mxu0 0
      %1504 = vmatpush1.bf16.msra.mxu0 0
      %1505 = vmatprep.subr.bf16.mxu0 0
      %1506 = vmatpush1.bf16.msra.mxu0 0
      %1507 = vmatprep.subr.bf16.mxu0 0
      %1508 = vmatpush1.bf16.msra.mxu0 0
      %1509 = vmatprep.subr.bf16.mxu0 0
      %1510 = vmatpush1.bf16.msra.mxu0 0
      %1511 = vmatprep.subr.bf16.mxu0 0
      %1512 = vmatpush1.bf16.msra.mxu0 %v1484
      %1513 = vmatprep.subr.bf16.mxu0 0
      %1514 = vmatpush1.bf16.msra.mxu0 %v1483
      %1515 = vmatprep.subr.bf16.mxu0 0
      %1516 = vmatpush2.bf16.msra.mxu0 0
      %1517 = vmatprep.subr.bf16.mxu0 0
      %1518 = vmatpush2.bf16.msra.mxu0 0
      %1519 = vmatprep.subr.bf16.mxu0 0
      %1520 = vmatpush2.bf16.msra.mxu0 0
      %1521 = vmatprep.subr.bf16.mxu0 0
      %1522 = vmatpush2.bf16.msra.mxu0 0
      %1523 = vmatprep.subr.bf16.mxu0 0
      %1524 = vmatpush2.bf16.msra.mxu0 0
      %1525 = vmatprep.subr.bf16.mxu0 0
      %1526 = vmatpush2.bf16.msra.mxu0 0
      %1527 = vmatprep.subr.bf16.mxu0 0
      %1528 = vmatpush2.bf16.msra.mxu0 0
      %1529 = vmatprep.subr.bf16.mxu0 0
      %1530 = vmatpush2.bf16.msra.mxu0 0
      %1531 = vmatprep.mubr.bf16.mxu0 0
      %1532 = vmatmul.mubr.bf16.gmra.mxu0 %v1488
      %v1533 = vpop.f32.mrf.mxu0
      %v1534 = vadd.f32 0.0, %v1533
      %v1535 = vpop.f32.mrf.mxu0
      %v1536 = vpop.f32.mrf.mxu0
      %v1537 = vadd.f32 0.0, %v1536
      %v1538 = vpop.f32.mrf.mxu0
      %1539 = vmatprep.mubr.bf16.mxu0 0
      %1540 = vmatmul.mubr.bf16.gmra.mxu0 %v1491
      %v1541 = vpop.f32.mrf.mxu0
      %v1542 = vadd.f32 0.0, %v1541
      %v1543 = vpop.f32.mrf.mxu0
      %v1544 = vpop.f32.mrf.mxu0
      %v1545 = vadd.f32 0.0, %v1544
      %v1546 = vpop.f32.mrf.mxu0
      %1547 = vmatprep.mubr.bf16.mxu0 0
      %1548 = vmatmul.mubr.bf16.gmra.mxu0 %v1494
      %v1549 = vpop.f32.mrf.mxu0
      %v1550 = vadd.f32 0.0, %v1549
      %v1551 = vpop.f32.mrf.mxu0
      %v1552 = vpop.f32.mrf.mxu0
      %v1553 = vadd.f32 0.0, %v1552
      %v1554 = vpop.f32.mrf.mxu0
      %1555 = vmatprep.mubr.bf16.mxu0 0
      %1556 = vmatmul.mubr.bf16.gmra.mxu0 %v1497
      %v1557 = vpop.f32.mrf.mxu0
      %v1558 = vadd.f32 0.0, %v1557
      %v1559 = vpop.f32.mrf.mxu0
      %v1560 = vpop.f32.mrf.mxu0
      %v1561 = vadd.f32 0.0, %v1560
      %v1562 = vpop.f32.mrf.mxu0
      %1563 = vdwg.mxu0
      %v1564 = vadd.f32 %v1443, %v1534
      %v1565 = vadd.f32 %v1444, %v1537
      %v1566 = vadd.f32 %v1445, %v1542
      %v1567 = vadd.f32 %v1446, %v1545
      %v1568 = vadd.f32 %v1447, %v1550
      %v1569 = vadd.f32 %v1448, %v1553
      %v1570 = vadd.f32 %v1449, %v1558
      %v1571 = vadd.f32 %v1450, %v1561
      %v1572 = vld [vmem:[#allocation2 + $0x18] sm:$0xff]
      %v1573 = vld [vmem:[#allocation2 + $0x20] sm:$0xff]
      %v1574 = vld [vmem:[#allocation2 + $0x28] sm:$0xff]
      %v1575 = vld [vmem:[#allocation2 + $0x30] sm:$0xff]
      %v1576 = vld [vmem:[#allocation2 + $0x38] sm:$0xff]
      %v1577 = vld [vmem:[#allocation2 + $0x40] sm:$0xff]
      %v1578 = vld [vmem:[#allocation2 + $0x48] sm:$0xff]
      %v1579 = vld [vmem:[#allocation2 + $0x50] sm:$0xff]
      %v1580 = vpack.c.bf16 %v1573, %v1572
      %v1581 = vpack.c.bf16 %v1575, %v1574
      %v1582 = vpack.c.bf16 %v1577, %v1576
      %v1583 = vpack.c.bf16 %v1579, %v1578
      %v1584 = vld [vmem:[%s3 + $0x70] sm:$0xf]
      %v1585 = vld [vmem:[%s3 + $0x74] sm:$0xf]
      %v1586 = vld [vmem:[%s3 + $0x78] sm:$0xf]
      %v1587 = vld [vmem:[%s3 + $0x7c] sm:$0xf]
      %v1592 = vunpack.c.l.b16 %v1584
      %v1593 = vunpack.c.l.b16 %v1585
      %v1594 = vunpack.c.l.b16 %v1586
      %v1595 = vunpack.c.l.b16 %v1587
      %v1596 = vpack.c.b16 %v1593, %v1592
      %v1597 = vpack.c.b16 %v1595, %v1594
      %v1601 = vsel %vm583, %v1580, 0
      %v1604 = vsel %vm583, %v1581, 0
      %v1607 = vsel %vm583, %v1582, 0
      %v1610 = vsel %vm583, %v1583, 0
      %1612 = vmatprep.subr.bf16.mxu0 0
      %1613 = vmatpush1.bf16.msra.mxu0 0
      %1614 = vmatprep.subr.bf16.mxu0 0
      %1615 = vmatpush1.bf16.msra.mxu0 0
      %1616 = vmatprep.subr.bf16.mxu0 0
      %1617 = vmatpush1.bf16.msra.mxu0 0
      %1618 = vmatprep.subr.bf16.mxu0 0
      %1619 = vmatpush1.bf16.msra.mxu0 0
      %1620 = vmatprep.subr.bf16.mxu0 0
      %1621 = vmatpush1.bf16.msra.mxu0 0
      %1622 = vmatprep.subr.bf16.mxu0 0
      %1623 = vmatpush1.bf16.msra.mxu0 0
      %1624 = vmatprep.subr.bf16.mxu0 0
      %1625 = vmatpush1.bf16.msra.mxu0 %v1597
      %1626 = vmatprep.subr.bf16.mxu0 0
      %1627 = vmatpush1.bf16.msra.mxu0 %v1596
      %1628 = vmatprep.subr.bf16.mxu0 0
      %1629 = vmatpush2.bf16.msra.mxu0 0
      %1630 = vmatprep.subr.bf16.mxu0 0
      %1631 = vmatpush2.bf16.msra.mxu0 0
      %1632 = vmatprep.subr.bf16.mxu0 0
      %1633 = vmatpush2.bf16.msra.mxu0 0
      %1634 = vmatprep.subr.bf16.mxu0 0
      %1635 = vmatpush2.bf16.msra.mxu0 0
      %1636 = vmatprep.subr.bf16.mxu0 0
      %1637 = vmatpush2.bf16.msra.mxu0 0
      %1638 = vmatprep.subr.bf16.mxu0 0
      %1639 = vmatpush2.bf16.msra.mxu0 0
      %1640 = vmatprep.subr.bf16.mxu0 0
      %1641 = vmatpush2.bf16.msra.mxu0 0
      %1642 = vmatprep.subr.bf16.mxu0 0
      %1643 = vmatpush2.bf16.msra.mxu0 0
      %1644 = vmatprep.mubr.bf16.mxu0 0
      %1645 = vmatmul.mubr.bf16.gmra.mxu0 %v1601
      %v1646 = vpop.f32.mrf.mxu0
      %v1647 = vadd.f32 0.0, %v1646
      %v1648 = vpop.f32.mrf.mxu0
      %v1649 = vpop.f32.mrf.mxu0
      %v1650 = vadd.f32 0.0, %v1649
      %v1651 = vpop.f32.mrf.mxu0
      %1652 = vmatprep.mubr.bf16.mxu0 0
      %1653 = vmatmul.mubr.bf16.gmra.mxu0 %v1604
      %v1654 = vpop.f32.mrf.mxu0
      %v1655 = vadd.f32 0.0, %v1654
      %v1656 = vpop.f32.mrf.mxu0
      %v1657 = vpop.f32.mrf.mxu0
      %v1658 = vadd.f32 0.0, %v1657
      %v1659 = vpop.f32.mrf.mxu0
      %1660 = vmatprep.mubr.bf16.mxu0 0
      %1661 = vmatmul.mubr.bf16.gmra.mxu0 %v1607
      %v1662 = vpop.f32.mrf.mxu0
      %v1663 = vadd.f32 0.0, %v1662
      %v1664 = vpop.f32.mrf.mxu0
      %v1665 = vpop.f32.mrf.mxu0
      %v1666 = vadd.f32 0.0, %v1665
      %v1667 = vpop.f32.mrf.mxu0
      %1668 = vmatprep.mubr.bf16.mxu0 0
      %1669 = vmatmul.mubr.bf16.gmra.mxu0 %v1610
      %v1670 = vpop.f32.mrf.mxu0
      %v1671 = vadd.f32 0.0, %v1670
      %v1672 = vpop.f32.mrf.mxu0
      %v1673 = vpop.f32.mrf.mxu0
      %v1674 = vadd.f32 0.0, %v1673
      %v1675 = vpop.f32.mrf.mxu0
      %1676 = vdwg.mxu0
      %v1677 = vadd.f32 %v1564, %v1647
      %v1678 = vadd.f32 %v1565, %v1650
      %v1679 = vadd.f32 %v1566, %v1655
      %v1680 = vadd.f32 %v1567, %v1658
      %v1681 = vadd.f32 %v1568, %v1663
      %v1682 = vadd.f32 %v1569, %v1666
      %v1683 = vadd.f32 %v1570, %v1671
      %v1684 = vadd.f32 %v1571, %v1674
      %v1685 = vld [vmem:[#allocation2 + $0x19] sm:$0xff]
      %v1686 = vld [vmem:[#allocation2 + $0x21] sm:$0xff]
      %v1687 = vld [vmem:[#allocation2 + $0x29] sm:$0xff]
      %v1688 = vld [vmem:[#allocation2 + $0x31] sm:$0xff]
      %v1689 = vld [vmem:[#allocation2 + $0x39] sm:$0xff]
      %v1690 = vld [vmem:[#allocation2 + $0x41] sm:$0xff]
      %v1691 = vld [vmem:[#allocation2 + $0x49] sm:$0xff]
      %v1692 = vld [vmem:[#allocation2 + $0x51] sm:$0xff]
      %v1693 = vsel %vm975, %v1685, 0.0
      %v1694 = vsel %vm976, %v1686, 0.0
      %v1695 = vsel %vm977, %v1687, 0.0
      %v1696 = vsel %vm978, %v1688, 0.0
      %v1697 = vsel %vm979, %v1689, 0.0
      %v1698 = vsel %vm980, %v1690, 0.0
      %v1699 = vsel %vm981, %v1691, 0.0
      %v1700 = vsel %vm982, %v1692, 0.0
      %v1701 = vpack.c.bf16 %v1694, %v1693
      %v1702 = vpack.c.bf16 %v1696, %v1695
      %v1703 = vpack.c.bf16 %v1698, %v1697
      %v1704 = vpack.c.bf16 %v1700, %v1699
      %v1705 = vld [vmem:[%s3 + $0x80] sm:$0xf]
      %v1706 = vld [vmem:[%s3 + $0x84] sm:$0xf]
      %v1707 = vld [vmem:[%s3 + $0x88] sm:$0xf]
      %v1708 = vld [vmem:[%s3 + $0x8c] sm:$0xf]
      %v1713 = vunpack.c.l.b16 %v1705
      %v1714 = vunpack.c.l.b16 %v1706
      %v1715 = vunpack.c.l.b16 %v1707
      %v1716 = vunpack.c.l.b16 %v1708
      %v1717 = vpack.c.b16 %v1714, %v1713
      %v1718 = vpack.c.b16 %v1716, %v1715
      %v1722 = vsel %vm583, %v1701, 0
      %v1725 = vsel %vm583, %v1702, 0
      %v1728 = vsel %vm583, %v1703, 0
      %v1731 = vsel %vm583, %v1704, 0
      %1733 = vmatprep.subr.bf16.mxu0 0
      %1734 = vmatpush1.bf16.msra.mxu0 0
      %1735 = vmatprep.subr.bf16.mxu0 0
      %1736 = vmatpush1.bf16.msra.mxu0 0
      %1737 = vmatprep.subr.bf16.mxu0 0
      %1738 = vmatpush1.bf16.msra.mxu0 0
      %1739 = vmatprep.subr.bf16.mxu0 0
      %1740 = vmatpush1.bf16.msra.mxu0 0
      %1741 = vmatprep.subr.bf16.mxu0 0
      %1742 = vmatpush1.bf16.msra.mxu0 0
      %1743 = vmatprep.subr.bf16.mxu0 0
      %1744 = vmatpush1.bf16.msra.mxu0 0
      %1745 = vmatprep.subr.bf16.mxu0 0
      %1746 = vmatpush1.bf16.msra.mxu0 %v1718
      %1747 = vmatprep.subr.bf16.mxu0 0
      %1748 = vmatpush1.bf16.msra.mxu0 %v1717
      %1749 = vmatprep.subr.bf16.mxu0 0
      %1750 = vmatpush2.bf16.msra.mxu0 0
      %1751 = vmatprep.subr.bf16.mxu0 0
      %1752 = vmatpush2.bf16.msra.mxu0 0
      %1753 = vmatprep.subr.bf16.mxu0 0
      %1754 = vmatpush2.bf16.msra.mxu0 0
      %1755 = vmatprep.subr.bf16.mxu0 0
      %1756 = vmatpush2.bf16.msra.mxu0 0
      %1757 = vmatprep.subr.bf16.mxu0 0
      %1758 = vmatpush2.bf16.msra.mxu0 0
      %1759 = vmatprep.subr.bf16.mxu0 0
      %1760 = vmatpush2.bf16.msra.mxu0 0
      %1761 = vmatprep.subr.bf16.mxu0 0
      %1762 = vmatpush2.bf16.msra.mxu0 0
      %1763 = vmatprep.subr.bf16.mxu0 0
      %1764 = vmatpush2.bf16.msra.mxu0 0
      %1765 = vmatprep.mubr.bf16.mxu0 0
      %1766 = vmatmul.mubr.bf16.gmra.mxu0 %v1722
      %v1767 = vpop.f32.mrf.mxu0
      %v1768 = vadd.f32 0.0, %v1767
      %v1769 = vpop.f32.mrf.mxu0
      %v1770 = vpop.f32.mrf.mxu0
      %v1771 = vadd.f32 0.0, %v1770
      %v1772 = vpop.f32.mrf.mxu0
      %1773 = vmatprep.mubr.bf16.mxu0 0
      %1774 = vmatmul.mubr.bf16.gmra.mxu0 %v1725
      %v1775 = vpop.f32.mrf.mxu0
      %v1776 = vadd.f32 0.0, %v1775
      %v1777 = vpop.f32.mrf.mxu0
      %v1778 = vpop.f32.mrf.mxu0
      %v1779 = vadd.f32 0.0, %v1778
      %v1780 = vpop.f32.mrf.mxu0
      %1781 = vmatprep.mubr.bf16.mxu0 0
      %1782 = vmatmul.mubr.bf16.gmra.mxu0 %v1728
      %v1783 = vpop.f32.mrf.mxu0
      %v1784 = vadd.f32 0.0, %v1783
      %v1785 = vpop.f32.mrf.mxu0
      %v1786 = vpop.f32.mrf.mxu0
      %v1787 = vadd.f32 0.0, %v1786
      %v1788 = vpop.f32.mrf.mxu0
      %1789 = vmatprep.mubr.bf16.mxu0 0
      %1790 = vmatmul.mubr.bf16.gmra.mxu0 %v1731
      %v1791 = vpop.f32.mrf.mxu0
      %v1792 = vadd.f32 0.0, %v1791
      %v1793 = vpop.f32.mrf.mxu0
      %v1794 = vpop.f32.mrf.mxu0
      %v1795 = vadd.f32 0.0, %v1794
      %v1796 = vpop.f32.mrf.mxu0
      %1797 = vdwg.mxu0
      %v1798 = vadd.f32 %v1677, %v1768
      %v1799 = vadd.f32 %v1678, %v1771
      %v1800 = vadd.f32 %v1679, %v1776
      %v1801 = vadd.f32 %v1680, %v1779
      %v1802 = vadd.f32 %v1681, %v1784
      %v1803 = vadd.f32 %v1682, %v1787
      %v1804 = vadd.f32 %v1683, %v1792
      %v1805 = vadd.f32 %v1684, %v1795
      %v1806 = vld [vmem:[%s4] sm:$0x1]
      %v1808 = vlaneseq
      %v1809 = vshrl.u32 %v1808, 7
      %v1810 = vsub.s32 0, %v1809
      %v1811 = vrot.slane %v1806, %v1810
      %v1813 = vadd.f32 %v1798, %v1811
      %v1814 = vadd.f32 %v1799, %v1811
      %v1815 = vadd.f32 %v1800, %v1811
      %v1816 = vadd.f32 %v1801, %v1811
      %v1817 = vadd.f32 %v1802, %v1811
      %v1818 = vadd.f32 %v1803, %v1811
      %v1819 = vadd.f32 %v1804, %v1811
      %v1820 = vadd.f32 %v1805, %v1811
      %v1821 = vld [vmem:[%s320] sm:$0xf]
      %v1822 = vld [vmem:[%s320 + $0x4] sm:$0xf]
      %v1823 = vld [vmem:[%s320 + $0x8] sm:$0xf]
      %v1824 = vld [vmem:[%s320 + $0xc] sm:$0xf]
      %v1825 = vld [vmem:[%s320 + $0x10] sm:$0xf]
      %v1826 = vld [vmem:[%s320 + $0x14] sm:$0xf]
      %v1827 = vld [vmem:[%s320 + $0x18] sm:$0xf]
      %v1828 = vld [vmem:[%s320 + $0x1c] sm:$0xf]
      %v1829 = vld [vmem:[%s6] sm:$0xf]
      %v1830 = vld [vmem:[%s6 + $0x4] sm:$0xf]
      %v1839 = vunpack.c.l.b16 %v1821
      %v1840 = vunpack.c.l.b16 %v1822
      %v1841 = vunpack.c.l.b16 %v1823
      %v1842 = vunpack.c.l.b16 %v1824
      %v1843 = vunpack.c.l.b16 %v1825
      %v1844 = vunpack.c.l.b16 %v1826
      %v1845 = vunpack.c.l.b16 %v1827
      %v1846 = vunpack.c.l.b16 %v1828
      %v1847 = vpack.c.b16 %v1840, %v1839
      %v1848 = vpack.c.b16 %v1842, %v1841
      %v1849 = vpack.c.b16 %v1844, %v1843
      %v1850 = vpack.c.b16 %v1846, %v1845
      %v1853 = vunpack.c.l.b16 %v1829
      %v1854 = vunpack.c.l.b16 %v1830
      %v1855 = vpack.c.b16 %v1854, %v1853
      %vm1857 = vcmask 130048
      %v1859 = vsel %vm1857, %v1847, 0
      %v1862 = vsel %vm1857, %v1848, 0
      %v1865 = vsel %vm1857, %v1849, 0
      %v1868 = vsel %vm1857, %v1850, 0
      %1870 = vmatprep.subr.bf16.mxu0 0
      %1871 = vmatpush1.bf16.msra.mxu0 0
      %1872 = vmatprep.subr.bf16.mxu0 0
      %1873 = vmatpush1.bf16.msra.mxu0 0
      %1874 = vmatprep.subr.bf16.mxu0 0
      %1875 = vmatpush1.bf16.msra.mxu0 0
      %1876 = vmatprep.subr.bf16.mxu0 0
      %1877 = vmatpush1.bf16.msra.mxu0 0
      %1878 = vmatprep.subr.bf16.mxu0 0
      %1879 = vmatpush1.bf16.msra.mxu0 0
      %1880 = vmatprep.subr.bf16.mxu0 0
      %1881 = vmatpush1.bf16.msra.mxu0 0
      %1882 = vmatprep.subr.bf16.mxu0 0
      %1883 = vmatpush1.bf16.msra.mxu0 0
      %1884 = vmatprep.subr.bf16.mxu0 0
      %1885 = vmatpush1.bf16.msra.mxu0 %v1855
      %1886 = vmatprep.subr.bf16.mxu0 0
      %1887 = vmatpush2.bf16.msra.mxu0 0
      %1888 = vmatprep.subr.bf16.mxu0 0
      %1889 = vmatpush2.bf16.msra.mxu0 0
      %1890 = vmatprep.subr.bf16.mxu0 0
      %1891 = vmatpush2.bf16.msra.mxu0 0
      %1892 = vmatprep.subr.bf16.mxu0 0
      %1893 = vmatpush2.bf16.msra.mxu0 0
      %1894 = vmatprep.subr.bf16.mxu0 0
      %1895 = vmatpush2.bf16.msra.mxu0 0
      %1896 = vmatprep.subr.bf16.mxu0 0
      %1897 = vmatpush2.bf16.msra.mxu0 0
      %1898 = vmatprep.subr.bf16.mxu0 0
      %1899 = vmatpush2.bf16.msra.mxu0 0
      %1900 = vmatprep.subr.bf16.mxu0 0
      %1901 = vmatpush2.bf16.msra.mxu0 0
      %1902 = vmatprep.mubr.bf16.mxu0 0
      %1903 = vmatmul.mubr.bf16.gmra.mxu0 %v1859
      %v1904 = vpop.f32.mrf.mxu0
      %v1905 = vadd.f32 0.0, %v1904
      %v1906 = vpop.f32.mrf.mxu0
      %v1907 = vpop.f32.mrf.mxu0
      %v1908 = vadd.f32 0.0, %v1907
      %v1909 = vpop.f32.mrf.mxu0
      %1910 = vmatprep.mubr.bf16.mxu0 0
      %1911 = vmatmul.mubr.bf16.gmra.mxu0 %v1862
      %v1912 = vpop.f32.mrf.mxu0
      %v1913 = vadd.f32 0.0, %v1912
      %v1914 = vpop.f32.mrf.mxu0
      %v1915 = vpop.f32.mrf.mxu0
      %v1916 = vadd.f32 0.0, %v1915
      %v1917 = vpop.f32.mrf.mxu0
      %1918 = vmatprep.mubr.bf16.mxu0 0
      %1919 = vmatmul.mubr.bf16.gmra.mxu0 %v1865
      %v1920 = vpop.f32.mrf.mxu0
      %v1921 = vadd.f32 0.0, %v1920
      %v1922 = vpop.f32.mrf.mxu0
      %v1923 = vpop.f32.mrf.mxu0
      %v1924 = vadd.f32 0.0, %v1923
      %v1925 = vpop.f32.mrf.mxu0
      %1926 = vmatprep.mubr.bf16.mxu0 0
      %1927 = vmatmul.mubr.bf16.gmra.mxu0 %v1868
      %v1928 = vpop.f32.mrf.mxu0
      %v1929 = vadd.f32 0.0, %v1928
      %v1930 = vpop.f32.mrf.mxu0
      %v1931 = vpop.f32.mrf.mxu0
      %v1932 = vadd.f32 0.0, %v1931
      %v1933 = vpop.f32.mrf.mxu0
      %1934 = vdwg.mxu0
      %v1935 = vadd.f32 %v1813, %v1905
      %v1936 = vadd.f32 %v1814, %v1908
      %v1937 = vadd.f32 %v1815, %v1913
      %v1938 = vadd.f32 %v1816, %v1916
      %v1939 = vadd.f32 %v1817, %v1921
      %v1940 = vadd.f32 %v1818, %v1924
      %v1941 = vadd.f32 %v1819, %v1929
      %v1942 = vadd.f32 %v1820, %v1932
      %v1943 = vld [vmem:[%s7] sm:$0x1]
      %v1945 = vlaneseq
      %v1946 = vshrl.u32 %v1945, 7
      %v1947 = vsub.s32 0, %v1946
      %v1948 = vrot.slane %v1943, %v1947
      %v1950 = vadd.f32 %v1935, %v1948
      %v1951 = vadd.f32 %v1936, %v1948
      %v1952 = vadd.f32 %v1937, %v1948
      %v1953 = vadd.f32 %v1938, %v1948
      %v1954 = vadd.f32 %v1939, %v1948
      %v1955 = vadd.f32 %v1940, %v1948
      %v1956 = vadd.f32 %v1941, %v1948
      %v1957 = vadd.f32 %v1942, %v1948
      %v1958 = vmax.f32 %v1950, 0.0
      %v1959 = vmax.f32 %v1951, 0.0
      %v1960 = vmax.f32 %v1952, 0.0
      %v1961 = vmax.f32 %v1953, 0.0
      %v1962 = vmax.f32 %v1954, 0.0
      %v1963 = vmax.f32 %v1955, 0.0
      %v1964 = vmax.f32 %v1956, 0.0
      %v1965 = vmax.f32 %v1957, 0.0
      %v1966 = vpack.c.bf16 %v1959, %v1958
      %v1967 = vpack.c.bf16 %v1961, %v1960
      %v1968 = vpack.c.bf16 %v1963, %v1962
      %v1969 = vpack.c.bf16 %v1965, %v1964
      %v1974 = vunpack.c.l.b16 %v1966
      %v1975 = vunpack.c.h.b16 %v1966
      %v1976 = vunpack.c.l.b16 %v1967
      %v1977 = vunpack.c.h.b16 %v1967
      %v1978 = vunpack.c.l.b16 %v1968
      %v1979 = vunpack.c.h.b16 %v1968
      %v1980 = vunpack.c.l.b16 %v1969
      %v1981 = vunpack.c.h.b16 %v1969
      %v1982 = vpack.c.b16 %v1974, %v1974
      %v1983 = vpack.c.b16 %v1975, %v1975
      %v1984 = vpack.c.b16 %v1976, %v1976
      %v1985 = vpack.c.b16 %v1977, %v1977
      %v1986 = vpack.c.b16 %v1978, %v1978
      %v1987 = vpack.c.b16 %v1979, %v1979
      %v1988 = vpack.c.b16 %v1980, %v1980
      %v1989 = vpack.c.b16 %v1981, %v1981
      %vm1998 = vcmask 257024
      %1999 = vst.msk [vmem:[%s325] sm:$0xf] %vm1998, %v1982
      %2000 = vst.msk [vmem:[%s325 + $0x4] sm:$0xf] %vm1998, %v1983
      %2001 = vst.msk [vmem:[%s325 + $0x8] sm:$0xf] %vm1998, %v1984
      %2002 = vst.msk [vmem:[%s325 + $0xc] sm:$0xf] %vm1998, %v1985
      %2003 = vst.msk [vmem:[%s325 + $0x10] sm:$0xf] %vm1998, %v1986
      %2004 = vst.msk [vmem:[%s325 + $0x14] sm:$0xf] %vm1998, %v1987
      %2005 = vst.msk [vmem:[%s325 + $0x18] sm:$0xf] %vm1998, %v1988
      %2006 = vst.msk [vmem:[%s325 + $0x1c] sm:$0xf] %vm1998, %v1989
      %p2007 = scmp.lt.s32.totalorder %s19, 1
      %s2008 = scalar_select %p2007, %s19, 1
      %s2009 = smul.addr %s2008, 8
      %s2010 = smul.addr %s2009, 4
      %s2011 = scalar_lea.vmem %s8, %s2010
      // Predicated region
      $region53: #{resnet_forward.7} parent=51 // pred_check
        %p2012 = pneg %p215
      $region54: #{resnet_forward.7} parent=51 // pred_check_branch
        %2014 = sbr.rel (%p2012) target = $region56
      $region55: #{resnet_forward.7} parent=51 // pred_region
        _
      $region56: #{resnet_forward.7} parent=51 // pred_fallthru
        _
    $region52: #{resnet_forward.7} parent=5 // pred_fallthru
      _
    %p2015 = scmp.le.s32.totalorder 2, %s14
    // Predicated region
    $region57: #{resnet_forward.7} parent=5 // pred_check
      %p2016 = pneg %p2015
    $region58: #{resnet_forward.7} parent=5 // pred_check_branch
      %2018 = sbr.rel (%p2016) target = $region60
    $region59: #{resnet_forward.7} parent=5 // pred_region
      %s2019 = ssub.s32 %s14, 2
      // Predicated region
      $region61: #{resnet_forward.7} parent=59 // pred_check
        %p2020 = pneg %p221
      $region62: #{resnet_forward.7} parent=59 // pred_check_branch
        %2022 = sbr.rel (%p2020) target = $region64
      $region63: #{resnet_forward.7} parent=59 // pred_region
        %p2023 = scmp.lt.s32.totalorder %s20, 1
        %s2024 = scalar_select %p2023, %s20, 1
        %s2025 = smul.addr %s2024, 8
        %s2026 = smul.addr %s2025, 4
        %s2027 = scalar_lea.vmem %s8, %s2026
      $region64: #{resnet_forward.7} parent=59 // pred_fallthru
        _
    $region60: #{resnet_forward.7} parent=5 // pred_fallthru
      _
  $region6: #{resnet_forward.7} parent=0 // loop_footer
    %s18 = sadd.s32 1, %s14
  $region7: #{resnet_forward.7} parent=0 // loop_footer_branch
    %13 = sbr.rel target = $region3
  $region8: #{resnet_forward.7} parent=0 // loop_exit
    _

// kernel: resnet_forward.6
$region0: #{resnet_forward.6}
  #allocation0 [shape = 'u32[]', space=smem, size = 0x4, offset = 0x4, fixed_abs, tag = 'smem constant byte address 0x4 - core index']
  #allocation1 [shape = 'u32[144,128]{1,0:T(1,128)}', space=vmem, size = 0x12000, scoped, tag = 'internal scratch']
  #allocation2 [shape = 'f32[304,16]{1,0:T(8,128)}', space=vmem, size = 0x26000, scoped, tag = 'scratch operand']
  %s0 = inlined_call_operand.vmem [shape: bf16[2,256,256], index: 0, kind: input, shape index: {}]
  %s1 = inlined_call_operand.vmem [shape: bf16[256,16], index: 1, kind: input, shape index: {}]
  %s2 = inlined_call_operand.vmem [shape: f32[1,16], index: 2, kind: input, shape index: {}]
  %s3 = inlined_call_operand.vmem [shape: bf16[144,16], index: 3, kind: input, shape index: {}]
  %s4 = inlined_call_operand.vmem [shape: f32[1,16], index: 4, kind: input, shape index: {}]
  %s5 = inlined_call_operand.vmem [shape: bf16[2,256,16], index: 5, kind: input, shape index: {}]
  %s6 = inlined_call_operand.vmem [shape: bf16[2,256,16], index: 6, kind: output, shape index: {}]
  %s7 = sld [smem:[#allocation0]]
  $region57: #{resnet_forward.6} parent=0
    _
  %s9 = ssub.s32 1, %s7
  %s10 = scalar_select 0, %s9, %s7
  loop: start=0, step=1, limit=4
  $region2: #{resnet_forward.6} parent=0 // loop_pre_header
    _
  $region3: #{resnet_forward.6} parent=0 // loop_header
    %s12 = sphi 0, %s16
    %p13 = scmp.ge.s32.totalorder %s12, 4
    %s22 = sphi 0, %s24
    %s25 = sphi 0, %s22
    %s26 = sphi 0, %s25
    %s42 = sphi 0, %s26
    %s46 = sphi 0, %s46
    %s48 = sphi 0, %s46
    %s49 = sphi 0, %s48
    %s63 = sphi 0, %s49
    %s67 = sphi 0, %s67
    %s69 = sphi 0, %s67
    %s70 = sphi 0, %s69
    %s84 = sphi 0, %s70
    %s88 = sphi 0, %s88
    %s90 = sphi 0, %s88
    %s91 = sphi 0, %s90
    %s105 = sphi 0, %s91
    %s109 = sphi 0, %s109
    %s111 = sphi 0, %s109
    %s112 = sphi 0, %s111
    %s126 = sphi 0, %s112
    %s132 = sphi 0, %s134
    %s135 = sphi 0, %s132
    %s136 = sphi 0, %s135
    %s152 = sphi 0, %s136
    %s158 = sphi 0, %s160
    %s161 = sphi 0, %s158
    %s162 = sphi 0, %s161
    %s178 = sphi 0, %s162
  $region4: #{resnet_forward.6} parent=0 // loop_header_branch
    %15 = sbr.rel (%p13) target = $region8
  $region5: #{resnet_forward.6} parent=0 // loop_body
    %s17 = ssub.s32 %s12, 1
    %s18 = ssub.s32 %s12, 2
    %s19 = sadd.s32 %s12, 1
    %s20 = ssub.s32 %s12, %s19
    %p21 = scmp.eq.s32.totalorder %s20, 0
    %s23 = sadd.s32 %s22, 1
    %s24 = scalar_select %p21, %s22, %s23
    %p27 = pneg %p21
    %p28 = scmp.eq.s32.totalorder %s12, 1
    %p29 = por %p27, %p28
    %p30 = scmp.ne.s32.totalorder %s22, %s25
    %p31 = scmp.eq.s32.totalorder %s12, 0
    %p32 = por %p30, %p31
    %p33 = scmp.ne.s32.totalorder %s22, %s25
    %p34 = scmp.eq.s32.totalorder %s17, 1
    %p35 = por %p33, %p34
    %p36 = scmp.ne.s32.totalorder %s25, %s26
    %p37 = scmp.eq.s32.totalorder %s17, 0
    %p38 = por %p36, %p37
    %p39 = scmp.ne.s32.totalorder %s25, %s26
    %p40 = scmp.eq.s32.totalorder %s18, 1
    %p41 = por %p39, %p40
    %p43 = scmp.ne.s32.totalorder %s26, %s42
    %p44 = scmp.eq.s32.totalorder %s18, 0
    %p45 = por %p43, %p44
    %s47 = sadd.s32 %s46, 1
    %p50 = scmp.eq.s32.totalorder %s12, 1
    %p51 = scmp.ne.s32.totalorder %s46, %s48
    %p52 = scmp.eq.s32.totalorder %s12, 0
    %p53 = por %p51, %p52
    %p54 = scmp.ne.s32.totalorder %s46, %s48
    %p55 = scmp.eq.s32.totalorder %s17, 1
    %p56 = por %p54, %p55
    %p57 = scmp.ne.s32.totalorder %s48, %s49
    %p58 = scmp.eq.s32.totalorder %s17, 0
    %p59 = por %p57, %p58
    %p60 = scmp.ne.s32.totalorder %s48, %s49
    %p61 = scmp.eq.s32.totalorder %s18, 1
    %p62 = por %p60, %p61
    %p64 = scmp.ne.s32.totalorder %s49, %s63
    %p65 = scmp.eq.s32.totalorder %s18, 0
    %p66 = por %p64, %p65
    %s68 = sadd.s32 %s67, 1
    %p71 = scmp.eq.s32.totalorder %s12, 1
    %p72 = scmp.ne.s32.totalorder %s67, %s69
    %p73 = scmp.eq.s32.totalorder %s12, 0
    %p74 = por %p72, %p73
    %p75 = scmp.ne.s32.totalorder %s67, %s69
    %p76 = scmp.eq.s32.totalorder %s17, 1
    %p77 = por %p75, %p76
    %p78 = scmp.ne.s32.totalorder %s69, %s70
    %p79 = scmp.eq.s32.totalorder %s17, 0
    %p80 = por %p78, %p79
    %p81 = scmp.ne.s32.totalorder %s69, %s70
    %p82 = scmp.eq.s32.totalorder %s18, 1
    %p83 = por %p81, %p82
    %p85 = scmp.ne.s32.totalorder %s70, %s84
    %p86 = scmp.eq.s32.totalorder %s18, 0
    %p87 = por %p85, %p86
    %s89 = sadd.s32 %s88, 1
    %p92 = scmp.eq.s32.totalorder %s12, 1
    %p93 = scmp.ne.s32.totalorder %s88, %s90
    %p94 = scmp.eq.s32.totalorder %s12, 0
    %p95 = por %p93, %p94
    %p96 = scmp.ne.s32.totalorder %s88, %s90
    %p97 = scmp.eq.s32.totalorder %s17, 1
    %p98 = por %p96, %p97
    %p99 = scmp.ne.s32.totalorder %s90, %s91
    %p100 = scmp.eq.s32.totalorder %s17, 0
    %p101 = por %p99, %p100
    %p102 = scmp.ne.s32.totalorder %s90, %s91
    %p103 = scmp.eq.s32.totalorder %s18, 1
    %p104 = por %p102, %p103
    %p106 = scmp.ne.s32.totalorder %s91, %s105
    %p107 = scmp.eq.s32.totalorder %s18, 0
    %p108 = por %p106, %p107
    %s110 = sadd.s32 %s109, 1
    %p113 = scmp.eq.s32.totalorder %s12, 1
    %p114 = scmp.ne.s32.totalorder %s109, %s111
    %p115 = scmp.eq.s32.totalorder %s12, 0
    %p116 = por %p114, %p115
    %p117 = scmp.ne.s32.totalorder %s109, %s111
    %p118 = scmp.eq.s32.totalorder %s17, 1
    %p119 = por %p117, %p118
    %p120 = scmp.ne.s32.totalorder %s111, %s112
    %p121 = scmp.eq.s32.totalorder %s17, 0
    %p122 = por %p120, %p121
    %p123 = scmp.ne.s32.totalorder %s111, %s112
    %p124 = scmp.eq.s32.totalorder %s18, 1
    %p125 = por %p123, %p124
    %p127 = scmp.ne.s32.totalorder %s112, %s126
    %p128 = scmp.eq.s32.totalorder %s18, 0
    %p129 = por %p127, %p128
    %s130 = ssub.s32 %s12, %s19
    %p131 = scmp.eq.s32.totalorder %s130, 0
    %s133 = sadd.s32 %s132, 1
    %s134 = scalar_select %p131, %s132, %s133
    %p137 = pneg %p131
    %p138 = scmp.eq.s32.totalorder %s12, 1
    %p139 = por %p137, %p138
    %p140 = scmp.ne.s32.totalorder %s132, %s135
    %p141 = scmp.eq.s32.totalorder %s12, 0
    %p142 = por %p140, %p141
    %p143 = scmp.ne.s32.totalorder %s132, %s135
    %p144 = scmp.eq.s32.totalorder %s17, 1
    %p145 = por %p143, %p144
    %p146 = scmp.ne.s32.totalorder %s135, %s136
    %p147 = scmp.eq.s32.totalorder %s17, 0
    %p148 = por %p146, %p147
    %p149 = scmp.ne.s32.totalorder %s135, %s136
    %p150 = scmp.eq.s32.totalorder %s18, 1
    %p151 = por %p149, %p150
    %p153 = scmp.ne.s32.totalorder %s136, %s152
    %p154 = scmp.eq.s32.totalorder %s18, 0
    %p155 = por %p153, %p154
    %s156 = ssub.s32 %s12, %s19
    %p157 = scmp.eq.s32.totalorder %s156, 0
    %s159 = sadd.s32 %s158, 1
    %s160 = scalar_select %p157, %s158, %s159
    %p163 = pneg %p157
    %p164 = scmp.eq.s32.totalorder %s12, 1
    %p165 = por %p163, %p164
    %p166 = scmp.ne.s32.totalorder %s158, %s161
    %p167 = scmp.eq.s32.totalorder %s12, 0
    %p168 = por %p166, %p167
    %p169 = scmp.ne.s32.totalorder %s158, %s161
    %p170 = scmp.eq.s32.totalorder %s17, 1
    %p171 = por %p169, %p170
    %p172 = scmp.ne.s32.totalorder %s161, %s162
    %p173 = scmp.eq.s32.totalorder %s17, 0
    %p174 = por %p172, %p173
    %p175 = scmp.ne.s32.totalorder %s161, %s162
    %p176 = scmp.eq.s32.totalorder %s18, 1
    %p177 = por %p175, %p176
    %p179 = scmp.ne.s32.totalorder %s162, %s178
    %p180 = scmp.eq.s32.totalorder %s18, 0
    %p181 = por %p179, %p180
    %p182 = scmp.le.s32.totalorder 1, %s12
    %p183 = scmp.lt.s32.totalorder %s12, 3
    %p184 = pnand %p182, %p183
    %p185 = pneg %p184
    // Predicated region
    $region9: #{resnet_forward.6} parent=5 // pred_check
      _
    $region10: #{resnet_forward.6} parent=5 // pred_check_branch
      %187 = sbr.rel (%p184) target = $region12
    $region11: #{resnet_forward.6} parent=5 // pred_region
      %s188 = ssub.s32 %s12, 1
      // Predicated region
      $region13: #{resnet_forward.6} parent=11 // pred_check
        %p189 = pneg %p59
      $region14: #{resnet_forward.6} parent=11 // pred_check_branch
        %191 = sbr.rel (%p189) target = $region16
      $region15: #{resnet_forward.6} parent=11 // pred_region
        _
      $region16: #{resnet_forward.6} parent=11 // pred_fallthru
        _
      // Predicated region
      $region17: #{resnet_forward.6} parent=11 // pred_check
        %p192 = pneg %p80
      $region18: #{resnet_forward.6} parent=11 // pred_check_branch
        %194 = sbr.rel (%p192) target = $region20
      $region19: #{resnet_forward.6} parent=11 // pred_region
        _
      $region20: #{resnet_forward.6} parent=11 // pred_fallthru
        _
      // Predicated region
      $region21: #{resnet_forward.6} parent=11 // pred_check
        %p195 = pneg %p101
      $region22: #{resnet_forward.6} parent=11 // pred_check_branch
        %197 = sbr.rel (%p195) target = $region24
      $region23: #{resnet_forward.6} parent=11 // pred_region
        _
      $region24: #{resnet_forward.6} parent=11 // pred_fallthru
        _
      // Predicated region
      $region25: #{resnet_forward.6} parent=11 // pred_check
        %p198 = pneg %p122
      $region26: #{resnet_forward.6} parent=11 // pred_check_branch
        %200 = sbr.rel (%p198) target = $region28
      $region27: #{resnet_forward.6} parent=11 // pred_region
        _
      $region28: #{resnet_forward.6} parent=11 // pred_fallthru
        _
    $region12: #{resnet_forward.6} parent=5 // pred_fallthru
      _
    %p201 = scmp.lt.s32.totalorder %s12, 2
    // Predicated region
    $region29: #{resnet_forward.6} parent=5 // pred_check
      %p202 = pneg %p201
    $region30: #{resnet_forward.6} parent=5 // pred_check_branch
      %204 = sbr.rel (%p202) target = $region32
    $region31: #{resnet_forward.6} parent=5 // pred_region
      // Predicated region
      $region33: #{resnet_forward.6} parent=31 // pred_check
        %p205 = pneg %p32
      $region34: #{resnet_forward.6} parent=31 // pred_check_branch
        %207 = sbr.rel (%p205) target = $region36
      $region35: #{resnet_forward.6} parent=31 // pred_region
        %p208 = scmp.lt.s32.totalorder %s12, 1
        %s209 = scalar_select %p208, %s12, 1
        %s210 = smul.addr %s209, 64
        %s211 = smul.addr %s210, 4
        %s212 = scalar_lea.vmem %s0, %s211
      $region36: #{resnet_forward.6} parent=31 // pred_fallthru
        _
      // Predicated region
      $region37: #{resnet_forward.6} parent=31 // pred_check
        %p213 = pneg %p142
      $region38: #{resnet_forward.6} parent=31 // pred_check_branch
        %215 = sbr.rel (%p213) target = $region40
      $region39: #{resnet_forward.6} parent=31 // pred_region
        %p216 = scmp.lt.s32.totalorder %s12, 1
        %s217 = scalar_select %p216, %s12, 1
        %s218 = smul.addr %s217, 32
        %s219 = smul.addr %s218, 4
        %s220 = scalar_lea.vmem %s5, %s219
      $region40: #{resnet_forward.6} parent=31 // pred_fallthru
        _
    $region32: #{resnet_forward.6} parent=5 // pred_fallthru
      _
    %p221 = scmp.le.s32.totalorder 1, %s12
    %p222 = scmp.lt.s32.totalorder %s12, 3
    %p223 = pnand %p221, %p222
    %p224 = pneg %p223
    // Predicated region
    $region41: #{resnet_forward.6} parent=5 // pred_check
      _
    $region42: #{resnet_forward.6} parent=5 // pred_check_branch
      %226 = sbr.rel (%p223) target = $region44
    $region43: #{resnet_forward.6} parent=5 // pred_region
      %s227 = ssub.s32 %s12, 1
      %p228 = scmp.lt.s32.totalorder %s17, 1
      %s229 = scalar_select %p228, %s17, 1
      %s230 = smul.addr %s229, 64
      %s231 = smul.addr %s230, 4
      %s232 = scalar_lea.vmem %s0, %s231
      %p233 = pneg %p38
      %p234 = pneg %p35
      %p235 = pneg %p59
      %p236 = pneg %p56
      %p237 = pneg %p80
      %p238 = pneg %p77
      %p239 = pneg %p101
      %p240 = pneg %p98
      %p241 = pneg %p122
      %p242 = pneg %p119
      %p243 = scmp.lt.s32.totalorder %s17, 1
      %s244 = scalar_select %p243, %s17, 1
      %s245 = smul.addr %s244, 32
      %s246 = smul.addr %s245, 4
      %s247 = scalar_lea.vmem %s5, %s246
      %p248 = pneg %p148
      %p249 = pneg %p145
      %p250 = pneg %p174
      %p251 = pneg %p171
      %p252 = scmp.lt.s32.totalorder %s17, 1
      %s253 = scalar_select %p252, %s17, 1
      %s254 = smul.addr %s253, 32
      %s255 = smul.addr %s254, 4
      %s256 = scalar_lea.vmem %s6, %s255
      %p257 = scmp.lt.s32.totalorder %s17, 1
      %s258 = scalar_select %p257, %s17, 1
      %s259 = smul.addr %s258, 64
      %s260 = smul.addr %s259, 4
      %s261 = scalar_lea.vmem %s0, %s260
      %p262 = scmp.lt.s32.totalorder %s17, 1
      %s263 = scalar_select %p262, %s17, 1
      %s264 = smul.addr %s263, 32
      %s265 = smul.addr %s264, 4
      %s266 = scalar_lea.vmem %s5, %s265
      %p267 = scmp.lt.s32.totalorder %s17, 1
      %s268 = scalar_select %p267, %s17, 1
      %s269 = smul.addr %s268, 32
      %s270 = smul.addr %s269, 4
      %s271 = scalar_lea.vmem %s6, %s270
      %v273 = vld [vmem:[%s261] sm:$0xff]
      %v274 = vld [vmem:[%s261 + $0x8] sm:$0xff]
      %v275 = vld [vmem:[%s261 + $0x10] sm:$0xff]
      %v276 = vld [vmem:[%s261 + $0x18] sm:$0xff]
      %v277 = vld [vmem:[%s261 + $0x20] sm:$0xff]
      %v278 = vld [vmem:[%s261 + $0x28] sm:$0xff]
      %v279 = vld [vmem:[%s261 + $0x30] sm:$0xff]
      %v280 = vld [vmem:[%s261 + $0x38] sm:$0xff]
      %v281 = vld [vmem:[%s261 + $0x40] sm:$0xff]
      %v282 = vld [vmem:[%s261 + $0x48] sm:$0xff]
      %v283 = vld [vmem:[%s261 + $0x50] sm:$0xff]
      %v284 = vld [vmem:[%s261 + $0x58] sm:$0xff]
      %v285 = vld [vmem:[%s261 + $0x60] sm:$0xff]
      %v286 = vld [vmem:[%s261 + $0x68] sm:$0xff]
      %v287 = vld [vmem:[%s261 + $0x70] sm:$0xff]
      %v288 = vld [vmem:[%s261 + $0x78] sm:$0xff]
      %v289 = vld [vmem:[%s261 + $0x80] sm:$0xff]
      %v290 = vld [vmem:[%s261 + $0x88] sm:$0xff]
      %v291 = vld [vmem:[%s261 + $0x90] sm:$0xff]
      %v292 = vld [vmem:[%s261 + $0x98] sm:$0xff]
      %v293 = vld [vmem:[%s261 + $0xa0] sm:$0xff]
      %v294 = vld [vmem:[%s261 + $0xa8] sm:$0xff]
      %v295 = vld [vmem:[%s261 + $0xb0] sm:$0xff]
      %v296 = vld [vmem:[%s261 + $0xb8] sm:$0xff]
      %v297 = vld [vmem:[%s261 + $0xc0] sm:$0xff]
      %v298 = vld [vmem:[%s261 + $0xc8] sm:$0xff]
      %v299 = vld [vmem:[%s261 + $0xd0] sm:$0xff]
      %v300 = vld [vmem:[%s261 + $0xd8] sm:$0xff]
      %v301 = vld [vmem:[%s261 + $0xe0] sm:$0xff]
      %v302 = vld [vmem:[%s261 + $0xe8] sm:$0xff]
      %v303 = vld [vmem:[%s261 + $0xf0] sm:$0xff]
      %v304 = vld [vmem:[%s261 + $0xf8] sm:$0xff]
      %v305 = vld [vmem:[%s1] sm:$0xf]
      %v306 = vld [vmem:[%s1 + $0x4] sm:$0xf]
      %v307 = vld [vmem:[%s1 + $0x8] sm:$0xf]
      %v308 = vld [vmem:[%s1 + $0xc] sm:$0xf]
      %v309 = vld [vmem:[%s1 + $0x10] sm:$0xf]
      %v310 = vld [vmem:[%s1 + $0x14] sm:$0xf]
      %v311 = vld [vmem:[%s1 + $0x18] sm:$0xf]
      %v312 = vld [vmem:[%s1 + $0x1c] sm:$0xf]
      %v313 = vld [vmem:[%s1 + $0x20] sm:$0xf]
      %v314 = vld [vmem:[%s1 + $0x24] sm:$0xf]
      %v315 = vld [vmem:[%s1 + $0x28] sm:$0xf]
      %v316 = vld [vmem:[%s1 + $0x2c] sm:$0xf]
      %v317 = vld [vmem:[%s1 + $0x30] sm:$0xf]
      %v318 = vld [vmem:[%s1 + $0x34] sm:$0xf]
      %v319 = vld [vmem:[%s1 + $0x38] sm:$0xf]
      %v320 = vld [vmem:[%s1 + $0x3c] sm:$0xf]
      %v321 = vld [vmem:[%s1 + $0x40] sm:$0xf]
      %v322 = vld [vmem:[%s1 + $0x44] sm:$0xf]
      %v323 = vld [vmem:[%s1 + $0x48] sm:$0xf]
      %v324 = vld [vmem:[%s1 + $0x4c] sm:$0xf]
      %v325 = vld [vmem:[%s1 + $0x50] sm:$0xf]
      %v326 = vld [vmem:[%s1 + $0x54] sm:$0xf]
      %v327 = vld [vmem:[%s1 + $0x58] sm:$0xf]
      %v328 = vld [vmem:[%s1 + $0x5c] sm:$0xf]
      %v329 = vld [vmem:[%s1 + $0x60] sm:$0xf]
      %v330 = vld [vmem:[%s1 + $0x64] sm:$0xf]
      %v331 = vld [vmem:[%s1 + $0x68] sm:$0xf]
      %v332 = vld [vmem:[%s1 + $0x6c] sm:$0xf]
      %v333 = vld [vmem:[%s1 + $0x70] sm:$0xf]
      %v334 = vld [vmem:[%s1 + $0x74] sm:$0xf]
      %v335 = vld [vmem:[%s1 + $0x78] sm:$0xf]
      %v336 = vld [vmem:[%s1 + $0x7c] sm:$0xf]
      %v337 = vld [vmem:[%s2] sm:$0x1]
      %v339 = vlaneseq
      %v340 = vshrl.u32 %v339, 7
      %v341 = vsub.s32 0, %v340
      %v342 = vrot.slane %v337, %v341
      %v376 = vunpack.c.l.b16 %v273
      %v377 = vunpack.c.h.b16 %v273
      %v378 = vunpack.c.l.b16 %v274
      %v379 = vunpack.c.h.b16 %v274
      %v380 = vunpack.c.l.b16 %v275
      %v381 = vunpack.c.h.b16 %v275
      %v382 = vunpack.c.l.b16 %v276
      %v383 = vunpack.c.h.b16 %v276
      %v384 = vunpack.c.l.b16 %v277
      %v385 = vunpack.c.h.b16 %v277
      %v386 = vunpack.c.l.b16 %v278
      %v387 = vunpack.c.h.b16 %v278
      %v388 = vunpack.c.l.b16 %v279
      %v389 = vunpack.c.h.b16 %v279
      %v390 = vunpack.c.l.b16 %v280
      %v391 = vunpack.c.h.b16 %v280
      %v392 = vunpack.c.l.b16 %v281
      %v393 = vunpack.c.h.b16 %v281
      %v394 = vunpack.c.l.b16 %v282
      %v395 = vunpack.c.h.b16 %v282
      %v396 = vunpack.c.l.b16 %v283
      %v397 = vunpack.c.h.b16 %v283
      %v398 = vunpack.c.l.b16 %v284
      %v399 = vunpack.c.h.b16 %v284
      %v400 = vunpack.c.l.b16 %v285
      %v401 = vunpack.c.h.b16 %v285
      %v402 = vunpack.c.l.b16 %v286
      %v403 = vunpack.c.h.b16 %v286
      %v404 = vunpack.c.l.b16 %v287
      %v405 = vunpack.c.h.b16 %v287
      %v406 = vunpack.c.l.b16 %v288
      %v407 = vunpack.c.h.b16 %v288
      %v408 = vunpack.c.l.b16 %v289
      %v409 = vunpack.c.h.b16 %v289
      %v410 = vunpack.c.l.b16 %v290
      %v411 = vunpack.c.h.b16 %v290
      %v412 = vunpack.c.l.b16 %v291
      %v413 = vunpack.c.h.b16 %v291
      %v414 = vunpack.c.l.b16 %v292
      %v415 = vunpack.c.h.b16 %v292
      %v416 = vunpack.c.l.b16 %v293
      %v417 = vunpack.c.h.b16 %v293
      %v418 = vunpack.c.l.b16 %v294
      %v419 = vunpack.c.h.b16 %v294
      %v420 = vunpack.c.l.b16 %v295
      %v421 = vunpack.c.h.b16 %v295
      %v422 = vunpack.c.l.b16 %v296
      %v423 = vunpack.c.h.b16 %v296
      %v424 = vunpack.c.l.b16 %v297
      %v425 = vunpack.c.h.b16 %v297
      %v426 = vunpack.c.l.b16 %v298
      %v427 = vunpack.c.h.b16 %v298
      %v428 = vunpack.c.l.b16 %v299
      %v429 = vunpack.c.h.b16 %v299
      %v430 = vunpack.c.l.b16 %v300
      %v431 = vunpack.c.h.b16 %v300
      %v432 = vunpack.c.l.b16 %v301
      %v433 = vunpack.c.h.b16 %v301
      %v434 = vunpack.c.l.b16 %v302
      %v435 = vunpack.c.h.b16 %v302
      %v436 = vunpack.c.l.b16 %v303
      %v437 = vunpack.c.h.b16 %v303
      %v438 = vunpack.c.l.b16 %v304
      %v439 = vunpack.c.h.b16 %v304
      %v440 = vpack.c.b16 %v378, %v376
      %v441 = vpack.c.b16 %v379, %v377
      %v442 = vpack.c.b16 %v382, %v380
      %v443 = vpack.c.b16 %v383, %v381
      %v444 = vpack.c.b16 %v386, %v384
      %v445 = vpack.c.b16 %v387, %v385
      %v446 = vpack.c.b16 %v390, %v388
      %v447 = vpack.c.b16 %v391, %v389
      %v448 = vpack.c.b16 %v394, %v392
      %v449 = vpack.c.b16 %v395, %v393
      %v450 = vpack.c.b16 %v398, %v396
      %v451 = vpack.c.b16 %v399, %v397
      %v452 = vpack.c.b16 %v402, %v400
      %v453 = vpack.c.b16 %v403, %v401
      %v454 = vpack.c.b16 %v406, %v404
      %v455 = vpack.c.b16 %v407, %v405
      %v456 = vpack.c.b16 %v410, %v408
      %v457 = vpack.c.b16 %v411, %v409
      %v458 = vpack.c.b16 %v414, %v412
      %v459 = vpack.c.b16 %v415, %v413
      %v460 = vpack.c.b16 %v418, %v416
      %v461 = vpack.c.b16 %v419, %v417
      %v462 = vpack.c.b16 %v422, %v420
      %v463 = vpack.c.b16 %v423, %v421
      %v464 = vpack.c.b16 %v426, %v424
      %v465 = vpack.c.b16 %v427, %v425
      %v466 = vpack.c.b16 %v430, %v428
      %v467 = vpack.c.b16 %v431, %v429
      %v468 = vpack.c.b16 %v434, %v432
      %v469 = vpack.c.b16 %v435, %v433
      %v470 = vpack.c.b16 %v438, %v436
      %v471 = vpack.c.b16 %v439, %v437
      %v536 = vunpack.c.l.b16 %v305
      %v537 = vunpack.c.l.b16 %v306
      %v538 = vunpack.c.l.b16 %v307
      %v539 = vunpack.c.l.b16 %v308
      %v540 = vunpack.c.l.b16 %v309
      %v541 = vunpack.c.l.b16 %v310
      %v542 = vunpack.c.l.b16 %v311
      %v543 = vunpack.c.l.b16 %v312
      %v544 = vunpack.c.l.b16 %v313
      %v545 = vunpack.c.l.b16 %v314
      %v546 = vunpack.c.l.b16 %v315
      %v547 = vunpack.c.l.b16 %v316
      %v548 = vunpack.c.l.b16 %v317
      %v549 = vunpack.c.l.b16 %v318
      %v550 = vunpack.c.l.b16 %v319
      %v551 = vunpack.c.l.b16 %v320
      %v552 = vunpack.c.l.b16 %v321
      %v553 = vunpack.c.l.b16 %v322
      %v554 = vunpack.c.l.b16 %v323
      %v555 = vunpack.c.l.b16 %v324
      %v556 = vunpack.c.l.b16 %v325
      %v557 = vunpack.c.l.b16 %v326
      %v558 = vunpack.c.l.b16 %v327
      %v559 = vunpack.c.l.b16 %v328
      %v560 = vunpack.c.l.b16 %v329
      %v561 = vunpack.c.l.b16 %v330
      %v562 = vunpack.c.l.b16 %v331
      %v563 = vunpack.c.l.b16 %v332
      %v564 = vunpack.c.l.b16 %v333
      %v565 = vunpack.c.l.b16 %v334
      %v566 = vunpack.c.l.b16 %v335
      %v567 = vunpack.c.l.b16 %v336
      %v568 = vpack.c.b16 %v537, %v536
      %v569 = vpack.c.b16 %v539, %v538
      %v570 = vpack.c.b16 %v541, %v540
      %v571 = vpack.c.b16 %v543, %v542
      %v572 = vpack.c.b16 %v545, %v544
      %v573 = vpack.c.b16 %v547, %v546
      %v574 = vpack.c.b16 %v549, %v548
      %v575 = vpack.c.b16 %v551, %v550
      %v576 = vpack.c.b16 %v553, %v552
      %v577 = vpack.c.b16 %v555, %v554
      %v578 = vpack.c.b16 %v557, %v556
      %v579 = vpack.c.b16 %v559, %v558
      %v580 = vpack.c.b16 %v561, %v560
      %v581 = vpack.c.b16 %v563, %v562
      %v582 = vpack.c.b16 %v565, %v564
      %v583 = vpack.c.b16 %v567, %v566
      %600 = vmatprep.subr.bf16.mxu0 0
      %601 = vmatpush1.bf16.msra.mxu0 %v575
      %602 = vmatprep.subr.bf16.mxu0 0
      %603 = vmatpush1.bf16.msra.mxu0 %v574
      %604 = vmatprep.subr.bf16.mxu0 0
      %605 = vmatpush1.bf16.msra.mxu0 %v573
      %606 = vmatprep.subr.bf16.mxu0 0
      %607 = vmatpush1.bf16.msra.mxu0 %v572
      %608 = vmatprep.subr.bf16.mxu0 0
      %609 = vmatpush1.bf16.msra.mxu0 %v571
      %610 = vmatprep.subr.bf16.mxu0 0
      %611 = vmatpush1.bf16.msra.mxu0 %v570
      %612 = vmatprep.subr.bf16.mxu0 0
      %613 = vmatpush1.bf16.msra.mxu0 %v569
      %614 = vmatprep.subr.bf16.mxu0 0
      %615 = vmatpush1.bf16.msra.mxu0 %v568
      %616 = vmatprep.subr.bf16.mxu0 0
      %617 = vmatpush2.bf16.msra.mxu0 %v583
      %618 = vmatprep.subr.bf16.mxu0 0
      %619 = vmatpush2.bf16.msra.mxu0 %v582
      %620 = vmatprep.subr.bf16.mxu0 0
      %621 = vmatpush2.bf16.msra.mxu0 %v581
      %622 = vmatprep.subr.bf16.mxu0 0
      %623 = vmatpush2.bf16.msra.mxu0 %v580
      %624 = vmatprep.subr.bf16.mxu0 0
      %625 = vmatpush2.bf16.msra.mxu0 %v579
      %626 = vmatprep.subr.bf16.mxu0 0
      %627 = vmatpush2.bf16.msra.mxu0 %v578
      %628 = vmatprep.subr.bf16.mxu0 0
      %629 = vmatpush2.bf16.msra.mxu0 %v577
      %630 = vmatprep.subr.bf16.mxu0 0
      %631 = vmatpush2.bf16.msra.mxu0 %v576
      %632 = vmatprep.mubr.bf16.mxu0 %v441
      %633 = vmatmul.mubr.bf16.gmra.mxu0 %v440
      %v634 = vpop.f32.mrf.mxu0
      %v635 = vadd.f32 %v342, %v634
      %v636 = vpop.f32.mrf.mxu0
      %v637 = vpop.f32.mrf.mxu0
      %v638 = vadd.f32 %v342, %v637
      %v639 = vpop.f32.mrf.mxu0
      %640 = vmatprep.mubr.bf16.mxu0 %v443
      %641 = vmatmul.mubr.bf16.gmra.mxu0 %v442
      %v642 = vpop.f32.mrf.mxu0
      %v643 = vadd.f32 %v342, %v642
      %v644 = vpop.f32.mrf.mxu0
      %v645 = vpop.f32.mrf.mxu0
      %v646 = vadd.f32 %v342, %v645
      %v647 = vpop.f32.mrf.mxu0
      %648 = vmatprep.mubr.bf16.mxu0 %v445
      %649 = vmatmul.mubr.bf16.gmra.mxu0 %v444
      %v650 = vpop.f32.mrf.mxu0
      %v651 = vadd.f32 %v342, %v650
      %v652 = vpop.f32.mrf.mxu0
      %v653 = vpop.f32.mrf.mxu0
      %v654 = vadd.f32 %v342, %v653
      %v655 = vpop.f32.mrf.mxu0
      %656 = vmatprep.mubr.bf16.mxu0 %v447
      %657 = vmatmul.mubr.bf16.gmra.mxu0 %v446
      %v658 = vpop.f32.mrf.mxu0
      %v659 = vadd.f32 %v342, %v658
      %v660 = vpop.f32.mrf.mxu0
      %v661 = vpop.f32.mrf.mxu0
      %v662 = vadd.f32 %v342, %v661
      %v663 = vpop.f32.mrf.mxu0
      %664 = vmatprep.mubr.bf16.mxu0 %v449
      %665 = vmatmul.mubr.bf16.gmra.mxu0 %v448
      %v666 = vpop.f32.mrf.mxu0
      %v667 = vadd.f32 %v342, %v666
      %v668 = vpop.f32.mrf.mxu0
      %v669 = vpop.f32.mrf.mxu0
      %v670 = vadd.f32 %v342, %v669
      %v671 = vpop.f32.mrf.mxu0
      %672 = vmatprep.mubr.bf16.mxu0 %v451
      %673 = vmatmul.mubr.bf16.gmra.mxu0 %v450
      %v674 = vpop.f32.mrf.mxu0
      %v675 = vadd.f32 %v342, %v674
      %v676 = vpop.f32.mrf.mxu0
      %v677 = vpop.f32.mrf.mxu0
      %v678 = vadd.f32 %v342, %v677
      %v679 = vpop.f32.mrf.mxu0
      %680 = vmatprep.mubr.bf16.mxu0 %v453
      %681 = vmatmul.mubr.bf16.gmra.mxu0 %v452
      %v682 = vpop.f32.mrf.mxu0
      %v683 = vadd.f32 %v342, %v682
      %v684 = vpop.f32.mrf.mxu0
      %v685 = vpop.f32.mrf.mxu0
      %v686 = vadd.f32 %v342, %v685
      %v687 = vpop.f32.mrf.mxu0
      %688 = vmatprep.mubr.bf16.mxu0 %v455
      %689 = vmatmul.mubr.bf16.gmra.mxu0 %v454
      %v690 = vpop.f32.mrf.mxu0
      %v691 = vadd.f32 %v342, %v690
      %v692 = vpop.f32.mrf.mxu0
      %v693 = vpop.f32.mrf.mxu0
      %v694 = vadd.f32 %v342, %v693
      %v695 = vpop.f32.mrf.mxu0
      %696 = vmatprep.mubr.bf16.mxu0 %v457
      %697 = vmatmul.mubr.bf16.gmra.mxu0 %v456
      %v698 = vpop.f32.mrf.mxu0
      %v699 = vadd.f32 %v342, %v698
      %v700 = vpop.f32.mrf.mxu0
      %v701 = vpop.f32.mrf.mxu0
      %v702 = vadd.f32 %v342, %v701
      %v703 = vpop.f32.mrf.mxu0
      %704 = vmatprep.mubr.bf16.mxu0 %v459
      %705 = vmatmul.mubr.bf16.gmra.mxu0 %v458
      %v706 = vpop.f32.mrf.mxu0
      %v707 = vadd.f32 %v342, %v706
      %v708 = vpop.f32.mrf.mxu0
      %v709 = vpop.f32.mrf.mxu0
      %v710 = vadd.f32 %v342, %v709
      %v711 = vpop.f32.mrf.mxu0
      %712 = vmatprep.mubr.bf16.mxu0 %v461
      %713 = vmatmul.mubr.bf16.gmra.mxu0 %v460
      %v714 = vpop.f32.mrf.mxu0
      %v715 = vadd.f32 %v342, %v714
      %v716 = vpop.f32.mrf.mxu0
      %v717 = vpop.f32.mrf.mxu0
      %v718 = vadd.f32 %v342, %v717
      %v719 = vpop.f32.mrf.mxu0
      %720 = vmatprep.mubr.bf16.mxu0 %v463
      %721 = vmatmul.mubr.bf16.gmra.mxu0 %v462
      %v722 = vpop.f32.mrf.mxu0
      %v723 = vadd.f32 %v342, %v722
      %v724 = vpop.f32.mrf.mxu0
      %v725 = vpop.f32.mrf.mxu0
      %v726 = vadd.f32 %v342, %v725
      %v727 = vpop.f32.mrf.mxu0
      %728 = vmatprep.mubr.bf16.mxu0 %v465
      %729 = vmatmul.mubr.bf16.gmra.mxu0 %v464
      %v730 = vpop.f32.mrf.mxu0
      %v731 = vadd.f32 %v342, %v730
      %v732 = vpop.f32.mrf.mxu0
      %v733 = vpop.f32.mrf.mxu0
      %v734 = vadd.f32 %v342, %v733
      %v735 = vpop.f32.mrf.mxu0
      %736 = vmatprep.mubr.bf16.mxu0 %v467
      %737 = vmatmul.mubr.bf16.gmra.mxu0 %v466
      %v738 = vpop.f32.mrf.mxu0
      %v739 = vadd.f32 %v342, %v738
      %v740 = vpop.f32.mrf.mxu0
      %v741 = vpop.f32.mrf.mxu0
      %v742 = vadd.f32 %v342, %v741
      %v743 = vpop.f32.mrf.mxu0
      %744 = vmatprep.mubr.bf16.mxu0 %v469
      %745 = vmatmul.mubr.bf16.gmra.mxu0 %v468
      %v746 = vpop.f32.mrf.mxu0
      %v747 = vadd.f32 %v342, %v746
      %v748 = vpop.f32.mrf.mxu0
      %v749 = vpop.f32.mrf.mxu0
      %v750 = vadd.f32 %v342, %v749
      %v751 = vpop.f32.mrf.mxu0
      %752 = vmatprep.mubr.bf16.mxu0 %v471
      %753 = vmatmul.mubr.bf16.gmra.mxu0 %v470
      %v754 = vpop.f32.mrf.mxu0
      %v755 = vadd.f32 %v342, %v754
      %v756 = vpop.f32.mrf.mxu0
      %v757 = vpop.f32.mrf.mxu0
      %v758 = vadd.f32 %v342, %v757
      %v759 = vpop.f32.mrf.mxu0
      %760 = vdwg.mxu0
      %v761 = vmax.f32 %v635, 0.0
      %v762 = vmax.f32 %v638, 0.0
      %v763 = vmax.f32 %v643, 0.0
      %v764 = vmax.f32 %v646, 0.0
      %v765 = vmax.f32 %v651, 0.0
      %v766 = vmax.f32 %v654, 0.0
      %v767 = vmax.f32 %v659, 0.0
      %v768 = vmax.f32 %v662, 0.0
      %v769 = vmax.f32 %v667, 0.0
      %v770 = vmax.f32 %v670, 0.0
      %v771 = vmax.f32 %v675, 0.0
      %v772 = vmax.f32 %v678, 0.0
      %v773 = vmax.f32 %v683, 0.0
      %v774 = vmax.f32 %v686, 0.0
      %v775 = vmax.f32 %v691, 0.0
      %v776 = vmax.f32 %v694, 0.0
      %v777 = vmax.f32 %v699, 0.0
      %v778 = vmax.f32 %v702, 0.0
      %v779 = vmax.f32 %v707, 0.0
      %v780 = vmax.f32 %v710, 0.0
      %v781 = vmax.f32 %v715, 0.0
      %v782 = vmax.f32 %v718, 0.0
      %v783 = vmax.f32 %v723, 0.0
      %v784 = vmax.f32 %v726, 0.0
      %v785 = vmax.f32 %v731, 0.0
      %v786 = vmax.f32 %v734, 0.0
      %v787 = vmax.f32 %v739, 0.0
      %v788 = vmax.f32 %v742, 0.0
      %v789 = vmax.f32 %v747, 0.0
      %v790 = vmax.f32 %v750, 0.0
      %v791 = vmax.f32 %v755, 0.0
      %v792 = vmax.f32 %v758, 0.0
      %vm793 = vcmask 130048
      %794 = vst.msk [vmem:[#allocation2] sm:$0xff] %vm793, 0.0
      %795 = vst.msk [vmem:[#allocation2 + $0x8] sm:$0xff] %vm793, 0.0
      %796 = vst.msk [vmem:[#allocation2 + $0x10] sm:$0xff] %vm793, 0.0
      %797 = vst.msk [vmem:[#allocation2 + $0x18] sm:$0xff] %vm793, 0.0
      %798 = vst.msk [vmem:[#allocation2 + $0x20] sm:$0xff] %vm793, 0.0
      %799 = vst.msk [vmem:[#allocation2 + $0x28] sm:$0xff] %vm793, 0.0
      %800 = vst.msk [vmem:[#allocation2 + $0x30] sm:$0xff] %vm793, 0.0
      %801 = vst.msk [vmem:[#allocation2 + $0x38] sm:$0xff] %vm793, 0.0
      %802 = vst.msk [vmem:[#allocation2 + $0x40] sm:$0xff] %vm793, 0.0
      %803 = vst.msk [vmem:[#allocation2 + $0x48] sm:$0xff] %vm793, 0.0
      %804 = vst.msk [vmem:[#allocation2 + $0x50] sm:$0xff] %vm793, 0.0
      %805 = vst.msk [vmem:[#allocation2 + $0x58] sm:$0xff] %vm793, 0.0
      %806 = vst.msk [vmem:[#allocation2 + $0x60] sm:$0xff] %vm793, 0.0
      %807 = vst.msk [vmem:[#allocation2 + $0x68] sm:$0xff] %vm793, 0.0
      %808 = vst.msk [vmem:[#allocation2 + $0x70] sm:$0xff] %vm793, 0.0
      %809 = vst.msk [vmem:[#allocation2 + $0x78] sm:$0xff] %vm793, 0.0
      %810 = vst.msk [vmem:[#allocation2 + $0x80] sm:$0xff] %vm793, 0.0
      %811 = vst.msk [vmem:[#allocation2 + $0x88] sm:$0xff] %vm793, 0.0
      %812 = vst.msk [vmem:[#allocation2 + $0x90] sm:$0xff] %vm793, 0.0
      %813 = vst.msk [vmem:[#allocation2 + $0x98] sm:$0xff] %vm793, 0.0
      %814 = vst.msk [vmem:[#allocation2 + $0xa0] sm:$0xff] %vm793, 0.0
      %815 = vst.msk [vmem:[#allocation2 + $0xa8] sm:$0xff] %vm793, 0.0
      %816 = vst.msk [vmem:[#allocation2 + $0xb0] sm:$0xff] %vm793, 0.0
      %817 = vst.msk [vmem:[#allocation2 + $0xb8] sm:$0xff] %vm793, 0.0
      %818 = vst.msk [vmem:[#allocation2 + $0xc0] sm:$0xff] %vm793, 0.0
      %819 = vst.msk [vmem:[#allocation2 + $0xc8] sm:$0xff] %vm793, 0.0
      %820 = vst.msk [vmem:[#allocation2 + $0xd0] sm:$0xff] %vm793, 0.0
      %821 = vst.msk [vmem:[#allocation2 + $0xd8] sm:$0xff] %vm793, 0.0
      %822 = vst.msk [vmem:[#allocation2 + $0xe0] sm:$0xff] %vm793, 0.0
      %823 = vst.msk [vmem:[#allocation2 + $0xe8] sm:$0xff] %vm793, 0.0
      %824 = vst.msk [vmem:[#allocation2 + $0xf0] sm:$0xff] %vm793, 0.0
      %825 = vst.msk [vmem:[#allocation2 + $0xf8] sm:$0xff] %vm793, 0.0
      %826 = vst.msk [vmem:[#allocation2 + $0x100] sm:$0xff] %vm793, 0.0
      %827 = vst.msk [vmem:[#allocation2 + $0x108] sm:$0xff] %vm793, 0.0
      %828 = vst.msk [vmem:[#allocation2 + $0x110] sm:$0xff] %vm793, 0.0
      %829 = vst.msk [vmem:[#allocation2 + $0x118] sm:$0xff] %vm793, 0.0
      %830 = vst.msk [vmem:[#allocation2 + $0x120] sm:$0xff] %vm793, 0.0
      %831 = vst.msk [vmem:[#allocation2 + $0x128] sm:$0xff] %vm793, 0.0
      %832 = vst.msk [vmem:[#allocation2 + $0x18] sm:$0xff] %vm793, %v761
      %833 = vst.msk [vmem:[#allocation2 + $0x20] sm:$0xff] %vm793, %v762
      %834 = vst.msk [vmem:[#allocation2 + $0x28] sm:$0xff] %vm793, %v763
      %835 = vst.msk [vmem:[#allocation2 + $0x30] sm:$0xff] %vm793, %v764
      %836 = vst.msk [vmem:[#allocation2 + $0x38] sm:$0xff] %vm793, %v765
      %837 = vst.msk [vmem:[#allocation2 + $0x40] sm:$0xff] %vm793, %v766
      %838 = vst.msk [vmem:[#allocation2 + $0x48] sm:$0xff] %vm793, %v767
      %839 = vst.msk [vmem:[#allocation2 + $0x50] sm:$0xff] %vm793, %v768
      %840 = vst.msk [vmem:[#allocation2 + $0x58] sm:$0xff] %vm793, %v769
      %841 = vst.msk [vmem:[#allocation2 + $0x60] sm:$0xff] %vm793, %v770
      %842 = vst.msk [vmem:[#allocation2 + $0x68] sm:$0xff] %vm793, %v771
      %843 = vst.msk [vmem:[#allocation2 + $0x70] sm:$0xff] %vm793, %v772
      %844 = vst.msk [vmem:[#allocation2 + $0x78] sm:$0xff] %vm793, %v773
      %845 = vst.msk [vmem:[#allocation2 + $0x80] sm:$0xff] %vm793, %v774
      %846 = vst.msk [vmem:[#allocation2 + $0x88] sm:$0xff] %vm793, %v775
      %847 = vst.msk [vmem:[#allocation2 + $0x90] sm:$0xff] %vm793, %v776
      %848 = vst.msk [vmem:[#allocation2 + $0x98] sm:$0xff] %vm793, %v777
      %849 = vst.msk [vmem:[#allocation2 + $0xa0] sm:$0xff] %vm793, %v778
      %850 = vst.msk [vmem:[#allocation2 + $0xa8] sm:$0xff] %vm793, %v779
      %851 = vst.msk [vmem:[#allocation2 + $0xb0] sm:$0xff] %vm793, %v780
      %852 = vst.msk [vmem:[#allocation2 + $0xb8] sm:$0xff] %vm793, %v781
      %853 = vst.msk [vmem:[#allocation2 + $0xc0] sm:$0xff] %vm793, %v782
      %854 = vst.msk [vmem:[#allocation2 + $0xc8] sm:$0xff] %vm793, %v783
      %855 = vst.msk [vmem:[#allocation2 + $0xd0] sm:$0xff] %vm793, %v784
      %856 = vst.msk [vmem:[#allocation2 + $0xd8] sm:$0xff] %vm793, %v785
      %857 = vst.msk [vmem:[#allocation2 + $0xe0] sm:$0xff] %vm793, %v786
      %858 = vst.msk [vmem:[#allocation2 + $0xe8] sm:$0xff] %vm793, %v787
      %859 = vst.msk [vmem:[#allocation2 + $0xf0] sm:$0xff] %vm793, %v788
      %860 = vst.msk [vmem:[#allocation2 + $0xf8] sm:$0xff] %vm793, %v789
      %861 = vst.msk [vmem:[#allocation2 + $0x100] sm:$0xff] %vm793, %v790
      %862 = vst.msk [vmem:[#allocation2 + $0x108] sm:$0xff] %vm793, %v791
      %863 = vst.msk [vmem:[#allocation2 + $0x110] sm:$0xff] %vm793, %v792
      %v864 = vlaneseq
      %v865 = vshrl.u32 %v864, 7
      %v866 = vadd.s32 %v865, 8
      %v867 = vadd.s32 %v865, 16
      %v868 = vadd.s32 %v865, 24
      %v869 = vadd.s32 %v865, 32
      %v870 = vadd.s32 %v865, 40
      %v871 = vadd.s32 %v865, 48
      %v872 = vadd.s32 %v865, 56
      %v873 = vadd.s32 %v865, 64
      %v874 = vadd.s32 %v865, 72
      %v875 = vadd.s32 %v865, 80
      %v876 = vadd.s32 %v865, 88
      %v877 = vadd.s32 %v865, 96
      %v878 = vadd.s32 %v865, 104
      %v879 = vadd.s32 %v865, 112
      %v880 = vadd.s32 %v865, 120
      %v881 = vadd.s32 %v865, 128
      %v882 = vadd.s32 %v865, 136
      %v883 = vadd.s32 %v865, 144
      %v884 = vadd.s32 %v865, 152
      %v885 = vadd.s32 %v865, 160
      %v886 = vadd.s32 %v865, 168
      %v887 = vadd.s32 %v865, 176
      %v888 = vadd.s32 %v865, 184
      %v889 = vadd.s32 %v865, 192
      %v890 = vadd.s32 %v865, 200
      %v891 = vadd.s32 %v865, 208
      %v892 = vadd.s32 %v865, 216
      %v893 = vadd.s32 %v865, 224
      %v894 = vadd.s32 %v865, 232
      %v895 = vadd.s32 %v865, 240
      %v896 = vadd.s32 %v865, 248
      %vm897 = vcmp.lt.s32.totalorder %v865, 0
      %v898 = vsub.s32 0, %v865
      %v899 = vsel %vm897, %v898, %v865
      %v900 = vshrl.u32 %v899, 4
      %v901 = vand.u32 %v899, 15
      %v902 = vsub.s32 0, %v901
      %v903 = vsel %vm897, %v902, %v901
      %vm904 = vcmp.lt.s32.totalorder %v866, 0
      %v905 = vsub.s32 0, %v866
      %v906 = vsel %vm904, %v905, %v866
      %v907 = vshrl.u32 %v906, 4
      %v908 = vand.u32 %v906, 15
      %v909 = vsub.s32 0, %v908
      %v910 = vsel %vm904, %v909, %v908
      %vm911 = vcmp.lt.s32.totalorder %v867, 0
      %v912 = vsub.s32 0, %v867
      %v913 = vsel %vm911, %v912, %v867
      %v914 = vshrl.u32 %v913, 4
      %v915 = vand.u32 %v913, 15
      %v916 = vsub.s32 0, %v915
      %v917 = vsel %vm911, %v916, %v915
      %vm918 = vcmp.lt.s32.totalorder %v868, 0
      %v919 = vsub.s32 0, %v868
      %v920 = vsel %vm918, %v919, %v868
      %v921 = vshrl.u32 %v920, 4
      %v922 = vand.u32 %v920, 15
      %v923 = vsub.s32 0, %v922
      %v924 = vsel %vm918, %v923, %v922
      %vm925 = vcmp.lt.s32.totalorder %v869, 0
      %v926 = vsub.s32 0, %v869
      %v927 = vsel %vm925, %v926, %v869
      %v928 = vshrl.u32 %v927, 4
      %v929 = vand.u32 %v927, 15
      %v930 = vsub.s32 0, %v929
      %v931 = vsel %vm925, %v930, %v929
      %vm932 = vcmp.lt.s32.totalorder %v870, 0
      %v933 = vsub.s32 0, %v870
      %v934 = vsel %vm932, %v933, %v870
      %v935 = vshrl.u32 %v934, 4
      %v936 = vand.u32 %v934, 15
      %v937 = vsub.s32 0, %v936
      %v938 = vsel %vm932, %v937, %v936
      %vm939 = vcmp.lt.s32.totalorder %v871, 0
      %v940 = vsub.s32 0, %v871
      %v941 = vsel %vm939, %v940, %v871
      %v942 = vshrl.u32 %v941, 4
      %v943 = vand.u32 %v941, 15
      %v944 = vsub.s32 0, %v943
      %v945 = vsel %vm939, %v944, %v943
      %vm946 = vcmp.lt.s32.totalorder %v872, 0
      %v947 = vsub.s32 0, %v872
      %v948 = vsel %vm946, %v947, %v872
      %v949 = vshrl.u32 %v948, 4
      %v950 = vand.u32 %v948, 15
      %v951 = vsub.s32 0, %v950
      %v952 = vsel %vm946, %v951, %v950
      %vm953 = vcmp.lt.s32.totalorder %v873, 0
      %v954 = vsub.s32 0, %v873
      %v955 = vsel %vm953, %v954, %v873
      %v956 = vshrl.u32 %v955, 4
      %v957 = vand.u32 %v955, 15
      %v958 = vsub.s32 0, %v957
      %v959 = vsel %vm953, %v958, %v957
      %vm960 = vcmp.lt.s32.totalorder %v874, 0
      %v961 = vsub.s32 0, %v874
      %v962 = vsel %vm960, %v961, %v874
      %v963 = vshrl.u32 %v962, 4
      %v964 = vand.u32 %v962, 15
      %v965 = vsub.s32 0, %v964
      %v966 = vsel %vm960, %v965, %v964
      %vm967 = vcmp.lt.s32.totalorder %v875, 0
      %v968 = vsub.s32 0, %v875
      %v969 = vsel %vm967, %v968, %v875
      %v970 = vshrl.u32 %v969, 4
      %v971 = vand.u32 %v969, 15
      %v972 = vsub.s32 0, %v971
      %v973 = vsel %vm967, %v972, %v971
      %vm974 = vcmp.lt.s32.totalorder %v876, 0
      %v975 = vsub.s32 0, %v876
      %v976 = vsel %vm974, %v975, %v876
      %v977 = vshrl.u32 %v976, 4
      %v978 = vand.u32 %v976, 15
      %v979 = vsub.s32 0, %v978
      %v980 = vsel %vm974, %v979, %v978
      %vm981 = vcmp.lt.s32.totalorder %v877, 0
      %v982 = vsub.s32 0, %v877
      %v983 = vsel %vm981, %v982, %v877
      %v984 = vshrl.u32 %v983, 4
      %v985 = vand.u32 %v983, 15
      %v986 = vsub.s32 0, %v985
      %v987 = vsel %vm981, %v986, %v985
      %vm988 = vcmp.lt.s32.totalorder %v878, 0
      %v989 = vsub.s32 0, %v878
      %v990 = vsel %vm988, %v989, %v878
      %v991 = vshrl.u32 %v990, 4
      %v992 = vand.u32 %v990, 15
      %v993 = vsub.s32 0, %v992
      %v994 = vsel %vm988, %v993, %v992
      %vm995 = vcmp.lt.s32.totalorder %v879, 0
      %v996 = vsub.s32 0, %v879
      %v997 = vsel %vm995, %v996, %v879
      %v998 = vshrl.u32 %v997, 4
      %v999 = vand.u32 %v997, 15
      %v1000 = vsub.s32 0, %v999
      %v1001 = vsel %vm995, %v1000, %v999
      %vm1002 = vcmp.lt.s32.totalorder %v880, 0
      %v1003 = vsub.s32 0, %v880
      %v1004 = vsel %vm1002, %v1003, %v880
      %v1005 = vshrl.u32 %v1004, 4
      %v1006 = vand.u32 %v1004, 15
      %v1007 = vsub.s32 0, %v1006
      %v1008 = vsel %vm1002, %v1007, %v1006
      %vm1009 = vcmp.lt.s32.totalorder %v881, 0
      %v1010 = vsub.s32 0, %v881
      %v1011 = vsel %vm1009, %v1010, %v881
      %v1012 = vshrl.u32 %v1011, 4
      %v1013 = vand.u32 %v1011, 15
      %v1014 = vsub.s32 0, %v1013
      %v1015 = vsel %vm1009, %v1014, %v1013
      %vm1016 = vcmp.lt.s32.totalorder %v882, 0
      %v1017 = vsub.s32 0, %v882
      %v1018 = vsel %vm1016, %v1017, %v882
      %v1019 = vshrl.u32 %v1018, 4
      %v1020 = vand.u32 %v1018, 15
      %v1021 = vsub.s32 0, %v1020
      %v1022 = vsel %vm1016, %v1021, %v1020
      %vm1023 = vcmp.lt.s32.totalorder %v883, 0
      %v1024 = vsub.s32 0, %v883
      %v1025 = vsel %vm1023, %v1024, %v883
      %v1026 = vshrl.u32 %v1025, 4
      %v1027 = vand.u32 %v1025, 15
      %v1028 = vsub.s32 0, %v1027
      %v1029 = vsel %vm1023, %v1028, %v1027
      %vm1030 = vcmp.lt.s32.totalorder %v884, 0
      %v1031 = vsub.s32 0, %v884
      %v1032 = vsel %vm1030, %v1031, %v884
      %v1033 = vshrl.u32 %v1032, 4
      %v1034 = vand.u32 %v1032, 15
      %v1035 = vsub.s32 0, %v1034
      %v1036 = vsel %vm1030, %v1035, %v1034
      %vm1037 = vcmp.lt.s32.totalorder %v885, 0
      %v1038 = vsub.s32 0, %v885
      %v1039 = vsel %vm1037, %v1038, %v885
      %v1040 = vshrl.u32 %v1039, 4
      %v1041 = vand.u32 %v1039, 15
      %v1042 = vsub.s32 0, %v1041
      %v1043 = vsel %vm1037, %v1042, %v1041
      %vm1044 = vcmp.lt.s32.totalorder %v886, 0
      %v1045 = vsub.s32 0, %v886
      %v1046 = vsel %vm1044, %v1045, %v886
      %v1047 = vshrl.u32 %v1046, 4
      %v1048 = vand.u32 %v1046, 15
      %v1049 = vsub.s32 0, %v1048
      %v1050 = vsel %vm1044, %v1049, %v1048
      %vm1051 = vcmp.lt.s32.totalorder %v887, 0
      %v1052 = vsub.s32 0, %v887
      %v1053 = vsel %vm1051, %v1052, %v887
      %v1054 = vshrl.u32 %v1053, 4
      %v1055 = vand.u32 %v1053, 15
      %v1056 = vsub.s32 0, %v1055
      %v1057 = vsel %vm1051, %v1056, %v1055
      %vm1058 = vcmp.lt.s32.totalorder %v888, 0
      %v1059 = vsub.s32 0, %v888
      %v1060 = vsel %vm1058, %v1059, %v888
      %v1061 = vshrl.u32 %v1060, 4
      %v1062 = vand.u32 %v1060, 15
      %v1063 = vsub.s32 0, %v1062
      %v1064 = vsel %vm1058, %v1063, %v1062
      %vm1065 = vcmp.lt.s32.totalorder %v889, 0
      %v1066 = vsub.s32 0, %v889
      %v1067 = vsel %vm1065, %v1066, %v889
      %v1068 = vshrl.u32 %v1067, 4
      %v1069 = vand.u32 %v1067, 15
      %v1070 = vsub.s32 0, %v1069
      %v1071 = vsel %vm1065, %v1070, %v1069
      %vm1072 = vcmp.lt.s32.totalorder %v890, 0
      %v1073 = vsub.s32 0, %v890
      %v1074 = vsel %vm1072, %v1073, %v890
      %v1075 = vshrl.u32 %v1074, 4
      %v1076 = vand.u32 %v1074, 15
      %v1077 = vsub.s32 0, %v1076
      %v1078 = vsel %vm1072, %v1077, %v1076
      %vm1079 = vcmp.lt.s32.totalorder %v891, 0
      %v1080 = vsub.s32 0, %v891
      %v1081 = vsel %vm1079, %v1080, %v891
      %v1082 = vshrl.u32 %v1081, 4
      %v1083 = vand.u32 %v1081, 15
      %v1084 = vsub.s32 0, %v1083
      %v1085 = vsel %vm1079, %v1084, %v1083
      %vm1086 = vcmp.lt.s32.totalorder %v892, 0
      %v1087 = vsub.s32 0, %v892
      %v1088 = vsel %vm1086, %v1087, %v892
      %v1089 = vshrl.u32 %v1088, 4
      %v1090 = vand.u32 %v1088, 15
      %v1091 = vsub.s32 0, %v1090
      %v1092 = vsel %vm1086, %v1091, %v1090
      %vm1093 = vcmp.lt.s32.totalorder %v893, 0
      %v1094 = vsub.s32 0, %v893
      %v1095 = vsel %vm1093, %v1094, %v893
      %v1096 = vshrl.u32 %v1095, 4
      %v1097 = vand.u32 %v1095, 15
      %v1098 = vsub.s32 0, %v1097
      %v1099 = vsel %vm1093, %v1098, %v1097
      %vm1100 = vcmp.lt.s32.totalorder %v894, 0
      %v1101 = vsub.s32 0, %v894
      %v1102 = vsel %vm1100, %v1101, %v894
      %v1103 = vshrl.u32 %v1102, 4
      %v1104 = vand.u32 %v1102, 15
      %v1105 = vsub.s32 0, %v1104
      %v1106 = vsel %vm1100, %v1105, %v1104
      %vm1107 = vcmp.lt.s32.totalorder %v895, 0
      %v1108 = vsub.s32 0, %v895
      %v1109 = vsel %vm1107, %v1108, %v895
      %v1110 = vshrl.u32 %v1109, 4
      %v1111 = vand.u32 %v1109, 15
      %v1112 = vsub.s32 0, %v1111
      %v1113 = vsel %vm1107, %v1112, %v1111
      %vm1114 = vcmp.lt.s32.totalorder %v896, 0
      %v1115 = vsub.s32 0, %v896
      %v1116 = vsel %vm1114, %v1115, %v896
      %v1117 = vshrl.u32 %v1116, 4
      %v1118 = vand.u32 %v1116, 15
      %v1119 = vsub.s32 0, %v1118
      %v1120 = vsel %vm1114, %v1119, %v1118
      %vm1121 = vcmp.ne.s32.totalorder %v903, 0
      %vm1122 = vcmp.ne.s32.totalorder %v910, 0
      %vm1123 = vcmp.ne.s32.totalorder %v917, 0
      %vm1124 = vcmp.ne.s32.totalorder %v924, 0
      %vm1125 = vcmp.ne.s32.totalorder %v931, 0
      %vm1126 = vcmp.ne.s32.totalorder %v938, 0
      %vm1127 = vcmp.ne.s32.totalorder %v945, 0
      %vm1128 = vcmp.ne.s32.totalorder %v952, 0
      %vm1129 = vcmp.ne.s32.totalorder %v959, 0
      %vm1130 = vcmp.ne.s32.totalorder %v966, 0
      %vm1131 = vcmp.ne.s32.totalorder %v973, 0
      %vm1132 = vcmp.ne.s32.totalorder %v980, 0
      %vm1133 = vcmp.ne.s32.totalorder %v987, 0
      %vm1134 = vcmp.ne.s32.totalorder %v994, 0
      %vm1135 = vcmp.ne.s32.totalorder %v1001, 0
      %vm1136 = vcmp.ne.s32.totalorder %v1008, 0
      %vm1137 = vcmp.ne.s32.totalorder %v1015, 0
      %vm1138 = vcmp.ne.s32.totalorder %v1022, 0
      %vm1139 = vcmp.ne.s32.totalorder %v1029, 0
      %vm1140 = vcmp.ne.s32.totalorder %v1036, 0
      %vm1141 = vcmp.ne.s32.totalorder %v1043, 0
      %vm1142 = vcmp.ne.s32.totalorder %v1050, 0
      %vm1143 = vcmp.ne.s32.totalorder %v1057, 0
      %vm1144 = vcmp.ne.s32.totalorder %v1064, 0
      %vm1145 = vcmp.ne.s32.totalorder %v1071, 0
      %vm1146 = vcmp.ne.s32.totalorder %v1078, 0
      %vm1147 = vcmp.ne.s32.totalorder %v1085, 0
      %vm1148 = vcmp.ne.s32.totalorder %v1092, 0
      %vm1149 = vcmp.ne.s32.totalorder %v1099, 0
      %vm1150 = vcmp.ne.s32.totalorder %v1106, 0
      %vm1151 = vcmp.ne.s32.totalorder %v1113, 0
      %vm1152 = vcmp.ne.s32.totalorder %v1120, 0
      %vm1153 = vcmp.lt.s32.totalorder %v903, 0
      %vm1154 = vcmp.lt.s32.totalorder %v910, 0
      %vm1155 = vcmp.lt.s32.totalorder %v917, 0
      %vm1156 = vcmp.lt.s32.totalorder %v924, 0
      %vm1157 = vcmp.lt.s32.totalorder %v931, 0
      %vm1158 = vcmp.lt.s32.totalorder %v938, 0
      %vm1159 = vcmp.lt.s32.totalorder %v945, 0
      %vm1160 = vcmp.lt.s32.totalorder %v952, 0
      %vm1161 = vcmp.lt.s32.totalorder %v959, 0
      %vm1162 = vcmp.lt.s32.totalorder %v966, 0
      %vm1163 = vcmp.lt.s32.totalorder %v973, 0
      %vm1164 = vcmp.lt.s32.totalorder %v980, 0
      %vm1165 = vcmp.lt.s32.totalorder %v987, 0
      %vm1166 = vcmp.lt.s32.totalorder %v994, 0
      %vm1167 = vcmp.lt.s32.totalorder %v1001, 0
      %vm1168 = vcmp.lt.s32.totalorder %v1008, 0
      %vm1169 = vcmp.lt.s32.totalorder %v1015, 0
      %vm1170 = vcmp.lt.s32.totalorder %v1022, 0
      %vm1171 = vcmp.lt.s32.totalorder %v1029, 0
      %vm1172 = vcmp.lt.s32.totalorder %v1036, 0
      %vm1173 = vcmp.lt.s32.totalorder %v1043, 0
      %vm1174 = vcmp.lt.s32.totalorder %v1050, 0
      %vm1175 = vcmp.lt.s32.totalorder %v1057, 0
      %vm1176 = vcmp.lt.s32.totalorder %v1064, 0
      %vm1177 = vcmp.lt.s32.totalorder %v1071, 0
      %vm1178 = vcmp.lt.s32.totalorder %v1078, 0
      %vm1179 = vcmp.lt.s32.totalorder %v1085, 0
      %vm1180 = vcmp.lt.s32.totalorder %v1092, 0
      %vm1181 = vcmp.lt.s32.totalorder %v1099, 0
      %vm1182 = vcmp.lt.s32.totalorder %v1106, 0
      %vm1183 = vcmp.lt.s32.totalorder %v1113, 0
      %vm1184 = vcmp.lt.s32.totalorder %v1120, 0
      %vm1185 = vmand %vm1153, %vm1121
      %vm1186 = vmand %vm1154, %vm1122
      %vm1187 = vmand %vm1155, %vm1123
      %vm1188 = vmand %vm1156, %vm1124
      %vm1189 = vmand %vm1157, %vm1125
      %vm1190 = vmand %vm1158, %vm1126
      %vm1191 = vmand %vm1159, %vm1127
      %vm1192 = vmand %vm1160, %vm1128
      %vm1193 = vmand %vm1161, %vm1129
      %vm1194 = vmand %vm1162, %vm1130
      %vm1195 = vmand %vm1163, %vm1131
      %vm1196 = vmand %vm1164, %vm1132
      %vm1197 = vmand %vm1165, %vm1133
      %vm1198 = vmand %vm1166, %vm1134
      %vm1199 = vmand %vm1167, %vm1135
      %vm1200 = vmand %vm1168, %vm1136
      %vm1201 = vmand %vm1169, %vm1137
      %vm1202 = vmand %vm1170, %vm1138
      %vm1203 = vmand %vm1171, %vm1139
      %vm1204 = vmand %vm1172, %vm1140
      %vm1205 = vmand %vm1173, %vm1141
      %vm1206 = vmand %vm1174, %vm1142
      %vm1207 = vmand %vm1175, %vm1143
      %vm1208 = vmand %vm1176, %vm1144
      %vm1209 = vmand %vm1177, %vm1145
      %vm1210 = vmand %vm1178, %vm1146
      %vm1211 = vmand %vm1179, %vm1147
      %vm1212 = vmand %vm1180, %vm1148
      %vm1213 = vmand %vm1181, %vm1149
      %vm1214 = vmand %vm1182, %vm1150
      %vm1215 = vmand %vm1183, %vm1151
      %vm1216 = vmand %vm1184, %vm1152
      %v1217 = vadd.s32 %v903, 16
      %v1218 = vadd.s32 %v910, 16
      %v1219 = vadd.s32 %v917, 16
      %v1220 = vadd.s32 %v924, 16
      %v1221 = vadd.s32 %v931, 16
      %v1222 = vadd.s32 %v938, 16
      %v1223 = vadd.s32 %v945, 16
      %v1224 = vadd.s32 %v952, 16
      %v1225 = vadd.s32 %v959, 16
      %v1226 = vadd.s32 %v966, 16
      %v1227 = vadd.s32 %v973, 16
      %v1228 = vadd.s32 %v980, 16
      %v1229 = vadd.s32 %v987, 16
      %v1230 = vadd.s32 %v994, 16
      %v1231 = vadd.s32 %v1001, 16
      %v1232 = vadd.s32 %v1008, 16
      %v1233 = vadd.s32 %v1015, 16
      %v1234 = vadd.s32 %v1022, 16
      %v1235 = vadd.s32 %v1029, 16
      %v1236 = vadd.s32 %v1036, 16
      %v1237 = vadd.s32 %v1043, 16
      %v1238 = vadd.s32 %v1050, 16
      %v1239 = vadd.s32 %v1057, 16
      %v1240 = vadd.s32 %v1064, 16
      %v1241 = vadd.s32 %v1071, 16
      %v1242 = vadd.s32 %v1078, 16
      %v1243 = vadd.s32 %v1085, 16
      %v1244 = vadd.s32 %v1092, 16
      %v1245 = vadd.s32 %v1099, 16
      %v1246 = vadd.s32 %v1106, 16
      %v1247 = vadd.s32 %v1113, 16
      %v1248 = vadd.s32 %v1120, 16
      %v1249 = vsel %vm1185, %v1217, %v903
      %v1250 = vsel %vm1186, %v1218, %v910
      %v1251 = vsel %vm1187, %v1219, %v917
      %v1252 = vsel %vm1188, %v1220, %v924
      %v1253 = vsel %vm1189, %v1221, %v931
      %v1254 = vsel %vm1190, %v1222, %v938
      %v1255 = vsel %vm1191, %v1223, %v945
      %v1256 = vsel %vm1192, %v1224, %v952
      %v1257 = vsel %vm1193, %v1225, %v959
      %v1258 = vsel %vm1194, %v1226, %v966
      %v1259 = vsel %vm1195, %v1227, %v973
      %v1260 = vsel %vm1196, %v1228, %v980
      %v1261 = vsel %vm1197, %v1229, %v987
      %v1262 = vsel %vm1198, %v1230, %v994
      %v1263 = vsel %vm1199, %v1231, %v1001
      %v1264 = vsel %vm1200, %v1232, %v1008
      %v1265 = vsel %vm1201, %v1233, %v1015
      %v1266 = vsel %vm1202, %v1234, %v1022
      %v1267 = vsel %vm1203, %v1235, %v1029
      %v1268 = vsel %vm1204, %v1236, %v1036
      %v1269 = vsel %vm1205, %v1237, %v1043
      %v1270 = vsel %vm1206, %v1238, %v1050
      %v1271 = vsel %vm1207, %v1239, %v1057
      %v1272 = vsel %vm1208, %v1240, %v1064
      %v1273 = vsel %vm1209, %v1241, %v1071
      %v1274 = vsel %vm1210, %v1242, %v1078
      %v1275 = vsel %vm1211, %v1243, %v1085
      %v1276 = vsel %vm1212, %v1244, %v1092
      %v1277 = vsel %vm1213, %v1245, %v1099
      %v1278 = vsel %vm1214, %v1246, %v1106
      %v1279 = vsel %vm1215, %v1247, %v1113
      %v1280 = vsel %vm1216, %v1248, %v1120
      %vm1281 = vcmp.ge.s32.totalorder %v1249, 1
      %vm1282 = vcmp.ge.s32.totalorder %v1250, 1
      %vm1283 = vcmp.ge.s32.totalorder %v1251, 1
      %vm1284 = vcmp.ge.s32.totalorder %v1252, 1
      %vm1285 = vcmp.ge.s32.totalorder %v1253, 1
      %vm1286 = vcmp.ge.s32.totalorder %v1254, 1
      %vm1287 = vcmp.ge.s32.totalorder %v1255, 1
      %vm1288 = vcmp.ge.s32.totalorder %v1256, 1
      %vm1289 = vcmp.ge.s32.totalorder %v1257, 1
      %vm1290 = vcmp.ge.s32.totalorder %v1258, 1
      %vm1291 = vcmp.ge.s32.totalorder %v1259, 1
      %vm1292 = vcmp.ge.s32.totalorder %v1260, 1
      %vm1293 = vcmp.ge.s32.totalorder %v1261, 1
      %vm1294 = vcmp.ge.s32.totalorder %v1262, 1
      %vm1295 = vcmp.ge.s32.totalorder %v1263, 1
      %vm1296 = vcmp.ge.s32.totalorder %v1264, 1
      %vm1297 = vcmp.ge.s32.totalorder %v1265, 1
      %vm1298 = vcmp.ge.s32.totalorder %v1266, 1
      %vm1299 = vcmp.ge.s32.totalorder %v1267, 1
      %vm1300 = vcmp.ge.s32.totalorder %v1268, 1
      %vm1301 = vcmp.ge.s32.totalorder %v1269, 1
      %vm1302 = vcmp.ge.s32.totalorder %v1270, 1
      %vm1303 = vcmp.ge.s32.totalorder %v1271, 1
      %vm1304 = vcmp.ge.s32.totalorder %v1272, 1
      %vm1305 = vcmp.ge.s32.totalorder %v1273, 1
      %vm1306 = vcmp.ge.s32.totalorder %v1274, 1
      %vm1307 = vcmp.ge.s32.totalorder %v1275, 1
      %vm1308 = vcmp.ge.s32.totalorder %v1276, 1
      %vm1309 = vcmp.ge.s32.totalorder %v1277, 1
      %vm1310 = vcmp.ge.s32.totalorder %v1278, 1
      %vm1311 = vcmp.ge.s32.totalorder %v1279, 1
      %vm1312 = vcmp.ge.s32.totalorder %v1280, 1
      %vm1313 = vcmp.lt.s32.totalorder %v1249, 15
      %vm1314 = vcmp.lt.s32.totalorder %v1250, 15
      %vm1315 = vcmp.lt.s32.totalorder %v1251, 15
      %vm1316 = vcmp.lt.s32.totalorder %v1252, 15
      %vm1317 = vcmp.lt.s32.totalorder %v1253, 15
      %vm1318 = vcmp.lt.s32.totalorder %v1254, 15
      %vm1319 = vcmp.lt.s32.totalorder %v1255, 15
      %vm1320 = vcmp.lt.s32.totalorder %v1256, 15
      %vm1321 = vcmp.lt.s32.totalorder %v1257, 15
      %vm1322 = vcmp.lt.s32.totalorder %v1258, 15
      %vm1323 = vcmp.lt.s32.totalorder %v1259, 15
      %vm1324 = vcmp.lt.s32.totalorder %v1260, 15
      %vm1325 = vcmp.lt.s32.totalorder %v1261, 15
      %vm1326 = vcmp.lt.s32.totalorder %v1262, 15
      %vm1327 = vcmp.lt.s32.totalorder %v1263, 15
      %vm1328 = vcmp.lt.s32.totalorder %v1264, 15
      %vm1329 = vcmp.lt.s32.totalorder %v1265, 15
      %vm1330 = vcmp.lt.s32.totalorder %v1266, 15
      %vm1331 = vcmp.lt.s32.totalorder %v1267, 15
      %vm1332 = vcmp.lt.s32.totalorder %v1268, 15
      %vm1333 = vcmp.lt.s32.totalorder %v1269, 15
      %vm1334 = vcmp.lt.s32.totalorder %v1270, 15
      %vm1335 = vcmp.lt.s32.totalorder %v1271, 15
      %vm1336 = vcmp.lt.s32.totalorder %v1272, 15
      %vm1337 = vcmp.lt.s32.totalorder %v1273, 15
      %vm1338 = vcmp.lt.s32.totalorder %v1274, 15
      %vm1339 = vcmp.lt.s32.totalorder %v1275, 15
      %vm1340 = vcmp.lt.s32.totalorder %v1276, 15
      %vm1341 = vcmp.lt.s32.totalorder %v1277, 15
      %vm1342 = vcmp.lt.s32.totalorder %v1278, 15
      %vm1343 = vcmp.lt.s32.totalorder %v1279, 15
      %vm1344 = vcmp.lt.s32.totalorder %v1280, 15
      %v1345 = vld [vmem:[#allocation2 + $0x7] sm:$0xff]
      %v1346 = vld [vmem:[#allocation2 + $0xf] sm:$0xff]
      %v1347 = vld [vmem:[#allocation2 + $0x17] sm:$0xff]
      %v1348 = vld [vmem:[#allocation2 + $0x1f] sm:$0xff]
      %v1349 = vld [vmem:[#allocation2 + $0x27] sm:$0xff]
      %v1350 = vld [vmem:[#allocation2 + $0x2f] sm:$0xff]
      %v1351 = vld [vmem:[#allocation2 + $0x37] sm:$0xff]
      %v1352 = vld [vmem:[#allocation2 + $0x3f] sm:$0xff]
      %v1353 = vld [vmem:[#allocation2 + $0x47] sm:$0xff]
      %v1354 = vld [vmem:[#allocation2 + $0x4f] sm:$0xff]
      %v1355 = vld [vmem:[#allocation2 + $0x57] sm:$0xff]
      %v1356 = vld [vmem:[#allocation2 + $0x5f] sm:$0xff]
      %v1357 = vld [vmem:[#allocation2 + $0x67] sm:$0xff]
      %v1358 = vld [vmem:[#allocation2 + $0x6f] sm:$0xff]
      %v1359 = vld [vmem:[#allocation2 + $0x77] sm:$0xff]
      %v1360 = vld [vmem:[#allocation2 + $0x7f] sm:$0xff]
      %v1361 = vld [vmem:[#allocation2 + $0x87] sm:$0xff]
      %v1362 = vld [vmem:[#allocation2 + $0x8f] sm:$0xff]
      %v1363 = vld [vmem:[#allocation2 + $0x97] sm:$0xff]
      %v1364 = vld [vmem:[#allocation2 + $0x9f] sm:$0xff]
      %v1365 = vld [vmem:[#allocation2 + $0xa7] sm:$0xff]
      %v1366 = vld [vmem:[#allocation2 + $0xaf] sm:$0xff]
      %v1367 = vld [vmem:[#allocation2 + $0xb7] sm:$0xff]
      %v1368 = vld [vmem:[#allocation2 + $0xbf] sm:$0xff]
      %v1369 = vld [vmem:[#allocation2 + $0xc7] sm:$0xff]
      %v1370 = vld [vmem:[#allocation2 + $0xcf] sm:$0xff]
      %v1371 = vld [vmem:[#allocation2 + $0xd7] sm:$0xff]
      %v1372 = vld [vmem:[#allocation2 + $0xdf] sm:$0xff]
      %v1373 = vld [vmem:[#allocation2 + $0xe7] sm:$0xff]
      %v1374 = vld [vmem:[#allocation2 + $0xef] sm:$0xff]
      %v1375 = vld [vmem:[#allocation2 + $0xf7] sm:$0xff]
      %v1376 = vld [vmem:[#allocation2 + $0xff] sm:$0xff]
      %v1377 = vsel %vm1281, 1, 0
      %v1378 = vsel %vm1282, 1, 0
      %v1379 = vsel %vm1283, 1, 0
      %v1380 = vsel %vm1284, 1, 0
      %v1381 = vsel %vm1285, 1, 0
      %v1382 = vsel %vm1286, 1, 0
      %v1383 = vsel %vm1287, 1, 0
      %v1384 = vsel %vm1288, 1, 0
      %v1385 = vsel %vm1289, 1, 0
      %v1386 = vsel %vm1290, 1, 0
      %v1387 = vsel %vm1291, 1, 0
      %v1388 = vsel %vm1292, 1, 0
      %v1389 = vsel %vm1293, 1, 0
      %v1390 = vsel %vm1294, 1, 0
      %v1391 = vsel %vm1295, 1, 0
      %v1392 = vsel %vm1296, 1, 0
      %v1393 = vsel %vm1297, 1, 0
      %v1394 = vsel %vm1298, 1, 0
      %v1395 = vsel %vm1299, 1, 0
      %v1396 = vsel %vm1300, 1, 0
      %v1397 = vsel %vm1301, 1, 0
      %v1398 = vsel %vm1302, 1, 0
      %v1399 = vsel %vm1303, 1, 0
      %v1400 = vsel %vm1304, 1, 0
      %v1401 = vsel %vm1305, 1, 0
      %v1402 = vsel %vm1306, 1, 0
      %v1403 = vsel %vm1307, 1, 0
      %v1404 = vsel %vm1308, 1, 0
      %v1405 = vsel %vm1309, 1, 0
      %v1406 = vsel %vm1310, 1, 0
      %v1407 = vsel %vm1311, 1, 0
      %v1408 = vsel %vm1312, 1, 0
      %vm1409 = vcmp.eq.s32.totalorder %v1377, 1
      %vm1410 = vcmp.eq.s32.totalorder %v1378, 1
      %vm1411 = vcmp.eq.s32.totalorder %v1379, 1
      %vm1412 = vcmp.eq.s32.totalorder %v1380, 1
      %vm1413 = vcmp.eq.s32.totalorder %v1381, 1
      %vm1414 = vcmp.eq.s32.totalorder %v1382, 1
      %vm1415 = vcmp.eq.s32.totalorder %v1383, 1
      %vm1416 = vcmp.eq.s32.totalorder %v1384, 1
      %vm1417 = vcmp.eq.s32.totalorder %v1385, 1
      %vm1418 = vcmp.eq.s32.totalorder %v1386, 1
      %vm1419 = vcmp.eq.s32.totalorder %v1387, 1
      %vm1420 = vcmp.eq.s32.totalorder %v1388, 1
      %vm1421 = vcmp.eq.s32.totalorder %v1389, 1
      %vm1422 = vcmp.eq.s32.totalorder %v1390, 1
      %vm1423 = vcmp.eq.s32.totalorder %v1391, 1
      %vm1424 = vcmp.eq.s32.totalorder %v1392, 1
      %vm1425 = vcmp.eq.s32.totalorder %v1393, 1
      %vm1426 = vcmp.eq.s32.totalorder %v1394, 1
      %vm1427 = vcmp.eq.s32.totalorder %v1395, 1
      %vm1428 = vcmp.eq.s32.totalorder %v1396, 1
      %vm1429 = vcmp.eq.s32.totalorder %v1397, 1
      %vm1430 = vcmp.eq.s32.totalorder %v1398, 1
      %vm1431 = vcmp.eq.s32.totalorder %v1399, 1
      %vm1432 = vcmp.eq.s32.totalorder %v1400, 1
      %vm1433 = vcmp.eq.s32.totalorder %v1401, 1
      %vm1434 = vcmp.eq.s32.totalorder %v1402, 1
      %vm1435 = vcmp.eq.s32.totalorder %v1403, 1
      %vm1436 = vcmp.eq.s32.totalorder %v1404, 1
      %vm1437 = vcmp.eq.s32.totalorder %v1405, 1
      %vm1438 = vcmp.eq.s32.totalorder %v1406, 1
      %vm1439 = vcmp.eq.s32.totalorder %v1407, 1
      %vm1440 = vcmp.eq.s32.totalorder %v1408, 1
      %v1441 = vsel %vm1409, %v1345, 0.0
      %v1442 = vsel %vm1410, %v1346, 0.0
      %v1443 = vsel %vm1411, %v1347, 0.0
      %v1444 = vsel %vm1412, %v1348, 0.0
      %v1445 = vsel %vm1413, %v1349, 0.0
      %v1446 = vsel %vm1414, %v1350, 0.0
      %v1447 = vsel %vm1415, %v1351, 0.0
      %v1448 = vsel %vm1416, %v1352, 0.0
      %v1449 = vsel %vm1417, %v1353, 0.0
      %v1450 = vsel %vm1418, %v1354, 0.0
      %v1451 = vsel %vm1419, %v1355, 0.0
      %v1452 = vsel %vm1420, %v1356, 0.0
      %v1453 = vsel %vm1421, %v1357, 0.0
      %v1454 = vsel %vm1422, %v1358, 0.0
      %v1455 = vsel %vm1423, %v1359, 0.0
      %v1456 = vsel %vm1424, %v1360, 0.0
      %v1457 = vsel %vm1425, %v1361, 0.0
      %v1458 = vsel %vm1426, %v1362, 0.0
      %v1459 = vsel %vm1427, %v1363, 0.0
      %v1460 = vsel %vm1428, %v1364, 0.0
      %v1461 = vsel %vm1429, %v1365, 0.0
      %v1462 = vsel %vm1430, %v1366, 0.0
      %v1463 = vsel %vm1431, %v1367, 0.0
      %v1464 = vsel %vm1432, %v1368, 0.0
      %v1465 = vsel %vm1433, %v1369, 0.0
      %v1466 = vsel %vm1434, %v1370, 0.0
      %v1467 = vsel %vm1435, %v1371, 0.0
      %v1468 = vsel %vm1436, %v1372, 0.0
      %v1469 = vsel %vm1437, %v1373, 0.0
      %v1470 = vsel %vm1438, %v1374, 0.0
      %v1471 = vsel %vm1439, %v1375, 0.0
      %v1472 = vsel %vm1440, %v1376, 0.0
      %v1473 = vpack.c.bf16 %v1442, %v1441
      %v1474 = vpack.c.bf16 %v1444, %v1443
      %v1475 = vpack.c.bf16 %v1446, %v1445
      %v1476 = vpack.c.bf16 %v1448, %v1447
      %v1477 = vpack.c.bf16 %v1450, %v1449
      %v1478 = vpack.c.bf16 %v1452, %v1451
      %v1479 = vpack.c.bf16 %v1454, %v1453
      %v1480 = vpack.c.bf16 %v1456, %v1455
      %v1481 = vpack.c.bf16 %v1458, %v1457
      %v1482 = vpack.c.bf16 %v1460, %v1459
      %v1483 = vpack.c.bf16 %v1462, %v1461
      %v1484 = vpack.c.bf16 %v1464, %v1463
      %v1485 = vpack.c.bf16 %v1466, %v1465
      %v1486 = vpack.c.bf16 %v1468, %v1467
      %v1487 = vpack.c.bf16 %v1470, %v1469
      %v1488 = vpack.c.bf16 %v1472, %v1471
      %v1489 = vld [vmem:[%s3] sm:$0xf]
      %v1490 = vld [vmem:[%s3 + $0x4] sm:$0xf]
      %v1491 = vld [vmem:[#allocation2 + $0x8] sm:$0xff]
      %v1492 = vld [vmem:[#allocation2 + $0x10] sm:$0xff]
      %v1493 = vld [vmem:[#allocation2 + $0x18] sm:$0xff]
      %v1494 = vld [vmem:[#allocation2 + $0x20] sm:$0xff]
      %v1495 = vld [vmem:[#allocation2 + $0x28] sm:$0xff]
      %v1496 = vld [vmem:[#allocation2 + $0x30] sm:$0xff]
      %v1497 = vld [vmem:[#allocation2 + $0x38] sm:$0xff]
      %v1498 = vld [vmem:[#allocation2 + $0x40] sm:$0xff]
      %v1499 = vld [vmem:[#allocation2 + $0x48] sm:$0xff]
      %v1500 = vld [vmem:[#allocation2 + $0x50] sm:$0xff]
      %v1501 = vld [vmem:[#allocation2 + $0x58] sm:$0xff]
      %v1502 = vld [vmem:[#allocation2 + $0x60] sm:$0xff]
      %v1503 = vld [vmem:[#allocation2 + $0x68] sm:$0xff]
      %v1504 = vld [vmem:[#allocation2 + $0x70] sm:$0xff]
      %v1505 = vld [vmem:[#allocation2 + $0x78] sm:$0xff]
      %v1506 = vld [vmem:[#allocation2 + $0x80] sm:$0xff]
      %v1507 = vld [vmem:[#allocation2 + $0x88] sm:$0xff]
      %v1508 = vld [vmem:[#allocation2 + $0x90] sm:$0xff]
      %v1509 = vld [vmem:[#allocation2 + $0x98] sm:$0xff]
      %v1510 = vld [vmem:[#allocation2 + $0xa0] sm:$0xff]
      %v1511 = vld [vmem:[#allocation2 + $0xa8] sm:$0xff]
      %v1512 = vld [vmem:[#allocation2 + $0xb0] sm:$0xff]
      %v1513 = vld [vmem:[#allocation2 + $0xb8] sm:$0xff]
      %v1514 = vld [vmem:[#allocation2 + $0xc0] sm:$0xff]
      %v1515 = vld [vmem:[#allocation2 + $0xc8] sm:$0xff]
      %v1516 = vld [vmem:[#allocation2 + $0xd0] sm:$0xff]
      %v1517 = vld [vmem:[#allocation2 + $0xd8] sm:$0xff]
      %v1518 = vld [vmem:[#allocation2 + $0xe0] sm:$0xff]
      %v1519 = vld [vmem:[#allocation2 + $0xe8] sm:$0xff]
      %v1520 = vld [vmem:[#allocation2 + $0xf0] sm:$0xff]
      %v1521 = vld [vmem:[#allocation2 + $0xf8] sm:$0xff]
      %v1522 = vld [vmem:[#allocation2 + $0x100] sm:$0xff]
      %v1523 = vpack.c.bf16 %v1492, %v1491
      %v1524 = vpack.c.bf16 %v1494, %v1493
      %v1525 = vpack.c.bf16 %v1496, %v1495
      %v1526 = vpack.c.bf16 %v1498, %v1497
      %v1527 = vpack.c.bf16 %v1500, %v1499
      %v1528 = vpack.c.bf16 %v1502, %v1501
      %v1529 = vpack.c.bf16 %v1504, %v1503
      %v1530 = vpack.c.bf16 %v1506, %v1505
      %v1531 = vpack.c.bf16 %v1508, %v1507
      %v1532 = vpack.c.bf16 %v1510, %v1509
      %v1533 = vpack.c.bf16 %v1512, %v1511
      %v1534 = vpack.c.bf16 %v1514, %v1513
      %v1535 = vpack.c.bf16 %v1516, %v1515
      %v1536 = vpack.c.bf16 %v1518, %v1517
      %v1537 = vpack.c.bf16 %v1520, %v1519
      %v1538 = vpack.c.bf16 %v1522, %v1521
      %v1539 = vld [vmem:[%s3 + $0x8] sm:$0xf]
      %v1540 = vld [vmem:[%s3 + $0xc] sm:$0xf]
      %v1543 = vunpack.c.l.b16 %v1539
      %v1544 = vunpack.c.l.b16 %v1540
      %v1545 = vpack.c.b16 %v1544, %v1543
      %v1548 = vsel %vm793, %v1523, 0
      %v1551 = vsel %vm793, %v1524, 0
      %v1554 = vsel %vm793, %v1525, 0
      %v1557 = vsel %vm793, %v1526, 0
      %v1560 = vsel %vm793, %v1527, 0
      %v1563 = vsel %vm793, %v1528, 0
      %v1566 = vsel %vm793, %v1529, 0
      %v1569 = vsel %vm793, %v1530, 0
      %v1572 = vsel %vm793, %v1531, 0
      %v1575 = vsel %vm793, %v1532, 0
      %v1578 = vsel %vm793, %v1533, 0
      %v1581 = vsel %vm793, %v1534, 0
      %v1584 = vsel %vm793, %v1535, 0
      %v1587 = vsel %vm793, %v1536, 0
      %v1590 = vsel %vm793, %v1537, 0
      %v1593 = vsel %vm793, %v1538, 0
      %1595 = vmatprep.subr.bf16.mxu0 0
      %1596 = vmatpush1.bf16.msra.mxu0 0
      %1597 = vmatprep.subr.bf16.mxu0 0
      %1598 = vmatpush1.bf16.msra.mxu0 0
      %1599 = vmatprep.subr.bf16.mxu0 0
      %1600 = vmatpush1.bf16.msra.mxu0 0
      %1601 = vmatprep.subr.bf16.mxu0 0
      %1602 = vmatpush1.bf16.msra.mxu0 0
      %1603 = vmatprep.subr.bf16.mxu0 0
      %1604 = vmatpush1.bf16.msra.mxu0 0
      %1605 = vmatprep.subr.bf16.mxu0 0
      %1606 = vmatpush1.bf16.msra.mxu0 0
      %1607 = vmatprep.subr.bf16.mxu0 0
      %1608 = vmatpush1.bf16.msra.mxu0 0
      %1609 = vmatprep.subr.bf16.mxu0 0
      %1610 = vmatpush1.bf16.msra.mxu0 %v1545
      %1611 = vmatprep.subr.bf16.mxu0 0
      %1612 = vmatpush2.bf16.msra.mxu0 0
      %1613 = vmatprep.subr.bf16.mxu0 0
      %1614 = vmatpush2.bf16.msra.mxu0 0
      %1615 = vmatprep.subr.bf16.mxu0 0
      %1616 = vmatpush2.bf16.msra.mxu0 0
      %1617 = vmatprep.subr.bf16.mxu0 0
      %1618 = vmatpush2.bf16.msra.mxu0 0
      %1619 = vmatprep.subr.bf16.mxu0 0
      %1620 = vmatpush2.bf16.msra.mxu0 0
      %1621 = vmatprep.subr.bf16.mxu0 0
      %1622 = vmatpush2.bf16.msra.mxu0 0
      %1623 = vmatprep.subr.bf16.mxu0 0
      %1624 = vmatpush2.bf16.msra.mxu0 0
      %1625 = vmatprep.subr.bf16.mxu0 0
      %1626 = vmatpush2.bf16.msra.mxu0 0
      %1627 = vmatprep.mubr.bf16.mxu0 0
      %1628 = vmatmul.mubr.bf16.gmra.mxu0 %v1548
      %v1629 = vpop.f32.mrf.mxu0
      %v1630 = vadd.f32 0.0, %v1629
      %v1631 = vpop.f32.mrf.mxu0
      %v1632 = vpop.f32.mrf.mxu0
      %v1633 = vadd.f32 0.0, %v1632
      %v1634 = vpop.f32.mrf.mxu0
      %1635 = vmatprep.mubr.bf16.mxu0 0
      %1636 = vmatmul.mubr.bf16.gmra.mxu0 %v1551
      %v1637 = vpop.f32.mrf.mxu0
      %v1638 = vadd.f32 0.0, %v1637
      %v1639 = vpop.f32.mrf.mxu0
      %v1640 = vpop.f32.mrf.mxu0
      %v1641 = vadd.f32 0.0, %v1640
      %v1642 = vpop.f32.mrf.mxu0
      %1643 = vmatprep.mubr.bf16.mxu0 0
      %1644 = vmatmul.mubr.bf16.gmra.mxu0 %v1554
      %v1645 = vpop.f32.mrf.mxu0
      %v1646 = vadd.f32 0.0, %v1645
      %v1647 = vpop.f32.mrf.mxu0
      %v1648 = vpop.f32.mrf.mxu0
      %v1649 = vadd.f32 0.0, %v1648
      %v1650 = vpop.f32.mrf.mxu0
      %1651 = vmatprep.mubr.bf16.mxu0 0
      %1652 = vmatmul.mubr.bf16.gmra.mxu0 %v1557
      %v1653 = vpop.f32.mrf.mxu0
      %v1654 = vadd.f32 0.0, %v1653
      %v1655 = vpop.f32.mrf.mxu0
      %v1656 = vpop.f32.mrf.mxu0
      %v1657 = vadd.f32 0.0, %v1656
      %v1658 = vpop.f32.mrf.mxu0
      %1659 = vmatprep.mubr.bf16.mxu0 0
      %1660 = vmatmul.mubr.bf16.gmra.mxu0 %v1560
      %v1661 = vpop.f32.mrf.mxu0
      %v1662 = vadd.f32 0.0, %v1661
      %v1663 = vpop.f32.mrf.mxu0
      %v1664 = vpop.f32.mrf.mxu0
      %v1665 = vadd.f32 0.0, %v1664
      %v1666 = vpop.f32.mrf.mxu0
      %1667 = vmatprep.mubr.bf16.mxu0 0
      %1668 = vmatmul.mubr.bf16.gmra.mxu0 %v1563
      %v1669 = vpop.f32.mrf.mxu0
      %v1670 = vadd.f32 0.0, %v1669
      %v1671 = vpop.f32.mrf.mxu0
      %v1672 = vpop.f32.mrf.mxu0
      %v1673 = vadd.f32 0.0, %v1672
      %v1674 = vpop.f32.mrf.mxu0
      %1675 = vmatprep.mubr.bf16.mxu0 0
      %1676 = vmatmul.mubr.bf16.gmra.mxu0 %v1566
      %v1677 = vpop.f32.mrf.mxu0
      %v1678 = vadd.f32 0.0, %v1677
      %v1679 = vpop.f32.mrf.mxu0
      %v1680 = vpop.f32.mrf.mxu0
      %v1681 = vadd.f32 0.0, %v1680
      %v1682 = vpop.f32.mrf.mxu0
      %1683 = vmatprep.mubr.bf16.mxu0 0
      %1684 = vmatmul.mubr.bf16.gmra.mxu0 %v1569
      %v1685 = vpop.f32.mrf.mxu0
      %v1686 = vadd.f32 0.0, %v1685
      %v1687 = vpop.f32.mrf.mxu0
      %v1688 = vpop.f32.mrf.mxu0
      %v1689 = vadd.f32 0.0, %v1688
      %v1690 = vpop.f32.mrf.mxu0
      %1691 = vmatprep.mubr.bf16.mxu0 0
      %1692 = vmatmul.mubr.bf16.gmra.mxu0 %v1572
      %v1693 = vpop.f32.mrf.mxu0
      %v1694 = vadd.f32 0.0, %v1693
      %v1695 = vpop.f32.mrf.mxu0
      %v1696 = vpop.f32.mrf.mxu0
      %v1697 = vadd.f32 0.0, %v1696
      %v1698 = vpop.f32.mrf.mxu0
      %1699 = vmatprep.mubr.bf16.mxu0 0
      %1700 = vmatmul.mubr.bf16.gmra.mxu0 %v1575
      %v1701 = vpop.f32.mrf.mxu0
      %v1702 = vadd.f32 0.0, %v1701
      %v1703 = vpop.f32.mrf.mxu0
      %v1704 = vpop.f32.mrf.mxu0
      %v1705 = vadd.f32 0.0, %v1704
      %v1706 = vpop.f32.mrf.mxu0
      %1707 = vmatprep.mubr.bf16.mxu0 0
      %1708 = vmatmul.mubr.bf16.gmra.mxu0 %v1578
      %v1709 = vpop.f32.mrf.mxu0
      %v1710 = vadd.f32 0.0, %v1709
      %v1711 = vpop.f32.mrf.mxu0
      %v1712 = vpop.f32.mrf.mxu0
      %v1713 = vadd.f32 0.0, %v1712
      %v1714 = vpop.f32.mrf.mxu0
      %1715 = vmatprep.mubr.bf16.mxu0 0
      %1716 = vmatmul.mubr.bf16.gmra.mxu0 %v1581
      %v1717 = vpop.f32.mrf.mxu0
      %v1718 = vadd.f32 0.0, %v1717
      %v1719 = vpop.f32.mrf.mxu0
      %v1720 = vpop.f32.mrf.mxu0
      %v1721 = vadd.f32 0.0, %v1720
      %v1722 = vpop.f32.mrf.mxu0
      %1723 = vmatprep.mubr.bf16.mxu0 0
      %1724 = vmatmul.mubr.bf16.gmra.mxu0 %v1584
      %v1725 = vpop.f32.mrf.mxu0
      %v1726 = vadd.f32 0.0, %v1725
      %v1727 = vpop.f32.mrf.mxu0
      %v1728 = vpop.f32.mrf.mxu0
      %v1729 = vadd.f32 0.0, %v1728
      %v1730 = vpop.f32.mrf.mxu0
      %1731 = vmatprep.mubr.bf16.mxu0 0
      %1732 = vmatmul.mubr.bf16.gmra.mxu0 %v1587
      %v1733 = vpop.f32.mrf.mxu0
      %v1734 = vadd.f32 0.0, %v1733
      %v1735 = vpop.f32.mrf.mxu0
      %v1736 = vpop.f32.mrf.mxu0
      %v1737 = vadd.f32 0.0, %v1736
      %v1738 = vpop.f32.mrf.mxu0
      %1739 = vmatprep.mubr.bf16.mxu0 0
      %1740 = vmatmul.mubr.bf16.gmra.mxu0 %v1590
      %v1741 = vpop.f32.mrf.mxu0
      %v1742 = vadd.f32 0.0, %v1741
      %v1743 = vpop.f32.mrf.mxu0
      %v1744 = vpop.f32.mrf.mxu0
      %v1745 = vadd.f32 0.0, %v1744
      %v1746 = vpop.f32.mrf.mxu0
      %1747 = vmatprep.mubr.bf16.mxu0 0
      %1748 = vmatmul.mubr.bf16.gmra.mxu0 %v1593
      %v1749 = vpop.f32.mrf.mxu0
      %v1750 = vadd.f32 0.0, %v1749
      %v1751 = vpop.f32.mrf.mxu0
      %v1752 = vpop.f32.mrf.mxu0
      %v1753 = vadd.f32 0.0, %v1752
      %v1754 = vpop.f32.mrf.mxu0
      %1755 = vdwg.mxu0
      %v1758 = vunpack.c.l.b16 %v1489
      %v1759 = vunpack.c.l.b16 %v1490
      %v1760 = vpack.c.b16 %v1759, %v1758
      %v1763 = vsel %vm793, %v1473, 0
      %v1766 = vsel %vm793, %v1474, 0
      %v1769 = vsel %vm793, %v1475, 0
      %v1772 = vsel %vm793, %v1476, 0
      %v1775 = vsel %vm793, %v1477, 0
      %v1778 = vsel %vm793, %v1478, 0
      %v1781 = vsel %vm793, %v1479, 0
      %v1784 = vsel %vm793, %v1480, 0
      %v1787 = vsel %vm793, %v1481, 0
      %v1790 = vsel %vm793, %v1482, 0
      %v1793 = vsel %vm793, %v1483, 0
      %v1796 = vsel %vm793, %v1484, 0
      %v1799 = vsel %vm793, %v1485, 0
      %v1802 = vsel %vm793, %v1486, 0
      %v1805 = vsel %vm793, %v1487, 0
      %v1808 = vsel %vm793, %v1488, 0
      %1810 = vmatprep.subr.bf16.mxu0 0
      %1811 = vmatpush1.bf16.msra.mxu0 0
      %1812 = vmatprep.subr.bf16.mxu0 0
      %1813 = vmatpush1.bf16.msra.mxu0 0
      %1814 = vmatprep.subr.bf16.mxu0 0
      %1815 = vmatpush1.bf16.msra.mxu0 0
      %1816 = vmatprep.subr.bf16.mxu0 0
      %1817 = vmatpush1.bf16.msra.mxu0 0
      %1818 = vmatprep.subr.bf16.mxu0 0
      %1819 = vmatpush1.bf16.msra.mxu0 0
      %1820 = vmatprep.subr.bf16.mxu0 0
      %1821 = vmatpush1.bf16.msra.mxu0 0
      %1822 = vmatprep.subr.bf16.mxu0 0
      %1823 = vmatpush1.bf16.msra.mxu0 0
      %1824 = vmatprep.subr.bf16.mxu0 0
      %1825 = vmatpush1.bf16.msra.mxu0 %v1760
      %1826 = vmatprep.subr.bf16.mxu0 0
      %1827 = vmatpush2.bf16.msra.mxu0 0
      %1828 = vmatprep.subr.bf16.mxu0 0
      %1829 = vmatpush2.bf16.msra.mxu0 0
      %1830 = vmatprep.subr.bf16.mxu0 0
      %1831 = vmatpush2.bf16.msra.mxu0 0
      %1832 = vmatprep.subr.bf16.mxu0 0
      %1833 = vmatpush2.bf16.msra.mxu0 0
      %1834 = vmatprep.subr.bf16.mxu0 0
      %1835 = vmatpush2.bf16.msra.mxu0 0
      %1836 = vmatprep.subr.bf16.mxu0 0
      %1837 = vmatpush2.bf16.msra.mxu0 0
      %1838 = vmatprep.subr.bf16.mxu0 0
      %1839 = vmatpush2.bf16.msra.mxu0 0
      %1840 = vmatprep.subr.bf16.mxu0 0
      %1841 = vmatpush2.bf16.msra.mxu0 0
      %1842 = vmatprep.mubr.bf16.mxu0 0
      %1843 = vmatmul.mubr.bf16.gmra.mxu0 %v1763
      %v1844 = vpop.f32.mrf.mxu0
      %v1845 = vadd.f32 %v1630, %v1844
      %v1846 = vpop.f32.mrf.mxu0
      %v1847 = vpop.f32.mrf.mxu0
      %v1848 = vadd.f32 %v1633, %v1847
      %v1849 = vpop.f32.mrf.mxu0
      %1850 = vmatprep.mubr.bf16.mxu0 0
      %1851 = vmatmul.mubr.bf16.gmra.mxu0 %v1766
      %v1852 = vpop.f32.mrf.mxu0
      %v1853 = vadd.f32 %v1638, %v1852
      %v1854 = vpop.f32.mrf.mxu0
      %v1855 = vpop.f32.mrf.mxu0
      %v1856 = vadd.f32 %v1641, %v1855
      %v1857 = vpop.f32.mrf.mxu0
      %1858 = vmatprep.mubr.bf16.mxu0 0
      %1859 = vmatmul.mubr.bf16.gmra.mxu0 %v1769
      %v1860 = vpop.f32.mrf.mxu0
      %v1861 = vadd.f32 %v1646, %v1860
      %v1862 = vpop.f32.mrf.mxu0
      %v1863 = vpop.f32.mrf.mxu0
      %v1864 = vadd.f32 %v1649, %v1863
      %v1865 = vpop.f32.mrf.mxu0
      %1866 = vmatprep.mubr.bf16.mxu0 0
      %1867 = vmatmul.mubr.bf16.gmra.mxu0 %v1772
      %v1868 = vpop.f32.mrf.mxu0
      %v1869 = vadd.f32 %v1654, %v1868
      %v1870 = vpop.f32.mrf.mxu0
      %v1871 = vpop.f32.mrf.mxu0
      %v1872 = vadd.f32 %v1657, %v1871
      %v1873 = vpop.f32.mrf.mxu0
      %1874 = vmatprep.mubr.bf16.mxu0 0
      %1875 = vmatmul.mubr.bf16.gmra.mxu0 %v1775
      %v1876 = vpop.f32.mrf.mxu0
      %v1877 = vadd.f32 %v1662, %v1876
      %v1878 = vpop.f32.mrf.mxu0
      %v1879 = vpop.f32.mrf.mxu0
      %v1880 = vadd.f32 %v1665, %v1879
      %v1881 = vpop.f32.mrf.mxu0
      %1882 = vmatprep.mubr.bf16.mxu0 0
      %1883 = vmatmul.mubr.bf16.gmra.mxu0 %v1778
      %v1884 = vpop.f32.mrf.mxu0
      %v1885 = vadd.f32 %v1670, %v1884
      %v1886 = vpop.f32.mrf.mxu0
      %v1887 = vpop.f32.mrf.mxu0
      %v1888 = vadd.f32 %v1673, %v1887
      %v1889 = vpop.f32.mrf.mxu0
      %1890 = vmatprep.mubr.bf16.mxu0 0
      %1891 = vmatmul.mubr.bf16.gmra.mxu0 %v1781
      %v1892 = vpop.f32.mrf.mxu0
      %v1893 = vadd.f32 %v1678, %v1892
      %v1894 = vpop.f32.mrf.mxu0
      %v1895 = vpop.f32.mrf.mxu0
      %v1896 = vadd.f32 %v1681, %v1895
      %v1897 = vpop.f32.mrf.mxu0
      %1898 = vmatprep.mubr.bf16.mxu0 0
      %1899 = vmatmul.mubr.bf16.gmra.mxu0 %v1784
      %v1900 = vpop.f32.mrf.mxu0
      %v1901 = vadd.f32 %v1686, %v1900
      %v1902 = vpop.f32.mrf.mxu0
      %v1903 = vpop.f32.mrf.mxu0
      %v1904 = vadd.f32 %v1689, %v1903
      %v1905 = vpop.f32.mrf.mxu0
      %1906 = vmatprep.mubr.bf16.mxu0 0
      %1907 = vmatmul.mubr.bf16.gmra.mxu0 %v1787
      %v1908 = vpop.f32.mrf.mxu0
      %v1909 = vadd.f32 %v1694, %v1908
      %v1910 = vpop.f32.mrf.mxu0
      %v1911 = vpop.f32.mrf.mxu0
      %v1912 = vadd.f32 %v1697, %v1911
      %v1913 = vpop.f32.mrf.mxu0
      %1914 = vmatprep.mubr.bf16.mxu0 0
      %1915 = vmatmul.mubr.bf16.gmra.mxu0 %v1790
      %v1916 = vpop.f32.mrf.mxu0
      %v1917 = vadd.f32 %v1702, %v1916
      %v1918 = vpop.f32.mrf.mxu0
      %v1919 = vpop.f32.mrf.mxu0
      %v1920 = vadd.f32 %v1705, %v1919
      %v1921 = vpop.f32.mrf.mxu0
      %1922 = vmatprep.mubr.bf16.mxu0 0
      %1923 = vmatmul.mubr.bf16.gmra.mxu0 %v1793
      %v1924 = vpop.f32.mrf.mxu0
      %v1925 = vadd.f32 %v1710, %v1924
      %v1926 = vpop.f32.mrf.mxu0
      %v1927 = vpop.f32.mrf.mxu0
      %v1928 = vadd.f32 %v1713, %v1927
      %v1929 = vpop.f32.mrf.mxu0
      %1930 = vmatprep.mubr.bf16.mxu0 0
      %1931 = vmatmul.mubr.bf16.gmra.mxu0 %v1796
      %v1932 = vpop.f32.mrf.mxu0
      %v1933 = vadd.f32 %v1718, %v1932
      %v1934 = vpop.f32.mrf.mxu0
      %v1935 = vpop.f32.mrf.mxu0
      %v1936 = vadd.f32 %v1721, %v1935
      %v1937 = vpop.f32.mrf.mxu0
      %1938 = vmatprep.mubr.bf16.mxu0 0
      %1939 = vmatmul.mubr.bf16.gmra.mxu0 %v1799
      %v1940 = vpop.f32.mrf.mxu0
      %v1941 = vadd.f32 %v1726, %v1940
      %v1942 = vpop.f32.mrf.mxu0
      %v1943 = vpop.f32.mrf.mxu0
      %v1944 = vadd.f32 %v1729, %v1943
      %v1945 = vpop.f32.mrf.mxu0
      %1946 = vmatprep.mubr.bf16.mxu0 0
      %1947 = vmatmul.mubr.bf16.gmra.mxu0 %v1802
      %v1948 = vpop.f32.mrf.mxu0
      %v1949 = vadd.f32 %v1734, %v1948
      %v1950 = vpop.f32.mrf.mxu0
      %v1951 = vpop.f32.mrf.mxu0
      %v1952 = vadd.f32 %v1737, %v1951
      %v1953 = vpop.f32.mrf.mxu0
      %1954 = vmatprep.mubr.bf16.mxu0 0
      %1955 = vmatmul.mubr.bf16.gmra.mxu0 %v1805
      %v1956 = vpop.f32.mrf.mxu0
      %v1957 = vadd.f32 %v1742, %v1956
      %v1958 = vpop.f32.mrf.mxu0
      %v1959 = vpop.f32.mrf.mxu0
      %v1960 = vadd.f32 %v1745, %v1959
      %v1961 = vpop.f32.mrf.mxu0
      %1962 = vmatprep.mubr.bf16.mxu0 0
      %1963 = vmatmul.mubr.bf16.gmra.mxu0 %v1808
      %v1964 = vpop.f32.mrf.mxu0
      %v1965 = vadd.f32 %v1750, %v1964
      %v1966 = vpop.f32.mrf.mxu0
      %v1967 = vpop.f32.mrf.mxu0
      %v1968 = vadd.f32 %v1753, %v1967
      %v1969 = vpop.f32.mrf.mxu0
      %1970 = vdwg.mxu0
      %v1971 = vld [vmem:[#allocation2 + $0x9] sm:$0xff]
      %v1972 = vld [vmem:[#allocation2 + $0x11] sm:$0xff]
      %v1973 = vld [vmem:[#allocation2 + $0x19] sm:$0xff]
      %v1974 = vld [vmem:[#allocation2 + $0x21] sm:$0xff]
      %v1975 = vld [vmem:[#allocation2 + $0x29] sm:$0xff]
      %v1976 = vld [vmem:[#allocation2 + $0x31] sm:$0xff]
      %v1977 = vld [vmem:[#allocation2 + $0x39] sm:$0xff]
      %v1978 = vld [vmem:[#allocation2 + $0x41] sm:$0xff]
      %v1979 = vld [vmem:[#allocation2 + $0x49] sm:$0xff]
      %v1980 = vld [vmem:[#allocation2 + $0x51] sm:$0xff]
      %v1981 = vld [vmem:[#allocation2 + $0x59] sm:$0xff]
      %v1982 = vld [vmem:[#allocation2 + $0x61] sm:$0xff]
      %v1983 = vld [vmem:[#allocation2 + $0x69] sm:$0xff]
      %v1984 = vld [vmem:[#allocation2 + $0x71] sm:$0xff]
      %v1985 = vld [vmem:[#allocation2 + $0x79] sm:$0xff]
      %v1986 = vld [vmem:[#allocation2 + $0x81] sm:$0xff]
      %v1987 = vld [vmem:[#allocation2 + $0x89] sm:$0xff]
      %v1988 = vld [vmem:[#allocation2 + $0x91] sm:$0xff]
      %v1989 = vld [vmem:[#allocation2 + $0x99] sm:$0xff]
      %v1990 = vld [vmem:[#allocation2 + $0xa1] sm:$0xff]
      %v1991 = vld [vmem:[#allocation2 + $0xa9] sm:$0xff]
      %v1992 = vld [vmem:[#allocation2 + $0xb1] sm:$0xff]
      %v1993 = vld [vmem:[#allocation2 + $0xb9] sm:$0xff]
      %v1994 = vld [vmem:[#allocation2 + $0xc1] sm:$0xff]
      %v1995 = vld [vmem:[#allocation2 + $0xc9] sm:$0xff]
      %v1996 = vld [vmem:[#allocation2 + $0xd1] sm:$0xff]
      %v1997 = vld [vmem:[#allocation2 + $0xd9] sm:$0xff]
      %v1998 = vld [vmem:[#allocation2 + $0xe1] sm:$0xff]
      %v1999 = vld [vmem:[#allocation2 + $0xe9] sm:$0xff]
      %v2000 = vld [vmem:[#allocation2 + $0xf1] sm:$0xff]
      %v2001 = vld [vmem:[#allocation2 + $0xf9] sm:$0xff]
      %v2002 = vld [vmem:[#allocation2 + $0x101] sm:$0xff]
      %v2003 = vsel %vm1313, 1, 0
      %v2004 = vsel %vm1314, 1, 0
      %v2005 = vsel %vm1315, 1, 0
      %v2006 = vsel %vm1316, 1, 0
      %v2007 = vsel %vm1317, 1, 0
      %v2008 = vsel %vm1318, 1, 0
      %v2009 = vsel %vm1319, 1, 0
      %v2010 = vsel %vm1320, 1, 0
      %v2011 = vsel %vm1321, 1, 0
      %v2012 = vsel %vm1322, 1, 0
      %v2013 = vsel %vm1323, 1, 0
      %v2014 = vsel %vm1324, 1, 0
      %v2015 = vsel %vm1325, 1, 0
      %v2016 = vsel %vm1326, 1, 0
      %v2017 = vsel %vm1327, 1, 0
      %v2018 = vsel %vm1328, 1, 0
      %v2019 = vsel %vm1329, 1, 0
      %v2020 = vsel %vm1330, 1, 0
      %v2021 = vsel %vm1331, 1, 0
      %v2022 = vsel %vm1332, 1, 0
      %v2023 = vsel %vm1333, 1, 0
      %v2024 = vsel %vm1334, 1, 0
      %v2025 = vsel %vm1335, 1, 0
      %v2026 = vsel %vm1336, 1, 0
      %v2027 = vsel %vm1337, 1, 0
      %v2028 = vsel %vm1338, 1, 0
      %v2029 = vsel %vm1339, 1, 0
      %v2030 = vsel %vm1340, 1, 0
      %v2031 = vsel %vm1341, 1, 0
      %v2032 = vsel %vm1342, 1, 0
      %v2033 = vsel %vm1343, 1, 0
      %v2034 = vsel %vm1344, 1, 0
      %vm2035 = vcmp.eq.s32.totalorder %v2003, 1
      %vm2036 = vcmp.eq.s32.totalorder %v2004, 1
      %vm2037 = vcmp.eq.s32.totalorder %v2005, 1
      %vm2038 = vcmp.eq.s32.totalorder %v2006, 1
      %vm2039 = vcmp.eq.s32.totalorder %v2007, 1
      %vm2040 = vcmp.eq.s32.totalorder %v2008, 1
      %vm2041 = vcmp.eq.s32.totalorder %v2009, 1
      %vm2042 = vcmp.eq.s32.totalorder %v2010, 1
      %vm2043 = vcmp.eq.s32.totalorder %v2011, 1
      %vm2044 = vcmp.eq.s32.totalorder %v2012, 1
      %vm2045 = vcmp.eq.s32.totalorder %v2013, 1
      %vm2046 = vcmp.eq.s32.totalorder %v2014, 1
      %vm2047 = vcmp.eq.s32.totalorder %v2015, 1
      %vm2048 = vcmp.eq.s32.totalorder %v2016, 1
      %vm2049 = vcmp.eq.s32.totalorder %v2017, 1
      %vm2050 = vcmp.eq.s32.totalorder %v2018, 1
      %vm2051 = vcmp.eq.s32.totalorder %v2019, 1
      %vm2052 = vcmp.eq.s32.totalorder %v2020, 1
      %vm2053 = vcmp.eq.s32.totalorder %v2021, 1
      %vm2054 = vcmp.eq.s32.totalorder %v2022, 1
      %vm2055 = vcmp.eq.s32.totalorder %v2023, 1
      %vm2056 = vcmp.eq.s32.totalorder %v2024, 1
      %vm2057 = vcmp.eq.s32.totalorder %v2025, 1
      %vm2058 = vcmp.eq.s32.totalorder %v2026, 1
      %vm2059 = vcmp.eq.s32.totalorder %v2027, 1
      %vm2060 = vcmp.eq.s32.totalorder %v2028, 1
      %vm2061 = vcmp.eq.s32.totalorder %v2029, 1
      %vm2062 = vcmp.eq.s32.totalorder %v2030, 1
      %vm2063 = vcmp.eq.s32.totalorder %v2031, 1
      %vm2064 = vcmp.eq.s32.totalorder %v2032, 1
      %vm2065 = vcmp.eq.s32.totalorder %v2033, 1
      %vm2066 = vcmp.eq.s32.totalorder %v2034, 1
      %v2067 = vsel %vm2035, %v1971, 0.0
      %v2068 = vsel %vm2036, %v1972, 0.0
      %v2069 = vsel %vm2037, %v1973, 0.0
      %v2070 = vsel %vm2038, %v1974, 0.0
      %v2071 = vsel %vm2039, %v1975, 0.0
      %v2072 = vsel %vm2040, %v1976, 0.0
      %v2073 = vsel %vm2041, %v1977, 0.0
      %v2074 = vsel %vm2042, %v1978, 0.0
      %v2075 = vsel %vm2043, %v1979, 0.0
      %v2076 = vsel %vm2044, %v1980, 0.0
      %v2077 = vsel %vm2045, %v1981, 0.0
      %v2078 = vsel %vm2046, %v1982, 0.0
      %v2079 = vsel %vm2047, %v1983, 0.0
      %v2080 = vsel %vm2048, %v1984, 0.0
      %v2081 = vsel %vm2049, %v1985, 0.0
      %v2082 = vsel %vm2050, %v1986, 0.0
      %v2083 = vsel %vm2051, %v1987, 0.0
      %v2084 = vsel %vm2052, %v1988, 0.0
      %v2085 = vsel %vm2053, %v1989, 0.0
      %v2086 = vsel %vm2054, %v1990, 0.0
      %v2087 = vsel %vm2055, %v1991, 0.0
      %v2088 = vsel %vm2056, %v1992, 0.0
      %v2089 = vsel %vm2057, %v1993, 0.0
      %v2090 = vsel %vm2058, %v1994, 0.0
      %v2091 = vsel %vm2059, %v1995, 0.0
      %v2092 = vsel %vm2060, %v1996, 0.0
      %v2093 = vsel %vm2061, %v1997, 0.0
      %v2094 = vsel %vm2062, %v1998, 0.0
      %v2095 = vsel %vm2063, %v1999, 0.0
      %v2096 = vsel %vm2064, %v2000, 0.0
      %v2097 = vsel %vm2065, %v2001, 0.0
      %v2098 = vsel %vm2066, %v2002, 0.0
      %v2099 = vpack.c.bf16 %v2068, %v2067
      %v2100 = vpack.c.bf16 %v2070, %v2069
      %v2101 = vpack.c.bf16 %v2072, %v2071
      %v2102 = vpack.c.bf16 %v2074, %v2073
      %v2103 = vpack.c.bf16 %v2076, %v2075
      %v2104 = vpack.c.bf16 %v2078, %v2077
      %v2105 = vpack.c.bf16 %v2080, %v2079
      %v2106 = vpack.c.bf16 %v2082, %v2081
      %v2107 = vpack.c.bf16 %v2084, %v2083
      %v2108 = vpack.c.bf16 %v2086, %v2085
      %v2109 = vpack.c.bf16 %v2088, %v2087
      %v2110 = vpack.c.bf16 %v2090, %v2089
      %v2111 = vpack.c.bf16 %v2092, %v2091
      %v2112 = vpack.c.bf16 %v2094, %v2093
      %v2113 = vpack.c.bf16 %v2096, %v2095
      %v2114 = vpack.c.bf16 %v2098, %v2097
      %v2115 = vld [vmem:[%s3 + $0x10] sm:$0xf]
      %v2116 = vld [vmem:[%s3 + $0x14] sm:$0xf]
      %v2119 = vunpack.c.l.b16 %v2115
      %v2120 = vunpack.c.l.b16 %v2116
      %v2121 = vpack.c.b16 %v2120, %v2119
      %v2124 = vsel %vm793, %v2099, 0
      %v2127 = vsel %vm793, %v2100, 0
      %v2130 = vsel %vm793, %v2101, 0
      %v2133 = vsel %vm793, %v2102, 0
      %v2136 = vsel %vm793, %v2103, 0
      %v2139 = vsel %vm793, %v2104, 0
      %v2142 = vsel %vm793, %v2105, 0
      %v2145 = vsel %vm793, %v2106, 0
      %v2148 = vsel %vm793, %v2107, 0
      %v2151 = vsel %vm793, %v2108, 0
      %v2154 = vsel %vm793, %v2109, 0
      %v2157 = vsel %vm793, %v2110, 0
      %v2160 = vsel %vm793, %v2111, 0
      %v2163 = vsel %vm793, %v2112, 0
      %v2166 = vsel %vm793, %v2113, 0
      %v2169 = vsel %vm793, %v2114, 0
      %2171 = vmatprep.subr.bf16.mxu0 0
      %2172 = vmatpush1.bf16.msra.mxu0 0
      %2173 = vmatprep.subr.bf16.mxu0 0
      %2174 = vmatpush1.bf16.msra.mxu0 0
      %2175 = vmatprep.subr.bf16.mxu0 0
      %2176 = vmatpush1.bf16.msra.mxu0 0
      %2177 = vmatprep.subr.bf16.mxu0 0
      %2178 = vmatpush1.bf16.msra.mxu0 0
      %2179 = vmatprep.subr.bf16.mxu0 0
      %2180 = vmatpush1.bf16.msra.mxu0 0
      %2181 = vmatprep.subr.bf16.mxu0 0
      %2182 = vmatpush1.bf16.msra.mxu0 0
      %2183 = vmatprep.subr.bf16.mxu0 0
      %2184 = vmatpush1.bf16.msra.mxu0 0
      %2185 = vmatprep.subr.bf16.mxu0 0
      %2186 = vmatpush1.bf16.msra.mxu0 %v2121
      %2187 = vmatprep.subr.bf16.mxu0 0
      %2188 = vmatpush2.bf16.msra.mxu0 0
      %2189 = vmatprep.subr.bf16.mxu0 0
      %2190 = vmatpush2.bf16.msra.mxu0 0
      %2191 = vmatprep.subr.bf16.mxu0 0
      %2192 = vmatpush2.bf16.msra.mxu0 0
      %2193 = vmatprep.subr.bf16.mxu0 0
      %2194 = vmatpush2.bf16.msra.mxu0 0
      %2195 = vmatprep.subr.bf16.mxu0 0
      %2196 = vmatpush2.bf16.msra.mxu0 0
      %2197 = vmatprep.subr.bf16.mxu0 0
      %2198 = vmatpush2.bf16.msra.mxu0 0
      %2199 = vmatprep.subr.bf16.mxu0 0
      %2200 = vmatpush2.bf16.msra.mxu0 0
      %2201 = vmatprep.subr.bf16.mxu0 0
      %2202 = vmatpush2.bf16.msra.mxu0 0
      %2203 = vmatprep.mubr.bf16.mxu0 0
      %2204 = vmatmul.mubr.bf16.gmra.mxu0 %v2124
      %v2205 = vpop.f32.mrf.mxu0
      %v2206 = vadd.f32 0.0, %v2205
      %v2207 = vpop.f32.mrf.mxu0
      %v2208 = vpop.f32.mrf.mxu0
      %v2209 = vadd.f32 0.0, %v2208
      %v2210 = vpop.f32.mrf.mxu0
      %2211 = vmatprep.mubr.bf16.mxu0 0
      %2212 = vmatmul.mubr.bf16.gmra.mxu0 %v2127
      %v2213 = vpop.f32.mrf.mxu0
      %v2214 = vadd.f32 0.0, %v2213
      %v2215 = vpop.f32.mrf.mxu0
      %v2216 = vpop.f32.mrf.mxu0
      %v2217 = vadd.f32 0.0, %v2216
      %v2218 = vpop.f32.mrf.mxu0
      %2219 = vmatprep.mubr.bf16.mxu0 0
      %2220 = vmatmul.mubr.bf16.gmra.mxu0 %v2130
      %v2221 = vpop.f32.mrf.mxu0
      %v2222 = vadd.f32 0.0, %v2221
      %v2223 = vpop.f32.mrf.mxu0
      %v2224 = vpop.f32.mrf.mxu0
      %v2225 = vadd.f32 0.0, %v2224
      %v2226 = vpop.f32.mrf.mxu0
      %2227 = vmatprep.mubr.bf16.mxu0 0
      %2228 = vmatmul.mubr.bf16.gmra.mxu0 %v2133
      %v2229 = vpop.f32.mrf.mxu0
      %v2230 = vadd.f32 0.0, %v2229
      %v2231 = vpop.f32.mrf.mxu0
      %v2232 = vpop.f32.mrf.mxu0
      %v2233 = vadd.f32 0.0, %v2232
      %v2234 = vpop.f32.mrf.mxu0
      %2235 = vmatprep.mubr.bf16.mxu0 0
      %2236 = vmatmul.mubr.bf16.gmra.mxu0 %v2136
      %v2237 = vpop.f32.mrf.mxu0
      %v2238 = vadd.f32 0.0, %v2237
      %v2239 = vpop.f32.mrf.mxu0
      %v2240 = vpop.f32.mrf.mxu0
      %v2241 = vadd.f32 0.0, %v2240
      %v2242 = vpop.f32.mrf.mxu0
      %2243 = vmatprep.mubr.bf16.mxu0 0
      %2244 = vmatmul.mubr.bf16.gmra.mxu0 %v2139
      %v2245 = vpop.f32.mrf.mxu0
      %v2246 = vadd.f32 0.0, %v2245
      %v2247 = vpop.f32.mrf.mxu0
      %v2248 = vpop.f32.mrf.mxu0
      %v2249 = vadd.f32 0.0, %v2248
      %v2250 = vpop.f32.mrf.mxu0
      %2251 = vmatprep.mubr.bf16.mxu0 0
      %2252 = vmatmul.mubr.bf16.gmra.mxu0 %v2142
      %v2253 = vpop.f32.mrf.mxu0
      %v2254 = vadd.f32 0.0, %v2253
      %v2255 = vpop.f32.mrf.mxu0
      %v2256 = vpop.f32.mrf.mxu0
      %v2257 = vadd.f32 0.0, %v2256
      %v2258 = vpop.f32.mrf.mxu0
      %2259 = vmatprep.mubr.bf16.mxu0 0
      %2260 = vmatmul.mubr.bf16.gmra.mxu0 %v2145
      %v2261 = vpop.f32.mrf.mxu0
      %v2262 = vadd.f32 0.0, %v2261
      %v2263 = vpop.f32.mrf.mxu0
      %v2264 = vpop.f32.mrf.mxu0
      %v2265 = vadd.f32 0.0, %v2264
      %v2266 = vpop.f32.mrf.mxu0
      %2267 = vmatprep.mubr.bf16.mxu0 0
      %2268 = vmatmul.mubr.bf16.gmra.mxu0 %v2148
      %v2269 = vpop.f32.mrf.mxu0
      %v2270 = vadd.f32 0.0, %v2269
      %v2271 = vpop.f32.mrf.mxu0
      %v2272 = vpop.f32.mrf.mxu0
      %v2273 = vadd.f32 0.0, %v2272
      %v2274 = vpop.f32.mrf.mxu0
      %2275 = vmatprep.mubr.bf16.mxu0 0
      %2276 = vmatmul.mubr.bf16.gmra.mxu0 %v2151
      %v2277 = vpop.f32.mrf.mxu0
      %v2278 = vadd.f32 0.0, %v2277
      %v2279 = vpop.f32.mrf.mxu0
      %v2280 = vpop.f32.mrf.mxu0
      %v2281 = vadd.f32 0.0, %v2280
      %v2282 = vpop.f32.mrf.mxu0
      %2283 = vmatprep.mubr.bf16.mxu0 0
      %2284 = vmatmul.mubr.bf16.gmra.mxu0 %v2154
      %v2285 = vpop.f32.mrf.mxu0
      %v2286 = vadd.f32 0.0, %v2285
      %v2287 = vpop.f32.mrf.mxu0
      %v2288 = vpop.f32.mrf.mxu0
      %v2289 = vadd.f32 0.0, %v2288
      %v2290 = vpop.f32.mrf.mxu0
      %2291 = vmatprep.mubr.bf16.mxu0 0
      %2292 = vmatmul.mubr.bf16.gmra.mxu0 %v2157
      %v2293 = vpop.f32.mrf.mxu0
      %v2294 = vadd.f32 0.0, %v2293
      %v2295 = vpop.f32.mrf.mxu0
      %v2296 = vpop.f32.mrf.mxu0
      %v2297 = vadd.f32 0.0, %v2296
      %v2298 = vpop.f32.mrf.mxu0
      %2299 = vmatprep.mubr.bf16.mxu0 0
      %2300 = vmatmul.mubr.bf16.gmra.mxu0 %v2160
      %v2301 = vpop.f32.mrf.mxu0
      %v2302 = vadd.f32 0.0, %v2301
      %v2303 = vpop.f32.mrf.mxu0
      %v2304 = vpop.f32.mrf.mxu0
      %v2305 = vadd.f32 0.0, %v2304
      %v2306 = vpop.f32.mrf.mxu0
      %2307 = vmatprep.mubr.bf16.mxu0 0
      %2308 = vmatmul.mubr.bf16.gmra.mxu0 %v2163
      %v2309 = vpop.f32.mrf.mxu0
      %v2310 = vadd.f32 0.0, %v2309
      %v2311 = vpop.f32.mrf.mxu0
      %v2312 = vpop.f32.mrf.mxu0
      %v2313 = vadd.f32 0.0, %v2312
      %v2314 = vpop.f32.mrf.mxu0
      %2315 = vmatprep.mubr.bf16.mxu0 0
      %2316 = vmatmul.mubr.bf16.gmra.mxu0 %v2166
      %v2317 = vpop.f32.mrf.mxu0
      %v2318 = vadd.f32 0.0, %v2317
      %v2319 = vpop.f32.mrf.mxu0
      %v2320 = vpop.f32.mrf.mxu0
      %v2321 = vadd.f32 0.0, %v2320
      %v2322 = vpop.f32.mrf.mxu0
      %2323 = vmatprep.mubr.bf16.mxu0 0
      %2324 = vmatmul.mubr.bf16.gmra.mxu0 %v2169
      %v2325 = vpop.f32.mrf.mxu0
      %v2326 = vadd.f32 0.0, %v2325
      %v2327 = vpop.f32.mrf.mxu0
      %v2328 = vpop.f32.mrf.mxu0
      %v2329 = vadd.f32 0.0, %v2328
      %v2330 = vpop.f32.mrf.mxu0
      %2331 = vdwg.mxu0
      %v2332 = vadd.f32 %v1845, %v2206
      %v2333 = vadd.f32 %v1848, %v2209
      %v2334 = vadd.f32 %v1853, %v2214
      %v2335 = vadd.f32 %v1856, %v2217
      %v2336 = vadd.f32 %v1861, %v2222
      %v2337 = vadd.f32 %v1864, %v2225
      %v2338 = vadd.f32 %v1869, %v2230
      %v2339 = vadd.f32 %v1872, %v2233
      %v2340 = vadd.f32 %v1877, %v2238
      %v2341 = vadd.f32 %v1880, %v2241
      %v2342 = vadd.f32 %v1885, %v2246
      %v2343 = vadd.f32 %v1888, %v2249
      %v2344 = vadd.f32 %v1893, %v2254
      %v2345 = vadd.f32 %v1896, %v2257
      %v2346 = vadd.f32 %v1901, %v2262
      %v2347 = vadd.f32 %v1904, %v2265
      %v2348 = vadd.f32 %v1909, %v2270
      %v2349 = vadd.f32 %v1912, %v2273
      %v2350 = vadd.f32 %v1917, %v2278
      %v2351 = vadd.f32 %v1920, %v2281
      %v2352 = vadd.f32 %v1925, %v2286
      %v2353 = vadd.f32 %v1928, %v2289
      %v2354 = vadd.f32 %v1933, %v2294
      %v2355 = vadd.f32 %v1936, %v2297
      %v2356 = vadd.f32 %v1941, %v2302
      %v2357 = vadd.f32 %v1944, %v2305
      %v2358 = vadd.f32 %v1949, %v2310
      %v2359 = vadd.f32 %v1952, %v2313
      %v2360 = vadd.f32 %v1957, %v2318
      %v2361 = vadd.f32 %v1960, %v2321
      %v2362 = vadd.f32 %v1965, %v2326
      %v2363 = vadd.f32 %v1968, %v2329
      %v2364 = vld [vmem:[#allocation2 + $0x17] sm:$0xff]
      %v2365 = vld [vmem:[#allocation2 + $0x1f] sm:$0xff]
      %v2366 = vld [vmem:[#allocation2 + $0x27] sm:$0xff]
      %v2367 = vld [vmem:[#allocation2 + $0x2f] sm:$0xff]
      %v2368 = vld [vmem:[#allocation2 + $0x37] sm:$0xff]
      %v2369 = vld [vmem:[#allocation2 + $0x3f] sm:$0xff]
      %v2370 = vld [vmem:[#allocation2 + $0x47] sm:$0xff]
      %v2371 = vld [vmem:[#allocation2 + $0x4f] sm:$0xff]
      %v2372 = vld [vmem:[#allocation2 + $0x57] sm:$0xff]
      %v2373 = vld [vmem:[#allocation2 + $0x5f] sm:$0xff]
      %v2374 = vld [vmem:[#allocation2 + $0x67] sm:$0xff]
      %v2375 = vld [vmem:[#allocation2 + $0x6f] sm:$0xff]
      %v2376 = vld [vmem:[#allocation2 + $0x77] sm:$0xff]
      %v2377 = vld [vmem:[#allocation2 + $0x7f] sm:$0xff]
      %v2378 = vld [vmem:[#allocation2 + $0x87] sm:$0xff]
      %v2379 = vld [vmem:[#allocation2 + $0x8f] sm:$0xff]
      %v2380 = vld [vmem:[#allocation2 + $0x97] sm:$0xff]
      %v2381 = vld [vmem:[#allocation2 + $0x9f] sm:$0xff]
      %v2382 = vld [vmem:[#allocation2 + $0xa7] sm:$0xff]
      %v2383 = vld [vmem:[#allocation2 + $0xaf] sm:$0xff]
      %v2384 = vld [vmem:[#allocation2 + $0xb7] sm:$0xff]
      %v2385 = vld [vmem:[#allocation2 + $0xbf] sm:$0xff]
      %v2386 = vld [vmem:[#allocation2 + $0xc7] sm:$0xff]
      %v2387 = vld [vmem:[#allocation2 + $0xcf] sm:$0xff]
      %v2388 = vld [vmem:[#allocation2 + $0xd7] sm:$0xff]
      %v2389 = vld [vmem:[#allocation2 + $0xdf] sm:$0xff]
      %v2390 = vld [vmem:[#allocation2 + $0xe7] sm:$0xff]
      %v2391 = vld [vmem:[#allocation2 + $0xef] sm:$0xff]
      %v2392 = vld [vmem:[#allocation2 + $0xf7] sm:$0xff]
      %v2393 = vld [vmem:[#allocation2 + $0xff] sm:$0xff]
      %v2394 = vld [vmem:[#allocation2 + $0x107] sm:$0xff]
      %v2395 = vld [vmem:[#allocation2 + $0x10f] sm:$0xff]
      %v2396 = vsel %vm1409, %v2364, 0.0
      %v2397 = vsel %vm1410, %v2365, 0.0
      %v2398 = vsel %vm1411, %v2366, 0.0
      %v2399 = vsel %vm1412, %v2367, 0.0
      %v2400 = vsel %vm1413, %v2368, 0.0
      %v2401 = vsel %vm1414, %v2369, 0.0
      %v2402 = vsel %vm1415, %v2370, 0.0
      %v2403 = vsel %vm1416, %v2371, 0.0
      %v2404 = vsel %vm1417, %v2372, 0.0
      %v2405 = vsel %vm1418, %v2373, 0.0
      %v2406 = vsel %vm1419, %v2374, 0.0
      %v2407 = vsel %vm1420, %v2375, 0.0
      %v2408 = vsel %vm1421, %v2376, 0.0
      %v2409 = vsel %vm1422, %v2377, 0.0
      %v2410 = vsel %vm1423, %v2378, 0.0
      %v2411 = vsel %vm1424, %v2379, 0.0
      %v2412 = vsel %vm1425, %v2380, 0.0
      %v2413 = vsel %vm1426, %v2381, 0.0
      %v2414 = vsel %vm1427, %v2382, 0.0
      %v2415 = vsel %vm1428, %v2383, 0.0
      %v2416 = vsel %vm1429, %v2384, 0.0
      %v2417 = vsel %vm1430, %v2385, 0.0
      %v2418 = vsel %vm1431, %v2386, 0.0
      %v2419 = vsel %vm1432, %v2387, 0.0
      %v2420 = vsel %vm1433, %v2388, 0.0
      %v2421 = vsel %vm1434, %v2389, 0.0
      %v2422 = vsel %vm1435, %v2390, 0.0
      %v2423 = vsel %vm1436, %v2391, 0.0
      %v2424 = vsel %vm1437, %v2392, 0.0
      %v2425 = vsel %vm1438, %v2393, 0.0
      %v2426 = vsel %vm1439, %v2394, 0.0
      %v2427 = vsel %vm1440, %v2395, 0.0
      %v2428 = vpack.c.bf16 %v2397, %v2396
      %v2429 = vpack.c.bf16 %v2399, %v2398
      %v2430 = vpack.c.bf16 %v2401, %v2400
      %v2431 = vpack.c.bf16 %v2403, %v2402
      %v2432 = vpack.c.bf16 %v2405, %v2404
      %v2433 = vpack.c.bf16 %v2407, %v2406
      %v2434 = vpack.c.bf16 %v2409, %v2408
      %v2435 = vpack.c.bf16 %v2411, %v2410
      %v2436 = vpack.c.bf16 %v2413, %v2412
      %v2437 = vpack.c.bf16 %v2415, %v2414
      %v2438 = vpack.c.bf16 %v2417, %v2416
      %v2439 = vpack.c.bf16 %v2419, %v2418
      %v2440 = vpack.c.bf16 %v2421, %v2420
      %v2441 = vpack.c.bf16 %v2423, %v2422
      %v2442 = vpack.c.bf16 %v2425, %v2424
      %v2443 = vpack.c.bf16 %v2427, %v2426
      %v2444 = vld [vmem:[%s3 + $0x18] sm:$0xf]
      %v2445 = vld [vmem:[%s3 + $0x1c] sm:$0xf]
      %v2448 = vunpack.c.l.b16 %v2444
      %v2449 = vunpack.c.l.b16 %v2445
      %v2450 = vpack.c.b16 %v2449, %v2448
      %v2453 = vsel %vm793, %v2428, 0
      %v2456 = vsel %vm793, %v2429, 0
      %v2459 = vsel %vm793, %v2430, 0
      %v2462 = vsel %vm793, %v2431, 0
      %v2465 = vsel %vm793, %v2432, 0
      %v2468 = vsel %vm793, %v2433, 0
      %v2471 = vsel %vm793, %v2434, 0
      %v2474 = vsel %vm793, %v2435, 0
      %v2477 = vsel %vm793, %v2436, 0
      %v2480 = vsel %vm793, %v2437, 0
      %v2483 = vsel %vm793, %v2438, 0
      %v2486 = vsel %vm793, %v2439, 0
      %v2489 = vsel %vm793, %v2440, 0
      %v2492 = vsel %vm793, %v2441, 0
      %v2495 = vsel %vm793, %v2442, 0
      %v2498 = vsel %vm793, %v2443, 0
      %2500 = vmatprep.subr.bf16.mxu0 0
      %2501 = vmatpush1.bf16.msra.mxu0 0
      %2502 = vmatprep.subr.bf16.mxu0 0
      %2503 = vmatpush1.bf16.msra.mxu0 0
      %2504 = vmatprep.subr.bf16.mxu0 0
      %2505 = vmatpush1.bf16.msra.mxu0 0
      %2506 = vmatprep.subr.bf16.mxu0 0
      %2507 = vmatpush1.bf16.msra.mxu0 0
      %2508 = vmatprep.subr.bf16.mxu0 0
      %2509 = vmatpush1.bf16.msra.mxu0 0
      %2510 = vmatprep.subr.bf16.mxu0 0
      %2511 = vmatpush1.bf16.msra.mxu0 0
      %2512 = vmatprep.subr.bf16.mxu0 0
      %2513 = vmatpush1.bf16.msra.mxu0 0
      %2514 = vmatprep.subr.bf16.mxu0 0
      %2515 = vmatpush1.bf16.msra.mxu0 %v2450
      %2516 = vmatprep.subr.bf16.mxu0 0
      %2517 = vmatpush2.bf16.msra.mxu0 0
      %2518 = vmatprep.subr.bf16.mxu0 0
      %2519 = vmatpush2.bf16.msra.mxu0 0
      %2520 = vmatprep.subr.bf16.mxu0 0
      %2521 = vmatpush2.bf16.msra.mxu0 0
      %2522 = vmatprep.subr.bf16.mxu0 0
      %2523 = vmatpush2.bf16.msra.mxu0 0
      %2524 = vmatprep.subr.bf16.mxu0 0
      %2525 = vmatpush2.bf16.msra.mxu0 0
      %2526 = vmatprep.subr.bf16.mxu0 0
      %2527 = vmatpush2.bf16.msra.mxu0 0
      %2528 = vmatprep.subr.bf16.mxu0 0
      %2529 = vmatpush2.bf16.msra.mxu0 0
      %2530 = vmatprep.subr.bf16.mxu0 0
      %2531 = vmatpush2.bf16.msra.mxu0 0
      %2532 = vmatprep.mubr.bf16.mxu0 0
      %2533 = vmatmul.mubr.bf16.gmra.mxu0 %v2453
      %v2534 = vpop.f32.mrf.mxu0
      %v2535 = vadd.f32 0.0, %v2534
      %v2536 = vpop.f32.mrf.mxu0
      %v2537 = vpop.f32.mrf.mxu0
      %v2538 = vadd.f32 0.0, %v2537
      %v2539 = vpop.f32.mrf.mxu0
      %2540 = vmatprep.mubr.bf16.mxu0 0
      %2541 = vmatmul.mubr.bf16.gmra.mxu0 %v2456
      %v2542 = vpop.f32.mrf.mxu0
      %v2543 = vadd.f32 0.0, %v2542
      %v2544 = vpop.f32.mrf.mxu0
      %v2545 = vpop.f32.mrf.mxu0
      %v2546 = vadd.f32 0.0, %v2545
      %v2547 = vpop.f32.mrf.mxu0
      %2548 = vmatprep.mubr.bf16.mxu0 0
      %2549 = vmatmul.mubr.bf16.gmra.mxu0 %v2459
      %v2550 = vpop.f32.mrf.mxu0
      %v2551 = vadd.f32 0.0, %v2550
      %v2552 = vpop.f32.mrf.mxu0
      %v2553 = vpop.f32.mrf.mxu0
      %v2554 = vadd.f32 0.0, %v2553
      %v2555 = vpop.f32.mrf.mxu0
      %2556 = vmatprep.mubr.bf16.mxu0 0
      %2557 = vmatmul.mubr.bf16.gmra.mxu0 %v2462
      %v2558 = vpop.f32.mrf.mxu0
      %v2559 = vadd.f32 0.0, %v2558
      %v2560 = vpop.f32.mrf.mxu0
      %v2561 = vpop.f32.mrf.mxu0
      %v2562 = vadd.f32 0.0, %v2561
      %v2563 = vpop.f32.mrf.mxu0
      %2564 = vmatprep.mubr.bf16.mxu0 0
      %2565 = vmatmul.mubr.bf16.gmra.mxu0 %v2465
      %v2566 = vpop.f32.mrf.mxu0
      %v2567 = vadd.f32 0.0, %v2566
      %v2568 = vpop.f32.mrf.mxu0
      %v2569 = vpop.f32.mrf.mxu0
      %v2570 = vadd.f32 0.0, %v2569
      %v2571 = vpop.f32.mrf.mxu0
      %2572 = vmatprep.mubr.bf16.mxu0 0
      %2573 = vmatmul.mubr.bf16.gmra.mxu0 %v2468
      %v2574 = vpop.f32.mrf.mxu0
      %v2575 = vadd.f32 0.0, %v2574
      %v2576 = vpop.f32.mrf.mxu0
      %v2577 = vpop.f32.mrf.mxu0
      %v2578 = vadd.f32 0.0, %v2577
      %v2579 = vpop.f32.mrf.mxu0
      %2580 = vmatprep.mubr.bf16.mxu0 0
      %2581 = vmatmul.mubr.bf16.gmra.mxu0 %v2471
      %v2582 = vpop.f32.mrf.mxu0
      %v2583 = vadd.f32 0.0, %v2582
      %v2584 = vpop.f32.mrf.mxu0
      %v2585 = vpop.f32.mrf.mxu0
      %v2586 = vadd.f32 0.0, %v2585
      %v2587 = vpop.f32.mrf.mxu0
      %2588 = vmatprep.mubr.bf16.mxu0 0
      %2589 = vmatmul.mubr.bf16.gmra.mxu0 %v2474
      %v2590 = vpop.f32.mrf.mxu0
      %v2591 = vadd.f32 0.0, %v2590
      %v2592 = vpop.f32.mrf.mxu0
      %v2593 = vpop.f32.mrf.mxu0
      %v2594 = vadd.f32 0.0, %v2593
      %v2595 = vpop.f32.mrf.mxu0
      %2596 = vmatprep.mubr.bf16.mxu0 0
      %2597 = vmatmul.mubr.bf16.gmra.mxu0 %v2477
      %v2598 = vpop.f32.mrf.mxu0
      %v2599 = vadd.f32 0.0, %v2598
      %v2600 = vpop.f32.mrf.mxu0
      %v2601 = vpop.f32.mrf.mxu0
      %v2602 = vadd.f32 0.0, %v2601
      %v2603 = vpop.f32.mrf.mxu0
      %2604 = vmatprep.mubr.bf16.mxu0 0
      %2605 = vmatmul.mubr.bf16.gmra.mxu0 %v2480
      %v2606 = vpop.f32.mrf.mxu0
      %v2607 = vadd.f32 0.0, %v2606
      %v2608 = vpop.f32.mrf.mxu0
      %v2609 = vpop.f32.mrf.mxu0
      %v2610 = vadd.f32 0.0, %v2609
      %v2611 = vpop.f32.mrf.mxu0
      %2612 = vmatprep.mubr.bf16.mxu0 0
      %2613 = vmatmul.mubr.bf16.gmra.mxu0 %v2483
      %v2614 = vpop.f32.mrf.mxu0
      %v2615 = vadd.f32 0.0, %v2614
      %v2616 = vpop.f32.mrf.mxu0
      %v2617 = vpop.f32.mrf.mxu0
      %v2618 = vadd.f32 0.0, %v2617
      %v2619 = vpop.f32.mrf.mxu0
      %2620 = vmatprep.mubr.bf16.mxu0 0
      %2621 = vmatmul.mubr.bf16.gmra.mxu0 %v2486
      %v2622 = vpop.f32.mrf.mxu0
      %v2623 = vadd.f32 0.0, %v2622
      %v2624 = vpop.f32.mrf.mxu0
      %v2625 = vpop.f32.mrf.mxu0
      %v2626 = vadd.f32 0.0, %v2625
      %v2627 = vpop.f32.mrf.mxu0
      %2628 = vmatprep.mubr.bf16.mxu0 0
      %2629 = vmatmul.mubr.bf16.gmra.mxu0 %v2489
      %v2630 = vpop.f32.mrf.mxu0
      %v2631 = vadd.f32 0.0, %v2630
      %v2632 = vpop.f32.mrf.mxu0
      %v2633 = vpop.f32.mrf.mxu0
      %v2634 = vadd.f32 0.0, %v2633
      %v2635 = vpop.f32.mrf.mxu0
      %2636 = vmatprep.mubr.bf16.mxu0 0
      %2637 = vmatmul.mubr.bf16.gmra.mxu0 %v2492
      %v2638 = vpop.f32.mrf.mxu0
      %v2639 = vadd.f32 0.0, %v2638
      %v2640 = vpop.f32.mrf.mxu0
      %v2641 = vpop.f32.mrf.mxu0
      %v2642 = vadd.f32 0.0, %v2641
      %v2643 = vpop.f32.mrf.mxu0
      %2644 = vmatprep.mubr.bf16.mxu0 0
      %2645 = vmatmul.mubr.bf16.gmra.mxu0 %v2495
      %v2646 = vpop.f32.mrf.mxu0
      %v2647 = vadd.f32 0.0, %v2646
      %v2648 = vpop.f32.mrf.mxu0
      %v2649 = vpop.f32.mrf.mxu0
      %v2650 = vadd.f32 0.0, %v2649
      %v2651 = vpop.f32.mrf.mxu0
      %2652 = vmatprep.mubr.bf16.mxu0 0
      %2653 = vmatmul.mubr.bf16.gmra.mxu0 %v2498
      %v2654 = vpop.f32.mrf.mxu0
      %v2655 = vadd.f32 0.0, %v2654
      %v2656 = vpop.f32.mrf.mxu0
      %v2657 = vpop.f32.mrf.mxu0
      %v2658 = vadd.f32 0.0, %v2657
      %v2659 = vpop.f32.mrf.mxu0
      %2660 = vdwg.mxu0
      %v2661 = vadd.f32 %v2332, %v2535
      %v2662 = vadd.f32 %v2333, %v2538
      %v2663 = vadd.f32 %v2334, %v2543
      %v2664 = vadd.f32 %v2335, %v2546
      %v2665 = vadd.f32 %v2336, %v2551
      %v2666 = vadd.f32 %v2337, %v2554
      %v2667 = vadd.f32 %v2338, %v2559
      %v2668 = vadd.f32 %v2339, %v2562
      %v2669 = vadd.f32 %v2340, %v2567
      %v2670 = vadd.f32 %v2341, %v2570
      %v2671 = vadd.f32 %v2342, %v2575
      %v2672 = vadd.f32 %v2343, %v2578
      %v2673 = vadd.f32 %v2344, %v2583
      %v2674 = vadd.f32 %v2345, %v2586
      %v2675 = vadd.f32 %v2346, %v2591
      %v2676 = vadd.f32 %v2347, %v2594
      %v2677 = vadd.f32 %v2348, %v2599
      %v2678 = vadd.f32 %v2349, %v2602
      %v2679 = vadd.f32 %v2350, %v2607
      %v2680 = vadd.f32 %v2351, %v2610
      %v2681 = vadd.f32 %v2352, %v2615
      %v2682 = vadd.f32 %v2353, %v2618
      %v2683 = vadd.f32 %v2354, %v2623
      %v2684 = vadd.f32 %v2355, %v2626
      %v2685 = vadd.f32 %v2356, %v2631
      %v2686 = vadd.f32 %v2357, %v2634
      %v2687 = vadd.f32 %v2358, %v2639
      %v2688 = vadd.f32 %v2359, %v2642
      %v2689 = vadd.f32 %v2360, %v2647
      %v2690 = vadd.f32 %v2361, %v2650
      %v2691 = vadd.f32 %v2362, %v2655
      %v2692 = vadd.f32 %v2363, %v2658
      %v2693 = vld [vmem:[#allocation2 + $0x18] sm:$0xff]
      %v2694 = vld [vmem:[#allocation2 + $0x20] sm:$0xff]
      %v2695 = vld [vmem:[#allocation2 + $0x28] sm:$0xff]
      %v2696 = vld [vmem:[#allocation2 + $0x30] sm:$0xff]
      %v2697 = vld [vmem:[#allocation2 + $0x38] sm:$0xff]
      %v2698 = vld [vmem:[#allocation2 + $0x40] sm:$0xff]
      %v2699 = vld [vmem:[#allocation2 + $0x48] sm:$0xff]
      %v2700 = vld [vmem:[#allocation2 + $0x50] sm:$0xff]
      %v2701 = vld [vmem:[#allocation2 + $0x58] sm:$0xff]
      %v2702 = vld [vmem:[#allocation2 + $0x60] sm:$0xff]
      %v2703 = vld [vmem:[#allocation2 + $0x68] sm:$0xff]
      %v2704 = vld [vmem:[#allocation2 + $0x70] sm:$0xff]
      %v2705 = vld [vmem:[#allocation2 + $0x78] sm:$0xff]
      %v2706 = vld [vmem:[#allocation2 + $0x80] sm:$0xff]
      %v2707 = vld [vmem:[#allocation2 + $0x88] sm:$0xff]
      %v2708 = vld [vmem:[#allocation2 + $0x90] sm:$0xff]
      %v2709 = vld [vmem:[#allocation2 + $0x98] sm:$0xff]
      %v2710 = vld [vmem:[#allocation2 + $0xa0] sm:$0xff]
      %v2711 = vld [vmem:[#allocation2 + $0xa8] sm:$0xff]
      %v2712 = vld [vmem:[#allocation2 + $0xb0] sm:$0xff]
      %v2713 = vld [vmem:[#allocation2 + $0xb8] sm:$0xff]
      %v2714 = vld [vmem:[#allocation2 + $0xc0] sm:$0xff]
      %v2715 = vld [vmem:[#allocation2 + $0xc8] sm:$0xff]
      %v2716 = vld [vmem:[#allocation2 + $0xd0] sm:$0xff]
      %v2717 = vld [vmem:[#allocation2 + $0xd8] sm:$0xff]
      %v2718 = vld [vmem:[#allocation2 + $0xe0] sm:$0xff]
      %v2719 = vld [vmem:[#allocation2 + $0xe8] sm:$0xff]
      %v2720 = vld [vmem:[#allocation2 + $0xf0] sm:$0xff]
      %v2721 = vld [vmem:[#allocation2 + $0xf8] sm:$0xff]
      %v2722 = vld [vmem:[#allocation2 + $0x100] sm:$0xff]
      %v2723 = vld [vmem:[#allocation2 + $0x108] sm:$0xff]
      %v2724 = vld [vmem:[#allocation2 + $0x110] sm:$0xff]
      %v2725 = vpack.c.bf16 %v2694, %v2693
      %v2726 = vpack.c.bf16 %v2696, %v2695
      %v2727 = vpack.c.bf16 %v2698, %v2697
      %v2728 = vpack.c.bf16 %v2700, %v2699
      %v2729 = vpack.c.bf16 %v2702, %v2701
      %v2730 = vpack.c.bf16 %v2704, %v2703
      %v2731 = vpack.c.bf16 %v2706, %v2705
      %v2732 = vpack.c.bf16 %v2708, %v2707
      %v2733 = vpack.c.bf16 %v2710, %v2709
      %v2734 = vpack.c.bf16 %v2712, %v2711
      %v2735 = vpack.c.bf16 %v2714, %v2713
      %v2736 = vpack.c.bf16 %v2716, %v2715
      %v2737 = vpack.c.bf16 %v2718, %v2717
      %v2738 = vpack.c.bf16 %v2720, %v2719
      %v2739 = vpack.c.bf16 %v2722, %v2721
      %v2740 = vpack.c.bf16 %v2724, %v2723
      %v2741 = vld [vmem:[%s3 + $0x20] sm:$0xf]
      %v2742 = vld [vmem:[%s3 + $0x24] sm:$0xf]
      %v2745 = vunpack.c.l.b16 %v2741
      %v2746 = vunpack.c.l.b16 %v2742
      %v2747 = vpack.c.b16 %v2746, %v2745
      %v2750 = vsel %vm793, %v2725, 0
      %v2753 = vsel %vm793, %v2726, 0
      %v2756 = vsel %vm793, %v2727, 0
      %v2759 = vsel %vm793, %v2728, 0
      %v2762 = vsel %vm793, %v2729, 0
      %v2765 = vsel %vm793, %v2730, 0
      %v2768 = vsel %vm793, %v2731, 0
      %v2771 = vsel %vm793, %v2732, 0
      %v2774 = vsel %vm793, %v2733, 0
      %v2777 = vsel %vm793, %v2734, 0
      %v2780 = vsel %vm793, %v2735, 0
      %v2783 = vsel %vm793, %v2736, 0
      %v2786 = vsel %vm793, %v2737, 0
      %v2789 = vsel %vm793, %v2738, 0
      %v2792 = vsel %vm793, %v2739, 0
      %v2795 = vsel %vm793, %v2740, 0
      %2797 = vmatprep.subr.bf16.mxu0 0
      %2798 = vmatpush1.bf16.msra.mxu0 0
      %2799 = vmatprep.subr.bf16.mxu0 0
      %2800 = vmatpush1.bf16.msra.mxu0 0
      %2801 = vmatprep.subr.bf16.mxu0 0
      %2802 = vmatpush1.bf16.msra.mxu0 0
      %2803 = vmatprep.subr.bf16.mxu0 0
      %2804 = vmatpush1.bf16.msra.mxu0 0
      %2805 = vmatprep.subr.bf16.mxu0 0
      %2806 = vmatpush1.bf16.msra.mxu0 0
      %2807 = vmatprep.subr.bf16.mxu0 0
      %2808 = vmatpush1.bf16.msra.mxu0 0
      %2809 = vmatprep.subr.bf16.mxu0 0
      %2810 = vmatpush1.bf16.msra.mxu0 0
      %2811 = vmatprep.subr.bf16.mxu0 0
      %2812 = vmatpush1.bf16.msra.mxu0 %v2747
      %2813 = vmatprep.subr.bf16.mxu0 0
      %2814 = vmatpush2.bf16.msra.mxu0 0
      %2815 = vmatprep.subr.bf16.mxu0 0
      %2816 = vmatpush2.bf16.msra.mxu0 0
      %2817 = vmatprep.subr.bf16.mxu0 0
      %2818 = vmatpush2.bf16.msra.mxu0 0
      %2819 = vmatprep.subr.bf16.mxu0 0
      %2820 = vmatpush2.bf16.msra.mxu0 0
      %2821 = vmatprep.subr.bf16.mxu0 0
      %2822 = vmatpush2.bf16.msra.mxu0 0
      %2823 = vmatprep.subr.bf16.mxu0 0
      %2824 = vmatpush2.bf16.msra.mxu0 0
      %2825 = vmatprep.subr.bf16.mxu0 0
      %2826 = vmatpush2.bf16.msra.mxu0 0
      %2827 = vmatprep.subr.bf16.mxu0 0
      %2828 = vmatpush2.bf16.msra.mxu0 0
      %2829 = vmatprep.mubr.bf16.mxu0 0
      %2830 = vmatmul.mubr.bf16.gmra.mxu0 %v2750
      %v2831 = vpop.f32.mrf.mxu0
      %v2832 = vadd.f32 0.0, %v2831
      %v2833 = vpop.f32.mrf.mxu0
      %v2834 = vpop.f32.mrf.mxu0
      %v2835 = vadd.f32 0.0, %v2834
      %v2836 = vpop.f32.mrf.mxu0
      %2837 = vmatprep.mubr.bf16.mxu0 0
      %2838 = vmatmul.mubr.bf16.gmra.mxu0 %v2753
      %v2839 = vpop.f32.mrf.mxu0
      %v2840 = vadd.f32 0.0, %v2839
      %v2841 = vpop.f32.mrf.mxu0
      %v2842 = vpop.f32.mrf.mxu0
      %v2843 = vadd.f32 0.0, %v2842
      %v2844 = vpop.f32.mrf.mxu0
      %2845 = vmatprep.mubr.bf16.mxu0 0
      %2846 = vmatmul.mubr.bf16.gmra.mxu0 %v2756
      %v2847 = vpop.f32.mrf.mxu0
      %v2848 = vadd.f32 0.0, %v2847
      %v2849 = vpop.f32.mrf.mxu0
      %v2850 = vpop.f32.mrf.mxu0
      %v2851 = vadd.f32 0.0, %v2850
      %v2852 = vpop.f32.mrf.mxu0
      %2853 = vmatprep.mubr.bf16.mxu0 0
      %2854 = vmatmul.mubr.bf16.gmra.mxu0 %v2759
      %v2855 = vpop.f32.mrf.mxu0
      %v2856 = vadd.f32 0.0, %v2855
      %v2857 = vpop.f32.mrf.mxu0
      %v2858 = vpop.f32.mrf.mxu0
      %v2859 = vadd.f32 0.0, %v2858
      %v2860 = vpop.f32.mrf.mxu0
      %2861 = vmatprep.mubr.bf16.mxu0 0
      %2862 = vmatmul.mubr.bf16.gmra.mxu0 %v2762
      %v2863 = vpop.f32.mrf.mxu0
      %v2864 = vadd.f32 0.0, %v2863
      %v2865 = vpop.f32.mrf.mxu0
      %v2866 = vpop.f32.mrf.mxu0
      %v2867 = vadd.f32 0.0, %v2866
      %v2868 = vpop.f32.mrf.mxu0
      %2869 = vmatprep.mubr.bf16.mxu0 0
      %2870 = vmatmul.mubr.bf16.gmra.mxu0 %v2765
      %v2871 = vpop.f32.mrf.mxu0
      %v2872 = vadd.f32 0.0, %v2871
      %v2873 = vpop.f32.mrf.mxu0
      %v2874 = vpop.f32.mrf.mxu0
      %v2875 = vadd.f32 0.0, %v2874
      %v2876 = vpop.f32.mrf.mxu0
      %2877 = vmatprep.mubr.bf16.mxu0 0
      %2878 = vmatmul.mubr.bf16.gmra.mxu0 %v2768
      %v2879 = vpop.f32.mrf.mxu0
      %v2880 = vadd.f32 0.0, %v2879
      %v2881 = vpop.f32.mrf.mxu0
      %v2882 = vpop.f32.mrf.mxu0
      %v2883 = vadd.f32 0.0, %v2882
      %v2884 = vpop.f32.mrf.mxu0
      %2885 = vmatprep.mubr.bf16.mxu0 0
      %2886 = vmatmul.mubr.bf16.gmra.mxu0 %v2771
      %v2887 = vpop.f32.mrf.mxu0
      %v2888 = vadd.f32 0.0, %v2887
      %v2889 = vpop.f32.mrf.mxu0
      %v2890 = vpop.f32.mrf.mxu0
      %v2891 = vadd.f32 0.0, %v2890
      %v2892 = vpop.f32.mrf.mxu0
      %2893 = vmatprep.mubr.bf16.mxu0 0
      %2894 = vmatmul.mubr.bf16.gmra.mxu0 %v2774
      %v2895 = vpop.f32.mrf.mxu0
      %v2896 = vadd.f32 0.0, %v2895
      %v2897 = vpop.f32.mrf.mxu0
      %v2898 = vpop.f32.mrf.mxu0
      %v2899 = vadd.f32 0.0, %v2898
      %v2900 = vpop.f32.mrf.mxu0
      %2901 = vmatprep.mubr.bf16.mxu0 0
      %2902 = vmatmul.mubr.bf16.gmra.mxu0 %v2777
      %v2903 = vpop.f32.mrf.mxu0
      %v2904 = vadd.f32 0.0, %v2903
      %v2905 = vpop.f32.mrf.mxu0
      %v2906 = vpop.f32.mrf.mxu0
      %v2907 = vadd.f32 0.0, %v2906
      %v2908 = vpop.f32.mrf.mxu0
      %2909 = vmatprep.mubr.bf16.mxu0 0
      %2910 = vmatmul.mubr.bf16.gmra.mxu0 %v2780
      %v2911 = vpop.f32.mrf.mxu0
      %v2912 = vadd.f32 0.0, %v2911
      %v2913 = vpop.f32.mrf.mxu0
      %v2914 = vpop.f32.mrf.mxu0
      %v2915 = vadd.f32 0.0, %v2914
      %v2916 = vpop.f32.mrf.mxu0
      %2917 = vmatprep.mubr.bf16.mxu0 0
      %2918 = vmatmul.mubr.bf16.gmra.mxu0 %v2783
      %v2919 = vpop.f32.mrf.mxu0
      %v2920 = vadd.f32 0.0, %v2919
      %v2921 = vpop.f32.mrf.mxu0
      %v2922 = vpop.f32.mrf.mxu0
      %v2923 = vadd.f32 0.0, %v2922
      %v2924 = vpop.f32.mrf.mxu0
      %2925 = vmatprep.mubr.bf16.mxu0 0
      %2926 = vmatmul.mubr.bf16.gmra.mxu0 %v2786
      %v2927 = vpop.f32.mrf.mxu0
      %v2928 = vadd.f32 0.0, %v2927
      %v2929 = vpop.f32.mrf.mxu0
      %v2930 = vpop.f32.mrf.mxu0
      %v2931 = vadd.f32 0.0, %v2930
      %v2932 = vpop.f32.mrf.mxu0
      %2933 = vmatprep.mubr.bf16.mxu0 0
      %2934 = vmatmul.mubr.bf16.gmra.mxu0 %v2789
      %v2935 = vpop.f32.mrf.mxu0
      %v2936 = vadd.f32 0.0, %v2935
      %v2937 = vpop.f32.mrf.mxu0
      %v2938 = vpop.f32.mrf.mxu0
      %v2939 = vadd.f32 0.0, %v2938
      %v2940 = vpop.f32.mrf.mxu0
      %2941 = vmatprep.mubr.bf16.mxu0 0
      %2942 = vmatmul.mubr.bf16.gmra.mxu0 %v2792
      %v2943 = vpop.f32.mrf.mxu0
      %v2944 = vadd.f32 0.0, %v2943
      %v2945 = vpop.f32.mrf.mxu0
      %v2946 = vpop.f32.mrf.mxu0
      %v2947 = vadd.f32 0.0, %v2946
      %v2948 = vpop.f32.mrf.mxu0
      %2949 = vmatprep.mubr.bf16.mxu0 0
      %2950 = vmatmul.mubr.bf16.gmra.mxu0 %v2795
      %v2951 = vpop.f32.mrf.mxu0
      %v2952 = vadd.f32 0.0, %v2951
      %v2953 = vpop.f32.mrf.mxu0
      %v2954 = vpop.f32.mrf.mxu0
      %v2955 = vadd.f32 0.0, %v2954
      %v2956 = vpop.f32.mrf.mxu0
      %2957 = vdwg.mxu0
      %v2958 = vadd.f32 %v2661, %v2832
      %v2959 = vadd.f32 %v2662, %v2835
      %v2960 = vadd.f32 %v2663, %v2840
      %v2961 = vadd.f32 %v2664, %v2843
      %v2962 = vadd.f32 %v2665, %v2848
      %v2963 = vadd.f32 %v2666, %v2851
      %v2964 = vadd.f32 %v2667, %v2856
      %v2965 = vadd.f32 %v2668, %v2859
      %v2966 = vadd.f32 %v2669, %v2864
      %v2967 = vadd.f32 %v2670, %v2867
      %v2968 = vadd.f32 %v2671, %v2872
      %v2969 = vadd.f32 %v2672, %v2875
      %v2970 = vadd.f32 %v2673, %v2880
      %v2971 = vadd.f32 %v2674, %v2883
      %v2972 = vadd.f32 %v2675, %v2888
      %v2973 = vadd.f32 %v2676, %v2891
      %v2974 = vadd.f32 %v2677, %v2896
      %v2975 = vadd.f32 %v2678, %v2899
      %v2976 = vadd.f32 %v2679, %v2904
      %v2977 = vadd.f32 %v2680, %v2907
      %v2978 = vadd.f32 %v2681, %v2912
      %v2979 = vadd.f32 %v2682, %v2915
      %v2980 = vadd.f32 %v2683, %v2920
      %v2981 = vadd.f32 %v2684, %v2923
      %v2982 = vadd.f32 %v2685, %v2928
      %v2983 = vadd.f32 %v2686, %v2931
      %v2984 = vadd.f32 %v2687, %v2936
      %v2985 = vadd.f32 %v2688, %v2939
      %v2986 = vadd.f32 %v2689, %v2944
      %v2987 = vadd.f32 %v2690, %v2947
      %v2988 = vadd.f32 %v2691, %v2952
      %v2989 = vadd.f32 %v2692, %v2955
      %v2990 = vld [vmem:[#allocation2 + $0x19] sm:$0xff]
      %v2991 = vld [vmem:[#allocation2 + $0x21] sm:$0xff]
      %v2992 = vld [vmem:[#allocation2 + $0x29] sm:$0xff]
      %v2993 = vld [vmem:[#allocation2 + $0x31] sm:$0xff]
      %v2994 = vld [vmem:[#allocation2 + $0x39] sm:$0xff]
      %v2995 = vld [vmem:[#allocation2 + $0x41] sm:$0xff]
      %v2996 = vld [vmem:[#allocation2 + $0x49] sm:$0xff]
      %v2997 = vld [vmem:[#allocation2 + $0x51] sm:$0xff]
      %v2998 = vld [vmem:[#allocation2 + $0x59] sm:$0xff]
      %v2999 = vld [vmem:[#allocation2 + $0x61] sm:$0xff]
      %v3000 = vld [vmem:[#allocation2 + $0x69] sm:$0xff]
      %v3001 = vld [vmem:[#allocation2 + $0x71] sm:$0xff]
      %v3002 = vld [vmem:[#allocation2 + $0x79] sm:$0xff]
      %v3003 = vld [vmem:[#allocation2 + $0x81] sm:$0xff]
      %v3004 = vld [vmem:[#allocation2 + $0x89] sm:$0xff]
      %v3005 = vld [vmem:[#allocation2 + $0x91] sm:$0xff]
      %v3006 = vld [vmem:[#allocation2 + $0x99] sm:$0xff]
      %v3007 = vld [vmem:[#allocation2 + $0xa1] sm:$0xff]
      %v3008 = vld [vmem:[#allocation2 + $0xa9] sm:$0xff]
      %v3009 = vld [vmem:[#allocation2 + $0xb1] sm:$0xff]
      %v3010 = vld [vmem:[#allocation2 + $0xb9] sm:$0xff]
      %v3011 = vld [vmem:[#allocation2 + $0xc1] sm:$0xff]
      %v3012 = vld [vmem:[#allocation2 + $0xc9] sm:$0xff]
      %v3013 = vld [vmem:[#allocation2 + $0xd1] sm:$0xff]
      %v3014 = vld [vmem:[#allocation2 + $0xd9] sm:$0xff]
      %v3015 = vld [vmem:[#allocation2 + $0xe1] sm:$0xff]
      %v3016 = vld [vmem:[#allocation2 + $0xe9] sm:$0xff]
      %v3017 = vld [vmem:[#allocation2 + $0xf1] sm:$0xff]
      %v3018 = vld [vmem:[#allocation2 + $0xf9] sm:$0xff]
      %v3019 = vld [vmem:[#allocation2 + $0x101] sm:$0xff]
      %v3020 = vld [vmem:[#allocation2 + $0x109] sm:$0xff]
      %v3021 = vld [vmem:[#allocation2 + $0x111] sm:$0xff]
      %v3022 = vsel %vm2035, %v2990, 0.0
      %v3023 = vsel %vm2036, %v2991, 0.0
      %v3024 = vsel %vm2037, %v2992, 0.0
      %v3025 = vsel %vm2038, %v2993, 0.0
      %v3026 = vsel %vm2039, %v2994, 0.0
      %v3027 = vsel %vm2040, %v2995, 0.0
      %v3028 = vsel %vm2041, %v2996, 0.0
      %v3029 = vsel %vm2042, %v2997, 0.0
      %v3030 = vsel %vm2043, %v2998, 0.0
      %v3031 = vsel %vm2044, %v2999, 0.0
      %v3032 = vsel %vm2045, %v3000, 0.0
      %v3033 = vsel %vm2046, %v3001, 0.0
      %v3034 = vsel %vm2047, %v3002, 0.0
      %v3035 = vsel %vm2048, %v3003, 0.0
      %v3036 = vsel %vm2049, %v3004, 0.0
      %v3037 = vsel %vm2050, %v3005, 0.0
      %v3038 = vsel %vm2051, %v3006, 0.0
      %v3039 = vsel %vm2052, %v3007, 0.0
      %v3040 = vsel %vm2053, %v3008, 0.0
      %v3041 = vsel %vm2054, %v3009, 0.0
      %v3042 = vsel %vm2055, %v3010, 0.0
      %v3043 = vsel %vm2056, %v3011, 0.0
      %v3044 = vsel %vm2057, %v3012, 0.0
      %v3045 = vsel %vm2058, %v3013, 0.0
      %v3046 = vsel %vm2059, %v3014, 0.0
      %v3047 = vsel %vm2060, %v3015, 0.0
      %v3048 = vsel %vm2061, %v3016, 0.0
      %v3049 = vsel %vm2062, %v3017, 0.0
      %v3050 = vsel %vm2063, %v3018, 0.0
      %v3051 = vsel %vm2064, %v3019, 0.0
      %v3052 = vsel %vm2065, %v3020, 0.0
      %v3053 = vsel %vm2066, %v3021, 0.0
      %v3054 = vpack.c.bf16 %v3023, %v3022
      %v3055 = vpack.c.bf16 %v3025, %v3024
      %v3056 = vpack.c.bf16 %v3027, %v3026
      %v3057 = vpack.c.bf16 %v3029, %v3028
      %v3058 = vpack.c.bf16 %v3031, %v3030
      %v3059 = vpack.c.bf16 %v3033, %v3032
      %v3060 = vpack.c.bf16 %v3035, %v3034
      %v3061 = vpack.c.bf16 %v3037, %v3036
      %v3062 = vpack.c.bf16 %v3039, %v3038
      %v3063 = vpack.c.bf16 %v3041, %v3040
      %v3064 = vpack.c.bf16 %v3043, %v3042
      %v3065 = vpack.c.bf16 %v3045, %v3044
      %v3066 = vpack.c.bf16 %v3047, %v3046
      %v3067 = vpack.c.bf16 %v3049, %v3048
      %v3068 = vpack.c.bf16 %v3051, %v3050
      %v3069 = vpack.c.bf16 %v3053, %v3052
      %v3070 = vld [vmem:[%s3 + $0x28] sm:$0xf]
      %v3071 = vld [vmem:[%s3 + $0x2c] sm:$0xf]
      %v3074 = vunpack.c.l.b16 %v3070
      %v3075 = vunpack.c.l.b16 %v3071
      %v3076 = vpack.c.b16 %v3075, %v3074
      %v3079 = vsel %vm793, %v3054, 0
      %v3082 = vsel %vm793, %v3055, 0
      %v3085 = vsel %vm793, %v3056, 0
      %v3088 = vsel %vm793, %v3057, 0
      %v3091 = vsel %vm793, %v3058, 0
      %v3094 = vsel %vm793, %v3059, 0
      %v3097 = vsel %vm793, %v3060, 0
      %v3100 = vsel %vm793, %v3061, 0
      %v3103 = vsel %vm793, %v3062, 0
      %v3106 = vsel %vm793, %v3063, 0
      %v3109 = vsel %vm793, %v3064, 0
      %v3112 = vsel %vm793, %v3065, 0
      %v3115 = vsel %vm793, %v3066, 0
      %v3118 = vsel %vm793, %v3067, 0
      %v3121 = vsel %vm793, %v3068, 0
      %v3124 = vsel %vm793, %v3069, 0
      %3126 = vmatprep.subr.bf16.mxu0 0
      %3127 = vmatpush1.bf16.msra.mxu0 0
      %3128 = vmatprep.subr.bf16.mxu0 0
      %3129 = vmatpush1.bf16.msra.mxu0 0
      %3130 = vmatprep.subr.bf16.mxu0 0
      %3131 = vmatpush1.bf16.msra.mxu0 0
      %3132 = vmatprep.subr.bf16.mxu0 0
      %3133 = vmatpush1.bf16.msra.mxu0 0
      %3134 = vmatprep.subr.bf16.mxu0 0
      %3135 = vmatpush1.bf16.msra.mxu0 0
      %3136 = vmatprep.subr.bf16.mxu0 0
      %3137 = vmatpush1.bf16.msra.mxu0 0
      %3138 = vmatprep.subr.bf16.mxu0 0
      %3139 = vmatpush1.bf16.msra.mxu0 0
      %3140 = vmatprep.subr.bf16.mxu0 0
      %3141 = vmatpush1.bf16.msra.mxu0 %v3076
      %3142 = vmatprep.subr.bf16.mxu0 0
      %3143 = vmatpush2.bf16.msra.mxu0 0
      %3144 = vmatprep.subr.bf16.mxu0 0
      %3145 = vmatpush2.bf16.msra.mxu0 0
      %3146 = vmatprep.subr.bf16.mxu0 0
      %3147 = vmatpush2.bf16.msra.mxu0 0
      %3148 = vmatprep.subr.bf16.mxu0 0
      %3149 = vmatpush2.bf16.msra.mxu0 0
      %3150 = vmatprep.subr.bf16.mxu0 0
      %3151 = vmatpush2.bf16.msra.mxu0 0
      %3152 = vmatprep.subr.bf16.mxu0 0
      %3153 = vmatpush2.bf16.msra.mxu0 0
      %3154 = vmatprep.subr.bf16.mxu0 0
      %3155 = vmatpush2.bf16.msra.mxu0 0
      %3156 = vmatprep.subr.bf16.mxu0 0
      %3157 = vmatpush2.bf16.msra.mxu0 0
      %3158 = vmatprep.mubr.bf16.mxu0 0
      %3159 = vmatmul.mubr.bf16.gmra.mxu0 %v3079
      %v3160 = vpop.f32.mrf.mxu0
      %v3161 = vadd.f32 0.0, %v3160
      %v3162 = vpop.f32.mrf.mxu0
      %v3163 = vpop.f32.mrf.mxu0
      %v3164 = vadd.f32 0.0, %v3163
      %v3165 = vpop.f32.mrf.mxu0
      %3166 = vmatprep.mubr.bf16.mxu0 0
      %3167 = vmatmul.mubr.bf16.gmra.mxu0 %v3082
      %v3168 = vpop.f32.mrf.mxu0
      %v3169 = vadd.f32 0.0, %v3168
      %v3170 = vpop.f32.mrf.mxu0
      %v3171 = vpop.f32.mrf.mxu0
      %v3172 = vadd.f32 0.0, %v3171
      %v3173 = vpop.f32.mrf.mxu0
      %3174 = vmatprep.mubr.bf16.mxu0 0
      %3175 = vmatmul.mubr.bf16.gmra.mxu0 %v3085
      %v3176 = vpop.f32.mrf.mxu0
      %v3177 = vadd.f32 0.0, %v3176
      %v3178 = vpop.f32.mrf.mxu0
      %v3179 = vpop.f32.mrf.mxu0
      %v3180 = vadd.f32 0.0, %v3179
      %v3181 = vpop.f32.mrf.mxu0
      %3182 = vmatprep.mubr.bf16.mxu0 0
      %3183 = vmatmul.mubr.bf16.gmra.mxu0 %v3088
      %v3184 = vpop.f32.mrf.mxu0
      %v3185 = vadd.f32 0.0, %v3184
      %v3186 = vpop.f32.mrf.mxu0
      %v3187 = vpop.f32.mrf.mxu0
      %v3188 = vadd.f32 0.0, %v3187
      %v3189 = vpop.f32.mrf.mxu0
      %3190 = vmatprep.mubr.bf16.mxu0 0
      %3191 = vmatmul.mubr.bf16.gmra.mxu0 %v3091
      %v3192 = vpop.f32.mrf.mxu0
      %v3193 = vadd.f32 0.0, %v3192
      %v3194 = vpop.f32.mrf.mxu0
      %v3195 = vpop.f32.mrf.mxu0
      %v3196 = vadd.f32 0.0, %v3195
      %v3197 = vpop.f32.mrf.mxu0
      %3198 = vmatprep.mubr.bf16.mxu0 0
      %3199 = vmatmul.mubr.bf16.gmra.mxu0 %v3094
      %v3200 = vpop.f32.mrf.mxu0
      %v3201 = vadd.f32 0.0, %v3200
      %v3202 = vpop.f32.mrf.mxu0
      %v3203 = vpop.f32.mrf.mxu0
      %v3204 = vadd.f32 0.0, %v3203
      %v3205 = vpop.f32.mrf.mxu0
      %3206 = vmatprep.mubr.bf16.mxu0 0
      %3207 = vmatmul.mubr.bf16.gmra.mxu0 %v3097
      %v3208 = vpop.f32.mrf.mxu0
      %v3209 = vadd.f32 0.0, %v3208
      %v3210 = vpop.f32.mrf.mxu0
      %v3211 = vpop.f32.mrf.mxu0
      %v3212 = vadd.f32 0.0, %v3211
      %v3213 = vpop.f32.mrf.mxu0
      %3214 = vmatprep.mubr.bf16.mxu0 0
      %3215 = vmatmul.mubr.bf16.gmra.mxu0 %v3100
      %v3216 = vpop.f32.mrf.mxu0
      %v3217 = vadd.f32 0.0, %v3216
      %v3218 = vpop.f32.mrf.mxu0
      %v3219 = vpop.f32.mrf.mxu0
      %v3220 = vadd.f32 0.0, %v3219
      %v3221 = vpop.f32.mrf.mxu0
      %3222 = vmatprep.mubr.bf16.mxu0 0
      %3223 = vmatmul.mubr.bf16.gmra.mxu0 %v3103
      %v3224 = vpop.f32.mrf.mxu0
      %v3225 = vadd.f32 0.0, %v3224
      %v3226 = vpop.f32.mrf.mxu0
      %v3227 = vpop.f32.mrf.mxu0
      %v3228 = vadd.f32 0.0, %v3227
      %v3229 = vpop.f32.mrf.mxu0
      %3230 = vmatprep.mubr.bf16.mxu0 0
      %3231 = vmatmul.mubr.bf16.gmra.mxu0 %v3106
      %v3232 = vpop.f32.mrf.mxu0
      %v3233 = vadd.f32 0.0, %v3232
      %v3234 = vpop.f32.mrf.mxu0
      %v3235 = vpop.f32.mrf.mxu0
      %v3236 = vadd.f32 0.0, %v3235
      %v3237 = vpop.f32.mrf.mxu0
      %3238 = vmatprep.mubr.bf16.mxu0 0
      %3239 = vmatmul.mubr.bf16.gmra.mxu0 %v3109
      %v3240 = vpop.f32.mrf.mxu0
      %v3241 = vadd.f32 0.0, %v3240
      %v3242 = vpop.f32.mrf.mxu0
      %v3243 = vpop.f32.mrf.mxu0
      %v3244 = vadd.f32 0.0, %v3243
      %v3245 = vpop.f32.mrf.mxu0
      %3246 = vmatprep.mubr.bf16.mxu0 0
      %3247 = vmatmul.mubr.bf16.gmra.mxu0 %v3112
      %v3248 = vpop.f32.mrf.mxu0
      %v3249 = vadd.f32 0.0, %v3248
      %v3250 = vpop.f32.mrf.mxu0
      %v3251 = vpop.f32.mrf.mxu0
      %v3252 = vadd.f32 0.0, %v3251
      %v3253 = vpop.f32.mrf.mxu0
      %3254 = vmatprep.mubr.bf16.mxu0 0
      %3255 = vmatmul.mubr.bf16.gmra.mxu0 %v3115
      %v3256 = vpop.f32.mrf.mxu0
      %v3257 = vadd.f32 0.0, %v3256
      %v3258 = vpop.f32.mrf.mxu0
      %v3259 = vpop.f32.mrf.mxu0
      %v3260 = vadd.f32 0.0, %v3259
      %v3261 = vpop.f32.mrf.mxu0
      %3262 = vmatprep.mubr.bf16.mxu0 0
      %3263 = vmatmul.mubr.bf16.gmra.mxu0 %v3118
      %v3264 = vpop.f32.mrf.mxu0
      %v3265 = vadd.f32 0.0, %v3264
      %v3266 = vpop.f32.mrf.mxu0
      %v3267 = vpop.f32.mrf.mxu0
      %v3268 = vadd.f32 0.0, %v3267
      %v3269 = vpop.f32.mrf.mxu0
      %3270 = vmatprep.mubr.bf16.mxu0 0
      %3271 = vmatmul.mubr.bf16.gmra.mxu0 %v3121
      %v3272 = vpop.f32.mrf.mxu0
      %v3273 = vadd.f32 0.0, %v3272
      %v3274 = vpop.f32.mrf.mxu0
      %v3275 = vpop.f32.mrf.mxu0
      %v3276 = vadd.f32 0.0, %v3275
      %v3277 = vpop.f32.mrf.mxu0
      %3278 = vmatprep.mubr.bf16.mxu0 0
      %3279 = vmatmul.mubr.bf16.gmra.mxu0 %v3124
      %v3280 = vpop.f32.mrf.mxu0
      %v3281 = vadd.f32 0.0, %v3280
      %v3282 = vpop.f32.mrf.mxu0
      %v3283 = vpop.f32.mrf.mxu0
      %v3284 = vadd.f32 0.0, %v3283
      %v3285 = vpop.f32.mrf.mxu0
      %3286 = vdwg.mxu0
      %v3287 = vadd.f32 %v2958, %v3161
      %v3288 = vadd.f32 %v2959, %v3164
      %v3289 = vadd.f32 %v2960, %v3169
      %v3290 = vadd.f32 %v2961, %v3172
      %v3291 = vadd.f32 %v2962, %v3177
      %v3292 = vadd.f32 %v2963, %v3180
      %v3293 = vadd.f32 %v2964, %v3185
      %v3294 = vadd.f32 %v2965, %v3188
      %v3295 = vadd.f32 %v2966, %v3193
      %v3296 = vadd.f32 %v2967, %v3196
      %v3297 = vadd.f32 %v2968, %v3201
      %v3298 = vadd.f32 %v2969, %v3204
      %v3299 = vadd.f32 %v2970, %v3209
      %v3300 = vadd.f32 %v2971, %v3212
      %v3301 = vadd.f32 %v2972, %v3217
      %v3302 = vadd.f32 %v2973, %v3220
      %v3303 = vadd.f32 %v2974, %v3225
      %v3304 = vadd.f32 %v2975, %v3228
      %v3305 = vadd.f32 %v2976, %v3233
      %v3306 = vadd.f32 %v2977, %v3236
      %v3307 = vadd.f32 %v2978, %v3241
      %v3308 = vadd.f32 %v2979, %v3244
      %v3309 = vadd.f32 %v2980, %v3249
      %v3310 = vadd.f32 %v2981, %v3252
      %v3311 = vadd.f32 %v2982, %v3257
      %v3312 = vadd.f32 %v2983, %v3260
      %v3313 = vadd.f32 %v2984, %v3265
      %v3314 = vadd.f32 %v2985, %v3268
      %v3315 = vadd.f32 %v2986, %v3273
      %v3316 = vadd.f32 %v2987, %v3276
      %v3317 = vadd.f32 %v2988, %v3281
      %v3318 = vadd.f32 %v2989, %v3284
      %v3319 = vld [vmem:[#allocation2 + $0x27] sm:$0xff]
      %v3320 = vld [vmem:[#allocation2 + $0x2f] sm:$0xff]
      %v3321 = vld [vmem:[#allocation2 + $0x37] sm:$0xff]
      %v3322 = vld [vmem:[#allocation2 + $0x3f] sm:$0xff]
      %v3323 = vld [vmem:[#allocation2 + $0x47] sm:$0xff]
      %v3324 = vld [vmem:[#allocation2 + $0x4f] sm:$0xff]
      %v3325 = vld [vmem:[#allocation2 + $0x57] sm:$0xff]
      %v3326 = vld [vmem:[#allocation2 + $0x5f] sm:$0xff]
      %v3327 = vld [vmem:[#allocation2 + $0x67] sm:$0xff]
      %v3328 = vld [vmem:[#allocation2 + $0x6f] sm:$0xff]
      %v3329 = vld [vmem:[#allocation2 + $0x77] sm:$0xff]
      %v3330 = vld [vmem:[#allocation2 + $0x7f] sm:$0xff]
      %v3331 = vld [vmem:[#allocation2 + $0x87] sm:$0xff]
      %v3332 = vld [vmem:[#allocation2 + $0x8f] sm:$0xff]
      %v3333 = vld [vmem:[#allocation2 + $0x97] sm:$0xff]
      %v3334 = vld [vmem:[#allocation2 + $0x9f] sm:$0xff]
      %v3335 = vld [vmem:[#allocation2 + $0xa7] sm:$0xff]
      %v3336 = vld [vmem:[#allocation2 + $0xaf] sm:$0xff]
      %v3337 = vld [vmem:[#allocation2 + $0xb7] sm:$0xff]
      %v3338 = vld [vmem:[#allocation2 + $0xbf] sm:$0xff]
      %v3339 = vld [vmem:[#allocation2 + $0xc7] sm:$0xff]
      %v3340 = vld [vmem:[#allocation2 + $0xcf] sm:$0xff]
      %v3341 = vld [vmem:[#allocation2 + $0xd7] sm:$0xff]
      %v3342 = vld [vmem:[#allocation2 + $0xdf] sm:$0xff]
      %v3343 = vld [vmem:[#allocation2 + $0xe7] sm:$0xff]
      %v3344 = vld [vmem:[#allocation2 + $0xef] sm:$0xff]
      %v3345 = vld [vmem:[#allocation2 + $0xf7] sm:$0xff]
      %v3346 = vld [vmem:[#allocation2 + $0xff] sm:$0xff]
      %v3347 = vld [vmem:[#allocation2 + $0x107] sm:$0xff]
      %v3348 = vld [vmem:[#allocation2 + $0x10f] sm:$0xff]
      %v3349 = vld [vmem:[#allocation2 + $0x117] sm:$0xff]
      %v3350 = vld [vmem:[#allocation2 + $0x11f] sm:$0xff]
      %v3351 = vsel %vm1409, %v3319, 0.0
      %v3352 = vsel %vm1410, %v3320, 0.0
      %v3353 = vsel %vm1411, %v3321, 0.0
      %v3354 = vsel %vm1412, %v3322, 0.0
      %v3355 = vsel %vm1413, %v3323, 0.0
      %v3356 = vsel %vm1414, %v3324, 0.0
      %v3357 = vsel %vm1415, %v3325, 0.0
      %v3358 = vsel %vm1416, %v3326, 0.0
      %v3359 = vsel %vm1417, %v3327, 0.0
      %v3360 = vsel %vm1418, %v3328, 0.0
      %v3361 = vsel %vm1419, %v3329, 0.0
      %v3362 = vsel %vm1420, %v3330, 0.0
      %v3363 = vsel %vm1421, %v3331, 0.0
      %v3364 = vsel %vm1422, %v3332, 0.0
      %v3365 = vsel %vm1423, %v3333, 0.0
      %v3366 = vsel %vm1424, %v3334, 0.0
      %v3367 = vsel %vm1425, %v3335, 0.0
      %v3368 = vsel %vm1426, %v3336, 0.0
      %v3369 = vsel %vm1427, %v3337, 0.0
      %v3370 = vsel %vm1428, %v3338, 0.0
      %v3371 = vsel %vm1429, %v3339, 0.0
      %v3372 = vsel %vm1430, %v3340, 0.0
      %v3373 = vsel %vm1431, %v3341, 0.0
      %v3374 = vsel %vm1432, %v3342, 0.0
      %v3375 = vsel %vm1433, %v3343, 0.0
      %v3376 = vsel %vm1434, %v3344, 0.0
      %v3377 = vsel %vm1435, %v3345, 0.0
      %v3378 = vsel %vm1436, %v3346, 0.0
      %v3379 = vsel %vm1437, %v3347, 0.0
      %v3380 = vsel %vm1438, %v3348, 0.0
      %v3381 = vsel %vm1439, %v3349, 0.0
      %v3382 = vsel %vm1440, %v3350, 0.0
      %v3383 = vpack.c.bf16 %v3352, %v3351
      %v3384 = vpack.c.bf16 %v3354, %v3353
      %v3385 = vpack.c.bf16 %v3356, %v3355
      %v3386 = vpack.c.bf16 %v3358, %v3357
      %v3387 = vpack.c.bf16 %v3360, %v3359
      %v3388 = vpack.c.bf16 %v3362, %v3361
      %v3389 = vpack.c.bf16 %v3364, %v3363
      %v3390 = vpack.c.bf16 %v3366, %v3365
      %v3391 = vpack.c.bf16 %v3368, %v3367
      %v3392 = vpack.c.bf16 %v3370, %v3369
      %v3393 = vpack.c.bf16 %v3372, %v3371
      %v3394 = vpack.c.bf16 %v3374, %v3373
      %v3395 = vpack.c.bf16 %v3376, %v3375
      %v3396 = vpack.c.bf16 %v3378, %v3377
      %v3397 = vpack.c.bf16 %v3380, %v3379
      %v3398 = vpack.c.bf16 %v3382, %v3381
      %v3399 = vld [vmem:[%s3 + $0x30] sm:$0xf]
      %v3400 = vld [vmem:[%s3 + $0x34] sm:$0xf]
      %v3403 = vunpack.c.l.b16 %v3399
      %v3404 = vunpack.c.l.b16 %v3400
      %v3405 = vpack.c.b16 %v3404, %v3403
      %v3408 = vsel %vm793, %v3383, 0
      %v3411 = vsel %vm793, %v3384, 0
      %v3414 = vsel %vm793, %v3385, 0
      %v3417 = vsel %vm793, %v3386, 0
      %v3420 = vsel %vm793, %v3387, 0
      %v3423 = vsel %vm793, %v3388, 0
      %v3426 = vsel %vm793, %v3389, 0
      %v3429 = vsel %vm793, %v3390, 0
      %v3432 = vsel %vm793, %v3391, 0
      %v3435 = vsel %vm793, %v3392, 0
      %v3438 = vsel %vm793, %v3393, 0
      %v3441 = vsel %vm793, %v3394, 0
      %v3444 = vsel %vm793, %v3395, 0
      %v3447 = vsel %vm793, %v3396, 0
      %v3450 = vsel %vm793, %v3397, 0
      %v3453 = vsel %vm793, %v3398, 0
      %3455 = vmatprep.subr.bf16.mxu0 0
      %3456 = vmatpush1.bf16.msra.mxu0 0
      %3457 = vmatprep.subr.bf16.mxu0 0
      %3458 = vmatpush1.bf16.msra.mxu0 0
      %3459 = vmatprep.subr.bf16.mxu0 0
      %3460 = vmatpush1.bf16.msra.mxu0 0
      %3461 = vmatprep.subr.bf16.mxu0 0
      %3462 = vmatpush1.bf16.msra.mxu0 0
      %3463 = vmatprep.subr.bf16.mxu0 0
      %3464 = vmatpush1.bf16.msra.mxu0 0
      %3465 = vmatprep.subr.bf16.mxu0 0
      %3466 = vmatpush1.bf16.msra.mxu0 0
      %3467 = vmatprep.subr.bf16.mxu0 0
      %3468 = vmatpush1.bf16.msra.mxu0 0
      %3469 = vmatprep.subr.bf16.mxu0 0
      %3470 = vmatpush1.bf16.msra.mxu0 %v3405
      %3471 = vmatprep.subr.bf16.mxu0 0
      %3472 = vmatpush2.bf16.msra.mxu0 0
      %3473 = vmatprep.subr.bf16.mxu0 0
      %3474 = vmatpush2.bf16.msra.mxu0 0
      %3475 = vmatprep.subr.bf16.mxu0 0
      %3476 = vmatpush2.bf16.msra.mxu0 0
      %3477 = vmatprep.subr.bf16.mxu0 0
      %3478 = vmatpush2.bf16.msra.mxu0 0
      %3479 = vmatprep.subr.bf16.mxu0 0
      %3480 = vmatpush2.bf16.msra.mxu0 0
      %3481 = vmatprep.subr.bf16.mxu0 0
      %3482 = vmatpush2.bf16.msra.mxu0 0
      %3483 = vmatprep.subr.bf16.mxu0 0
      %3484 = vmatpush2.bf16.msra.mxu0 0
      %3485 = vmatprep.subr.bf16.mxu0 0
      %3486 = vmatpush2.bf16.msra.mxu0 0
      %3487 = vmatprep.mubr.bf16.mxu0 0
      %3488 = vmatmul.mubr.bf16.gmra.mxu0 %v3408
      %v3489 = vpop.f32.mrf.mxu0
      %v3490 = vadd.f32 0.0, %v3489
      %v3491 = vpop.f32.mrf.mxu0
      %v3492 = vpop.f32.mrf.mxu0
      %v3493 = vadd.f32 0.0, %v3492
      %v3494 = vpop.f32.mrf.mxu0
      %3495 = vmatprep.mubr.bf16.mxu0 0
      %3496 = vmatmul.mubr.bf16.gmra.mxu0 %v3411
      %v3497 = vpop.f32.mrf.mxu0
      %v3498 = vadd.f32 0.0, %v3497
      %v3499 = vpop.f32.mrf.mxu0
      %v3500 = vpop.f32.mrf.mxu0
      %v3501 = vadd.f32 0.0, %v3500
      %v3502 = vpop.f32.mrf.mxu0
      %3503 = vmatprep.mubr.bf16.mxu0 0
      %3504 = vmatmul.mubr.bf16.gmra.mxu0 %v3414
      %v3505 = vpop.f32.mrf.mxu0
      %v3506 = vadd.f32 0.0, %v3505
      %v3507 = vpop.f32.mrf.mxu0
      %v3508 = vpop.f32.mrf.mxu0
      %v3509 = vadd.f32 0.0, %v3508
      %v3510 = vpop.f32.mrf.mxu0
      %3511 = vmatprep.mubr.bf16.mxu0 0
      %3512 = vmatmul.mubr.bf16.gmra.mxu0 %v3417
      %v3513 = vpop.f32.mrf.mxu0
      %v3514 = vadd.f32 0.0, %v3513
      %v3515 = vpop.f32.mrf.mxu0
      %v3516 = vpop.f32.mrf.mxu0
      %v3517 = vadd.f32 0.0, %v3516
      %v3518 = vpop.f32.mrf.mxu0
      %3519 = vmatprep.mubr.bf16.mxu0 0
      %3520 = vmatmul.mubr.bf16.gmra.mxu0 %v3420
      %v3521 = vpop.f32.mrf.mxu0
      %v3522 = vadd.f32 0.0, %v3521
      %v3523 = vpop.f32.mrf.mxu0
      %v3524 = vpop.f32.mrf.mxu0
      %v3525 = vadd.f32 0.0, %v3524
      %v3526 = vpop.f32.mrf.mxu0
      %3527 = vmatprep.mubr.bf16.mxu0 0
      %3528 = vmatmul.mubr.bf16.gmra.mxu0 %v3423
      %v3529 = vpop.f32.mrf.mxu0
      %v3530 = vadd.f32 0.0, %v3529
      %v3531 = vpop.f32.mrf.mxu0
      %v3532 = vpop.f32.mrf.mxu0
      %v3533 = vadd.f32 0.0, %v3532
      %v3534 = vpop.f32.mrf.mxu0
      %3535 = vmatprep.mubr.bf16.mxu0 0
      %3536 = vmatmul.mubr.bf16.gmra.mxu0 %v3426
      %v3537 = vpop.f32.mrf.mxu0
      %v3538 = vadd.f32 0.0, %v3537
      %v3539 = vpop.f32.mrf.mxu0
      %v3540 = vpop.f32.mrf.mxu0
      %v3541 = vadd.f32 0.0, %v3540
      %v3542 = vpop.f32.mrf.mxu0
      %3543 = vmatprep.mubr.bf16.mxu0 0
      %3544 = vmatmul.mubr.bf16.gmra.mxu0 %v3429
      %v3545 = vpop.f32.mrf.mxu0
      %v3546 = vadd.f32 0.0, %v3545
      %v3547 = vpop.f32.mrf.mxu0
      %v3548 = vpop.f32.mrf.mxu0
      %v3549 = vadd.f32 0.0, %v3548
      %v3550 = vpop.f32.mrf.mxu0
      %3551 = vmatprep.mubr.bf16.mxu0 0
      %3552 = vmatmul.mubr.bf16.gmra.mxu0 %v3432
      %v3553 = vpop.f32.mrf.mxu0
      %v3554 = vadd.f32 0.0, %v3553
      %v3555 = vpop.f32.mrf.mxu0
      %v3556 = vpop.f32.mrf.mxu0
      %v3557 = vadd.f32 0.0, %v3556
      %v3558 = vpop.f32.mrf.mxu0
      %3559 = vmatprep.mubr.bf16.mxu0 0
      %3560 = vmatmul.mubr.bf16.gmra.mxu0 %v3435
      %v3561 = vpop.f32.mrf.mxu0
      %v3562 = vadd.f32 0.0, %v3561
      %v3563 = vpop.f32.mrf.mxu0
      %v3564 = vpop.f32.mrf.mxu0
      %v3565 = vadd.f32 0.0, %v3564
      %v3566 = vpop.f32.mrf.mxu0
      %3567 = vmatprep.mubr.bf16.mxu0 0
      %3568 = vmatmul.mubr.bf16.gmra.mxu0 %v3438
      %v3569 = vpop.f32.mrf.mxu0
      %v3570 = vadd.f32 0.0, %v3569
      %v3571 = vpop.f32.mrf.mxu0
      %v3572 = vpop.f32.mrf.mxu0
      %v3573 = vadd.f32 0.0, %v3572
      %v3574 = vpop.f32.mrf.mxu0
      %3575 = vmatprep.mubr.bf16.mxu0 0
      %3576 = vmatmul.mubr.bf16.gmra.mxu0 %v3441
      %v3577 = vpop.f32.mrf.mxu0
      %v3578 = vadd.f32 0.0, %v3577
      %v3579 = vpop.f32.mrf.mxu0
      %v3580 = vpop.f32.mrf.mxu0
      %v3581 = vadd.f32 0.0, %v3580
      %v3582 = vpop.f32.mrf.mxu0
      %3583 = vmatprep.mubr.bf16.mxu0 0
      %3584 = vmatmul.mubr.bf16.gmra.mxu0 %v3444
      %v3585 = vpop.f32.mrf.mxu0
      %v3586 = vadd.f32 0.0, %v3585
      %v3587 = vpop.f32.mrf.mxu0
      %v3588 = vpop.f32.mrf.mxu0
      %v3589 = vadd.f32 0.0, %v3588
      %v3590 = vpop.f32.mrf.mxu0
      %3591 = vmatprep.mubr.bf16.mxu0 0
      %3592 = vmatmul.mubr.bf16.gmra.mxu0 %v3447
      %v3593 = vpop.f32.mrf.mxu0
      %v3594 = vadd.f32 0.0, %v3593
      %v3595 = vpop.f32.mrf.mxu0
      %v3596 = vpop.f32.mrf.mxu0
      %v3597 = vadd.f32 0.0, %v3596
      %v3598 = vpop.f32.mrf.mxu0
      %3599 = vmatprep.mubr.bf16.mxu0 0
      %3600 = vmatmul.mubr.bf16.gmra.mxu0 %v3450
      %v3601 = vpop.f32.mrf.mxu0
      %v3602 = vadd.f32 0.0, %v3601
      %v3603 = vpop.f32.mrf.mxu0
      %v3604 = vpop.f32.mrf.mxu0
      %v3605 = vadd.f32 0.0, %v3604
      %v3606 = vpop.f32.mrf.mxu0
      %3607 = vmatprep.mubr.bf16.mxu0 0
      %3608 = vmatmul.mubr.bf16.gmra.mxu0 %v3453
      %v3609 = vpop.f32.mrf.mxu0
      %v3610 = vadd.f32 0.0, %v3609
      %v3611 = vpop.f32.mrf.mxu0
      %v3612 = vpop.f32.mrf.mxu0
      %v3613 = vadd.f32 0.0, %v3612
      %v3614 = vpop.f32.mrf.mxu0
      %3615 = vdwg.mxu0
      %v3616 = vadd.f32 %v3287, %v3490
      %v3617 = vadd.f32 %v3288, %v3493
      %v3618 = vadd.f32 %v3289, %v3498
      %v3619 = vadd.f32 %v3290, %v3501
      %v3620 = vadd.f32 %v3291, %v3506
      %v3621 = vadd.f32 %v3292, %v3509
      %v3622 = vadd.f32 %v3293, %v3514
      %v3623 = vadd.f32 %v3294, %v3517
      %v3624 = vadd.f32 %v3295, %v3522
      %v3625 = vadd.f32 %v3296, %v3525
      %v3626 = vadd.f32 %v3297, %v3530
      %v3627 = vadd.f32 %v3298, %v3533
      %v3628 = vadd.f32 %v3299, %v3538
      %v3629 = vadd.f32 %v3300, %v3541
      %v3630 = vadd.f32 %v3301, %v3546
      %v3631 = vadd.f32 %v3302, %v3549
      %v3632 = vadd.f32 %v3303, %v3554
      %v3633 = vadd.f32 %v3304, %v3557
      %v3634 = vadd.f32 %v3305, %v3562
      %v3635 = vadd.f32 %v3306, %v3565
      %v3636 = vadd.f32 %v3307, %v3570
      %v3637 = vadd.f32 %v3308, %v3573
      %v3638 = vadd.f32 %v3309, %v3578
      %v3639 = vadd.f32 %v3310, %v3581
      %v3640 = vadd.f32 %v3311, %v3586
      %v3641 = vadd.f32 %v3312, %v3589
      %v3642 = vadd.f32 %v3313, %v3594
      %v3643 = vadd.f32 %v3314, %v3597
      %v3644 = vadd.f32 %v3315, %v3602
      %v3645 = vadd.f32 %v3316, %v3605
      %v3646 = vadd.f32 %v3317, %v3610
      %v3647 = vadd.f32 %v3318, %v3613
      %v3648 = vld [vmem:[#allocation2 + $0x28] sm:$0xff]
      %v3649 = vld [vmem:[#allocation2 + $0x30] sm:$0xff]
      %v3650 = vld [vmem:[#allocation2 + $0x38] sm:$0xff]
      %v3651 = vld [vmem:[#allocation2 + $0x40] sm:$0xff]
      %v3652 = vld [vmem:[#allocation2 + $0x48] sm:$0xff]
      %v3653 = vld [vmem:[#allocation2 + $0x50] sm:$0xff]
      %v3654 = vld [vmem:[#allocation2 + $0x58] sm:$0xff]
      %v3655 = vld [vmem:[#allocation2 + $0x60] sm:$0xff]
      %v3656 = vld [vmem:[#allocation2 + $0x68] sm:$0xff]
      %v3657 = vld [vmem:[#allocation2 + $0x70] sm:$0xff]
      %v3658 = vld [vmem:[#allocation2 + $0x78] sm:$0xff]
      %v3659 = vld [vmem:[#allocation2 + $0x80] sm:$0xff]
      %v3660 = vld [vmem:[#allocation2 + $0x88] sm:$0xff]
      %v3661 = vld [vmem:[#allocation2 + $0x90] sm:$0xff]
      %v3662 = vld [vmem:[#allocation2 + $0x98] sm:$0xff]
      %v3663 = vld [vmem:[#allocation2 + $0xa0] sm:$0xff]
      %v3664 = vld [vmem:[#allocation2 + $0xa8] sm:$0xff]
      %v3665 = vld [vmem:[#allocation2 + $0xb0] sm:$0xff]
      %v3666 = vld [vmem:[#allocation2 + $0xb8] sm:$0xff]
      %v3667 = vld [vmem:[#allocation2 + $0xc0] sm:$0xff]
      %v3668 = vld [vmem:[#allocation2 + $0xc8] sm:$0xff]
      %v3669 = vld [vmem:[#allocation2 + $0xd0] sm:$0xff]
      %v3670 = vld [vmem:[#allocation2 + $0xd8] sm:$0xff]
      %v3671 = vld [vmem:[#allocation2 + $0xe0] sm:$0xff]
      %v3672 = vld [vmem:[#allocation2 + $0xe8] sm:$0xff]
      %v3673 = vld [vmem:[#allocation2 + $0xf0] sm:$0xff]
      %v3674 = vld [vmem:[#allocation2 + $0xf8] sm:$0xff]
      %v3675 = vld [vmem:[#allocation2 + $0x100] sm:$0xff]
      %v3676 = vld [vmem:[#allocation2 + $0x108] sm:$0xff]
      %v3677 = vld [vmem:[#allocation2 + $0x110] sm:$0xff]
      %v3678 = vld [vmem:[#allocation2 + $0x118] sm:$0xff]
      %v3679 = vld [vmem:[#allocation2 + $0x120] sm:$0xff]
      %v3680 = vpack.c.bf16 %v3649, %v3648
      %v3681 = vpack.c.bf16 %v3651, %v3650
      %v3682 = vpack.c.bf16 %v3653, %v3652
      %v3683 = vpack.c.bf16 %v3655, %v3654
      %v3684 = vpack.c.bf16 %v3657, %v3656
      %v3685 = vpack.c.bf16 %v3659, %v3658
      %v3686 = vpack.c.bf16 %v3661, %v3660
      %v3687 = vpack.c.bf16 %v3663, %v3662
      %v3688 = vpack.c.bf16 %v3665, %v3664
      %v3689 = vpack.c.bf16 %v3667, %v3666
      %v3690 = vpack.c.bf16 %v3669, %v3668
      %v3691 = vpack.c.bf16 %v3671, %v3670
      %v3692 = vpack.c.bf16 %v3673, %v3672
      %v3693 = vpack.c.bf16 %v3675, %v3674
      %v3694 = vpack.c.bf16 %v3677, %v3676
      %v3695 = vpack.c.bf16 %v3679, %v3678
      %v3696 = vld [vmem:[%s3 + $0x38] sm:$0xf]
      %v3697 = vld [vmem:[%s3 + $0x3c] sm:$0xf]
      %v3700 = vunpack.c.l.b16 %v3696
      %v3701 = vunpack.c.l.b16 %v3697
      %v3702 = vpack.c.b16 %v3701, %v3700
      %v3705 = vsel %vm793, %v3680, 0
      %v3708 = vsel %vm793, %v3681, 0
      %v3711 = vsel %vm793, %v3682, 0
      %v3714 = vsel %vm793, %v3683, 0
      %v3717 = vsel %vm793, %v3684, 0
      %v3720 = vsel %vm793, %v3685, 0
      %v3723 = vsel %vm793, %v3686, 0
      %v3726 = vsel %vm793, %v3687, 0
      %v3729 = vsel %vm793, %v3688, 0
      %v3732 = vsel %vm793, %v3689, 0
      %v3735 = vsel %vm793, %v3690, 0
      %v3738 = vsel %vm793, %v3691, 0
      %v3741 = vsel %vm793, %v3692, 0
      %v3744 = vsel %vm793, %v3693, 0
      %v3747 = vsel %vm793, %v3694, 0
      %v3750 = vsel %vm793, %v3695, 0
      %3752 = vmatprep.subr.bf16.mxu0 0
      %3753 = vmatpush1.bf16.msra.mxu0 0
      %3754 = vmatprep.subr.bf16.mxu0 0
      %3755 = vmatpush1.bf16.msra.mxu0 0
      %3756 = vmatprep.subr.bf16.mxu0 0
      %3757 = vmatpush1.bf16.msra.mxu0 0
      %3758 = vmatprep.subr.bf16.mxu0 0
      %3759 = vmatpush1.bf16.msra.mxu0 0
      %3760 = vmatprep.subr.bf16.mxu0 0
      %3761 = vmatpush1.bf16.msra.mxu0 0
      %3762 = vmatprep.subr.bf16.mxu0 0
      %3763 = vmatpush1.bf16.msra.mxu0 0
      %3764 = vmatprep.subr.bf16.mxu0 0
      %3765 = vmatpush1.bf16.msra.mxu0 0
      %3766 = vmatprep.subr.bf16.mxu0 0
      %3767 = vmatpush1.bf16.msra.mxu0 %v3702
      %3768 = vmatprep.subr.bf16.mxu0 0
      %3769 = vmatpush2.bf16.msra.mxu0 0
      %3770 = vmatprep.subr.bf16.mxu0 0
      %3771 = vmatpush2.bf16.msra.mxu0 0
      %3772 = vmatprep.subr.bf16.mxu0 0
      %3773 = vmatpush2.bf16.msra.mxu0 0
      %3774 = vmatprep.subr.bf16.mxu0 0
      %3775 = vmatpush2.bf16.msra.mxu0 0
      %3776 = vmatprep.subr.bf16.mxu0 0
      %3777 = vmatpush2.bf16.msra.mxu0 0
      %3778 = vmatprep.subr.bf16.mxu0 0
      %3779 = vmatpush2.bf16.msra.mxu0 0
      %3780 = vmatprep.subr.bf16.mxu0 0
      %3781 = vmatpush2.bf16.msra.mxu0 0
      %3782 = vmatprep.subr.bf16.mxu0 0
      %3783 = vmatpush2.bf16.msra.mxu0 0
      %3784 = vmatprep.mubr.bf16.mxu0 0
      %3785 = vmatmul.mubr.bf16.gmra.mxu0 %v3705
      %v3786 = vpop.f32.mrf.mxu0
      %v3787 = vadd.f32 0.0, %v3786
      %v3788 = vpop.f32.mrf.mxu0
      %v3789 = vpop.f32.mrf.mxu0
      %v3790 = vadd.f32 0.0, %v3789
      %v3791 = vpop.f32.mrf.mxu0
      %3792 = vmatprep.mubr.bf16.mxu0 0
      %3793 = vmatmul.mubr.bf16.gmra.mxu0 %v3708
      %v3794 = vpop.f32.mrf.mxu0
      %v3795 = vadd.f32 0.0, %v3794
      %v3796 = vpop.f32.mrf.mxu0
      %v3797 = vpop.f32.mrf.mxu0
      %v3798 = vadd.f32 0.0, %v3797
      %v3799 = vpop.f32.mrf.mxu0
      %3800 = vmatprep.mubr.bf16.mxu0 0
      %3801 = vmatmul.mubr.bf16.gmra.mxu0 %v3711
      %v3802 = vpop.f32.mrf.mxu0
      %v3803 = vadd.f32 0.0, %v3802
      %v3804 = vpop.f32.mrf.mxu0
      %v3805 = vpop.f32.mrf.mxu0
      %v3806 = vadd.f32 0.0, %v3805
      %v3807 = vpop.f32.mrf.mxu0
      %3808 = vmatprep.mubr.bf16.mxu0 0
      %3809 = vmatmul.mubr.bf16.gmra.mxu0 %v3714
      %v3810 = vpop.f32.mrf.mxu0
      %v3811 = vadd.f32 0.0, %v3810
      %v3812 = vpop.f32.mrf.mxu0
      %v3813 = vpop.f32.mrf.mxu0
      %v3814 = vadd.f32 0.0, %v3813
      %v3815 = vpop.f32.mrf.mxu0
      %3816 = vmatprep.mubr.bf16.mxu0 0
      %3817 = vmatmul.mubr.bf16.gmra.mxu0 %v3717
      %v3818 = vpop.f32.mrf.mxu0
      %v3819 = vadd.f32 0.0, %v3818
      %v3820 = vpop.f32.mrf.mxu0
      %v3821 = vpop.f32.mrf.mxu0
      %v3822 = vadd.f32 0.0, %v3821
      %v3823 = vpop.f32.mrf.mxu0
      %3824 = vmatprep.mubr.bf16.mxu0 0
      %3825 = vmatmul.mubr.bf16.gmra.mxu0 %v3720
      %v3826 = vpop.f32.mrf.mxu0
      %v3827 = vadd.f32 0.0, %v3826
      %v3828 = vpop.f32.mrf.mxu0
      %v3829 = vpop.f32.mrf.mxu0
      %v3830 = vadd.f32 0.0, %v3829
      %v3831 = vpop.f32.mrf.mxu0
      %3832 = vmatprep.mubr.bf16.mxu0 0
      %3833 = vmatmul.mubr.bf16.gmra.mxu0 %v3723
      %v3834 = vpop.f32.mrf.mxu0
      %v3835 = vadd.f32 0.0, %v3834
      %v3836 = vpop.f32.mrf.mxu0
      %v3837 = vpop.f32.mrf.mxu0
      %v3838 = vadd.f32 0.0, %v3837
      %v3839 = vpop.f32.mrf.mxu0
      %3840 = vmatprep.mubr.bf16.mxu0 0
      %3841 = vmatmul.mubr.bf16.gmra.mxu0 %v3726
      %v3842 = vpop.f32.mrf.mxu0
      %v3843 = vadd.f32 0.0, %v3842
      %v3844 = vpop.f32.mrf.mxu0
      %v3845 = vpop.f32.mrf.mxu0
      %v3846 = vadd.f32 0.0, %v3845
      %v3847 = vpop.f32.mrf.mxu0
      %3848 = vmatprep.mubr.bf16.mxu0 0
      %3849 = vmatmul.mubr.bf16.gmra.mxu0 %v3729
      %v3850 = vpop.f32.mrf.mxu0
      %v3851 = vadd.f32 0.0, %v3850
      %v3852 = vpop.f32.mrf.mxu0
      %v3853 = vpop.f32.mrf.mxu0
      %v3854 = vadd.f32 0.0, %v3853
      %v3855 = vpop.f32.mrf.mxu0
      %3856 = vmatprep.mubr.bf16.mxu0 0
      %3857 = vmatmul.mubr.bf16.gmra.mxu0 %v3732
      %v3858 = vpop.f32.mrf.mxu0
      %v3859 = vadd.f32 0.0, %v3858
      %v3860 = vpop.f32.mrf.mxu0
      %v3861 = vpop.f32.mrf.mxu0
      %v3862 = vadd.f32 0.0, %v3861
      %v3863 = vpop.f32.mrf.mxu0
      %3864 = vmatprep.mubr.bf16.mxu0 0
      %3865 = vmatmul.mubr.bf16.gmra.mxu0 %v3735
      %v3866 = vpop.f32.mrf.mxu0
      %v3867 = vadd.f32 0.0, %v3866
      %v3868 = vpop.f32.mrf.mxu0
      %v3869 = vpop.f32.mrf.mxu0
      %v3870 = vadd.f32 0.0, %v3869
      %v3871 = vpop.f32.mrf.mxu0
      %3872 = vmatprep.mubr.bf16.mxu0 0
      %3873 = vmatmul.mubr.bf16.gmra.mxu0 %v3738
      %v3874 = vpop.f32.mrf.mxu0
      %v3875 = vadd.f32 0.0, %v3874
      %v3876 = vpop.f32.mrf.mxu0
      %v3877 = vpop.f32.mrf.mxu0
      %v3878 = vadd.f32 0.0, %v3877
      %v3879 = vpop.f32.mrf.mxu0
      %3880 = vmatprep.mubr.bf16.mxu0 0
      %3881 = vmatmul.mubr.bf16.gmra.mxu0 %v3741
      %v3882 = vpop.f32.mrf.mxu0
      %v3883 = vadd.f32 0.0, %v3882
      %v3884 = vpop.f32.mrf.mxu0
      %v3885 = vpop.f32.mrf.mxu0
      %v3886 = vadd.f32 0.0, %v3885
      %v3887 = vpop.f32.mrf.mxu0
      %3888 = vmatprep.mubr.bf16.mxu0 0
      %3889 = vmatmul.mubr.bf16.gmra.mxu0 %v3744
      %v3890 = vpop.f32.mrf.mxu0
      %v3891 = vadd.f32 0.0, %v3890
      %v3892 = vpop.f32.mrf.mxu0
      %v3893 = vpop.f32.mrf.mxu0
      %v3894 = vadd.f32 0.0, %v3893
      %v3895 = vpop.f32.mrf.mxu0
      %3896 = vmatprep.mubr.bf16.mxu0 0
      %3897 = vmatmul.mubr.bf16.gmra.mxu0 %v3747
      %v3898 = vpop.f32.mrf.mxu0
      %v3899 = vadd.f32 0.0, %v3898
      %v3900 = vpop.f32.mrf.mxu0
      %v3901 = vpop.f32.mrf.mxu0
      %v3902 = vadd.f32 0.0, %v3901
      %v3903 = vpop.f32.mrf.mxu0
      %3904 = vmatprep.mubr.bf16.mxu0 0
      %3905 = vmatmul.mubr.bf16.gmra.mxu0 %v3750
      %v3906 = vpop.f32.mrf.mxu0
      %v3907 = vadd.f32 0.0, %v3906
      %v3908 = vpop.f32.mrf.mxu0
      %v3909 = vpop.f32.mrf.mxu0
      %v3910 = vadd.f32 0.0, %v3909
      %v3911 = vpop.f32.mrf.mxu0
      %3912 = vdwg.mxu0
      %v3913 = vadd.f32 %v3616, %v3787
      %v3914 = vadd.f32 %v3617, %v3790
      %v3915 = vadd.f32 %v3618, %v3795
      %v3916 = vadd.f32 %v3619, %v3798
      %v3917 = vadd.f32 %v3620, %v3803
      %v3918 = vadd.f32 %v3621, %v3806
      %v3919 = vadd.f32 %v3622, %v3811
      %v3920 = vadd.f32 %v3623, %v3814
      %v3921 = vadd.f32 %v3624, %v3819
      %v3922 = vadd.f32 %v3625, %v3822
      %v3923 = vadd.f32 %v3626, %v3827
      %v3924 = vadd.f32 %v3627, %v3830
      %v3925 = vadd.f32 %v3628, %v3835
      %v3926 = vadd.f32 %v3629, %v3838
      %v3927 = vadd.f32 %v3630, %v3843
      %v3928 = vadd.f32 %v3631, %v3846
      %v3929 = vadd.f32 %v3632, %v3851
      %v3930 = vadd.f32 %v3633, %v3854
      %v3931 = vadd.f32 %v3634, %v3859
      %v3932 = vadd.f32 %v3635, %v3862
      %v3933 = vadd.f32 %v3636, %v3867
      %v3934 = vadd.f32 %v3637, %v3870
      %v3935 = vadd.f32 %v3638, %v3875
      %v3936 = vadd.f32 %v3639, %v3878
      %v3937 = vadd.f32 %v3640, %v3883
      %v3938 = vadd.f32 %v3641, %v3886
      %v3939 = vadd.f32 %v3642, %v3891
      %v3940 = vadd.f32 %v3643, %v3894
      %v3941 = vadd.f32 %v3644, %v3899
      %v3942 = vadd.f32 %v3645, %v3902
      %v3943 = vadd.f32 %v3646, %v3907
      %v3944 = vadd.f32 %v3647, %v3910
      %v3945 = vld [vmem:[#allocation2 + $0x29] sm:$0xff]
      %v3946 = vld [vmem:[#allocation2 + $0x31] sm:$0xff]
      %v3947 = vld [vmem:[#allocation2 + $0x39] sm:$0xff]
      %v3948 = vld [vmem:[#allocation2 + $0x41] sm:$0xff]
      %v3949 = vld [vmem:[#allocation2 + $0x49] sm:$0xff]
      %v3950 = vld [vmem:[#allocation2 + $0x51] sm:$0xff]
      %v3951 = vld [vmem:[#allocation2 + $0x59] sm:$0xff]
      %v3952 = vld [vmem:[#allocation2 + $0x61] sm:$0xff]
      %v3953 = vld [vmem:[#allocation2 + $0x69] sm:$0xff]
      %v3954 = vld [vmem:[#allocation2 + $0x71] sm:$0xff]
      %v3955 = vld [vmem:[#allocation2 + $0x79] sm:$0xff]
      %v3956 = vld [vmem:[#allocation2 + $0x81] sm:$0xff]
      %v3957 = vld [vmem:[#allocation2 + $0x89] sm:$0xff]
      %v3958 = vld [vmem:[#allocation2 + $0x91] sm:$0xff]
      %v3959 = vld [vmem:[#allocation2 + $0x99] sm:$0xff]
      %v3960 = vld [vmem:[#allocation2 + $0xa1] sm:$0xff]
      %v3961 = vld [vmem:[#allocation2 + $0xa9] sm:$0xff]
      %v3962 = vld [vmem:[#allocation2 + $0xb1] sm:$0xff]
      %v3963 = vld [vmem:[#allocation2 + $0xb9] sm:$0xff]
      %v3964 = vld [vmem:[#allocation2 + $0xc1] sm:$0xff]
      %v3965 = vld [vmem:[#allocation2 + $0xc9] sm:$0xff]
      %v3966 = vld [vmem:[#allocation2 + $0xd1] sm:$0xff]
      %v3967 = vld [vmem:[#allocation2 + $0xd9] sm:$0xff]
      %v3968 = vld [vmem:[#allocation2 + $0xe1] sm:$0xff]
      %v3969 = vld [vmem:[#allocation2 + $0xe9] sm:$0xff]
      %v3970 = vld [vmem:[#allocation2 + $0xf1] sm:$0xff]
      %v3971 = vld [vmem:[#allocation2 + $0xf9] sm:$0xff]
      %v3972 = vld [vmem:[#allocation2 + $0x101] sm:$0xff]
      %v3973 = vld [vmem:[#allocation2 + $0x109] sm:$0xff]
      %v3974 = vld [vmem:[#allocation2 + $0x111] sm:$0xff]
      %v3975 = vld [vmem:[#allocation2 + $0x119] sm:$0xff]
      %v3976 = vld [vmem:[#allocation2 + $0x121] sm:$0xff]
      %v3977 = vsel %vm2035, %v3945, 0.0
      %v3978 = vsel %vm2036, %v3946, 0.0
      %v3979 = vsel %vm2037, %v3947, 0.0
      %v3980 = vsel %vm2038, %v3948, 0.0
      %v3981 = vsel %vm2039, %v3949, 0.0
      %v3982 = vsel %vm2040, %v3950, 0.0
      %v3983 = vsel %vm2041, %v3951, 0.0
      %v3984 = vsel %vm2042, %v3952, 0.0
      %v3985 = vsel %vm2043, %v3953, 0.0
      %v3986 = vsel %vm2044, %v3954, 0.0
      %v3987 = vsel %vm2045, %v3955, 0.0
      %v3988 = vsel %vm2046, %v3956, 0.0
      %v3989 = vsel %vm2047, %v3957, 0.0
      %v3990 = vsel %vm2048, %v3958, 0.0
      %v3991 = vsel %vm2049, %v3959, 0.0
      %v3992 = vsel %vm2050, %v3960, 0.0
      %v3993 = vsel %vm2051, %v3961, 0.0
      %v3994 = vsel %vm2052, %v3962, 0.0
      %v3995 = vsel %vm2053, %v3963, 0.0
      %v3996 = vsel %vm2054, %v3964, 0.0
      %v3997 = vsel %vm2055, %v3965, 0.0
      %v3998 = vsel %vm2056, %v3966, 0.0
      %v3999 = vsel %vm2057, %v3967, 0.0
      %v4000 = vsel %vm2058, %v3968, 0.0
      %v4001 = vsel %vm2059, %v3969, 0.0
      %v4002 = vsel %vm2060, %v3970, 0.0
      %v4003 = vsel %vm2061, %v3971, 0.0
      %v4004 = vsel %vm2062, %v3972, 0.0
      %v4005 = vsel %vm2063, %v3973, 0.0
      %v4006 = vsel %vm2064, %v3974, 0.0
      %v4007 = vsel %vm2065, %v3975, 0.0
      %v4008 = vsel %vm2066, %v3976, 0.0
      %v4009 = vpack.c.bf16 %v3978, %v3977
      %v4010 = vpack.c.bf16 %v3980, %v3979
      %v4011 = vpack.c.bf16 %v3982, %v3981
      %v4012 = vpack.c.bf16 %v3984, %v3983
      %v4013 = vpack.c.bf16 %v3986, %v3985
      %v4014 = vpack.c.bf16 %v3988, %v3987
      %v4015 = vpack.c.bf16 %v3990, %v3989
      %v4016 = vpack.c.bf16 %v3992, %v3991
      %v4017 = vpack.c.bf16 %v3994, %v3993
      %v4018 = vpack.c.bf16 %v3996, %v3995
      %v4019 = vpack.c.bf16 %v3998, %v3997
      %v4020 = vpack.c.bf16 %v4000, %v3999
      %v4021 = vpack.c.bf16 %v4002, %v4001
      %v4022 = vpack.c.bf16 %v4004, %v4003
      %v4023 = vpack.c.bf16 %v4006, %v4005
      %v4024 = vpack.c.bf16 %v4008, %v4007
      %v4025 = vld [vmem:[%s3 + $0x40] sm:$0xf]
      %v4026 = vld [vmem:[%s3 + $0x44] sm:$0xf]
      %v4029 = vunpack.c.l.b16 %v4025
      %v4030 = vunpack.c.l.b16 %v4026
      %v4031 = vpack.c.b16 %v4030, %v4029
      %v4034 = vsel %vm793, %v4009, 0
      %v4037 = vsel %vm793, %v4010, 0
      %v4040 = vsel %vm793, %v4011, 0
      %v4043 = vsel %vm793, %v4012, 0
      %v4046 = vsel %vm793, %v4013, 0
      %v4049 = vsel %vm793, %v4014, 0
      %v4052 = vsel %vm793, %v4015, 0
      %v4055 = vsel %vm793, %v4016, 0
      %v4058 = vsel %vm793, %v4017, 0
      %v4061 = vsel %vm793, %v4018, 0
      %v4064 = vsel %vm793, %v4019, 0
      %v4067 = vsel %vm793, %v4020, 0
      %v4070 = vsel %vm793, %v4021, 0
      %v4073 = vsel %vm793, %v4022, 0
      %v4076 = vsel %vm793, %v4023, 0
      %v4079 = vsel %vm793, %v4024, 0
      %4081 = vmatprep.subr.bf16.mxu0 0
      %4082 = vmatpush1.bf16.msra.mxu0 0
      %4083 = vmatprep.subr.bf16.mxu0 0
      %4084 = vmatpush1.bf16.msra.mxu0 0
      %4085 = vmatprep.subr.bf16.mxu0 0
      %4086 = vmatpush1.bf16.msra.mxu0 0
      %4087 = vmatprep.subr.bf16.mxu0 0
      %4088 = vmatpush1.bf16.msra.mxu0 0
      %4089 = vmatprep.subr.bf16.mxu0 0
      %4090 = vmatpush1.bf16.msra.mxu0 0
      %4091 = vmatprep.subr.bf16.mxu0 0
      %4092 = vmatpush1.bf16.msra.mxu0 0
      %4093 = vmatprep.subr.bf16.mxu0 0
      %4094 = vmatpush1.bf16.msra.mxu0 0
      %4095 = vmatprep.subr.bf16.mxu0 0
      %4096 = vmatpush1.bf16.msra.mxu0 %v4031
      %4097 = vmatprep.subr.bf16.mxu0 0
      %4098 = vmatpush2.bf16.msra.mxu0 0
      %4099 = vmatprep.subr.bf16.mxu0 0
      %4100 = vmatpush2.bf16.msra.mxu0 0
      %4101 = vmatprep.subr.bf16.mxu0 0
      %4102 = vmatpush2.bf16.msra.mxu0 0
      %4103 = vmatprep.subr.bf16.mxu0 0
      %4104 = vmatpush2.bf16.msra.mxu0 0
      %4105 = vmatprep.subr.bf16.mxu0 0
      %4106 = vmatpush2.bf16.msra.mxu0 0
      %4107 = vmatprep.subr.bf16.mxu0 0
      %4108 = vmatpush2.bf16.msra.mxu0 0
      %4109 = vmatprep.subr.bf16.mxu0 0
      %4110 = vmatpush2.bf16.msra.mxu0 0
      %4111 = vmatprep.subr.bf16.mxu0 0
      %4112 = vmatpush2.bf16.msra.mxu0 0
      %4113 = vmatprep.mubr.bf16.mxu0 0
      %4114 = vmatmul.mubr.bf16.gmra.mxu0 %v4034
      %v4115 = vpop.f32.mrf.mxu0
      %v4116 = vadd.f32 0.0, %v4115
      %v4117 = vpop.f32.mrf.mxu0
      %v4118 = vpop.f32.mrf.mxu0
      %v4119 = vadd.f32 0.0, %v4118
      %v4120 = vpop.f32.mrf.mxu0
      %4121 = vmatprep.mubr.bf16.mxu0 0
      %4122 = vmatmul.mubr.bf16.gmra.mxu0 %v4037
      %v4123 = vpop.f32.mrf.mxu0
      %v4124 = vadd.f32 0.0, %v4123
      %v4125 = vpop.f32.mrf.mxu0
      %v4126 = vpop.f32.mrf.mxu0
      %v4127 = vadd.f32 0.0, %v4126
      %v4128 = vpop.f32.mrf.mxu0
      %4129 = vmatprep.mubr.bf16.mxu0 0
      %4130 = vmatmul.mubr.bf16.gmra.mxu0 %v4040
      %v4131 = vpop.f32.mrf.mxu0
      %v4132 = vadd.f32 0.0, %v4131
      %v4133 = vpop.f32.mrf.mxu0
      %v4134 = vpop.f32.mrf.mxu0
      %v4135 = vadd.f32 0.0, %v4134
      %v4136 = vpop.f32.mrf.mxu0
      %4137 = vmatprep.mubr.bf16.mxu0 0
      %4138 = vmatmul.mubr.bf16.gmra.mxu0 %v4043
      %v4139 = vpop.f32.mrf.mxu0
      %v4140 = vadd.f32 0.0, %v4139
      %v4141 = vpop.f32.mrf.mxu0
      %v4142 = vpop.f32.mrf.mxu0
      %v4143 = vadd.f32 0.0, %v4142
      %v4144 = vpop.f32.mrf.mxu0
      %4145 = vmatprep.mubr.bf16.mxu0 0
      %4146 = vmatmul.mubr.bf16.gmra.mxu0 %v4046
      %v4147 = vpop.f32.mrf.mxu0
      %v4148 = vadd.f32 0.0, %v4147
      %v4149 = vpop.f32.mrf.mxu0
      %v4150 = vpop.f32.mrf.mxu0
      %v4151 = vadd.f32 0.0, %v4150
      %v4152 = vpop.f32.mrf.mxu0
      %4153 = vmatprep.mubr.bf16.mxu0 0
      %4154 = vmatmul.mubr.bf16.gmra.mxu0 %v4049
      %v4155 = vpop.f32.mrf.mxu0
      %v4156 = vadd.f32 0.0, %v4155
      %v4157 = vpop.f32.mrf.mxu0
      %v4158 = vpop.f32.mrf.mxu0
      %v4159 = vadd.f32 0.0, %v4158
      %v4160 = vpop.f32.mrf.mxu0
      %4161 = vmatprep.mubr.bf16.mxu0 0
      %4162 = vmatmul.mubr.bf16.gmra.mxu0 %v4052
      %v4163 = vpop.f32.mrf.mxu0
      %v4164 = vadd.f32 0.0, %v4163
      %v4165 = vpop.f32.mrf.mxu0
      %v4166 = vpop.f32.mrf.mxu0
      %v4167 = vadd.f32 0.0, %v4166
      %v4168 = vpop.f32.mrf.mxu0
      %4169 = vmatprep.mubr.bf16.mxu0 0
      %4170 = vmatmul.mubr.bf16.gmra.mxu0 %v4055
      %v4171 = vpop.f32.mrf.mxu0
      %v4172 = vadd.f32 0.0, %v4171
      %v4173 = vpop.f32.mrf.mxu0
      %v4174 = vpop.f32.mrf.mxu0
      %v4175 = vadd.f32 0.0, %v4174
      %v4176 = vpop.f32.mrf.mxu0
      %4177 = vmatprep.mubr.bf16.mxu0 0
      %4178 = vmatmul.mubr.bf16.gmra.mxu0 %v4058
      %v4179 = vpop.f32.mrf.mxu0
      %v4180 = vadd.f32 0.0, %v4179
      %v4181 = vpop.f32.mrf.mxu0
      %v4182 = vpop.f32.mrf.mxu0
      %v4183 = vadd.f32 0.0, %v4182
      %v4184 = vpop.f32.mrf.mxu0
      %4185 = vmatprep.mubr.bf16.mxu0 0
      %4186 = vmatmul.mubr.bf16.gmra.mxu0 %v4061
      %v4187 = vpop.f32.mrf.mxu0
      %v4188 = vadd.f32 0.0, %v4187
      %v4189 = vpop.f32.mrf.mxu0
      %v4190 = vpop.f32.mrf.mxu0
      %v4191 = vadd.f32 0.0, %v4190
      %v4192 = vpop.f32.mrf.mxu0
      %4193 = vmatprep.mubr.bf16.mxu0 0
      %4194 = vmatmul.mubr.bf16.gmra.mxu0 %v4064
      %v4195 = vpop.f32.mrf.mxu0
      %v4196 = vadd.f32 0.0, %v4195
      %v4197 = vpop.f32.mrf.mxu0
      %v4198 = vpop.f32.mrf.mxu0
      %v4199 = vadd.f32 0.0, %v4198
      %v4200 = vpop.f32.mrf.mxu0
      %4201 = vmatprep.mubr.bf16.mxu0 0
      %4202 = vmatmul.mubr.bf16.gmra.mxu0 %v4067
      %v4203 = vpop.f32.mrf.mxu0
      %v4204 = vadd.f32 0.0, %v4203
      %v4205 = vpop.f32.mrf.mxu0
      %v4206 = vpop.f32.mrf.mxu0
      %v4207 = vadd.f32 0.0, %v4206
      %v4208 = vpop.f32.mrf.mxu0
      %4209 = vmatprep.mubr.bf16.mxu0 0
      %4210 = vmatmul.mubr.bf16.gmra.mxu0 %v4070
      %v4211 = vpop.f32.mrf.mxu0
      %v4212 = vadd.f32 0.0, %v4211
      %v4213 = vpop.f32.mrf.mxu0
      %v4214 = vpop.f32.mrf.mxu0
      %v4215 = vadd.f32 0.0, %v4214
      %v4216 = vpop.f32.mrf.mxu0
      %4217 = vmatprep.mubr.bf16.mxu0 0
      %4218 = vmatmul.mubr.bf16.gmra.mxu0 %v4073
      %v4219 = vpop.f32.mrf.mxu0
      %v4220 = vadd.f32 0.0, %v4219
      %v4221 = vpop.f32.mrf.mxu0
      %v4222 = vpop.f32.mrf.mxu0
      %v4223 = vadd.f32 0.0, %v4222
      %v4224 = vpop.f32.mrf.mxu0
      %4225 = vmatprep.mubr.bf16.mxu0 0
      %4226 = vmatmul.mubr.bf16.gmra.mxu0 %v4076
      %v4227 = vpop.f32.mrf.mxu0
      %v4228 = vadd.f32 0.0, %v4227
      %v4229 = vpop.f32.mrf.mxu0
      %v4230 = vpop.f32.mrf.mxu0
      %v4231 = vadd.f32 0.0, %v4230
      %v4232 = vpop.f32.mrf.mxu0
      %4233 = vmatprep.mubr.bf16.mxu0 0
      %4234 = vmatmul.mubr.bf16.gmra.mxu0 %v4079
      %v4235 = vpop.f32.mrf.mxu0
      %v4236 = vadd.f32 0.0, %v4235
      %v4237 = vpop.f32.mrf.mxu0
      %v4238 = vpop.f32.mrf.mxu0
      %v4239 = vadd.f32 0.0, %v4238
      %v4240 = vpop.f32.mrf.mxu0
      %4241 = vdwg.mxu0
      %v4242 = vadd.f32 %v3913, %v4116
      %v4243 = vadd.f32 %v3914, %v4119
      %v4244 = vadd.f32 %v3915, %v4124
      %v4245 = vadd.f32 %v3916, %v4127
      %v4246 = vadd.f32 %v3917, %v4132
      %v4247 = vadd.f32 %v3918, %v4135
      %v4248 = vadd.f32 %v3919, %v4140
      %v4249 = vadd.f32 %v3920, %v4143
      %v4250 = vadd.f32 %v3921, %v4148
      %v4251 = vadd.f32 %v3922, %v4151
      %v4252 = vadd.f32 %v3923, %v4156
      %v4253 = vadd.f32 %v3924, %v4159
      %v4254 = vadd.f32 %v3925, %v4164
      %v4255 = vadd.f32 %v3926, %v4167
      %v4256 = vadd.f32 %v3927, %v4172
      %v4257 = vadd.f32 %v3928, %v4175
      %v4258 = vadd.f32 %v3929, %v4180
      %v4259 = vadd.f32 %v3930, %v4183
      %v4260 = vadd.f32 %v3931, %v4188
      %v4261 = vadd.f32 %v3932, %v4191
      %v4262 = vadd.f32 %v3933, %v4196
      %v4263 = vadd.f32 %v3934, %v4199
      %v4264 = vadd.f32 %v3935, %v4204
      %v4265 = vadd.f32 %v3936, %v4207
      %v4266 = vadd.f32 %v3937, %v4212
      %v4267 = vadd.f32 %v3938, %v4215
      %v4268 = vadd.f32 %v3939, %v4220
      %v4269 = vadd.f32 %v3940, %v4223
      %v4270 = vadd.f32 %v3941, %v4228
      %v4271 = vadd.f32 %v3942, %v4231
      %v4272 = vadd.f32 %v3943, %v4236
      %v4273 = vadd.f32 %v3944, %v4239
      %v4274 = vld [vmem:[%s4] sm:$0x1]
      %v4276 = vlaneseq
      %v4277 = vshrl.u32 %v4276, 7
      %v4278 = vsub.s32 0, %v4277
      %v4279 = vrot.slane %v4274, %v4278
      %v4281 = vadd.f32 %v4242, %v4279
      %v4282 = vadd.f32 %v4243, %v4279
      %v4283 = vadd.f32 %v4244, %v4279
      %v4284 = vadd.f32 %v4245, %v4279
      %v4285 = vadd.f32 %v4246, %v4279
      %v4286 = vadd.f32 %v4247, %v4279
      %v4287 = vadd.f32 %v4248, %v4279
      %v4288 = vadd.f32 %v4249, %v4279
      %v4289 = vadd.f32 %v4250, %v4279
      %v4290 = vadd.f32 %v4251, %v4279
      %v4291 = vadd.f32 %v4252, %v4279
      %v4292 = vadd.f32 %v4253, %v4279
      %v4293 = vadd.f32 %v4254, %v4279
      %v4294 = vadd.f32 %v4255, %v4279
      %v4295 = vadd.f32 %v4256, %v4279
      %v4296 = vadd.f32 %v4257, %v4279
      %v4297 = vadd.f32 %v4258, %v4279
      %v4298 = vadd.f32 %v4259, %v4279
      %v4299 = vadd.f32 %v4260, %v4279
      %v4300 = vadd.f32 %v4261, %v4279
      %v4301 = vadd.f32 %v4262, %v4279
      %v4302 = vadd.f32 %v4263, %v4279
      %v4303 = vadd.f32 %v4264, %v4279
      %v4304 = vadd.f32 %v4265, %v4279
      %v4305 = vadd.f32 %v4266, %v4279
      %v4306 = vadd.f32 %v4267, %v4279
      %v4307 = vadd.f32 %v4268, %v4279
      %v4308 = vadd.f32 %v4269, %v4279
      %v4309 = vadd.f32 %v4270, %v4279
      %v4310 = vadd.f32 %v4271, %v4279
      %v4311 = vadd.f32 %v4272, %v4279
      %v4312 = vadd.f32 %v4273, %v4279
      %v4313 = vld [vmem:[%s266] sm:$0xf]
      %v4314 = vld [vmem:[%s266 + $0x4] sm:$0xf]
      %v4315 = vld [vmem:[%s266 + $0x8] sm:$0xf]
      %v4316 = vld [vmem:[%s266 + $0xc] sm:$0xf]
      %v4317 = vld [vmem:[%s266 + $0x10] sm:$0xf]
      %v4318 = vld [vmem:[%s266 + $0x14] sm:$0xf]
      %v4319 = vld [vmem:[%s266 + $0x18] sm:$0xf]
      %v4320 = vld [vmem:[%s266 + $0x1c] sm:$0xf]
      %v4321 = vld [vmem:[%s266 + $0x20] sm:$0xf]
      %v4322 = vld [vmem:[%s266 + $0x24] sm:$0xf]
      %v4323 = vld [vmem:[%s266 + $0x28] sm:$0xf]
      %v4324 = vld [vmem:[%s266 + $0x2c] sm:$0xf]
      %v4325 = vld [vmem:[%s266 + $0x30] sm:$0xf]
      %v4326 = vld [vmem:[%s266 + $0x34] sm:$0xf]
      %v4327 = vld [vmem:[%s266 + $0x38] sm:$0xf]
      %v4328 = vld [vmem:[%s266 + $0x3c] sm:$0xf]
      %v4329 = vld [vmem:[%s266 + $0x40] sm:$0xf]
      %v4330 = vld [vmem:[%s266 + $0x44] sm:$0xf]
      %v4331 = vld [vmem:[%s266 + $0x48] sm:$0xf]
      %v4332 = vld [vmem:[%s266 + $0x4c] sm:$0xf]
      %v4333 = vld [vmem:[%s266 + $0x50] sm:$0xf]
      %v4334 = vld [vmem:[%s266 + $0x54] sm:$0xf]
      %v4335 = vld [vmem:[%s266 + $0x58] sm:$0xf]
      %v4336 = vld [vmem:[%s266 + $0x5c] sm:$0xf]
      %v4337 = vld [vmem:[%s266 + $0x60] sm:$0xf]
      %v4338 = vld [vmem:[%s266 + $0x64] sm:$0xf]
      %v4339 = vld [vmem:[%s266 + $0x68] sm:$0xf]
      %v4340 = vld [vmem:[%s266 + $0x6c] sm:$0xf]
      %v4341 = vld [vmem:[%s266 + $0x70] sm:$0xf]
      %v4342 = vld [vmem:[%s266 + $0x74] sm:$0xf]
      %v4343 = vld [vmem:[%s266 + $0x78] sm:$0xf]
      %v4344 = vld [vmem:[%s266 + $0x7c] sm:$0xf]
      %v4345 = vunpack.c.l.bf16 %v4313
      %v4346 = vunpack.c.l.bf16 %v4314
      %v4347 = vunpack.c.l.bf16 %v4315
      %v4348 = vunpack.c.l.bf16 %v4316
      %v4349 = vunpack.c.l.bf16 %v4317
      %v4350 = vunpack.c.l.bf16 %v4318
      %v4351 = vunpack.c.l.bf16 %v4319
      %v4352 = vunpack.c.l.bf16 %v4320
      %v4353 = vunpack.c.l.bf16 %v4321
      %v4354 = vunpack.c.l.bf16 %v4322
      %v4355 = vunpack.c.l.bf16 %v4323
      %v4356 = vunpack.c.l.bf16 %v4324
      %v4357 = vunpack.c.l.bf16 %v4325
      %v4358 = vunpack.c.l.bf16 %v4326
      %v4359 = vunpack.c.l.bf16 %v4327
      %v4360 = vunpack.c.l.bf16 %v4328
      %v4361 = vunpack.c.l.bf16 %v4329
      %v4362 = vunpack.c.l.bf16 %v4330
      %v4363 = vunpack.c.l.bf16 %v4331
      %v4364 = vunpack.c.l.bf16 %v4332
      %v4365 = vunpack.c.l.bf16 %v4333
      %v4366 = vunpack.c.l.bf16 %v4334
      %v4367 = vunpack.c.l.bf16 %v4335
      %v4368 = vunpack.c.l.bf16 %v4336
      %v4369 = vunpack.c.l.bf16 %v4337
      %v4370 = vunpack.c.l.bf16 %v4338
      %v4371 = vunpack.c.l.bf16 %v4339
      %v4372 = vunpack.c.l.bf16 %v4340
      %v4373 = vunpack.c.l.bf16 %v4341
      %v4374 = vunpack.c.l.bf16 %v4342
      %v4375 = vunpack.c.l.bf16 %v4343
      %v4376 = vunpack.c.l.bf16 %v4344
      %v4377 = vadd.f32 %v4281, %v4345
      %v4378 = vadd.f32 %v4282, %v4346
      %v4379 = vadd.f32 %v4283, %v4347
      %v4380 = vadd.f32 %v4284, %v4348
      %v4381 = vadd.f32 %v4285, %v4349
      %v4382 = vadd.f32 %v4286, %v4350
      %v4383 = vadd.f32 %v4287, %v4351
      %v4384 = vadd.f32 %v4288, %v4352
      %v4385 = vadd.f32 %v4289, %v4353
      %v4386 = vadd.f32 %v4290, %v4354
      %v4387 = vadd.f32 %v4291, %v4355
      %v4388 = vadd.f32 %v4292, %v4356
      %v4389 = vadd.f32 %v4293, %v4357
      %v4390 = vadd.f32 %v4294, %v4358
      %v4391 = vadd.f32 %v4295, %v4359
      %v4392 = vadd.f32 %v4296, %v4360
      %v4393 = vadd.f32 %v4297, %v4361
      %v4394 = vadd.f32 %v4298, %v4362
      %v4395 = vadd.f32 %v4299, %v4363
      %v4396 = vadd.f32 %v4300, %v4364
      %v4397 = vadd.f32 %v4301, %v4365
      %v4398 = vadd.f32 %v4302, %v4366
      %v4399 = vadd.f32 %v4303, %v4367
      %v4400 = vadd.f32 %v4304, %v4368
      %v4401 = vadd.f32 %v4305, %v4369
      %v4402 = vadd.f32 %v4306, %v4370
      %v4403 = vadd.f32 %v4307, %v4371
      %v4404 = vadd.f32 %v4308, %v4372
      %v4405 = vadd.f32 %v4309, %v4373
      %v4406 = vadd.f32 %v4310, %v4374
      %v4407 = vadd.f32 %v4311, %v4375
      %v4408 = vadd.f32 %v4312, %v4376
      %v4409 = vmax.f32 %v4377, 0.0
      %v4410 = vmax.f32 %v4378, 0.0
      %v4411 = vmax.f32 %v4379, 0.0
      %v4412 = vmax.f32 %v4380, 0.0
      %v4413 = vmax.f32 %v4381, 0.0
      %v4414 = vmax.f32 %v4382, 0.0
      %v4415 = vmax.f32 %v4383, 0.0
      %v4416 = vmax.f32 %v4384, 0.0
      %v4417 = vmax.f32 %v4385, 0.0
      %v4418 = vmax.f32 %v4386, 0.0
      %v4419 = vmax.f32 %v4387, 0.0
      %v4420 = vmax.f32 %v4388, 0.0
      %v4421 = vmax.f32 %v4389, 0.0
      %v4422 = vmax.f32 %v4390, 0.0
      %v4423 = vmax.f32 %v4391, 0.0
      %v4424 = vmax.f32 %v4392, 0.0
      %v4425 = vmax.f32 %v4393, 0.0
      %v4426 = vmax.f32 %v4394, 0.0
      %v4427 = vmax.f32 %v4395, 0.0
      %v4428 = vmax.f32 %v4396, 0.0
      %v4429 = vmax.f32 %v4397, 0.0
      %v4430 = vmax.f32 %v4398, 0.0
      %v4431 = vmax.f32 %v4399, 0.0
      %v4432 = vmax.f32 %v4400, 0.0
      %v4433 = vmax.f32 %v4401, 0.0
      %v4434 = vmax.f32 %v4402, 0.0
      %v4435 = vmax.f32 %v4403, 0.0
      %v4436 = vmax.f32 %v4404, 0.0
      %v4437 = vmax.f32 %v4405, 0.0
      %v4438 = vmax.f32 %v4406, 0.0
      %v4439 = vmax.f32 %v4407, 0.0
      %v4440 = vmax.f32 %v4408, 0.0
      %v4441 = vpack.c.bf16 %v4410, %v4409
      %v4442 = vpack.c.bf16 %v4412, %v4411
      %v4443 = vpack.c.bf16 %v4414, %v4413
      %v4444 = vpack.c.bf16 %v4416, %v4415
      %v4445 = vpack.c.bf16 %v4418, %v4417
      %v4446 = vpack.c.bf16 %v4420, %v4419
      %v4447 = vpack.c.bf16 %v4422, %v4421
      %v4448 = vpack.c.bf16 %v4424, %v4423
      %v4449 = vpack.c.bf16 %v4426, %v4425
      %v4450 = vpack.c.bf16 %v4428, %v4427
      %v4451 = vpack.c.bf16 %v4430, %v4429
      %v4452 = vpack.c.bf16 %v4432, %v4431
      %v4453 = vpack.c.bf16 %v4434, %v4433
      %v4454 = vpack.c.bf16 %v4436, %v4435
      %v4455 = vpack.c.bf16 %v4438, %v4437
      %v4456 = vpack.c.bf16 %v4440, %v4439
      %v4473 = vunpack.c.l.b16 %v4441
      %v4474 = vunpack.c.h.b16 %v4441
      %v4475 = vunpack.c.l.b16 %v4442
      %v4476 = vunpack.c.h.b16 %v4442
      %v4477 = vunpack.c.l.b16 %v4443
      %v4478 = vunpack.c.h.b16 %v4443
      %v4479 = vunpack.c.l.b16 %v4444
      %v4480 = vunpack.c.h.b16 %v4444
      %v4481 = vunpack.c.l.b16 %v4445
      %v4482 = vunpack.c.h.b16 %v4445
      %v4483 = vunpack.c.l.b16 %v4446
      %v4484 = vunpack.c.h.b16 %v4446
      %v4485 = vunpack.c.l.b16 %v4447
      %v4486 = vunpack.c.h.b16 %v4447
      %v4487 = vunpack.c.l.b16 %v4448
      %v4488 = vunpack.c.h.b16 %v4448
      %v4489 = vunpack.c.l.b16 %v4449
      %v4490 = vunpack.c.h.b16 %v4449
      %v4491 = vunpack.c.l.b16 %v4450
      %v4492 = vunpack.c.h.b16 %v4450
      %v4493 = vunpack.c.l.b16 %v4451
      %v4494 = vunpack.c.h.b16 %v4451
      %v4495 = vunpack.c.l.b16 %v4452
      %v4496 = vunpack.c.h.b16 %v4452
      %v4497 = vunpack.c.l.b16 %v4453
      %v4498 = vunpack.c.h.b16 %v4453
      %v4499 = vunpack.c.l.b16 %v4454
      %v4500 = vunpack.c.h.b16 %v4454
      %v4501 = vunpack.c.l.b16 %v4455
      %v4502 = vunpack.c.h.b16 %v4455
      %v4503 = vunpack.c.l.b16 %v4456
      %v4504 = vunpack.c.h.b16 %v4456
      %v4505 = vpack.c.b16 %v4473, %v4473
      %v4506 = vpack.c.b16 %v4474, %v4474
      %v4507 = vpack.c.b16 %v4475, %v4475
      %v4508 = vpack.c.b16 %v4476, %v4476
      %v4509 = vpack.c.b16 %v4477, %v4477
      %v4510 = vpack.c.b16 %v4478, %v4478
      %v4511 = vpack.c.b16 %v4479, %v4479
      %v4512 = vpack.c.b16 %v4480, %v4480
      %v4513 = vpack.c.b16 %v4481, %v4481
      %v4514 = vpack.c.b16 %v4482, %v4482
      %v4515 = vpack.c.b16 %v4483, %v4483
      %v4516 = vpack.c.b16 %v4484, %v4484
      %v4517 = vpack.c.b16 %v4485, %v4485
      %v4518 = vpack.c.b16 %v4486, %v4486
      %v4519 = vpack.c.b16 %v4487, %v4487
      %v4520 = vpack.c.b16 %v4488, %v4488
      %v4521 = vpack.c.b16 %v4489, %v4489
      %v4522 = vpack.c.b16 %v4490, %v4490
      %v4523 = vpack.c.b16 %v4491, %v4491
      %v4524 = vpack.c.b16 %v4492, %v4492
      %v4525 = vpack.c.b16 %v4493, %v4493
      %v4526 = vpack.c.b16 %v4494, %v4494
      %v4527 = vpack.c.b16 %v4495, %v4495
      %v4528 = vpack.c.b16 %v4496, %v4496
      %v4529 = vpack.c.b16 %v4497, %v4497
      %v4530 = vpack.c.b16 %v4498, %v4498
      %v4531 = vpack.c.b16 %v4499, %v4499
      %v4532 = vpack.c.b16 %v4500, %v4500
      %v4533 = vpack.c.b16 %v4501, %v4501
      %v4534 = vpack.c.b16 %v4502, %v4502
      %v4535 = vpack.c.b16 %v4503, %v4503
      %v4536 = vpack.c.b16 %v4504, %v4504
      %vm4569 = vcmask 125952
      %4570 = vst.msk [vmem:[%s271] sm:$0xf] %vm4569, %v4505
      %4571 = vst.msk [vmem:[%s271 + $0x4] sm:$0xf] %vm4569, %v4506
      %4572 = vst.msk [vmem:[%s271 + $0x8] sm:$0xf] %vm4569, %v4507
      %4573 = vst.msk [vmem:[%s271 + $0xc] sm:$0xf] %vm4569, %v4508
      %4574 = vst.msk [vmem:[%s271 + $0x10] sm:$0xf] %vm4569, %v4509
      %4575 = vst.msk [vmem:[%s271 + $0x14] sm:$0xf] %vm4569, %v4510
      %4576 = vst.msk [vmem:[%s271 + $0x18] sm:$0xf] %vm4569, %v4511
      %4577 = vst.msk [vmem:[%s271 + $0x1c] sm:$0xf] %vm4569, %v4512
      %4578 = vst.msk [vmem:[%s271 + $0x20] sm:$0xf] %vm4569, %v4513
      %4579 = vst.msk [vmem:[%s271 + $0x24] sm:$0xf] %vm4569, %v4514
      %4580 = vst.msk [vmem:[%s271 + $0x28] sm:$0xf] %vm4569, %v4515
      %4581 = vst.msk [vmem:[%s271 + $0x2c] sm:$0xf] %vm4569, %v4516
      %4582 = vst.msk [vmem:[%s271 + $0x30] sm:$0xf] %vm4569, %v4517
      %4583 = vst.msk [vmem:[%s271 + $0x34] sm:$0xf] %vm4569, %v4518
      %4584 = vst.msk [vmem:[%s271 + $0x38] sm:$0xf] %vm4569, %v4519
      %4585 = vst.msk [vmem:[%s271 + $0x3c] sm:$0xf] %vm4569, %v4520
      %4586 = vst.msk [vmem:[%s271 + $0x40] sm:$0xf] %vm4569, %v4521
      %4587 = vst.msk [vmem:[%s271 + $0x44] sm:$0xf] %vm4569, %v4522
      %4588 = vst.msk [vmem:[%s271 + $0x48] sm:$0xf] %vm4569, %v4523
      %4589 = vst.msk [vmem:[%s271 + $0x4c] sm:$0xf] %vm4569, %v4524
      %4590 = vst.msk [vmem:[%s271 + $0x50] sm:$0xf] %vm4569, %v4525
      %4591 = vst.msk [vmem:[%s271 + $0x54] sm:$0xf] %vm4569, %v4526
      %4592 = vst.msk [vmem:[%s271 + $0x58] sm:$0xf] %vm4569, %v4527
      %4593 = vst.msk [vmem:[%s271 + $0x5c] sm:$0xf] %vm4569, %v4528
      %4594 = vst.msk [vmem:[%s271 + $0x60] sm:$0xf] %vm4569, %v4529
      %4595 = vst.msk [vmem:[%s271 + $0x64] sm:$0xf] %vm4569, %v4530
      %4596 = vst.msk [vmem:[%s271 + $0x68] sm:$0xf] %vm4569, %v4531
      %4597 = vst.msk [vmem:[%s271 + $0x6c] sm:$0xf] %vm4569, %v4532
      %4598 = vst.msk [vmem:[%s271 + $0x70] sm:$0xf] %vm4569, %v4533
      %4599 = vst.msk [vmem:[%s271 + $0x74] sm:$0xf] %vm4569, %v4534
      %4600 = vst.msk [vmem:[%s271 + $0x78] sm:$0xf] %vm4569, %v4535
      %4601 = vst.msk [vmem:[%s271 + $0x7c] sm:$0xf] %vm4569, %v4536
      %p4602 = scmp.lt.s32.totalorder %s17, 1
      %s4603 = scalar_select %p4602, %s17, 1
      %s4604 = smul.addr %s4603, 32
      %s4605 = smul.addr %s4604, 4
      %s4606 = scalar_lea.vmem %s6, %s4605
      // Predicated region
      $region45: #{resnet_forward.6} parent=43 // pred_check
        %p4607 = pneg %p171
      $region46: #{resnet_forward.6} parent=43 // pred_check_branch
        %4609 = sbr.rel (%p4607) target = $region48
      $region47: #{resnet_forward.6} parent=43 // pred_region
        _
      $region48: #{resnet_forward.6} parent=43 // pred_fallthru
        _
    $region44: #{resnet_forward.6} parent=5 // pred_fallthru
      _
    %p4610 = scmp.le.s32.totalorder 2, %s12
    // Predicated region
    $region49: #{resnet_forward.6} parent=5 // pred_check
      %p4611 = pneg %p4610
    $region50: #{resnet_forward.6} parent=5 // pred_check_branch
      %4613 = sbr.rel (%p4611) target = $region52
    $region51: #{resnet_forward.6} parent=5 // pred_region
      %s4614 = ssub.s32 %s12, 2
      // Predicated region
      $region53: #{resnet_forward.6} parent=51 // pred_check
        %p4615 = pneg %p177
      $region54: #{resnet_forward.6} parent=51 // pred_check_branch
        %4617 = sbr.rel (%p4615) target = $region56
      $region55: #{resnet_forward.6} parent=51 // pred_region
        %p4618 = scmp.lt.s32.totalorder %s18, 1
        %s4619 = scalar_select %p4618, %s18, 1
        %s4620 = smul.addr %s4619, 32
        %s4621 = smul.addr %s4620, 4
        %s4622 = scalar_lea.vmem %s6, %s4621
      $region56: #{resnet_forward.6} parent=51 // pred_fallthru
        _
    $region52: #{resnet_forward.6} parent=5 // pred_fallthru
      _
  $region6: #{resnet_forward.6} parent=0 // loop_footer
    %s16 = sadd.s32 1, %s12
  $region7: #{resnet_forward.6} parent=0 // loop_footer_branch
    %11 = sbr.rel target = $region3
  $region8: #{resnet_forward.6} parent=0 // loop_exit
    _

// kernel: resnet_forward.9
$region0: #{resnet_forward.9}
  #allocation0 [shape = 'u32[]', space=smem, size = 0x4, offset = 0x4, fixed_abs, tag = 'smem constant byte address 0x4 - core index']
  #allocation1 [shape = 'u32[144,128]{1,0:T(1,128)}', space=vmem, size = 0x12000, scoped, tag = 'internal scratch']
  %s0 = inlined_call_operand.vmem [shape: bf16[2,16,64], index: 0, kind: input, shape index: {}]
  %s1 = inlined_call_operand.vmem [shape: bf16[64,128], index: 1, kind: input, shape index: {}]
  %s2 = inlined_call_operand.vmem [shape: f32[1,128], index: 2, kind: input, shape index: {}]
  %s3 = inlined_call_operand.hbm [shape: f32[2,128], index: 3, kind: output, shape index: {}]
  %s4 = sld [smem:[#allocation0]]
  $region22: #{resnet_forward.9} parent=0
    _
  %s6 = ssub.s32 1, %s4
  %s7 = scalar_select 0, %s6, %s4
  $region1: #{resnet_forward.9} parent=0
    #allocation2 [shape = 'u8[1024]{0}', space=vmem, size = 0x400, scoped, tag = 'output window, operand 0, single buffered']
    #allocation3 [shape = 's32[1]{0}', space=sflag, size = 0x4, scoped, tag = 'scoped memory for resnet_forward.9']
    %8 = vsyncpa [#allocation3], 0
    // Predicated region
    $region2: #{resnet_forward.9} parent=1 // pred_check
      _
    $region3: #{resnet_forward.9} parent=1 // pred_check_branch
      %10 = sbr.rel (0) target = $region5
    $region4: #{resnet_forward.9} parent=1 // pred_region
      _
    $region5: #{resnet_forward.9} parent=1 // pred_fallthru
      _
    // Predicated region
    $region6: #{resnet_forward.9} parent=1 // pred_check
      _
    $region7: #{resnet_forward.9} parent=1 // pred_check_branch
      %12 = sbr.rel (0) target = $region9
    $region8: #{resnet_forward.9} parent=1 // pred_region
      _
    $region9: #{resnet_forward.9} parent=1 // pred_fallthru
      _
    // Predicated region
    $region10: #{resnet_forward.9} parent=1 // pred_check
      _
    $region11: #{resnet_forward.9} parent=1 // pred_check_branch
      %14 = sbr.rel (0) target = $region13
    $region12: #{resnet_forward.9} parent=1 // pred_region
      _
    $region13: #{resnet_forward.9} parent=1 // pred_fallthru
      _
    %v16 = vld [vmem:[%s0] sm:$0xf]
    %v17 = vld [vmem:[%s0 + $0x4] sm:$0xf]
    %v18 = vld [vmem:[%s0 + $0x8] sm:$0xf]
    %v19 = vld [vmem:[%s0 + $0xc] sm:$0xf]
    %v20 = vunpack.c.l.bf16 %v16
    %v21 = vunpack.c.l.bf16 %v17
    %v22 = vunpack.c.l.bf16 %v18
    %v23 = vunpack.c.l.bf16 %v19
    %vm24 = vcmask 523264
    %v25 = vsel %vm24, %v20, 0.0
    %v26 = vsel %vm24, %v21, 0.0
    %v27 = vadd.f32 %v25, %v26
    %v28 = vrot.slane %v27, 4
    %v29 = vadd.f32 %v27, %v28
    %v30 = vrot.slane %v29, 2
    %v31 = vadd.f32 %v29, %v30
    %v32 = vrot.slane %v31, 1
    %v33 = vadd.f32 %v31, %v32
    %v34 = vsel %vm24, %v22, 0.0
    %v35 = vsel %vm24, %v23, 0.0
    %v36 = vadd.f32 %v34, %v35
    %v37 = vrot.slane %v36, 4
    %v38 = vadd.f32 %v36, %v37
    %v39 = vrot.slane %v38, 2
    %v40 = vadd.f32 %v38, %v39
    %v41 = vrot.slane %v40, 1
    %v42 = vadd.f32 %v40, %v41
    %v43 = vrcp.pop 16.0
    %v44 = vmul.f32 %v33, %v43
    %v45 = vmul.f32 %v42, %v43
    %v46 = vpack.c.bf16 %v44, %v44
    %v47 = vpack.c.bf16 %v45, %v45
    %v48 = vld [vmem:[%s1] sm:$0xf]
    %v49 = vld [vmem:[%s1 + $0x4] sm:$0xf]
    %v50 = vld [vmem:[%s1 + $0x8] sm:$0xf]
    %v51 = vld [vmem:[%s1 + $0xc] sm:$0xf]
    %v52 = vld [vmem:[%s1 + $0x10] sm:$0xf]
    %v53 = vld [vmem:[%s1 + $0x14] sm:$0xf]
    %v54 = vld [vmem:[%s1 + $0x18] sm:$0xf]
    %v55 = vld [vmem:[%s1 + $0x1c] sm:$0xf]
    %v56 = vld [vmem:[%s2] sm:$0x1]
    %v58 = vlaneseq
    %v59 = vshrl.u32 %v58, 7
    %v60 = vsub.s32 0, %v59
    %v61 = vrot.slane %v56, %v60
    %v65 = vunpack.c.l.b16 %v46
    %v66 = vunpack.c.l.b16 %v47
    %vm67 = vcmask 1041409
    %v68 = vsel %vm67, %v66, %v65
    %v69 = vpack.c.b16 %v68, %v68
    %v78 = vunpack.c.l.b16 %v48
    %v79 = vunpack.c.l.b16 %v49
    %v80 = vunpack.c.l.b16 %v50
    %v81 = vunpack.c.l.b16 %v51
    %v82 = vunpack.c.l.b16 %v52
    %v83 = vunpack.c.l.b16 %v53
    %v84 = vunpack.c.l.b16 %v54
    %v85 = vunpack.c.l.b16 %v55
    %v86 = vpack.c.b16 %v79, %v78
    %v87 = vpack.c.b16 %v81, %v80
    %v88 = vpack.c.b16 %v83, %v82
    %v89 = vpack.c.b16 %v85, %v84
    %v95 = vsel %vm24, %v69, 0
    %97 = vmatprep.subr.bf16.mxu0 0
    %98 = vmatpush1.bf16.msra.mxu0 0
    %99 = vmatprep.subr.bf16.mxu0 0
    %100 = vmatpush1.bf16.msra.mxu0 0
    %101 = vmatprep.subr.bf16.mxu0 0
    %102 = vmatpush1.bf16.msra.mxu0 0
    %103 = vmatprep.subr.bf16.mxu0 0
    %104 = vmatpush1.bf16.msra.mxu0 0
    %105 = vmatprep.subr.bf16.mxu0 0
    %106 = vmatpush1.bf16.msra.mxu0 %v89
    %107 = vmatprep.subr.bf16.mxu0 0
    %108 = vmatpush1.bf16.msra.mxu0 %v88
    %109 = vmatprep.subr.bf16.mxu0 0
    %110 = vmatpush1.bf16.msra.mxu0 %v87
    %111 = vmatprep.subr.bf16.mxu0 0
    %112 = vmatpush1.bf16.msra.mxu0 %v86
    %113 = vmatprep.subr.bf16.mxu0 0
    %114 = vmatpush2.bf16.msra.mxu0 0
    %115 = vmatprep.subr.bf16.mxu0 0
    %116 = vmatpush2.bf16.msra.mxu0 0
    %117 = vmatprep.subr.bf16.mxu0 0
    %118 = vmatpush2.bf16.msra.mxu0 0
    %119 = vmatprep.subr.bf16.mxu0 0
    %120 = vmatpush2.bf16.msra.mxu0 0
    %121 = vmatprep.subr.bf16.mxu0 0
    %122 = vmatpush2.bf16.msra.mxu0 0
    %123 = vmatprep.subr.bf16.mxu0 0
    %124 = vmatpush2.bf16.msra.mxu0 0
    %125 = vmatprep.subr.bf16.mxu0 0
    %126 = vmatpush2.bf16.msra.mxu0 0
    %127 = vmatprep.subr.bf16.mxu0 0
    %128 = vmatpush2.bf16.msra.mxu0 0
    %129 = vmatprep.mubr.bf16.mxu0 0
    %130 = vmatmul.mubr.bf16.gmra.mxu0 %v95
    %v131 = vpop.f32.mrf.mxu0
    %v132 = vadd.f32 %v61, %v131
    %v133 = vpop.f32.mrf.mxu0
    %v134 = vpop.f32.mrf.mxu0
    %v135 = vpop.f32.mrf.mxu0
    %136 = vdwg.mxu0
    %137 = vst [vmem:[#allocation2] sm:$0x3] %v132
    // Predicated region
    $region14: #{resnet_forward.9} parent=1 // pred_check
      _
    $region15: #{resnet_forward.9} parent=1 // pred_check_branch
      %139 = sbr.rel (0) target = $region17
    $region16: #{resnet_forward.9} parent=1 // pred_region
      %s141 = ssub.s32 32, 32
      %142 = vsyncadd [#allocation3], %s141
      %s144 = sshll.u32 [#allocation2], 4
      %s145 = int_to_ptr.vmem [resolvable:$true] %s144
      %147 = dma.vmem_to_hbm [thread:$0]  %s145, 32, %s3, [#allocation3]
    $region17: #{resnet_forward.9} parent=1 // pred_fallthru
      _
    // Predicated region
    $region18: #{resnet_forward.9} parent=1 // pred_check
      _
    $region19: #{resnet_forward.9} parent=1 // pred_check_branch
      %149 = sbr.rel (0) target = $region21
    $region20: #{resnet_forward.9} parent=1 // pred_region
      %150 = dma.done [#allocation3], 32
    $region21: #{resnet_forward.9} parent=1 // pred_fallthru
      _
    %151 = vsyncpa [#allocation3], 1

// kernel: resnet_forward.8
$region0: #{resnet_forward.8}
  #allocation0 [shape = 'u32[]', space=smem, size = 0x4, offset = 0x4, fixed_abs, tag = 'smem constant byte address 0x4 - core index']
  #allocation1 [shape = 'u32[144,128]{1,0:T(1,128)}', space=vmem, size = 0x12000, scoped, tag = 'internal scratch']
  #allocation2 [shape = 'f32[32,64]{1,0:T(8,128)}', space=vmem, size = 0x4000, scoped, tag = 'scratch operand']
  %s0 = inlined_call_operand.vmem [shape: bf16[2,16,384], index: 0, kind: input, shape index: {}]
  %s1 = inlined_call_operand.vmem [shape: bf16[384,64], index: 1, kind: input, shape index: {}]
  %s2 = inlined_call_operand.vmem [shape: f32[1,64], index: 2, kind: input, shape index: {}]
  %s3 = inlined_call_operand.vmem [shape: bf16[576,64], index: 3, kind: input, shape index: {}]
  %s4 = inlined_call_operand.vmem [shape: f32[1,64], index: 4, kind: input, shape index: {}]
  %s5 = inlined_call_operand.vmem [shape: bf16[2,16,32], index: 5, kind: input, shape index: {}]
  %s6 = inlined_call_operand.vmem [shape: bf16[32,64], index: 6, kind: input, shape index: {}]
  %s7 = inlined_call_operand.vmem [shape: f32[1,64], index: 7, kind: input, shape index: {}]
  %s8 = inlined_call_operand.vmem [shape: bf16[2,16,64], index: 8, kind: output, shape index: {}]
  %s9 = sld [smem:[#allocation0]]
  $region65: #{resnet_forward.8} parent=0
    _
  %s11 = ssub.s32 1, %s9
  %s12 = scalar_select 0, %s11, %s9
  loop: start=0, step=1, limit=4
  $region2: #{resnet_forward.8} parent=0 // loop_pre_header
    _
  $region3: #{resnet_forward.8} parent=0 // loop_header
    %s14 = sphi 0, %s18
    %p15 = scmp.ge.s32.totalorder %s14, 4
    %s24 = sphi 0, %s26
    %s27 = sphi 0, %s24
    %s28 = sphi 0, %s27
    %s44 = sphi 0, %s28
    %s48 = sphi 0, %s48
    %s50 = sphi 0, %s48
    %s51 = sphi 0, %s50
    %s65 = sphi 0, %s51
    %s69 = sphi 0, %s69
    %s71 = sphi 0, %s69
    %s72 = sphi 0, %s71
    %s86 = sphi 0, %s72
    %s90 = sphi 0, %s90
    %s92 = sphi 0, %s90
    %s93 = sphi 0, %s92
    %s107 = sphi 0, %s93
    %s111 = sphi 0, %s111
    %s113 = sphi 0, %s111
    %s114 = sphi 0, %s113
    %s128 = sphi 0, %s114
    %s134 = sphi 0, %s136
    %s137 = sphi 0, %s134
    %s138 = sphi 0, %s137
    %s154 = sphi 0, %s138
    %s158 = sphi 0, %s158
    %s160 = sphi 0, %s158
    %s161 = sphi 0, %s160
    %s175 = sphi 0, %s161
    %s179 = sphi 0, %s179
    %s181 = sphi 0, %s179
    %s182 = sphi 0, %s181
    %s196 = sphi 0, %s182
    %s202 = sphi 0, %s204
    %s205 = sphi 0, %s202
    %s206 = sphi 0, %s205
    %s222 = sphi 0, %s206
  $region4: #{resnet_forward.8} parent=0 // loop_header_branch
    %17 = sbr.rel (%p15) target = $region8
  $region5: #{resnet_forward.8} parent=0 // loop_body
    %s19 = ssub.s32 %s14, 1
    %s20 = ssub.s32 %s14, 2
    %s21 = sadd.s32 %s14, 1
    %s22 = ssub.s32 %s14, %s21
    %p23 = scmp.eq.s32.totalorder %s22, 0
    %s25 = sadd.s32 %s24, 1
    %s26 = scalar_select %p23, %s24, %s25
    %p29 = pneg %p23
    %p30 = scmp.eq.s32.totalorder %s14, 1
    %p31 = por %p29, %p30
    %p32 = scmp.ne.s32.totalorder %s24, %s27
    %p33 = scmp.eq.s32.totalorder %s14, 0
    %p34 = por %p32, %p33
    %p35 = scmp.ne.s32.totalorder %s24, %s27
    %p36 = scmp.eq.s32.totalorder %s19, 1
    %p37 = por %p35, %p36
    %p38 = scmp.ne.s32.totalorder %s27, %s28
    %p39 = scmp.eq.s32.totalorder %s19, 0
    %p40 = por %p38, %p39
    %p41 = scmp.ne.s32.totalorder %s27, %s28
    %p42 = scmp.eq.s32.totalorder %s20, 1
    %p43 = por %p41, %p42
    %p45 = scmp.ne.s32.totalorder %s28, %s44
    %p46 = scmp.eq.s32.totalorder %s20, 0
    %p47 = por %p45, %p46
    %s49 = sadd.s32 %s48, 1
    %p52 = scmp.eq.s32.totalorder %s14, 1
    %p53 = scmp.ne.s32.totalorder %s48, %s50
    %p54 = scmp.eq.s32.totalorder %s14, 0
    %p55 = por %p53, %p54
    %p56 = scmp.ne.s32.totalorder %s48, %s50
    %p57 = scmp.eq.s32.totalorder %s19, 1
    %p58 = por %p56, %p57
    %p59 = scmp.ne.s32.totalorder %s50, %s51
    %p60 = scmp.eq.s32.totalorder %s19, 0
    %p61 = por %p59, %p60
    %p62 = scmp.ne.s32.totalorder %s50, %s51
    %p63 = scmp.eq.s32.totalorder %s20, 1
    %p64 = por %p62, %p63
    %p66 = scmp.ne.s32.totalorder %s51, %s65
    %p67 = scmp.eq.s32.totalorder %s20, 0
    %p68 = por %p66, %p67
    %s70 = sadd.s32 %s69, 1
    %p73 = scmp.eq.s32.totalorder %s14, 1
    %p74 = scmp.ne.s32.totalorder %s69, %s71
    %p75 = scmp.eq.s32.totalorder %s14, 0
    %p76 = por %p74, %p75
    %p77 = scmp.ne.s32.totalorder %s69, %s71
    %p78 = scmp.eq.s32.totalorder %s19, 1
    %p79 = por %p77, %p78
    %p80 = scmp.ne.s32.totalorder %s71, %s72
    %p81 = scmp.eq.s32.totalorder %s19, 0
    %p82 = por %p80, %p81
    %p83 = scmp.ne.s32.totalorder %s71, %s72
    %p84 = scmp.eq.s32.totalorder %s20, 1
    %p85 = por %p83, %p84
    %p87 = scmp.ne.s32.totalorder %s72, %s86
    %p88 = scmp.eq.s32.totalorder %s20, 0
    %p89 = por %p87, %p88
    %s91 = sadd.s32 %s90, 1
    %p94 = scmp.eq.s32.totalorder %s14, 1
    %p95 = scmp.ne.s32.totalorder %s90, %s92
    %p96 = scmp.eq.s32.totalorder %s14, 0
    %p97 = por %p95, %p96
    %p98 = scmp.ne.s32.totalorder %s90, %s92
    %p99 = scmp.eq.s32.totalorder %s19, 1
    %p100 = por %p98, %p99
    %p101 = scmp.ne.s32.totalorder %s92, %s93
    %p102 = scmp.eq.s32.totalorder %s19, 0
    %p103 = por %p101, %p102
    %p104 = scmp.ne.s32.totalorder %s92, %s93
    %p105 = scmp.eq.s32.totalorder %s20, 1
    %p106 = por %p104, %p105
    %p108 = scmp.ne.s32.totalorder %s93, %s107
    %p109 = scmp.eq.s32.totalorder %s20, 0
    %p110 = por %p108, %p109
    %s112 = sadd.s32 %s111, 1
    %p115 = scmp.eq.s32.totalorder %s14, 1
    %p116 = scmp.ne.s32.totalorder %s111, %s113
    %p117 = scmp.eq.s32.totalorder %s14, 0
    %p118 = por %p116, %p117
    %p119 = scmp.ne.s32.totalorder %s111, %s113
    %p120 = scmp.eq.s32.totalorder %s19, 1
    %p121 = por %p119, %p120
    %p122 = scmp.ne.s32.totalorder %s113, %s114
    %p123 = scmp.eq.s32.totalorder %s19, 0
    %p124 = por %p122, %p123
    %p125 = scmp.ne.s32.totalorder %s113, %s114
    %p126 = scmp.eq.s32.totalorder %s20, 1
    %p127 = por %p125, %p126
    %p129 = scmp.ne.s32.totalorder %s114, %s128
    %p130 = scmp.eq.s32.totalorder %s20, 0
    %p131 = por %p129, %p130
    %s132 = ssub.s32 %s14, %s21
    %p133 = scmp.eq.s32.totalorder %s132, 0
    %s135 = sadd.s32 %s134, 1
    %s136 = scalar_select %p133, %s134, %s135
    %p139 = pneg %p133
    %p140 = scmp.eq.s32.totalorder %s14, 1
    %p141 = por %p139, %p140
    %p142 = scmp.ne.s32.totalorder %s134, %s137
    %p143 = scmp.eq.s32.totalorder %s14, 0
    %p144 = por %p142, %p143
    %p145 = scmp.ne.s32.totalorder %s134, %s137
    %p146 = scmp.eq.s32.totalorder %s19, 1
    %p147 = por %p145, %p146
    %p148 = scmp.ne.s32.totalorder %s137, %s138
    %p149 = scmp.eq.s32.totalorder %s19, 0
    %p150 = por %p148, %p149
    %p151 = scmp.ne.s32.totalorder %s137, %s138
    %p152 = scmp.eq.s32.totalorder %s20, 1
    %p153 = por %p151, %p152
    %p155 = scmp.ne.s32.totalorder %s138, %s154
    %p156 = scmp.eq.s32.totalorder %s20, 0
    %p157 = por %p155, %p156
    %s159 = sadd.s32 %s158, 1
    %p162 = scmp.eq.s32.totalorder %s14, 1
    %p163 = scmp.ne.s32.totalorder %s158, %s160
    %p164 = scmp.eq.s32.totalorder %s14, 0
    %p165 = por %p163, %p164
    %p166 = scmp.ne.s32.totalorder %s158, %s160
    %p167 = scmp.eq.s32.totalorder %s19, 1
    %p168 = por %p166, %p167
    %p169 = scmp.ne.s32.totalorder %s160, %s161
    %p170 = scmp.eq.s32.totalorder %s19, 0
    %p171 = por %p169, %p170
    %p172 = scmp.ne.s32.totalorder %s160, %s161
    %p173 = scmp.eq.s32.totalorder %s20, 1
    %p174 = por %p172, %p173
    %p176 = scmp.ne.s32.totalorder %s161, %s175
    %p177 = scmp.eq.s32.totalorder %s20, 0
    %p178 = por %p176, %p177
    %s180 = sadd.s32 %s179, 1
    %p183 = scmp.eq.s32.totalorder %s14, 1
    %p184 = scmp.ne.s32.totalorder %s179, %s181
    %p185 = scmp.eq.s32.totalorder %s14, 0
    %p186 = por %p184, %p185
    %p187 = scmp.ne.s32.totalorder %s179, %s181
    %p188 = scmp.eq.s32.totalorder %s19, 1
    %p189 = por %p187, %p188
    %p190 = scmp.ne.s32.totalorder %s181, %s182
    %p191 = scmp.eq.s32.totalorder %s19, 0
    %p192 = por %p190, %p191
    %p193 = scmp.ne.s32.totalorder %s181, %s182
    %p194 = scmp.eq.s32.totalorder %s20, 1
    %p195 = por %p193, %p194
    %p197 = scmp.ne.s32.totalorder %s182, %s196
    %p198 = scmp.eq.s32.totalorder %s20, 0
    %p199 = por %p197, %p198
    %s200 = ssub.s32 %s14, %s21
    %p201 = scmp.eq.s32.totalorder %s200, 0
    %s203 = sadd.s32 %s202, 1
    %s204 = scalar_select %p201, %s202, %s203
    %p207 = pneg %p201
    %p208 = scmp.eq.s32.totalorder %s14, 1
    %p209 = por %p207, %p208
    %p210 = scmp.ne.s32.totalorder %s202, %s205
    %p211 = scmp.eq.s32.totalorder %s14, 0
    %p212 = por %p210, %p211
    %p213 = scmp.ne.s32.totalorder %s202, %s205
    %p214 = scmp.eq.s32.totalorder %s19, 1
    %p215 = por %p213, %p214
    %p216 = scmp.ne.s32.totalorder %s205, %s206
    %p217 = scmp.eq.s32.totalorder %s19, 0
    %p218 = por %p216, %p217
    %p219 = scmp.ne.s32.totalorder %s205, %s206
    %p220 = scmp.eq.s32.totalorder %s20, 1
    %p221 = por %p219, %p220
    %p223 = scmp.ne.s32.totalorder %s206, %s222
    %p224 = scmp.eq.s32.totalorder %s20, 0
    %p225 = por %p223, %p224
    %p226 = scmp.le.s32.totalorder 1, %s14
    %p227 = scmp.lt.s32.totalorder %s14, 3
    %p228 = pnand %p226, %p227
    %p229 = pneg %p228
    // Predicated region
    $region9: #{resnet_forward.8} parent=5 // pred_check
      _
    $region10: #{resnet_forward.8} parent=5 // pred_check_branch
      %231 = sbr.rel (%p228) target = $region12
    $region11: #{resnet_forward.8} parent=5 // pred_region
      %s232 = ssub.s32 %s14, 1
      // Predicated region
      $region13: #{resnet_forward.8} parent=11 // pred_check
        %p233 = pneg %p61
      $region14: #{resnet_forward.8} parent=11 // pred_check_branch
        %235 = sbr.rel (%p233) target = $region16
      $region15: #{resnet_forward.8} parent=11 // pred_region
        _
      $region16: #{resnet_forward.8} parent=11 // pred_fallthru
        _
      // Predicated region
      $region17: #{resnet_forward.8} parent=11 // pred_check
        %p236 = pneg %p82
      $region18: #{resnet_forward.8} parent=11 // pred_check_branch
        %238 = sbr.rel (%p236) target = $region20
      $region19: #{resnet_forward.8} parent=11 // pred_region
        _
      $region20: #{resnet_forward.8} parent=11 // pred_fallthru
        _
      // Predicated region
      $region21: #{resnet_forward.8} parent=11 // pred_check
        %p239 = pneg %p103
      $region22: #{resnet_forward.8} parent=11 // pred_check_branch
        %241 = sbr.rel (%p239) target = $region24
      $region23: #{resnet_forward.8} parent=11 // pred_region
        _
      $region24: #{resnet_forward.8} parent=11 // pred_fallthru
        _
      // Predicated region
      $region25: #{resnet_forward.8} parent=11 // pred_check
        %p242 = pneg %p124
      $region26: #{resnet_forward.8} parent=11 // pred_check_branch
        %244 = sbr.rel (%p242) target = $region28
      $region27: #{resnet_forward.8} parent=11 // pred_region
        _
      $region28: #{resnet_forward.8} parent=11 // pred_fallthru
        _
      // Predicated region
      $region29: #{resnet_forward.8} parent=11 // pred_check
        %p245 = pneg %p171
      $region30: #{resnet_forward.8} parent=11 // pred_check_branch
        %247 = sbr.rel (%p245) target = $region32
      $region31: #{resnet_forward.8} parent=11 // pred_region
        _
      $region32: #{resnet_forward.8} parent=11 // pred_fallthru
        _
      // Predicated region
      $region33: #{resnet_forward.8} parent=11 // pred_check
        %p248 = pneg %p192
      $region34: #{resnet_forward.8} parent=11 // pred_check_branch
        %250 = sbr.rel (%p248) target = $region36
      $region35: #{resnet_forward.8} parent=11 // pred_region
        _
      $region36: #{resnet_forward.8} parent=11 // pred_fallthru
        _
    $region12: #{resnet_forward.8} parent=5 // pred_fallthru
      _
    %p251 = scmp.lt.s32.totalorder %s14, 2
    // Predicated region
    $region37: #{resnet_forward.8} parent=5 // pred_check
      %p252 = pneg %p251
    $region38: #{resnet_forward.8} parent=5 // pred_check_branch
      %254 = sbr.rel (%p252) target = $region40
    $region39: #{resnet_forward.8} parent=5 // pred_region
      // Predicated region
      $region41: #{resnet_forward.8} parent=39 // pred_check
        %p255 = pneg %p34
      $region42: #{resnet_forward.8} parent=39 // pred_check_branch
        %257 = sbr.rel (%p255) target = $region44
      $region43: #{resnet_forward.8} parent=39 // pred_region
        %p258 = scmp.lt.s32.totalorder %s14, 1
        %s259 = scalar_select %p258, %s14, 1
        %s260 = smul.addr %s259, 6
        %s261 = smul.addr %s260, 4
        %s262 = scalar_lea.vmem %s0, %s261
      $region44: #{resnet_forward.8} parent=39 // pred_fallthru
        _
      // Predicated region
      $region45: #{resnet_forward.8} parent=39 // pred_check
        %p263 = pneg %p144
      $region46: #{resnet_forward.8} parent=39 // pred_check_branch
        %265 = sbr.rel (%p263) target = $region48
      $region47: #{resnet_forward.8} parent=39 // pred_region
        %p266 = scmp.lt.s32.totalorder %s14, 1
        %s267 = scalar_select %p266, %s14, 1
        %s268 = smul.addr %s267, 2
        %s269 = smul.addr %s268, 4
        %s270 = scalar_lea.vmem %s5, %s269
      $region48: #{resnet_forward.8} parent=39 // pred_fallthru
        _
    $region40: #{resnet_forward.8} parent=5 // pred_fallthru
      _
    %p271 = scmp.le.s32.totalorder 1, %s14
    %p272 = scmp.lt.s32.totalorder %s14, 3
    %p273 = pnand %p271, %p272
    %p274 = pneg %p273
    // Predicated region
    $region49: #{resnet_forward.8} parent=5 // pred_check
      _
    $region50: #{resnet_forward.8} parent=5 // pred_check_branch
      %276 = sbr.rel (%p273) target = $region52
    $region51: #{resnet_forward.8} parent=5 // pred_region
      %s277 = ssub.s32 %s14, 1
      %p278 = scmp.lt.s32.totalorder %s19, 1
      %s279 = scalar_select %p278, %s19, 1
      %s280 = smul.addr %s279, 6
      %s281 = smul.addr %s280, 4
      %s282 = scalar_lea.vmem %s0, %s281
      %p283 = pneg %p40
      %p284 = pneg %p37
      %p285 = pneg %p61
      %p286 = pneg %p58
      %p287 = pneg %p82
      %p288 = pneg %p79
      %p289 = pneg %p103
      %p290 = pneg %p100
      %p291 = pneg %p124
      %p292 = pneg %p121
      %p293 = scmp.lt.s32.totalorder %s19, 1
      %s294 = scalar_select %p293, %s19, 1
      %s295 = smul.addr %s294, 2
      %s296 = smul.addr %s295, 4
      %s297 = scalar_lea.vmem %s5, %s296
      %p298 = pneg %p150
      %p299 = pneg %p147
      %p300 = pneg %p171
      %p301 = pneg %p168
      %p302 = pneg %p192
      %p303 = pneg %p189
      %p304 = pneg %p218
      %p305 = pneg %p215
      %p306 = scmp.lt.s32.totalorder %s19, 1
      %s307 = scalar_select %p306, %s19, 1
      %s308 = smul.addr %s307, 2
      %s309 = smul.addr %s308, 4
      %s310 = scalar_lea.vmem %s8, %s309
      %p311 = scmp.lt.s32.totalorder %s19, 1
      %s312 = scalar_select %p311, %s19, 1
      %s313 = smul.addr %s312, 6
      %s314 = smul.addr %s313, 4
      %s315 = scalar_lea.vmem %s0, %s314
      %p316 = scmp.lt.s32.totalorder %s19, 1
      %s317 = scalar_select %p316, %s19, 1
      %s318 = smul.addr %s317, 2
      %s319 = smul.addr %s318, 4
      %s320 = scalar_lea.vmem %s5, %s319
      %p321 = scmp.lt.s32.totalorder %s19, 1
      %s322 = scalar_select %p321, %s19, 1
      %s323 = smul.addr %s322, 2
      %s324 = smul.addr %s323, 4
      %s325 = scalar_lea.vmem %s8, %s324
      %v327 = vld [vmem:[%s315] sm:$0xff]
      %v328 = vld [vmem:[%s315 + $0x8] sm:$0xf]
      %v329 = vld [vmem:[%s315 + $0xc] sm:$0xff]
      %v330 = vld [vmem:[%s315 + $0x14] sm:$0xf]
      %v331 = vld [vmem:[%s1] sm:$0xf]
      %v332 = vld [vmem:[%s1 + $0x4] sm:$0xf]
      %v333 = vld [vmem:[%s1 + $0x8] sm:$0xf]
      %v334 = vld [vmem:[%s1 + $0xc] sm:$0xf]
      %v335 = vld [vmem:[%s1 + $0x10] sm:$0xf]
      %v336 = vld [vmem:[%s1 + $0x14] sm:$0xf]
      %v337 = vld [vmem:[%s1 + $0x18] sm:$0xf]
      %v338 = vld [vmem:[%s1 + $0x1c] sm:$0xf]
      %v339 = vld [vmem:[%s1 + $0x20] sm:$0xf]
      %v340 = vld [vmem:[%s1 + $0x24] sm:$0xf]
      %v341 = vld [vmem:[%s1 + $0x28] sm:$0xf]
      %v342 = vld [vmem:[%s1 + $0x2c] sm:$0xf]
      %v343 = vld [vmem:[%s1 + $0x30] sm:$0xf]
      %v344 = vld [vmem:[%s1 + $0x34] sm:$0xf]
      %v345 = vld [vmem:[%s1 + $0x38] sm:$0xf]
      %v346 = vld [vmem:[%s1 + $0x3c] sm:$0xf]
      %v347 = vld [vmem:[%s1 + $0x40] sm:$0xf]
      %v348 = vld [vmem:[%s1 + $0x44] sm:$0xf]
      %v349 = vld [vmem:[%s1 + $0x48] sm:$0xf]
      %v350 = vld [vmem:[%s1 + $0x4c] sm:$0xf]
      %v351 = vld [vmem:[%s1 + $0x50] sm:$0xf]
      %v352 = vld [vmem:[%s1 + $0x54] sm:$0xf]
      %v353 = vld [vmem:[%s1 + $0x58] sm:$0xf]
      %v354 = vld [vmem:[%s1 + $0x5c] sm:$0xf]
      %v355 = vld [vmem:[%s1 + $0x60] sm:$0xf]
      %v356 = vld [vmem:[%s1 + $0x64] sm:$0xf]
      %v357 = vld [vmem:[%s1 + $0x68] sm:$0xf]
      %v358 = vld [vmem:[%s1 + $0x6c] sm:$0xf]
      %v359 = vld [vmem:[%s1 + $0x70] sm:$0xf]
      %v360 = vld [vmem:[%s1 + $0x74] sm:$0xf]
      %v361 = vld [vmem:[%s1 + $0x78] sm:$0xf]
      %v362 = vld [vmem:[%s1 + $0x7c] sm:$0xf]
      %v363 = vld [vmem:[%s1 + $0x80] sm:$0xf]
      %v364 = vld [vmem:[%s1 + $0x84] sm:$0xf]
      %v365 = vld [vmem:[%s1 + $0x88] sm:$0xf]
      %v366 = vld [vmem:[%s1 + $0x8c] sm:$0xf]
      %v367 = vld [vmem:[%s1 + $0x90] sm:$0xf]
      %v368 = vld [vmem:[%s1 + $0x94] sm:$0xf]
      %v369 = vld [vmem:[%s1 + $0x98] sm:$0xf]
      %v370 = vld [vmem:[%s1 + $0x9c] sm:$0xf]
      %v371 = vld [vmem:[%s1 + $0xa0] sm:$0xf]
      %v372 = vld [vmem:[%s1 + $0xa4] sm:$0xf]
      %v373 = vld [vmem:[%s1 + $0xa8] sm:$0xf]
      %v374 = vld [vmem:[%s1 + $0xac] sm:$0xf]
      %v375 = vld [vmem:[%s1 + $0xb0] sm:$0xf]
      %v376 = vld [vmem:[%s1 + $0xb4] sm:$0xf]
      %v377 = vld [vmem:[%s1 + $0xb8] sm:$0xf]
      %v378 = vld [vmem:[%s1 + $0xbc] sm:$0xf]
      %v379 = vld [vmem:[%s2] sm:$0x1]
      %v381 = vlaneseq
      %v382 = vshrl.u32 %v381, 7
      %v383 = vsub.s32 0, %v382
      %v384 = vrot.slane %v379, %v383
      %v390 = vunpack.c.l.b16 %v327
      %v391 = vunpack.c.h.b16 %v327
      %v392 = vunpack.c.l.b16 %v328
      %v393 = vunpack.c.l.b16 %v329
      %v394 = vunpack.c.h.b16 %v329
      %v395 = vunpack.c.l.b16 %v330
      %v396 = vpack.c.b16 %v393, %v390
      %v397 = vpack.c.b16 %v394, %v391
      %v398 = vpack.c.b16 %v395, %v392
      %v450 = vunpack.c.l.b16 %v331
      %v451 = vunpack.c.l.b16 %v332
      %v452 = vunpack.c.l.b16 %v333
      %v453 = vunpack.c.l.b16 %v334
      %v454 = vunpack.c.l.b16 %v335
      %v455 = vunpack.c.l.b16 %v336
      %v456 = vunpack.c.l.b16 %v337
      %v457 = vunpack.c.l.b16 %v338
      %v458 = vunpack.c.l.b16 %v339
      %v459 = vunpack.c.l.b16 %v340
      %v460 = vunpack.c.l.b16 %v341
      %v461 = vunpack.c.l.b16 %v342
      %v462 = vunpack.c.l.b16 %v343
      %v463 = vunpack.c.l.b16 %v344
      %v464 = vunpack.c.l.b16 %v345
      %v465 = vunpack.c.l.b16 %v346
      %v466 = vunpack.c.l.b16 %v347
      %v467 = vunpack.c.l.b16 %v348
      %v468 = vunpack.c.l.b16 %v349
      %v469 = vunpack.c.l.b16 %v350
      %v470 = vunpack.c.l.b16 %v351
      %v471 = vunpack.c.l.b16 %v352
      %v472 = vunpack.c.l.b16 %v353
      %v473 = vunpack.c.l.b16 %v354
      %v474 = vunpack.c.l.b16 %v355
      %v475 = vunpack.c.l.b16 %v356
      %v476 = vunpack.c.l.b16 %v357
      %v477 = vunpack.c.l.b16 %v358
      %v478 = vunpack.c.l.b16 %v359
      %v479 = vunpack.c.l.b16 %v360
      %v480 = vunpack.c.l.b16 %v361
      %v481 = vunpack.c.l.b16 %v362
      %v482 = vunpack.c.l.b16 %v363
      %v483 = vunpack.c.l.b16 %v364
      %v484 = vunpack.c.l.b16 %v365
      %v485 = vunpack.c.l.b16 %v366
      %v486 = vunpack.c.l.b16 %v367
      %v487 = vunpack.c.l.b16 %v368
      %v488 = vunpack.c.l.b16 %v369
      %v489 = vunpack.c.l.b16 %v370
      %v490 = vunpack.c.l.b16 %v371
      %v491 = vunpack.c.l.b16 %v372
      %v492 = vunpack.c.l.b16 %v373
      %v493 = vunpack.c.l.b16 %v374
      %v494 = vunpack.c.l.b16 %v375
      %v495 = vunpack.c.l.b16 %v376
      %v496 = vunpack.c.l.b16 %v377
      %v497 = vunpack.c.l.b16 %v378
      %v498 = vpack.c.b16 %v451, %v450
      %v499 = vpack.c.b16 %v453, %v452
      %v500 = vpack.c.b16 %v455, %v454
      %v501 = vpack.c.b16 %v457, %v456
      %v502 = vpack.c.b16 %v459, %v458
      %v503 = vpack.c.b16 %v461, %v460
      %v504 = vpack.c.b16 %v463, %v462
      %v505 = vpack.c.b16 %v465, %v464
      %v506 = vpack.c.b16 %v467, %v466
      %v507 = vpack.c.b16 %v469, %v468
      %v508 = vpack.c.b16 %v471, %v470
      %v509 = vpack.c.b16 %v473, %v472
      %v510 = vpack.c.b16 %v475, %v474
      %v511 = vpack.c.b16 %v477, %v476
      %v512 = vpack.c.b16 %v479, %v478
      %v513 = vpack.c.b16 %v481, %v480
      %v514 = vpack.c.b16 %v483, %v482
      %v515 = vpack.c.b16 %v485, %v484
      %v516 = vpack.c.b16 %v487, %v486
      %v517 = vpack.c.b16 %v489, %v488
      %v518 = vpack.c.b16 %v491, %v490
      %v519 = vpack.c.b16 %v493, %v492
      %v520 = vpack.c.b16 %v495, %v494
      %v521 = vpack.c.b16 %v497, %v496
      %546 = vmatprep.subr.bf16.mxu0 0
      %547 = vmatpush1.bf16.msra.mxu0 %v505
      %548 = vmatprep.subr.bf16.mxu0 0
      %549 = vmatpush1.bf16.msra.mxu0 %v504
      %550 = vmatprep.subr.bf16.mxu0 0
      %551 = vmatpush1.bf16.msra.mxu0 %v503
      %552 = vmatprep.subr.bf16.mxu0 0
      %553 = vmatpush1.bf16.msra.mxu0 %v502
      %554 = vmatprep.subr.bf16.mxu0 0
      %555 = vmatpush1.bf16.msra.mxu0 %v501
      %556 = vmatprep.subr.bf16.mxu0 0
      %557 = vmatpush1.bf16.msra.mxu0 %v500
      %558 = vmatprep.subr.bf16.mxu0 0
      %559 = vmatpush1.bf16.msra.mxu0 %v499
      %560 = vmatprep.subr.bf16.mxu0 0
      %561 = vmatpush1.bf16.msra.mxu0 %v498
      %562 = vmatprep.subr.bf16.mxu0 0
      %563 = vmatpush2.bf16.msra.mxu0 %v513
      %564 = vmatprep.subr.bf16.mxu0 0
      %565 = vmatpush2.bf16.msra.mxu0 %v512
      %566 = vmatprep.subr.bf16.mxu0 0
      %567 = vmatpush2.bf16.msra.mxu0 %v511
      %568 = vmatprep.subr.bf16.mxu0 0
      %569 = vmatpush2.bf16.msra.mxu0 %v510
      %570 = vmatprep.subr.bf16.mxu0 0
      %571 = vmatpush2.bf16.msra.mxu0 %v509
      %572 = vmatprep.subr.bf16.mxu0 0
      %573 = vmatpush2.bf16.msra.mxu0 %v508
      %574 = vmatprep.subr.bf16.mxu0 0
      %575 = vmatpush2.bf16.msra.mxu0 %v507
      %576 = vmatprep.subr.bf16.mxu0 0
      %577 = vmatpush2.bf16.msra.mxu0 %v506
      %578 = vmatprep.mubr.bf16.mxu0 %v397
      %579 = vmatmul.mubr.bf16.gmra.mxu0 %v396
      %v580 = vpop.f32.mrf.mxu0
      %v581 = vadd.f32 %v384, %v580
      %v582 = vpop.f32.mrf.mxu0
      %v583 = vpop.f32.mrf.mxu0
      %v584 = vadd.f32 %v384, %v583
      %v585 = vpop.f32.mrf.mxu0
      %586 = vdwg.mxu0
      %587 = vmatprep.subr.bf16.mxu0 0
      %588 = vmatpush1.bf16.msra.mxu0 %v521
      %589 = vmatprep.subr.bf16.mxu0 0
      %590 = vmatpush1.bf16.msra.mxu0 %v520
      %591 = vmatprep.subr.bf16.mxu0 0
      %592 = vmatpush1.bf16.msra.mxu0 %v519
      %593 = vmatprep.subr.bf16.mxu0 0
      %594 = vmatpush1.bf16.msra.mxu0 %v518
      %595 = vmatprep.subr.bf16.mxu0 0
      %596 = vmatpush1.bf16.msra.mxu0 %v517
      %597 = vmatprep.subr.bf16.mxu0 0
      %598 = vmatpush1.bf16.msra.mxu0 %v516
      %599 = vmatprep.subr.bf16.mxu0 0
      %600 = vmatpush1.bf16.msra.mxu0 %v515
      %601 = vmatprep.subr.bf16.mxu0 0
      %602 = vmatpush1.bf16.msra.mxu0 %v514
      %603 = vmatprep.subr.bf16.mxu0 0
      %604 = vmatpush2.bf16.msra.mxu0 0
      %605 = vmatprep.subr.bf16.mxu0 0
      %606 = vmatpush2.bf16.msra.mxu0 0
      %607 = vmatprep.subr.bf16.mxu0 0
      %608 = vmatpush2.bf16.msra.mxu0 0
      %609 = vmatprep.subr.bf16.mxu0 0
      %610 = vmatpush2.bf16.msra.mxu0 0
      %611 = vmatprep.subr.bf16.mxu0 0
      %612 = vmatpush2.bf16.msra.mxu0 0
      %613 = vmatprep.subr.bf16.mxu0 0
      %614 = vmatpush2.bf16.msra.mxu0 0
      %615 = vmatprep.subr.bf16.mxu0 0
      %616 = vmatpush2.bf16.msra.mxu0 0
      %617 = vmatprep.subr.bf16.mxu0 0
      %618 = vmatpush2.bf16.msra.mxu0 0
      %619 = vmatprep.mubr.bf16.mxu0 0
      %620 = vmatmul.mubr.bf16.gmra.mxu0 %v398
      %v621 = vpop.f32.mrf.mxu0
      %v622 = vadd.f32 %v581, %v621
      %v623 = vpop.f32.mrf.mxu0
      %v624 = vpop.f32.mrf.mxu0
      %v625 = vadd.f32 %v584, %v624
      %v626 = vpop.f32.mrf.mxu0
      %627 = vdwg.mxu0
      %v628 = vmax.f32 %v622, 0.0
      %v629 = vmax.f32 %v625, 0.0
      %vm630 = vcmask 523264
      %631 = vst.msk [vmem:[#allocation2] sm:$0xff] %vm630, 0.0
      %632 = vst.msk [vmem:[#allocation2 + $0x8] sm:$0xff] %vm630, 0.0
      %633 = vst.msk [vmem:[#allocation2 + $0x10] sm:$0xff] %vm630, 0.0
      %634 = vst.msk [vmem:[#allocation2 + $0x18] sm:$0xff] %vm630, 0.0
      %635 = vst.msk [vmem:[#allocation2 + $0x8] sm:$0xff] %vm630, %v628
      %636 = vst.msk [vmem:[#allocation2 + $0x10] sm:$0xff] %vm630, %v629
      %v637 = vlaneseq
      %v638 = vshrl.u32 %v637, 7
      %v639 = vadd.s32 %v638, 8
      %vm640 = vcmp.lt.s32.totalorder %v638, 0
      %v641 = vsub.s32 0, %v638
      %v642 = vsel %vm640, %v641, %v638
      %v643 = vshrl.u32 %v642, 2
      %v644 = vand.u32 %v642, 3
      %v645 = vsub.s32 0, %v644
      %v646 = vsel %vm640, %v645, %v644
      %vm647 = vcmp.lt.s32.totalorder %v639, 0
      %v648 = vsub.s32 0, %v639
      %v649 = vsel %vm647, %v648, %v639
      %v650 = vshrl.u32 %v649, 2
      %v651 = vand.u32 %v649, 3
      %v652 = vsub.s32 0, %v651
      %v653 = vsel %vm647, %v652, %v651
      %vm654 = vcmp.ne.s32.totalorder %v646, 0
      %vm655 = vcmp.ne.s32.totalorder %v653, 0
      %vm656 = vcmp.lt.s32.totalorder %v646, 0
      %vm657 = vcmp.lt.s32.totalorder %v653, 0
      %vm658 = vmand %vm656, %vm654
      %vm659 = vmand %vm657, %vm655
      %v660 = vadd.s32 %v646, 4
      %v661 = vadd.s32 %v653, 4
      %v662 = vsel %vm658, %v660, %v646
      %v663 = vsel %vm659, %v661, %v653
      %vm664 = vcmp.ge.s32.totalorder %v662, 1
      %vm665 = vcmp.ge.s32.totalorder %v663, 1
      %vm666 = vcmp.lt.s32.totalorder %v662, 3
      %vm667 = vcmp.lt.s32.totalorder %v663, 3
      %v668 = vld [vmem:[#allocation2 + $0x3] sm:$0xff]
      %v669 = vld [vmem:[#allocation2 + $0xb] sm:$0xff]
      %v670 = vsel %vm664, 1, 0
      %v671 = vsel %vm665, 1, 0
      %vm672 = vcmp.eq.s32.totalorder %v670, 1
      %vm673 = vcmp.eq.s32.totalorder %v671, 1
      %v674 = vsel %vm672, %v668, 0.0
      %v675 = vsel %vm673, %v669, 0.0
      %v676 = vpack.c.bf16 %v675, %v674
      %v677 = vld [vmem:[%s3] sm:$0xf]
      %v678 = vld [vmem:[%s3 + $0x4] sm:$0xf]
      %v679 = vld [vmem:[%s3 + $0x8] sm:$0xf]
      %v680 = vld [vmem:[%s3 + $0xc] sm:$0xf]
      %v681 = vld [vmem:[%s3 + $0x10] sm:$0xf]
      %v682 = vld [vmem:[%s3 + $0x14] sm:$0xf]
      %v683 = vld [vmem:[%s3 + $0x18] sm:$0xf]
      %v684 = vld [vmem:[%s3 + $0x1c] sm:$0xf]
      %v685 = vld [vmem:[#allocation2 + $0x4] sm:$0xff]
      %v686 = vld [vmem:[#allocation2 + $0xc] sm:$0xff]
      %v687 = vpack.c.bf16 %v686, %v685
      %v688 = vld [vmem:[%s3 + $0x20] sm:$0xf]
      %v689 = vld [vmem:[%s3 + $0x24] sm:$0xf]
      %v690 = vld [vmem:[%s3 + $0x28] sm:$0xf]
      %v691 = vld [vmem:[%s3 + $0x2c] sm:$0xf]
      %v692 = vld [vmem:[%s3 + $0x30] sm:$0xf]
      %v693 = vld [vmem:[%s3 + $0x34] sm:$0xf]
      %v694 = vld [vmem:[%s3 + $0x38] sm:$0xf]
      %v695 = vld [vmem:[%s3 + $0x3c] sm:$0xf]
      %v704 = vunpack.c.l.b16 %v688
      %v705 = vunpack.c.l.b16 %v689
      %v706 = vunpack.c.l.b16 %v690
      %v707 = vunpack.c.l.b16 %v691
      %v708 = vunpack.c.l.b16 %v692
      %v709 = vunpack.c.l.b16 %v693
      %v710 = vunpack.c.l.b16 %v694
      %v711 = vunpack.c.l.b16 %v695
      %v712 = vpack.c.b16 %v705, %v704
      %v713 = vpack.c.b16 %v707, %v706
      %v714 = vpack.c.b16 %v709, %v708
      %v715 = vpack.c.b16 %v711, %v710
      %v721 = vsel %vm630, %v687, 0
      %723 = vmatprep.subr.bf16.mxu0 0
      %724 = vmatpush1.bf16.msra.mxu0 0
      %725 = vmatprep.subr.bf16.mxu0 0
      %726 = vmatpush1.bf16.msra.mxu0 0
      %727 = vmatprep.subr.bf16.mxu0 0
      %728 = vmatpush1.bf16.msra.mxu0 0
      %729 = vmatprep.subr.bf16.mxu0 0
      %730 = vmatpush1.bf16.msra.mxu0 0
      %731 = vmatprep.subr.bf16.mxu0 0
      %732 = vmatpush1.bf16.msra.mxu0 %v715
      %733 = vmatprep.subr.bf16.mxu0 0
      %734 = vmatpush1.bf16.msra.mxu0 %v714
      %735 = vmatprep.subr.bf16.mxu0 0
      %736 = vmatpush1.bf16.msra.mxu0 %v713
      %737 = vmatprep.subr.bf16.mxu0 0
      %738 = vmatpush1.bf16.msra.mxu0 %v712
      %739 = vmatprep.subr.bf16.mxu0 0
      %740 = vmatpush2.bf16.msra.mxu0 0
      %741 = vmatprep.subr.bf16.mxu0 0
      %742 = vmatpush2.bf16.msra.mxu0 0
      %743 = vmatprep.subr.bf16.mxu0 0
      %744 = vmatpush2.bf16.msra.mxu0 0
      %745 = vmatprep.subr.bf16.mxu0 0
      %746 = vmatpush2.bf16.msra.mxu0 0
      %747 = vmatprep.subr.bf16.mxu0 0
      %748 = vmatpush2.bf16.msra.mxu0 0
      %749 = vmatprep.subr.bf16.mxu0 0
      %750 = vmatpush2.bf16.msra.mxu0 0
      %751 = vmatprep.subr.bf16.mxu0 0
      %752 = vmatpush2.bf16.msra.mxu0 0
      %753 = vmatprep.subr.bf16.mxu0 0
      %754 = vmatpush2.bf16.msra.mxu0 0
      %755 = vmatprep.mubr.bf16.mxu0 0
      %756 = vmatmul.mubr.bf16.gmra.mxu0 %v721
      %v757 = vpop.f32.mrf.mxu0
      %v758 = vadd.f32 0.0, %v757
      %v759 = vpop.f32.mrf.mxu0
      %v760 = vpop.f32.mrf.mxu0
      %v761 = vadd.f32 0.0, %v760
      %v762 = vpop.f32.mrf.mxu0
      %763 = vdwg.mxu0
      %v772 = vunpack.c.l.b16 %v677
      %v773 = vunpack.c.l.b16 %v678
      %v774 = vunpack.c.l.b16 %v679
      %v775 = vunpack.c.l.b16 %v680
      %v776 = vunpack.c.l.b16 %v681
      %v777 = vunpack.c.l.b16 %v682
      %v778 = vunpack.c.l.b16 %v683
      %v779 = vunpack.c.l.b16 %v684
      %v780 = vpack.c.b16 %v773, %v772
      %v781 = vpack.c.b16 %v775, %v774
      %v782 = vpack.c.b16 %v777, %v776
      %v783 = vpack.c.b16 %v779, %v778
      %v789 = vsel %vm630, %v676, 0
      %791 = vmatprep.subr.bf16.mxu0 0
      %792 = vmatpush1.bf16.msra.mxu0 0
      %793 = vmatprep.subr.bf16.mxu0 0
      %794 = vmatpush1.bf16.msra.mxu0 0
      %795 = vmatprep.subr.bf16.mxu0 0
      %796 = vmatpush1.bf16.msra.mxu0 0
      %797 = vmatprep.subr.bf16.mxu0 0
      %798 = vmatpush1.bf16.msra.mxu0 0
      %799 = vmatprep.subr.bf16.mxu0 0
      %800 = vmatpush1.bf16.msra.mxu0 %v783
      %801 = vmatprep.subr.bf16.mxu0 0
      %802 = vmatpush1.bf16.msra.mxu0 %v782
      %803 = vmatprep.subr.bf16.mxu0 0
      %804 = vmatpush1.bf16.msra.mxu0 %v781
      %805 = vmatprep.subr.bf16.mxu0 0
      %806 = vmatpush1.bf16.msra.mxu0 %v780
      %807 = vmatprep.subr.bf16.mxu0 0
      %808 = vmatpush2.bf16.msra.mxu0 0
      %809 = vmatprep.subr.bf16.mxu0 0
      %810 = vmatpush2.bf16.msra.mxu0 0
      %811 = vmatprep.subr.bf16.mxu0 0
      %812 = vmatpush2.bf16.msra.mxu0 0
      %813 = vmatprep.subr.bf16.mxu0 0
      %814 = vmatpush2.bf16.msra.mxu0 0
      %815 = vmatprep.subr.bf16.mxu0 0
      %816 = vmatpush2.bf16.msra.mxu0 0
      %817 = vmatprep.subr.bf16.mxu0 0
      %818 = vmatpush2.bf16.msra.mxu0 0
      %819 = vmatprep.subr.bf16.mxu0 0
      %820 = vmatpush2.bf16.msra.mxu0 0
      %821 = vmatprep.subr.bf16.mxu0 0
      %822 = vmatpush2.bf16.msra.mxu0 0
      %823 = vmatprep.mubr.bf16.mxu0 0
      %824 = vmatmul.mubr.bf16.gmra.mxu0 %v789
      %v825 = vpop.f32.mrf.mxu0
      %v826 = vadd.f32 %v758, %v825
      %v827 = vpop.f32.mrf.mxu0
      %v828 = vpop.f32.mrf.mxu0
      %v829 = vadd.f32 %v761, %v828
      %v830 = vpop.f32.mrf.mxu0
      %831 = vdwg.mxu0
      %v832 = vld [vmem:[#allocation2 + $0x5] sm:$0xff]
      %v833 = vld [vmem:[#allocation2 + $0xd] sm:$0xff]
      %v834 = vsel %vm666, 1, 0
      %v835 = vsel %vm667, 1, 0
      %vm836 = vcmp.eq.s32.totalorder %v834, 1
      %vm837 = vcmp.eq.s32.totalorder %v835, 1
      %v838 = vsel %vm836, %v832, 0.0
      %v839 = vsel %vm837, %v833, 0.0
      %v840 = vpack.c.bf16 %v839, %v838
      %v841 = vld [vmem:[%s3 + $0x40] sm:$0xf]
      %v842 = vld [vmem:[%s3 + $0x44] sm:$0xf]
      %v843 = vld [vmem:[%s3 + $0x48] sm:$0xf]
      %v844 = vld [vmem:[%s3 + $0x4c] sm:$0xf]
      %v845 = vld [vmem:[%s3 + $0x50] sm:$0xf]
      %v846 = vld [vmem:[%s3 + $0x54] sm:$0xf]
      %v847 = vld [vmem:[%s3 + $0x58] sm:$0xf]
      %v848 = vld [vmem:[%s3 + $0x5c] sm:$0xf]
      %v857 = vunpack.c.l.b16 %v841
      %v858 = vunpack.c.l.b16 %v842
      %v859 = vunpack.c.l.b16 %v843
      %v860 = vunpack.c.l.b16 %v844
      %v861 = vunpack.c.l.b16 %v845
      %v862 = vunpack.c.l.b16 %v846
      %v863 = vunpack.c.l.b16 %v847
      %v864 = vunpack.c.l.b16 %v848
      %v865 = vpack.c.b16 %v858, %v857
      %v866 = vpack.c.b16 %v860, %v859
      %v867 = vpack.c.b16 %v862, %v861
      %v868 = vpack.c.b16 %v864, %v863
      %v874 = vsel %vm630, %v840, 0
      %876 = vmatprep.subr.bf16.mxu0 0
      %877 = vmatpush1.bf16.msra.mxu0 0
      %878 = vmatprep.subr.bf16.mxu0 0
      %879 = vmatpush1.bf16.msra.mxu0 0
      %880 = vmatprep.subr.bf16.mxu0 0
      %881 = vmatpush1.bf16.msra.mxu0 0
      %882 = vmatprep.subr.bf16.mxu0 0
      %883 = vmatpush1.bf16.msra.mxu0 0
      %884 = vmatprep.subr.bf16.mxu0 0
      %885 = vmatpush1.bf16.msra.mxu0 %v868
      %886 = vmatprep.subr.bf16.mxu0 0
      %887 = vmatpush1.bf16.msra.mxu0 %v867
      %888 = vmatprep.subr.bf16.mxu0 0
      %889 = vmatpush1.bf16.msra.mxu0 %v866
      %890 = vmatprep.subr.bf16.mxu0 0
      %891 = vmatpush1.bf16.msra.mxu0 %v865
      %892 = vmatprep.subr.bf16.mxu0 0
      %893 = vmatpush2.bf16.msra.mxu0 0
      %894 = vmatprep.subr.bf16.mxu0 0
      %895 = vmatpush2.bf16.msra.mxu0 0
      %896 = vmatprep.subr.bf16.mxu0 0
      %897 = vmatpush2.bf16.msra.mxu0 0
      %898 = vmatprep.subr.bf16.mxu0 0
      %899 = vmatpush2.bf16.msra.mxu0 0
      %900 = vmatprep.subr.bf16.mxu0 0
      %901 = vmatpush2.bf16.msra.mxu0 0
      %902 = vmatprep.subr.bf16.mxu0 0
      %903 = vmatpush2.bf16.msra.mxu0 0
      %904 = vmatprep.subr.bf16.mxu0 0
      %905 = vmatpush2.bf16.msra.mxu0 0
      %906 = vmatprep.subr.bf16.mxu0 0
      %907 = vmatpush2.bf16.msra.mxu0 0
      %908 = vmatprep.mubr.bf16.mxu0 0
      %909 = vmatmul.mubr.bf16.gmra.mxu0 %v874
      %v910 = vpop.f32.mrf.mxu0
      %v911 = vadd.f32 0.0, %v910
      %v912 = vpop.f32.mrf.mxu0
      %v913 = vpop.f32.mrf.mxu0
      %v914 = vadd.f32 0.0, %v913
      %v915 = vpop.f32.mrf.mxu0
      %916 = vdwg.mxu0
      %v917 = vadd.f32 %v826, %v911
      %v918 = vadd.f32 %v829, %v914
      %v919 = vld [vmem:[#allocation2 + $0x7] sm:$0xff]
      %v920 = vld [vmem:[#allocation2 + $0xf] sm:$0xff]
      %v921 = vsel %vm672, %v919, 0.0
      %v922 = vsel %vm673, %v920, 0.0
      %v923 = vpack.c.bf16 %v922, %v921
      %v924 = vld [vmem:[%s3 + $0x60] sm:$0xf]
      %v925 = vld [vmem:[%s3 + $0x64] sm:$0xf]
      %v926 = vld [vmem:[%s3 + $0x68] sm:$0xf]
      %v927 = vld [vmem:[%s3 + $0x6c] sm:$0xf]
      %v928 = vld [vmem:[%s3 + $0x70] sm:$0xf]
      %v929 = vld [vmem:[%s3 + $0x74] sm:$0xf]
      %v930 = vld [vmem:[%s3 + $0x78] sm:$0xf]
      %v931 = vld [vmem:[%s3 + $0x7c] sm:$0xf]
      %v940 = vunpack.c.l.b16 %v924
      %v941 = vunpack.c.l.b16 %v925
      %v942 = vunpack.c.l.b16 %v926
      %v943 = vunpack.c.l.b16 %v927
      %v944 = vunpack.c.l.b16 %v928
      %v945 = vunpack.c.l.b16 %v929
      %v946 = vunpack.c.l.b16 %v930
      %v947 = vunpack.c.l.b16 %v931
      %v948 = vpack.c.b16 %v941, %v940
      %v949 = vpack.c.b16 %v943, %v942
      %v950 = vpack.c.b16 %v945, %v944
      %v951 = vpack.c.b16 %v947, %v946
      %v957 = vsel %vm630, %v923, 0
      %959 = vmatprep.subr.bf16.mxu0 0
      %960 = vmatpush1.bf16.msra.mxu0 0
      %961 = vmatprep.subr.bf16.mxu0 0
      %962 = vmatpush1.bf16.msra.mxu0 0
      %963 = vmatprep.subr.bf16.mxu0 0
      %964 = vmatpush1.bf16.msra.mxu0 0
      %965 = vmatprep.subr.bf16.mxu0 0
      %966 = vmatpush1.bf16.msra.mxu0 0
      %967 = vmatprep.subr.bf16.mxu0 0
      %968 = vmatpush1.bf16.msra.mxu0 %v951
      %969 = vmatprep.subr.bf16.mxu0 0
      %970 = vmatpush1.bf16.msra.mxu0 %v950
      %971 = vmatprep.subr.bf16.mxu0 0
      %972 = vmatpush1.bf16.msra.mxu0 %v949
      %973 = vmatprep.subr.bf16.mxu0 0
      %974 = vmatpush1.bf16.msra.mxu0 %v948
      %975 = vmatprep.subr.bf16.mxu0 0
      %976 = vmatpush2.bf16.msra.mxu0 0
      %977 = vmatprep.subr.bf16.mxu0 0
      %978 = vmatpush2.bf16.msra.mxu0 0
      %979 = vmatprep.subr.bf16.mxu0 0
      %980 = vmatpush2.bf16.msra.mxu0 0
      %981 = vmatprep.subr.bf16.mxu0 0
      %982 = vmatpush2.bf16.msra.mxu0 0
      %983 = vmatprep.subr.bf16.mxu0 0
      %984 = vmatpush2.bf16.msra.mxu0 0
      %985 = vmatprep.subr.bf16.mxu0 0
      %986 = vmatpush2.bf16.msra.mxu0 0
      %987 = vmatprep.subr.bf16.mxu0 0
      %988 = vmatpush2.bf16.msra.mxu0 0
      %989 = vmatprep.subr.bf16.mxu0 0
      %990 = vmatpush2.bf16.msra.mxu0 0
      %991 = vmatprep.mubr.bf16.mxu0 0
      %992 = vmatmul.mubr.bf16.gmra.mxu0 %v957
      %v993 = vpop.f32.mrf.mxu0
      %v994 = vadd.f32 0.0, %v993
      %v995 = vpop.f32.mrf.mxu0
      %v996 = vpop.f32.mrf.mxu0
      %v997 = vadd.f32 0.0, %v996
      %v998 = vpop.f32.mrf.mxu0
      %999 = vdwg.mxu0
      %v1000 = vadd.f32 %v917, %v994
      %v1001 = vadd.f32 %v918, %v997
      %v1002 = vld [vmem:[#allocation2 + $0x8] sm:$0xff]
      %v1003 = vld [vmem:[#allocation2 + $0x10] sm:$0xff]
      %v1004 = vpack.c.bf16 %v1003, %v1002
      %v1005 = vld [vmem:[%s3 + $0x80] sm:$0xf]
      %v1006 = vld [vmem:[%s3 + $0x84] sm:$0xf]
      %v1007 = vld [vmem:[%s3 + $0x88] sm:$0xf]
      %v1008 = vld [vmem:[%s3 + $0x8c] sm:$0xf]
      %v1009 = vld [vmem:[%s3 + $0x90] sm:$0xf]
      %v1010 = vld [vmem:[%s3 + $0x94] sm:$0xf]
      %v1011 = vld [vmem:[%s3 + $0x98] sm:$0xf]
      %v1012 = vld [vmem:[%s3 + $0x9c] sm:$0xf]
      %v1021 = vunpack.c.l.b16 %v1005
      %v1022 = vunpack.c.l.b16 %v1006
      %v1023 = vunpack.c.l.b16 %v1007
      %v1024 = vunpack.c.l.b16 %v1008
      %v1025 = vunpack.c.l.b16 %v1009
      %v1026 = vunpack.c.l.b16 %v1010
      %v1027 = vunpack.c.l.b16 %v1011
      %v1028 = vunpack.c.l.b16 %v1012
      %v1029 = vpack.c.b16 %v1022, %v1021
      %v1030 = vpack.c.b16 %v1024, %v1023
      %v1031 = vpack.c.b16 %v1026, %v1025
      %v1032 = vpack.c.b16 %v1028, %v1027
      %v1038 = vsel %vm630, %v1004, 0
      %1040 = vmatprep.subr.bf16.mxu0 0
      %1041 = vmatpush1.bf16.msra.mxu0 0
      %1042 = vmatprep.subr.bf16.mxu0 0
      %1043 = vmatpush1.bf16.msra.mxu0 0
      %1044 = vmatprep.subr.bf16.mxu0 0
      %1045 = vmatpush1.bf16.msra.mxu0 0
      %1046 = vmatprep.subr.bf16.mxu0 0
      %1047 = vmatpush1.bf16.msra.mxu0 0
      %1048 = vmatprep.subr.bf16.mxu0 0
      %1049 = vmatpush1.bf16.msra.mxu0 %v1032
      %1050 = vmatprep.subr.bf16.mxu0 0
      %1051 = vmatpush1.bf16.msra.mxu0 %v1031
      %1052 = vmatprep.subr.bf16.mxu0 0
      %1053 = vmatpush1.bf16.msra.mxu0 %v1030
      %1054 = vmatprep.subr.bf16.mxu0 0
      %1055 = vmatpush1.bf16.msra.mxu0 %v1029
      %1056 = vmatprep.subr.bf16.mxu0 0
      %1057 = vmatpush2.bf16.msra.mxu0 0
      %1058 = vmatprep.subr.bf16.mxu0 0
      %1059 = vmatpush2.bf16.msra.mxu0 0
      %1060 = vmatprep.subr.bf16.mxu0 0
      %1061 = vmatpush2.bf16.msra.mxu0 0
      %1062 = vmatprep.subr.bf16.mxu0 0
      %1063 = vmatpush2.bf16.msra.mxu0 0
      %1064 = vmatprep.subr.bf16.mxu0 0
      %1065 = vmatpush2.bf16.msra.mxu0 0
      %1066 = vmatprep.subr.bf16.mxu0 0
      %1067 = vmatpush2.bf16.msra.mxu0 0
      %1068 = vmatprep.subr.bf16.mxu0 0
      %1069 = vmatpush2.bf16.msra.mxu0 0
      %1070 = vmatprep.subr.bf16.mxu0 0
      %1071 = vmatpush2.bf16.msra.mxu0 0
      %1072 = vmatprep.mubr.bf16.mxu0 0
      %1073 = vmatmul.mubr.bf16.gmra.mxu0 %v1038
      %v1074 = vpop.f32.mrf.mxu0
      %v1075 = vadd.f32 0.0, %v1074
      %v1076 = vpop.f32.mrf.mxu0
      %v1077 = vpop.f32.mrf.mxu0
      %v1078 = vadd.f32 0.0, %v1077
      %v1079 = vpop.f32.mrf.mxu0
      %1080 = vdwg.mxu0
      %v1081 = vadd.f32 %v1000, %v1075
      %v1082 = vadd.f32 %v1001, %v1078
      %v1083 = vld [vmem:[#allocation2 + $0x9] sm:$0xff]
      %v1084 = vld [vmem:[#allocation2 + $0x11] sm:$0xff]
      %v1085 = vsel %vm836, %v1083, 0.0
      %v1086 = vsel %vm837, %v1084, 0.0
      %v1087 = vpack.c.bf16 %v1086, %v1085
      %v1088 = vld [vmem:[%s3 + $0xa0] sm:$0xf]
      %v1089 = vld [vmem:[%s3 + $0xa4] sm:$0xf]
      %v1090 = vld [vmem:[%s3 + $0xa8] sm:$0xf]
      %v1091 = vld [vmem:[%s3 + $0xac] sm:$0xf]
      %v1092 = vld [vmem:[%s3 + $0xb0] sm:$0xf]
      %v1093 = vld [vmem:[%s3 + $0xb4] sm:$0xf]
      %v1094 = vld [vmem:[%s3 + $0xb8] sm:$0xf]
      %v1095 = vld [vmem:[%s3 + $0xbc] sm:$0xf]
      %v1104 = vunpack.c.l.b16 %v1088
      %v1105 = vunpack.c.l.b16 %v1089
      %v1106 = vunpack.c.l.b16 %v1090
      %v1107 = vunpack.c.l.b16 %v1091
      %v1108 = vunpack.c.l.b16 %v1092
      %v1109 = vunpack.c.l.b16 %v1093
      %v1110 = vunpack.c.l.b16 %v1094
      %v1111 = vunpack.c.l.b16 %v1095
      %v1112 = vpack.c.b16 %v1105, %v1104
      %v1113 = vpack.c.b16 %v1107, %v1106
      %v1114 = vpack.c.b16 %v1109, %v1108
      %v1115 = vpack.c.b16 %v1111, %v1110
      %v1121 = vsel %vm630, %v1087, 0
      %1123 = vmatprep.subr.bf16.mxu0 0
      %1124 = vmatpush1.bf16.msra.mxu0 0
      %1125 = vmatprep.subr.bf16.mxu0 0
      %1126 = vmatpush1.bf16.msra.mxu0 0
      %1127 = vmatprep.subr.bf16.mxu0 0
      %1128 = vmatpush1.bf16.msra.mxu0 0
      %1129 = vmatprep.subr.bf16.mxu0 0
      %1130 = vmatpush1.bf16.msra.mxu0 0
      %1131 = vmatprep.subr.bf16.mxu0 0
      %1132 = vmatpush1.bf16.msra.mxu0 %v1115
      %1133 = vmatprep.subr.bf16.mxu0 0
      %1134 = vmatpush1.bf16.msra.mxu0 %v1114
      %1135 = vmatprep.subr.bf16.mxu0 0
      %1136 = vmatpush1.bf16.msra.mxu0 %v1113
      %1137 = vmatprep.subr.bf16.mxu0 0
      %1138 = vmatpush1.bf16.msra.mxu0 %v1112
      %1139 = vmatprep.subr.bf16.mxu0 0
      %1140 = vmatpush2.bf16.msra.mxu0 0
      %1141 = vmatprep.subr.bf16.mxu0 0
      %1142 = vmatpush2.bf16.msra.mxu0 0
      %1143 = vmatprep.subr.bf16.mxu0 0
      %1144 = vmatpush2.bf16.msra.mxu0 0
      %1145 = vmatprep.subr.bf16.mxu0 0
      %1146 = vmatpush2.bf16.msra.mxu0 0
      %1147 = vmatprep.subr.bf16.mxu0 0
      %1148 = vmatpush2.bf16.msra.mxu0 0
      %1149 = vmatprep.subr.bf16.mxu0 0
      %1150 = vmatpush2.bf16.msra.mxu0 0
      %1151 = vmatprep.subr.bf16.mxu0 0
      %1152 = vmatpush2.bf16.msra.mxu0 0
      %1153 = vmatprep.subr.bf16.mxu0 0
      %1154 = vmatpush2.bf16.msra.mxu0 0
      %1155 = vmatprep.mubr.bf16.mxu0 0
      %1156 = vmatmul.mubr.bf16.gmra.mxu0 %v1121
      %v1157 = vpop.f32.mrf.mxu0
      %v1158 = vadd.f32 0.0, %v1157
      %v1159 = vpop.f32.mrf.mxu0
      %v1160 = vpop.f32.mrf.mxu0
      %v1161 = vadd.f32 0.0, %v1160
      %v1162 = vpop.f32.mrf.mxu0
      %1163 = vdwg.mxu0
      %v1164 = vadd.f32 %v1081, %v1158
      %v1165 = vadd.f32 %v1082, %v1161
      %v1166 = vld [vmem:[#allocation2 + $0xb] sm:$0xff]
      %v1167 = vld [vmem:[#allocation2 + $0x13] sm:$0xff]
      %v1168 = vsel %vm672, %v1166, 0.0
      %v1169 = vsel %vm673, %v1167, 0.0
      %v1170 = vpack.c.bf16 %v1169, %v1168
      %v1171 = vld [vmem:[%s3 + $0xc0] sm:$0xf]
      %v1172 = vld [vmem:[%s3 + $0xc4] sm:$0xf]
      %v1173 = vld [vmem:[%s3 + $0xc8] sm:$0xf]
      %v1174 = vld [vmem:[%s3 + $0xcc] sm:$0xf]
      %v1175 = vld [vmem:[%s3 + $0xd0] sm:$0xf]
      %v1176 = vld [vmem:[%s3 + $0xd4] sm:$0xf]
      %v1177 = vld [vmem:[%s3 + $0xd8] sm:$0xf]
      %v1178 = vld [vmem:[%s3 + $0xdc] sm:$0xf]
      %v1187 = vunpack.c.l.b16 %v1171
      %v1188 = vunpack.c.l.b16 %v1172
      %v1189 = vunpack.c.l.b16 %v1173
      %v1190 = vunpack.c.l.b16 %v1174
      %v1191 = vunpack.c.l.b16 %v1175
      %v1192 = vunpack.c.l.b16 %v1176
      %v1193 = vunpack.c.l.b16 %v1177
      %v1194 = vunpack.c.l.b16 %v1178
      %v1195 = vpack.c.b16 %v1188, %v1187
      %v1196 = vpack.c.b16 %v1190, %v1189
      %v1197 = vpack.c.b16 %v1192, %v1191
      %v1198 = vpack.c.b16 %v1194, %v1193
      %v1204 = vsel %vm630, %v1170, 0
      %1206 = vmatprep.subr.bf16.mxu0 0
      %1207 = vmatpush1.bf16.msra.mxu0 0
      %1208 = vmatprep.subr.bf16.mxu0 0
      %1209 = vmatpush1.bf16.msra.mxu0 0
      %1210 = vmatprep.subr.bf16.mxu0 0
      %1211 = vmatpush1.bf16.msra.mxu0 0
      %1212 = vmatprep.subr.bf16.mxu0 0
      %1213 = vmatpush1.bf16.msra.mxu0 0
      %1214 = vmatprep.subr.bf16.mxu0 0
      %1215 = vmatpush1.bf16.msra.mxu0 %v1198
      %1216 = vmatprep.subr.bf16.mxu0 0
      %1217 = vmatpush1.bf16.msra.mxu0 %v1197
      %1218 = vmatprep.subr.bf16.mxu0 0
      %1219 = vmatpush1.bf16.msra.mxu0 %v1196
      %1220 = vmatprep.subr.bf16.mxu0 0
      %1221 = vmatpush1.bf16.msra.mxu0 %v1195
      %1222 = vmatprep.subr.bf16.mxu0 0
      %1223 = vmatpush2.bf16.msra.mxu0 0
      %1224 = vmatprep.subr.bf16.mxu0 0
      %1225 = vmatpush2.bf16.msra.mxu0 0
      %1226 = vmatprep.subr.bf16.mxu0 0
      %1227 = vmatpush2.bf16.msra.mxu0 0
      %1228 = vmatprep.subr.bf16.mxu0 0
      %1229 = vmatpush2.bf16.msra.mxu0 0
      %1230 = vmatprep.subr.bf16.mxu0 0
      %1231 = vmatpush2.bf16.msra.mxu0 0
      %1232 = vmatprep.subr.bf16.mxu0 0
      %1233 = vmatpush2.bf16.msra.mxu0 0
      %1234 = vmatprep.subr.bf16.mxu0 0
      %1235 = vmatpush2.bf16.msra.mxu0 0
      %1236 = vmatprep.subr.bf16.mxu0 0
      %1237 = vmatpush2.bf16.msra.mxu0 0
      %1238 = vmatprep.mubr.bf16.mxu0 0
      %1239 = vmatmul.mubr.bf16.gmra.mxu0 %v1204
      %v1240 = vpop.f32.mrf.mxu0
      %v1241 = vadd.f32 0.0, %v1240
      %v1242 = vpop.f32.mrf.mxu0
      %v1243 = vpop.f32.mrf.mxu0
      %v1244 = vadd.f32 0.0, %v1243
      %v1245 = vpop.f32.mrf.mxu0
      %1246 = vdwg.mxu0
      %v1247 = vadd.f32 %v1164, %v1241
      %v1248 = vadd.f32 %v1165, %v1244
      %v1249 = vld [vmem:[#allocation2 + $0xc] sm:$0xff]
      %v1250 = vld [vmem:[#allocation2 + $0x14] sm:$0xff]
      %v1251 = vpack.c.bf16 %v1250, %v1249
      %v1252 = vld [vmem:[%s3 + $0xe0] sm:$0xf]
      %v1253 = vld [vmem:[%s3 + $0xe4] sm:$0xf]
      %v1254 = vld [vmem:[%s3 + $0xe8] sm:$0xf]
      %v1255 = vld [vmem:[%s3 + $0xec] sm:$0xf]
      %v1256 = vld [vmem:[%s3 + $0xf0] sm:$0xf]
      %v1257 = vld [vmem:[%s3 + $0xf4] sm:$0xf]
      %v1258 = vld [vmem:[%s3 + $0xf8] sm:$0xf]
      %v1259 = vld [vmem:[%s3 + $0xfc] sm:$0xf]
      %v1268 = vunpack.c.l.b16 %v1252
      %v1269 = vunpack.c.l.b16 %v1253
      %v1270 = vunpack.c.l.b16 %v1254
      %v1271 = vunpack.c.l.b16 %v1255
      %v1272 = vunpack.c.l.b16 %v1256
      %v1273 = vunpack.c.l.b16 %v1257
      %v1274 = vunpack.c.l.b16 %v1258
      %v1275 = vunpack.c.l.b16 %v1259
      %v1276 = vpack.c.b16 %v1269, %v1268
      %v1277 = vpack.c.b16 %v1271, %v1270
      %v1278 = vpack.c.b16 %v1273, %v1272
      %v1279 = vpack.c.b16 %v1275, %v1274
      %v1285 = vsel %vm630, %v1251, 0
      %1287 = vmatprep.subr.bf16.mxu0 0
      %1288 = vmatpush1.bf16.msra.mxu0 0
      %1289 = vmatprep.subr.bf16.mxu0 0
      %1290 = vmatpush1.bf16.msra.mxu0 0
      %1291 = vmatprep.subr.bf16.mxu0 0
      %1292 = vmatpush1.bf16.msra.mxu0 0
      %1293 = vmatprep.subr.bf16.mxu0 0
      %1294 = vmatpush1.bf16.msra.mxu0 0
      %1295 = vmatprep.subr.bf16.mxu0 0
      %1296 = vmatpush1.bf16.msra.mxu0 %v1279
      %1297 = vmatprep.subr.bf16.mxu0 0
      %1298 = vmatpush1.bf16.msra.mxu0 %v1278
      %1299 = vmatprep.subr.bf16.mxu0 0
      %1300 = vmatpush1.bf16.msra.mxu0 %v1277
      %1301 = vmatprep.subr.bf16.mxu0 0
      %1302 = vmatpush1.bf16.msra.mxu0 %v1276
      %1303 = vmatprep.subr.bf16.mxu0 0
      %1304 = vmatpush2.bf16.msra.mxu0 0
      %1305 = vmatprep.subr.bf16.mxu0 0
      %1306 = vmatpush2.bf16.msra.mxu0 0
      %1307 = vmatprep.subr.bf16.mxu0 0
      %1308 = vmatpush2.bf16.msra.mxu0 0
      %1309 = vmatprep.subr.bf16.mxu0 0
      %1310 = vmatpush2.bf16.msra.mxu0 0
      %1311 = vmatprep.subr.bf16.mxu0 0
      %1312 = vmatpush2.bf16.msra.mxu0 0
      %1313 = vmatprep.subr.bf16.mxu0 0
      %1314 = vmatpush2.bf16.msra.mxu0 0
      %1315 = vmatprep.subr.bf16.mxu0 0
      %1316 = vmatpush2.bf16.msra.mxu0 0
      %1317 = vmatprep.subr.bf16.mxu0 0
      %1318 = vmatpush2.bf16.msra.mxu0 0
      %1319 = vmatprep.mubr.bf16.mxu0 0
      %1320 = vmatmul.mubr.bf16.gmra.mxu0 %v1285
      %v1321 = vpop.f32.mrf.mxu0
      %v1322 = vadd.f32 0.0, %v1321
      %v1323 = vpop.f32.mrf.mxu0
      %v1324 = vpop.f32.mrf.mxu0
      %v1325 = vadd.f32 0.0, %v1324
      %v1326 = vpop.f32.mrf.mxu0
      %1327 = vdwg.mxu0
      %v1328 = vadd.f32 %v1247, %v1322
      %v1329 = vadd.f32 %v1248, %v1325
      %v1330 = vld [vmem:[#allocation2 + $0xd] sm:$0xff]
      %v1331 = vld [vmem:[#allocation2 + $0x15] sm:$0xff]
      %v1332 = vsel %vm836, %v1330, 0.0
      %v1333 = vsel %vm837, %v1331, 0.0
      %v1334 = vpack.c.bf16 %v1333, %v1332
      %v1335 = vld [vmem:[%s3 + $0x100] sm:$0xf]
      %v1336 = vld [vmem:[%s3 + $0x104] sm:$0xf]
      %v1337 = vld [vmem:[%s3 + $0x108] sm:$0xf]
      %v1338 = vld [vmem:[%s3 + $0x10c] sm:$0xf]
      %v1339 = vld [vmem:[%s3 + $0x110] sm:$0xf]
      %v1340 = vld [vmem:[%s3 + $0x114] sm:$0xf]
      %v1341 = vld [vmem:[%s3 + $0x118] sm:$0xf]
      %v1342 = vld [vmem:[%s3 + $0x11c] sm:$0xf]
      %v1351 = vunpack.c.l.b16 %v1335
      %v1352 = vunpack.c.l.b16 %v1336
      %v1353 = vunpack.c.l.b16 %v1337
      %v1354 = vunpack.c.l.b16 %v1338
      %v1355 = vunpack.c.l.b16 %v1339
      %v1356 = vunpack.c.l.b16 %v1340
      %v1357 = vunpack.c.l.b16 %v1341
      %v1358 = vunpack.c.l.b16 %v1342
      %v1359 = vpack.c.b16 %v1352, %v1351
      %v1360 = vpack.c.b16 %v1354, %v1353
      %v1361 = vpack.c.b16 %v1356, %v1355
      %v1362 = vpack.c.b16 %v1358, %v1357
      %v1368 = vsel %vm630, %v1334, 0
      %1370 = vmatprep.subr.bf16.mxu0 0
      %1371 = vmatpush1.bf16.msra.mxu0 0
      %1372 = vmatprep.subr.bf16.mxu0 0
      %1373 = vmatpush1.bf16.msra.mxu0 0
      %1374 = vmatprep.subr.bf16.mxu0 0
      %1375 = vmatpush1.bf16.msra.mxu0 0
      %1376 = vmatprep.subr.bf16.mxu0 0
      %1377 = vmatpush1.bf16.msra.mxu0 0
      %1378 = vmatprep.subr.bf16.mxu0 0
      %1379 = vmatpush1.bf16.msra.mxu0 %v1362
      %1380 = vmatprep.subr.bf16.mxu0 0
      %1381 = vmatpush1.bf16.msra.mxu0 %v1361
      %1382 = vmatprep.subr.bf16.mxu0 0
      %1383 = vmatpush1.bf16.msra.mxu0 %v1360
      %1384 = vmatprep.subr.bf16.mxu0 0
      %1385 = vmatpush1.bf16.msra.mxu0 %v1359
      %1386 = vmatprep.subr.bf16.mxu0 0
      %1387 = vmatpush2.bf16.msra.mxu0 0
      %1388 = vmatprep.subr.bf16.mxu0 0
      %1389 = vmatpush2.bf16.msra.mxu0 0
      %1390 = vmatprep.subr.bf16.mxu0 0
      %1391 = vmatpush2.bf16.msra.mxu0 0
      %1392 = vmatprep.subr.bf16.mxu0 0
      %1393 = vmatpush2.bf16.msra.mxu0 0
      %1394 = vmatprep.subr.bf16.mxu0 0
      %1395 = vmatpush2.bf16.msra.mxu0 0
      %1396 = vmatprep.subr.bf16.mxu0 0
      %1397 = vmatpush2.bf16.msra.mxu0 0
      %1398 = vmatprep.subr.bf16.mxu0 0
      %1399 = vmatpush2.bf16.msra.mxu0 0
      %1400 = vmatprep.subr.bf16.mxu0 0
      %1401 = vmatpush2.bf16.msra.mxu0 0
      %1402 = vmatprep.mubr.bf16.mxu0 0
      %1403 = vmatmul.mubr.bf16.gmra.mxu0 %v1368
      %v1404 = vpop.f32.mrf.mxu0
      %v1405 = vadd.f32 0.0, %v1404
      %v1406 = vpop.f32.mrf.mxu0
      %v1407 = vpop.f32.mrf.mxu0
      %v1408 = vadd.f32 0.0, %v1407
      %v1409 = vpop.f32.mrf.mxu0
      %1410 = vdwg.mxu0
      %v1411 = vadd.f32 %v1328, %v1405
      %v1412 = vadd.f32 %v1329, %v1408
      %v1413 = vld [vmem:[%s4] sm:$0x1]
      %v1415 = vlaneseq
      %v1416 = vshrl.u32 %v1415, 7
      %v1417 = vsub.s32 0, %v1416
      %v1418 = vrot.slane %v1413, %v1417
      %v1420 = vadd.f32 %v1411, %v1418
      %v1421 = vadd.f32 %v1412, %v1418
      %v1422 = vld [vmem:[%s320] sm:$0xf]
      %v1423 = vld [vmem:[%s320 + $0x4] sm:$0xf]
      %v1424 = vld [vmem:[%s6] sm:$0xf]
      %v1425 = vld [vmem:[%s6 + $0x4] sm:$0xf]
      %v1426 = vld [vmem:[%s6 + $0x8] sm:$0xf]
      %v1427 = vld [vmem:[%s6 + $0xc] sm:$0xf]
      %v1430 = vunpack.c.l.b16 %v1422
      %v1431 = vunpack.c.l.b16 %v1423
      %v1432 = vpack.c.b16 %v1431, %v1430
      %v1437 = vunpack.c.l.b16 %v1424
      %v1438 = vunpack.c.l.b16 %v1425
      %v1439 = vunpack.c.l.b16 %v1426
      %v1440 = vunpack.c.l.b16 %v1427
      %v1441 = vpack.c.b16 %v1438, %v1437
      %v1442 = vpack.c.b16 %v1440, %v1439
      %vm1445 = vcmask 261120
      %v1447 = vsel %vm1445, %v1432, 0
      %1449 = vmatprep.subr.bf16.mxu0 0
      %1450 = vmatpush1.bf16.msra.mxu0 0
      %1451 = vmatprep.subr.bf16.mxu0 0
      %1452 = vmatpush1.bf16.msra.mxu0 0
      %1453 = vmatprep.subr.bf16.mxu0 0
      %1454 = vmatpush1.bf16.msra.mxu0 0
      %1455 = vmatprep.subr.bf16.mxu0 0
      %1456 = vmatpush1.bf16.msra.mxu0 0
      %1457 = vmatprep.subr.bf16.mxu0 0
      %1458 = vmatpush1.bf16.msra.mxu0 0
      %1459 = vmatprep.subr.bf16.mxu0 0
      %1460 = vmatpush1.bf16.msra.mxu0 0
      %1461 = vmatprep.subr.bf16.mxu0 0
      %1462 = vmatpush1.bf16.msra.mxu0 %v1442
      %1463 = vmatprep.subr.bf16.mxu0 0
      %1464 = vmatpush1.bf16.msra.mxu0 %v1441
      %1465 = vmatprep.subr.bf16.mxu0 0
      %1466 = vmatpush2.bf16.msra.mxu0 0
      %1467 = vmatprep.subr.bf16.mxu0 0
      %1468 = vmatpush2.bf16.msra.mxu0 0
      %1469 = vmatprep.subr.bf16.mxu0 0
      %1470 = vmatpush2.bf16.msra.mxu0 0
      %1471 = vmatprep.subr.bf16.mxu0 0
      %1472 = vmatpush2.bf16.msra.mxu0 0
      %1473 = vmatprep.subr.bf16.mxu0 0
      %1474 = vmatpush2.bf16.msra.mxu0 0
      %1475 = vmatprep.subr.bf16.mxu0 0
      %1476 = vmatpush2.bf16.msra.mxu0 0
      %1477 = vmatprep.subr.bf16.mxu0 0
      %1478 = vmatpush2.bf16.msra.mxu0 0
      %1479 = vmatprep.subr.bf16.mxu0 0
      %1480 = vmatpush2.bf16.msra.mxu0 0
      %1481 = vmatprep.mubr.bf16.mxu0 0
      %1482 = vmatmul.mubr.bf16.gmra.mxu0 %v1447
      %v1483 = vpop.f32.mrf.mxu0
      %v1484 = vadd.f32 0.0, %v1483
      %v1485 = vpop.f32.mrf.mxu0
      %v1486 = vpop.f32.mrf.mxu0
      %v1487 = vadd.f32 0.0, %v1486
      %v1488 = vpop.f32.mrf.mxu0
      %1489 = vdwg.mxu0
      %v1490 = vadd.f32 %v1420, %v1484
      %v1491 = vadd.f32 %v1421, %v1487
      %v1492 = vld [vmem:[%s7] sm:$0x1]
      %v1494 = vlaneseq
      %v1495 = vshrl.u32 %v1494, 7
      %v1496 = vsub.s32 0, %v1495
      %v1497 = vrot.slane %v1492, %v1496
      %v1499 = vadd.f32 %v1490, %v1497
      %v1500 = vadd.f32 %v1491, %v1497
      %v1501 = vmax.f32 %v1499, 0.0
      %v1502 = vmax.f32 %v1500, 0.0
      %v1503 = vpack.c.bf16 %v1502, %v1501
      %v1505 = vunpack.c.l.b16 %v1503
      %v1506 = vunpack.c.h.b16 %v1503
      %v1507 = vpack.c.b16 %v1505, %v1505
      %v1508 = vpack.c.b16 %v1506, %v1506
      %vm1511 = vcmask 519168
      %1512 = vst.msk [vmem:[%s325] sm:$0xf] %vm1511, %v1507
      %1513 = vst.msk [vmem:[%s325 + $0x4] sm:$0xf] %vm1511, %v1508
      %p1514 = scmp.lt.s32.totalorder %s19, 1
      %s1515 = scalar_select %p1514, %s19, 1
      %s1516 = smul.addr %s1515, 2
      %s1517 = smul.addr %s1516, 4
      %s1518 = scalar_lea.vmem %s8, %s1517
      // Predicated region
      $region53: #{resnet_forward.8} parent=51 // pred_check
        %p1519 = pneg %p215
      $region54: #{resnet_forward.8} parent=51 // pred_check_branch
        %1521 = sbr.rel (%p1519) target = $region56
      $region55: #{resnet_forward.8} parent=51 // pred_region
        _
      $region56: #{resnet_forward.8} parent=51 // pred_fallthru
        _
    $region52: #{resnet_forward.8} parent=5 // pred_fallthru
      _
    %p1522 = scmp.le.s32.totalorder 2, %s14
    // Predicated region
    $region57: #{resnet_forward.8} parent=5 // pred_check
      %p1523 = pneg %p1522
    $region58: #{resnet_forward.8} parent=5 // pred_check_branch
      %1525 = sbr.rel (%p1523) target = $region60
    $region59: #{resnet_forward.8} parent=5 // pred_region
      %s1526 = ssub.s32 %s14, 2
      // Predicated region
      $region61: #{resnet_forward.8} parent=59 // pred_check
        %p1527 = pneg %p221
      $region62: #{resnet_forward.8} parent=59 // pred_check_branch
        %1529 = sbr.rel (%p1527) target = $region64
      $region63: #{resnet_forward.8} parent=59 // pred_region
        %p1530 = scmp.lt.s32.totalorder %s20, 1
        %s1531 = scalar_select %p1530, %s20, 1
        %s1532 = smul.addr %s1531, 2
        %s1533 = smul.addr %s1532, 4
        %s1534 = scalar_lea.vmem %s8, %s1533
      $region64: #{resnet_forward.8} parent=59 // pred_fallthru
        _
    $region60: #{resnet_forward.8} parent=5 // pred_fallthru
      _
  $region6: #{resnet_forward.8} parent=0 // loop_footer
    %s18 = sadd.s32 1, %s14
  $region7: #{resnet_forward.8} parent=0 // loop_footer_branch
    %13 = sbr.rel target = $region3
  $region8: #{resnet_forward.8} parent=0 // loop_exit
    _

</llo_original>
